<compile_context>
chip_gen: v7x
topology: tpu7x:2x2x1
jax: 0.10.0
libtpu: 0.0.40
codegen_flags: <defaults>
</compile_context>

<pallas_src>
import functools

import numpy as np
import jax
import jax.numpy as jnp
from jax.experimental import pallas as pl
from jax.experimental.pallas import tpu as pltpu


def _full_block(shape):
    """Whole-array BlockSpec (no grid -> index_map takes no args)."""
    n = len(shape)
    return pl.BlockSpec(shape, lambda *_: (0,) * n)


# ----------------------------------------------------------------------------
# Fused whole-network kernel: conv+relu+pool stack, flatten, FC head.
# refs layout: [x, (conv_w, conv_b)*n_conv, (fc_w, fc_b)*n_fc, out,
#               patch_scratch*n_conv, flat_scratch]
# ----------------------------------------------------------------------------
def _fused_convnet_kernel(*refs, n_conv, n_fc, conv_meta, pool):
    x_ref = refs[0]
    conv_refs = refs[1:1 + 2 * n_conv]
    fc_refs = refs[1 + 2 * n_conv:1 + 2 * n_conv + 2 * n_fc]
    s0 = 1 + 2 * n_conv + 2 * n_fc
    o_ref = refs[s0]
    patch_refs = refs[s0 + 1:s0 + 1 + n_conv]
    flat_ref = refs[s0 + 1 + n_conv]

    x = x_ref[...]                                   # (N, H, W, Cin) f32
    N = x.shape[0]

    # ---- conv -> relu -> maxpool stack --------------------------------------
    for li in range(n_conv):
        KH, KW, Cin, Cout, Ho, Wo, Po, Pw = conv_meta[li]
        w_ref = conv_refs[2 * li]                    # (KH*KW*Cin, Cout)
        b_ref = conv_refs[2 * li + 1]                # (1, Cout)
        patch_ref = patch_refs[li]                   # VMEM (N, Ho, Wo, KH*KW*Cin)

        # im2col: each shifted window goes to its lane-slab of the patch matrix
        for kh in range(KH):
            for kw in range(KW):
                c0 = (kh * KW + kw) * Cin
                patch_ref[:, :, :, c0:c0 + Cin] = x[:, kh:kh + Ho, kw:kw + Wo, :]

        # single MXU matmul over the whole batch (M = N*Ho*Wo, K = KH*KW*Cin)
        patches = patch_ref[...].reshape(N * Ho * Wo, KH * KW * Cin)
        y = jnp.dot(patches, w_ref[...], preferred_element_type=jnp.float32)
        y = jnp.maximum(y + b_ref[...], 0.0)         # bias + ReLU
        y = y.reshape(N, Ho, Wo, Cout)

        # MaxPool2d(pool, stride=pool), floor semantics.  Reshapes below only
        # split leading dims (layout-free) or the sublane dim (same class the
        # previous kernel lowered fine).
        # TODO(synk): pool_stride != pool_size would need strided window reads.
        yc = y[:, :Po * pool, :Pw * pool, :]                     # (N, Po*p, Pw*p, C)
        t = yc.reshape(N * Po, pool, Pw * pool, Cout)            # leading split
        t = jnp.max(t, axis=1)                                   # pool over H
        t = t.reshape(N * Po, Pw, pool, Cout)                    # sublane split
        t = jnp.max(t, axis=2)                                   # pool over W
        x = t.reshape(N, Po, Pw, Cout)                           # (N, Po, Pw, C)

    # ---- flatten (torch (C,H,W) order folded into the first FC weight) ------
    _, Po, Pw, C = x.shape
    for p in range(Po):
        for q in range(Pw):
            off = (p * Pw + q) * C
            flat_ref[:, :, :, off:off + C] = x[:, p:p + 1, q:q + 1, :]
    h = flat_ref[:, 0, 0, :]                          # (N, Po*Pw*C)

    # ---- FC head (all layers resident in VMEM) -------------------------------
    for i in range(n_fc):
        w_ref, b_ref = fc_refs[2 * i], fc_refs[2 * i + 1]
        h = jnp.dot(h, w_ref[...], preferred_element_type=jnp.float32) + b_ref[...]
        if i < n_fc - 1:
            h = jnp.maximum(h, 0.0)

    o_ref[...] = h.astype(o_ref.dtype)


# ----------------------------------------------------------------------------
# ConvNet wrapper (parameter container + forward)
# ----------------------------------------------------------------------------
class ConvNetPallas:
    def __init__(self, channels_list, conv_size, pool_size, pool_stride,
                 fc_dim_list, key):
        self.pool = pool_size
        self.stride = pool_stride
        self.conv_ws, self.conv_bs, self.fc_ws, self.fc_bs = [], [], [], []
        for i in range(len(channels_list) - 1):
            key, k1, k2 = jax.random.split(key, 3)
            cin, cout = channels_list[i], channels_list[i + 1]
            fan_in = cin * conv_size * conv_size
            # conv weight stored HWIO (KH, KW, Cin, Cout)
            self.conv_ws.append(
                jax.random.normal(k1, (conv_size, conv_size, cin, cout),
                                  jnp.float32) / np.sqrt(fan_in))
            self.conv_bs.append(
                0.01 * jax.random.normal(k2, (cout,), jnp.float32))
        for i in range(len(fc_dim_list) - 1):
            key, k1, k2 = jax.random.split(key, 3)
            din, dout = fc_dim_list[i], fc_dim_list[i + 1]
            # fc weight stored (in, out), rows in torch (C, H, W)-flatten order
            self.fc_ws.append(
                jax.random.normal(k1, (din, dout), jnp.float32) / np.sqrt(din))
            self.fc_bs.append(
                0.01 * jax.random.normal(k2, (dout,), jnp.float32))

    def __call__(self, x_nchw):
        assert self.stride == self.pool, "kernel assumes pool_stride == pool_size"
        N, _, H, W = x_nchw.shape
        x = jnp.transpose(x_nchw, (0, 2, 3, 1))      # NCHW -> NHWC (glue)

        # static per-layer geometry
        conv_meta = []
        h, w = H, W
        for wg in self.conv_ws:
            KH, KW, cin, cout = wg.shape
            Ho, Wo = h - KH + 1, w - KW + 1
            Po = (Ho - self.pool) // self.stride + 1
            Pw = (Wo - self.pool) // self.stride + 1
            conv_meta.append((KH, KW, cin, cout, Ho, Wo, Po, Pw))
            h, w = Po, Pw
        c_last = self.conv_ws[-1].shape[-1]
        assert self.fc_ws[0].shape[0] == c_last * h * w

        # Kernel operands: im2col conv weight matrices, 2-D biases, and the
        # first FC weight with the NCHW-flatten permutation folded into its
        # rows (so the kernel flattens in NHWC order with no transpose).
        args = [x]
        for wg, b in zip(self.conv_ws, self.conv_bs):
            args.append(wg.reshape(-1, wg.shape[-1]))            # (KH*KW*Cin, Cout)
            args.append(b.reshape(1, -1))
        dh = self.fc_ws[0].shape[1]
        fw0 = self.fc_ws[0].reshape(c_last, h, w, dh).transpose(1, 2, 0, 3)
        args.append(fw0.reshape(h * w * c_last, dh))             # (Po*Pw*C, Dh)
        args.append(self.fc_bs[0].reshape(1, -1))
        for wg, b in zip(self.fc_ws[1:], self.fc_bs[1:]):
            args.append(wg)
            args.append(b.reshape(1, -1))

        n_conv, n_fc = len(self.conv_ws), len(self.fc_ws)
        d_out = self.fc_ws[-1].shape[1]
        scratch = [pltpu.VMEM((N, m[4], m[5], m[0] * m[1] * m[2]), jnp.float32)
                   for m in conv_meta]
        scratch.append(pltpu.VMEM((N, 1, 1, h * w * c_last), jnp.float32))

        kernel = functools.partial(
            _fused_convnet_kernel, n_conv=n_conv, n_fc=n_fc,
            conv_meta=tuple(conv_meta), pool=self.pool)

        return pl.pallas_call(
            kernel,
            out_shape=jax.ShapeDtypeStruct((N, d_out), x.dtype),
            in_specs=[_full_block(a.shape) for a in args],
            out_specs=_full_block((N, d_out)),
            scratch_shapes=scratch,
        )(*args)


# ----------------------------------------------------------------------------
# Pure-JAX reference for correctness check (exact f32 precision)
# ----------------------------------------------------------------------------
def reference_forward(net, x_nchw):
    hp = jax.lax.Precision.HIGHEST
    x = jnp.transpose(x_nchw, (0, 2, 3, 1))
    for w, b in zip(net.conv_ws, net.conv_bs):
        y = jax.lax.conv_general_dilated(
            x, w, window_strides=(1, 1), padding="VALID",
            dimension_numbers=("NHWC", "HWIO", "NHWC"), precision=hp)
        y = jnp.maximum(y + b.reshape(1, 1, 1, -1), 0.0)
        x = jax.lax.reduce_window(
            y, -jnp.inf, jax.lax.max,
            (1, net.pool, net.pool, 1), (1, net.stride, net.stride, 1), "VALID")
    x = jnp.transpose(x, (0, 3, 1, 2)).reshape(x.shape[0], -1)
    n_fc = len(net.fc_ws)
    for i, (w, b) in enumerate(zip(net.fc_ws, net.fc_bs)):
        x = jnp.dot(x, w, precision=hp) + b
        if i < n_fc - 1:
            x = jnp.maximum(x, 0.0)
    return x


if __name__ == "__main__":
    key = jax.random.PRNGKey(0)
    kp, kx = jax.random.split(key)

    # small ConvNet config: 16x16 -> conv3 -> 14 -> pool2 -> 7 -> conv3 -> 5
    #                       -> pool2 -> 2 ; flatten = 16*2*2 = 64
    channels_list = [4, 8, 16]
    conv_size = 3
    pool_size = 2
    pool_stride = 2
    fc_dim_list = [64, 32, 10]

    net = ConvNetPallas(channels_list, conv_size, pool_size, pool_stride,
                        fc_dim_list, kp)
    x = jax.random.normal(kx, (2, 4, 16, 16), jnp.float32)   # NCHW like torch

    out = jax.block_until_ready(net(x))
    ref = jax.block_until_ready(reference_forward(net, x))

    assert out.shape == (2, 10), out.shape
    np.testing.assert_allclose(np.asarray(out), np.asarray(ref),
                               rtol=1e-5, atol=1e-5)
    print("KERNEL_OK")
</pallas_src>

<mosaic_0001>
module attributes {stable_mosaic.version = 11 : i64} {
  func.func @_fused_convnet_kernel(%arg0: memref<2x16x16x4xf32, #tpu.memory_space<vmem>>, %arg1: memref<36x8xf32, #tpu.memory_space<vmem>>, %arg2: memref<1x8xf32, #tpu.memory_space<vmem>>, %arg3: memref<72x16xf32, #tpu.memory_space<vmem>>, %arg4: memref<1x16xf32, #tpu.memory_space<vmem>>, %arg5: memref<64x32xf32, #tpu.memory_space<vmem>>, %arg6: memref<1x32xf32, #tpu.memory_space<vmem>>, %arg7: memref<32x10xf32, #tpu.memory_space<vmem>>, %arg8: memref<1x10xf32, #tpu.memory_space<vmem>>, %arg9: memref<2x10xf32, #tpu.memory_space<vmem>>, %arg10: memref<2x14x14x36xf32, #tpu.memory_space<vmem>>, %arg11: memref<2x5x5x72xf32, #tpu.memory_space<vmem>>, %arg12: memref<2x1x1x64xf32, #tpu.memory_space<vmem>>) attributes {dimension_semantics = [], scalar_prefetch = 0 : i64, scratch_operands = 3 : i64, tpu.core_type = #tpu.core_type<tc>} {
    %c0 = arith.constant 0 : index
    %c0_0 = arith.constant 0 : index
    %c0_1 = arith.constant 0 : index
    %c0_2 = arith.constant 0 : index
    %0 = vector.load %arg0[%c0, %c0_0, %c0_1, %c0_2] : memref<2x16x16x4xf32, #tpu.memory_space<vmem>>, vector<2x16x16x4xf32>
    %1 = vector.extract_strided_slice %0 {offsets = [0, 0, 0, 0], sizes = [2, 14, 14, 4], strides = [1, 1, 1, 1]} : vector<2x16x16x4xf32> to vector<2x14x14x4xf32>
    %c0_3 = arith.constant 0 : index
    %c0_4 = arith.constant 0 : index
    %c0_5 = arith.constant 0 : index
    %c0_6 = arith.constant 0 : index
    %2 = vector.load %arg10[%c0_3, %c0_4, %c0_5, %c0_6] : memref<2x14x14x36xf32, #tpu.memory_space<vmem>>, vector<2x14x14x4xf32>
    tpu.vector_store %arg10[%c0_3, %c0_4, %c0_5, %c0_6], %1 {strides = array<i32>} : memref<2x14x14x36xf32, #tpu.memory_space<vmem>>, vector<2x14x14x4xf32>,
    %3 = vector.extract_strided_slice %0 {offsets = [0, 0, 1, 0], sizes = [2, 14, 14, 4], strides = [1, 1, 1, 1]} : vector<2x16x16x4xf32> to vector<2x14x14x4xf32>
    %c0_7 = arith.constant 0 : index
    %c0_8 = arith.constant 0 : index
    %c0_9 = arith.constant 0 : index
    %c4 = arith.constant 4 : index
    %4 = vector.load %arg10[%c0_7, %c0_8, %c0_9, %c4] : memref<2x14x14x36xf32, #tpu.memory_space<vmem>>, vector<2x14x14x4xf32>
    tpu.vector_store %arg10[%c0_7, %c0_8, %c0_9, %c4], %3 {strides = array<i32>} : memref<2x14x14x36xf32, #tpu.memory_space<vmem>>, vector<2x14x14x4xf32>,
    %5 = vector.extract_strided_slice %0 {offsets = [0, 0, 2, 0], sizes = [2, 14, 14, 4], strides = [1, 1, 1, 1]} : vector<2x16x16x4xf32> to vector<2x14x14x4xf32>
    %c0_10 = arith.constant 0 : index
    %c0_11 = arith.constant 0 : index
    %c0_12 = arith.constant 0 : index
    %c8 = arith.constant 8 : index
    %6 = vector.load %arg10[%c0_10, %c0_11, %c0_12, %c8] : memref<2x14x14x36xf32, #tpu.memory_space<vmem>>, vector<2x14x14x4xf32>
    tpu.vector_store %arg10[%c0_10, %c0_11, %c0_12, %c8], %5 {strides = array<i32>} : memref<2x14x14x36xf32, #tpu.memory_space<vmem>>, vector<2x14x14x4xf32>,
    %7 = vector.extract_strided_slice %0 {offsets = [0, 1, 0, 0], sizes = [2, 14, 14, 4], strides = [1, 1, 1, 1]} : vector<2x16x16x4xf32> to vector<2x14x14x4xf32>
    %c0_13 = arith.constant 0 : index
    %c0_14 = arith.constant 0 : index
    %c0_15 = arith.constant 0 : index
    %c12 = arith.constant 12 : index
    %8 = vector.load %arg10[%c0_13, %c0_14, %c0_15, %c12] : memref<2x14x14x36xf32, #tpu.memory_space<vmem>>, vector<2x14x14x4xf32>
    tpu.vector_store %arg10[%c0_13, %c0_14, %c0_15, %c12], %7 {strides = array<i32>} : memref<2x14x14x36xf32, #tpu.memory_space<vmem>>, vector<2x14x14x4xf32>,
    %9 = vector.extract_strided_slice %0 {offsets = [0, 1, 1, 0], sizes = [2, 14, 14, 4], strides = [1, 1, 1, 1]} : vector<2x16x16x4xf32> to vector<2x14x14x4xf32>
    %c0_16 = arith.constant 0 : index
    %c0_17 = arith.constant 0 : index
    %c0_18 = arith.constant 0 : index
    %c16 = arith.constant 16 : index
    %10 = vector.load %arg10[%c0_16, %c0_17, %c0_18, %c16] : memref<2x14x14x36xf32, #tpu.memory_space<vmem>>, vector<2x14x14x4xf32>
    tpu.vector_store %arg10[%c0_16, %c0_17, %c0_18, %c16], %9 {strides = array<i32>} : memref<2x14x14x36xf32, #tpu.memory_space<vmem>>, vector<2x14x14x4xf32>,
    %11 = vector.extract_strided_slice %0 {offsets = [0, 1, 2, 0], sizes = [2, 14, 14, 4], strides = [1, 1, 1, 1]} : vector<2x16x16x4xf32> to vector<2x14x14x4xf32>
    %c0_19 = arith.constant 0 : index
    %c0_20 = arith.constant 0 : index
    %c0_21 = arith.constant 0 : index
    %c20 = arith.constant 20 : index
    %12 = vector.load %arg10[%c0_19, %c0_20, %c0_21, %c20] : memref<2x14x14x36xf32, #tpu.memory_space<vmem>>, vector<2x14x14x4xf32>
    tpu.vector_store %arg10[%c0_19, %c0_20, %c0_21, %c20], %11 {strides = array<i32>} : memref<2x14x14x36xf32, #tpu.memory_space<vmem>>, vector<2x14x14x4xf32>,
    %13 = vector.extract_strided_slice %0 {offsets = [0, 2, 0, 0], sizes = [2, 14, 14, 4], strides = [1, 1, 1, 1]} : vector<2x16x16x4xf32> to vector<2x14x14x4xf32>
    %c0_22 = arith.constant 0 : index
    %c0_23 = arith.constant 0 : index
    %c0_24 = arith.constant 0 : index
    %c24 = arith.constant 24 : index
    %14 = vector.load %arg10[%c0_22, %c0_23, %c0_24, %c24] : memref<2x14x14x36xf32, #tpu.memory_space<vmem>>, vector<2x14x14x4xf32>
    tpu.vector_store %arg10[%c0_22, %c0_23, %c0_24, %c24], %13 {strides = array<i32>} : memref<2x14x14x36xf32, #tpu.memory_space<vmem>>, vector<2x14x14x4xf32>,
    %15 = vector.extract_strided_slice %0 {offsets = [0, 2, 1, 0], sizes = [2, 14, 14, 4], strides = [1, 1, 1, 1]} : vector<2x16x16x4xf32> to vector<2x14x14x4xf32>
    %c0_25 = arith.constant 0 : index
    %c0_26 = arith.constant 0 : index
    %c0_27 = arith.constant 0 : index
    %c28 = arith.constant 28 : index
    %16 = vector.load %arg10[%c0_25, %c0_26, %c0_27, %c28] : memref<2x14x14x36xf32, #tpu.memory_space<vmem>>, vector<2x14x14x4xf32>
    tpu.vector_store %arg10[%c0_25, %c0_26, %c0_27, %c28], %15 {strides = array<i32>} : memref<2x14x14x36xf32, #tpu.memory_space<vmem>>, vector<2x14x14x4xf32>,
    %17 = vector.extract_strided_slice %0 {offsets = [0, 2, 2, 0], sizes = [2, 14, 14, 4], strides = [1, 1, 1, 1]} : vector<2x16x16x4xf32> to vector<2x14x14x4xf32>
    %c0_28 = arith.constant 0 : index
    %c0_29 = arith.constant 0 : index
    %c0_30 = arith.constant 0 : index
    %c32 = arith.constant 32 : index
    %18 = vector.load %arg10[%c0_28, %c0_29, %c0_30, %c32] : memref<2x14x14x36xf32, #tpu.memory_space<vmem>>, vector<2x14x14x4xf32>
    tpu.vector_store %arg10[%c0_28, %c0_29, %c0_30, %c32], %17 {strides = array<i32>} : memref<2x14x14x36xf32, #tpu.memory_space<vmem>>, vector<2x14x14x4xf32>,
    %c0_31 = arith.constant 0 : index
    %c0_32 = arith.constant 0 : index
    %c0_33 = arith.constant 0 : index
    %c0_34 = arith.constant 0 : index
    %19 = vector.load %arg10[%c0_31, %c0_32, %c0_33, %c0_34] : memref<2x14x14x36xf32, #tpu.memory_space<vmem>>, vector<2x14x14x36xf32>
    %20 = vector.shape_cast %19 : vector<2x14x14x36xf32> to vector<392x36xf32>
    %c0_35 = arith.constant 0 : index
    %c0_36 = arith.constant 0 : index
    %21 = vector.load %arg1[%c0_35, %c0_36] : memref<36x8xf32, #tpu.memory_space<vmem>>, vector<36x8xf32>
    %cst = arith.constant dense<0.000000e+00> : vector<392x8xf32>
    %22 = tpu.matmul %20, %21, %cst {dimension_numbers = #tpu.dot_dimension_numbers<[1], [0], [0], [1], [0, 0, 1, 1], [], []>} : vector<392x36xf32>, vector<36x8xf32>, vector<392x8xf32> -> vector<392x8xf32>
    %c0_37 = arith.constant 0 : index
    %c0_38 = arith.constant 0 : index
    %23 = vector.load %arg2[%c0_37, %c0_38] : memref<1x8xf32, #tpu.memory_space<vmem>>, vector<1x8xf32>
    %24 = vector.broadcast %23 : vector<1x8xf32> to vector<392x8xf32>
    %25 = arith.addf %22, %24 : vector<392x8xf32>
    %cst_39 = arith.constant 0.000000e+00 : f32
    %26 = vector.broadcast %cst_39 : f32 to vector<392x8xf32>
    %27 = arith.maximumf %25, %26 : vector<392x8xf32>
    %28 = vector.shape_cast %27 : vector<392x8xf32> to vector<2x14x14x8xf32>
    %29 = vector.shape_cast %28 : vector<2x14x14x8xf32> to vector<14x2x14x8xf32>
    %cst_40 = arith.constant dense<0xFF800000> : vector<14x14x8xf32>
    %30 = vector.multi_reduction <maximumf>, %29, %cst_40 [1] : vector<14x2x14x8xf32> to vector<14x14x8xf32>
    %31 = vector.shape_cast %30 : vector<14x14x8xf32> to vector<14x7x2x8xf32>
    %cst_41 = arith.constant dense<0xFF800000> : vector<14x7x8xf32>
    %32 = vector.multi_reduction <maximumf>, %31, %cst_41 [2] : vector<14x7x2x8xf32> to vector<14x7x8xf32>
    %33 = vector.shape_cast %32 : vector<14x7x8xf32> to vector<2x7x7x8xf32>
    %34 = vector.extract_strided_slice %33 {offsets = [0, 0, 0, 0], sizes = [2, 5, 5, 8], strides = [1, 1, 1, 1]} : vector<2x7x7x8xf32> to vector<2x5x5x8xf32>
    %c0_42 = arith.constant 0 : index
    %c0_43 = arith.constant 0 : index
    %c0_44 = arith.constant 0 : index
    %c0_45 = arith.constant 0 : index
    %35 = vector.load %arg11[%c0_42, %c0_43, %c0_44, %c0_45] : memref<2x5x5x72xf32, #tpu.memory_space<vmem>>, vector<2x5x5x8xf32>
    tpu.vector_store %arg11[%c0_42, %c0_43, %c0_44, %c0_45], %34 {strides = array<i32>} : memref<2x5x5x72xf32, #tpu.memory_space<vmem>>, vector<2x5x5x8xf32>,
    %36 = vector.extract_strided_slice %33 {offsets = [0, 0, 1, 0], sizes = [2, 5, 5, 8], strides = [1, 1, 1, 1]} : vector<2x7x7x8xf32> to vector<2x5x5x8xf32>
    %c0_46 = arith.constant 0 : index
    %c0_47 = arith.constant 0 : index
    %c0_48 = arith.constant 0 : index
    %c8_49 = arith.constant 8 : index
    %37 = vector.load %arg11[%c0_46, %c0_47, %c0_48, %c8_49] : memref<2x5x5x72xf32, #tpu.memory_space<vmem>>, vector<2x5x5x8xf32>
    tpu.vector_store %arg11[%c0_46, %c0_47, %c0_48, %c8_49], %36 {strides = array<i32>} : memref<2x5x5x72xf32, #tpu.memory_space<vmem>>, vector<2x5x5x8xf32>,
    %38 = vector.extract_strided_slice %33 {offsets = [0, 0, 2, 0], sizes = [2, 5, 5, 8], strides = [1, 1, 1, 1]} : vector<2x7x7x8xf32> to vector<2x5x5x8xf32>
    %c0_50 = arith.constant 0 : index
    %c0_51 = arith.constant 0 : index
    %c0_52 = arith.constant 0 : index
    %c16_53 = arith.constant 16 : index
    %39 = vector.load %arg11[%c0_50, %c0_51, %c0_52, %c16_53] : memref<2x5x5x72xf32, #tpu.memory_space<vmem>>, vector<2x5x5x8xf32>
    tpu.vector_store %arg11[%c0_50, %c0_51, %c0_52, %c16_53], %38 {strides = array<i32>} : memref<2x5x5x72xf32, #tpu.memory_space<vmem>>, vector<2x5x5x8xf32>,
    %40 = vector.extract_strided_slice %33 {offsets = [0, 1, 0, 0], sizes = [2, 5, 5, 8], strides = [1, 1, 1, 1]} : vector<2x7x7x8xf32> to vector<2x5x5x8xf32>
    %c0_54 = arith.constant 0 : index
    %c0_55 = arith.constant 0 : index
    %c0_56 = arith.constant 0 : index
    %c24_57 = arith.constant 24 : index
    %41 = vector.load %arg11[%c0_54, %c0_55, %c0_56, %c24_57] : memref<2x5x5x72xf32, #tpu.memory_space<vmem>>, vector<2x5x5x8xf32>
    tpu.vector_store %arg11[%c0_54, %c0_55, %c0_56, %c24_57], %40 {strides = array<i32>} : memref<2x5x5x72xf32, #tpu.memory_space<vmem>>, vector<2x5x5x8xf32>,
    %42 = vector.extract_strided_slice %33 {offsets = [0, 1, 1, 0], sizes = [2, 5, 5, 8], strides = [1, 1, 1, 1]} : vector<2x7x7x8xf32> to vector<2x5x5x8xf32>
    %c0_58 = arith.constant 0 : index
    %c0_59 = arith.constant 0 : index
    %c0_60 = arith.constant 0 : index
    %c32_61 = arith.constant 32 : index
    %43 = vector.load %arg11[%c0_58, %c0_59, %c0_60, %c32_61] : memref<2x5x5x72xf32, #tpu.memory_space<vmem>>, vector<2x5x5x8xf32>
    tpu.vector_store %arg11[%c0_58, %c0_59, %c0_60, %c32_61], %42 {strides = array<i32>} : memref<2x5x5x72xf32, #tpu.memory_space<vmem>>, vector<2x5x5x8xf32>,
    %44 = vector.extract_strided_slice %33 {offsets = [0, 1, 2, 0], sizes = [2, 5, 5, 8], strides = [1, 1, 1, 1]} : vector<2x7x7x8xf32> to vector<2x5x5x8xf32>
    %c0_62 = arith.constant 0 : index
    %c0_63 = arith.constant 0 : index
    %c0_64 = arith.constant 0 : index
    %c40 = arith.constant 40 : index
    %45 = vector.load %arg11[%c0_62, %c0_63, %c0_64, %c40] : memref<2x5x5x72xf32, #tpu.memory_space<vmem>>, vector<2x5x5x8xf32>
    tpu.vector_store %arg11[%c0_62, %c0_63, %c0_64, %c40], %44 {strides = array<i32>} : memref<2x5x5x72xf32, #tpu.memory_space<vmem>>, vector<2x5x5x8xf32>,
    %46 = vector.extract_strided_slice %33 {offsets = [0, 2, 0, 0], sizes = [2, 5, 5, 8], strides = [1, 1, 1, 1]} : vector<2x7x7x8xf32> to vector<2x5x5x8xf32>
    %c0_65 = arith.constant 0 : index
    %c0_66 = arith.constant 0 : index
    %c0_67 = arith.constant 0 : index
    %c48 = arith.constant 48 : index
    %47 = vector.load %arg11[%c0_65, %c0_66, %c0_67, %c48] : memref<2x5x5x72xf32, #tpu.memory_space<vmem>>, vector<2x5x5x8xf32>
    tpu.vector_store %arg11[%c0_65, %c0_66, %c0_67, %c48], %46 {strides = array<i32>} : memref<2x5x5x72xf32, #tpu.memory_space<vmem>>, vector<2x5x5x8xf32>,
    %48 = vector.extract_strided_slice %33 {offsets = [0, 2, 1, 0], sizes = [2, 5, 5, 8], strides = [1, 1, 1, 1]} : vector<2x7x7x8xf32> to vector<2x5x5x8xf32>
    %c0_68 = arith.constant 0 : index
    %c0_69 = arith.constant 0 : index
    %c0_70 = arith.constant 0 : index
    %c56 = arith.constant 56 : index
    %49 = vector.load %arg11[%c0_68, %c0_69, %c0_70, %c56] : memref<2x5x5x72xf32, #tpu.memory_space<vmem>>, vector<2x5x5x8xf32>
    tpu.vector_store %arg11[%c0_68, %c0_69, %c0_70, %c56], %48 {strides = array<i32>} : memref<2x5x5x72xf32, #tpu.memory_space<vmem>>, vector<2x5x5x8xf32>,
    %50 = vector.extract_strided_slice %33 {offsets = [0, 2, 2, 0], sizes = [2, 5, 5, 8], strides = [1, 1, 1, 1]} : vector<2x7x7x8xf32> to vector<2x5x5x8xf32>
    %c0_71 = arith.constant 0 : index
    %c0_72 = arith.constant 0 : index
    %c0_73 = arith.constant 0 : index
    %c64 = arith.constant 64 : index
    %51 = vector.load %arg11[%c0_71, %c0_72, %c0_73, %c64] : memref<2x5x5x72xf32, #tpu.memory_space<vmem>>, vector<2x5x5x8xf32>
    tpu.vector_store %arg11[%c0_71, %c0_72, %c0_73, %c64], %50 {strides = array<i32>} : memref<2x5x5x72xf32, #tpu.memory_space<vmem>>, vector<2x5x5x8xf32>,
    %c0_74 = arith.constant 0 : index
    %c0_75 = arith.constant 0 : index
    %c0_76 = arith.constant 0 : index
    %c0_77 = arith.constant 0 : index
    %52 = vector.load %arg11[%c0_74, %c0_75, %c0_76, %c0_77] : memref<2x5x5x72xf32, #tpu.memory_space<vmem>>, vector<2x5x5x72xf32>
    %53 = vector.shape_cast %52 : vector<2x5x5x72xf32> to vector<50x72xf32>
    %c0_78 = arith.constant 0 : index
    %c0_79 = arith.constant 0 : index
    %54 = vector.load %arg3[%c0_78, %c0_79] : memref<72x16xf32, #tpu.memory_space<vmem>>, vector<72x16xf32>
    %cst_80 = arith.constant dense<0.000000e+00> : vector<50x16xf32>
    %55 = tpu.matmul %53, %54, %cst_80 {dimension_numbers = #tpu.dot_dimension_numbers<[1], [0], [0], [1], [0, 0, 1, 1], [], []>} : vector<50x72xf32>, vector<72x16xf32>, vector<50x16xf32> -> vector<50x16xf32>
    %c0_81 = arith.constant 0 : index
    %c0_82 = arith.constant 0 : index
    %56 = vector.load %arg4[%c0_81, %c0_82] : memref<1x16xf32, #tpu.memory_space<vmem>>, vector<1x16xf32>
    %57 = vector.broadcast %56 : vector<1x16xf32> to vector<50x16xf32>
    %58 = arith.addf %55, %57 : vector<50x16xf32>
    %cst_83 = arith.constant 0.000000e+00 : f32
    %59 = vector.broadcast %cst_83 : f32 to vector<50x16xf32>
    %60 = arith.maximumf %58, %59 : vector<50x16xf32>
    %61 = vector.shape_cast %60 : vector<50x16xf32> to vector<2x5x5x16xf32>
    %62 = vector.extract_strided_slice %61 {offsets = [0, 0, 0, 0], sizes = [2, 4, 4, 16], strides = [1, 1, 1, 1]} : vector<2x5x5x16xf32> to vector<2x4x4x16xf32>
    %63 = vector.shape_cast %62 : vector<2x4x4x16xf32> to vector<4x2x4x16xf32>
    %cst_84 = arith.constant dense<0xFF800000> : vector<4x4x16xf32>
    %64 = vector.multi_reduction <maximumf>, %63, %cst_84 [1] : vector<4x2x4x16xf32> to vector<4x4x16xf32>
    %65 = vector.shape_cast %64 : vector<4x4x16xf32> to vector<4x2x2x16xf32>
    %cst_85 = arith.constant dense<0xFF800000> : vector<4x2x16xf32>
    %66 = vector.multi_reduction <maximumf>, %65, %cst_85 [2] : vector<4x2x2x16xf32> to vector<4x2x16xf32>
    %67 = vector.shape_cast %66 : vector<4x2x16xf32> to vector<2x2x2x16xf32>
    %68 = vector.extract_strided_slice %67 {offsets = [0, 0, 0, 0], sizes = [2, 1, 1, 16], strides = [1, 1, 1, 1]} : vector<2x2x2x16xf32> to vector<2x1x1x16xf32>
    %c0_86 = arith.constant 0 : index
    %c0_87 = arith.constant 0 : index
    %c0_88 = arith.constant 0 : index
    %c0_89 = arith.constant 0 : index
    %69 = vector.load %arg12[%c0_86, %c0_87, %c0_88, %c0_89] : memref<2x1x1x64xf32, #tpu.memory_space<vmem>>, vector<2x1x1x16xf32>
    tpu.vector_store %arg12[%c0_86, %c0_87, %c0_88, %c0_89], %68 {strides = array<i32>} : memref<2x1x1x64xf32, #tpu.memory_space<vmem>>, vector<2x1x1x16xf32>,
    %70 = vector.extract_strided_slice %67 {offsets = [0, 0, 1, 0], sizes = [2, 1, 1, 16], strides = [1, 1, 1, 1]} : vector<2x2x2x16xf32> to vector<2x1x1x16xf32>
    %c0_90 = arith.constant 0 : index
    %c0_91 = arith.constant 0 : index
    %c0_92 = arith.constant 0 : index
    %c16_93 = arith.constant 16 : index
    %71 = vector.load %arg12[%c0_90, %c0_91, %c0_92, %c16_93] : memref<2x1x1x64xf32, #tpu.memory_space<vmem>>, vector<2x1x1x16xf32>
    tpu.vector_store %arg12[%c0_90, %c0_91, %c0_92, %c16_93], %70 {strides = array<i32>} : memref<2x1x1x64xf32, #tpu.memory_space<vmem>>, vector<2x1x1x16xf32>,
    %72 = vector.extract_strided_slice %67 {offsets = [0, 1, 0, 0], sizes = [2, 1, 1, 16], strides = [1, 1, 1, 1]} : vector<2x2x2x16xf32> to vector<2x1x1x16xf32>
    %c0_94 = arith.constant 0 : index
    %c0_95 = arith.constant 0 : index
    %c0_96 = arith.constant 0 : index
    %c32_97 = arith.constant 32 : index
    %73 = vector.load %arg12[%c0_94, %c0_95, %c0_96, %c32_97] : memref<2x1x1x64xf32, #tpu.memory_space<vmem>>, vector<2x1x1x16xf32>
    tpu.vector_store %arg12[%c0_94, %c0_95, %c0_96, %c32_97], %72 {strides = array<i32>} : memref<2x1x1x64xf32, #tpu.memory_space<vmem>>, vector<2x1x1x16xf32>,
    %74 = vector.extract_strided_slice %67 {offsets = [0, 1, 1, 0], sizes = [2, 1, 1, 16], strides = [1, 1, 1, 1]} : vector<2x2x2x16xf32> to vector<2x1x1x16xf32>
    %c0_98 = arith.constant 0 : index
    %c0_99 = arith.constant 0 : index
    %c0_100 = arith.constant 0 : index
    %c48_101 = arith.constant 48 : index
    %75 = vector.load %arg12[%c0_98, %c0_99, %c0_100, %c48_101] : memref<2x1x1x64xf32, #tpu.memory_space<vmem>>, vector<2x1x1x16xf32>
    tpu.vector_store %arg12[%c0_98, %c0_99, %c0_100, %c48_101], %74 {strides = array<i32>} : memref<2x1x1x64xf32, #tpu.memory_space<vmem>>, vector<2x1x1x16xf32>,
    %c0_102 = arith.constant 0 : index
    %c0_103 = arith.constant 0 : index
    %c0_104 = arith.constant 0 : index
    %c0_105 = arith.constant 0 : index
    %76 = vector.load %arg12[%c0_102, %c0_103, %c0_104, %c0_105] : memref<2x1x1x64xf32, #tpu.memory_space<vmem>>, vector<2x1x1x64xf32>
    %77 = vector.shape_cast %76 : vector<2x1x1x64xf32> to vector<2x64xf32>
    %c0_106 = arith.constant 0 : index
    %c0_107 = arith.constant 0 : index
    %78 = vector.load %arg5[%c0_106, %c0_107] : memref<64x32xf32, #tpu.memory_space<vmem>>, vector<64x32xf32>
    %cst_108 = arith.constant dense<0.000000e+00> : vector<2x32xf32>
    %79 = tpu.matmul %77, %78, %cst_108 {dimension_numbers = #tpu.dot_dimension_numbers<[1], [0], [0], [1], [0, 0, 1, 1], [], []>} : vector<2x64xf32>, vector<64x32xf32>, vector<2x32xf32> -> vector<2x32xf32>
    %c0_109 = arith.constant 0 : index
    %c0_110 = arith.constant 0 : index
    %80 = vector.load %arg6[%c0_109, %c0_110] : memref<1x32xf32, #tpu.memory_space<vmem>>, vector<1x32xf32>
    %81 = vector.broadcast %80 : vector<1x32xf32> to vector<2x32xf32>
    %82 = arith.addf %79, %81 : vector<2x32xf32>
    %cst_111 = arith.constant 0.000000e+00 : f32
    %83 = vector.broadcast %cst_111 : f32 to vector<2x32xf32>
    %84 = arith.maximumf %82, %83 : vector<2x32xf32>
    %c0_112 = arith.constant 0 : index
    %c0_113 = arith.constant 0 : index
    %85 = vector.load %arg7[%c0_112, %c0_113] : memref<32x10xf32, #tpu.memory_space<vmem>>, vector<32x10xf32>
    %cst_114 = arith.constant dense<0.000000e+00> : vector<2x10xf32>
    %86 = tpu.matmul %84, %85, %cst_114 {dimension_numbers = #tpu.dot_dimension_numbers<[1], [0], [0], [1], [0, 0, 1, 1], [], []>} : vector<2x32xf32>, vector<32x10xf32>, vector<2x10xf32> -> vector<2x10xf32>
    %c0_115 = arith.constant 0 : index
    %c0_116 = arith.constant 0 : index
    %87 = vector.load %arg8[%c0_115, %c0_116] : memref<1x10xf32, #tpu.memory_space<vmem>>, vector<1x10xf32>
    %88 = vector.broadcast %87 : vector<1x10xf32> to vector<2x10xf32>
    %89 = arith.addf %86, %88 : vector<2x10xf32>
    %c0_117 = arith.constant 0 : index
    %c0_118 = arith.constant 0 : index
    %90 = vector.load %arg9[%c0_117, %c0_118] : memref<2x10xf32, #tpu.memory_space<vmem>>, vector<2x10xf32>
    tpu.vector_store %arg9[%c0_117, %c0_118], %89 {strides = array<i32>} : memref<2x10xf32, #tpu.memory_space<vmem>>, vector<2x10xf32>,
    return
  }
}

</mosaic_0001>

<llo_original>
// kernel: tpu_custom_call.1
$region0: #{tpu_custom_call.1}
  #allocation0 [shape = 'u32[]', space=smem, size = 0x4, offset = 0x4, fixed_abs, tag = 'smem constant byte address 0x4 - core index']
  #allocation1 [shape = 'u32[144,128]{1,0:T(1,128)}', space=vmem, size = 0x12000, scoped, tag = 'internal scratch']
  #allocation2 [shape = 'f32[2,14,14,36]{3,2,1,0:T(8,128)}', space=vmem, size = 0x38000, scoped, tag = 'scratch operand']
  #allocation3 [shape = 'f32[2,5,5,72]{3,2,1,0:T(8,128)}', space=vmem, size = 0xa000, scoped, tag = 'scratch operand']
  #allocation4 [shape = 'f32[2,1,1,64]{3,2,1,0:T(1,128)}', space=vmem, size = 0x400, scoped, tag = 'scratch operand']
  %s0 = inlined_call_operand.vmem [shape: f32[2,16,16,4], index: 0, kind: input, shape index: {}]
  %s1 = inlined_call_operand.vmem [shape: f32[36,8], index: 1, kind: input, shape index: {}]
  %s2 = inlined_call_operand.vmem [shape: f32[1,8], index: 2, kind: input, shape index: {}]
  %s3 = inlined_call_operand.vmem [shape: f32[72,16], index: 3, kind: input, shape index: {}]
  %s4 = inlined_call_operand.vmem [shape: f32[1,16], index: 4, kind: input, shape index: {}]
  %s5 = inlined_call_operand.vmem [shape: f32[64,32], index: 5, kind: input, shape index: {}]
  %s6 = inlined_call_operand.vmem [shape: f32[1,32], index: 6, kind: input, shape index: {}]
  %s7 = inlined_call_operand.vmem [shape: f32[32,10], index: 7, kind: input, shape index: {}]
  %s8 = inlined_call_operand.vmem [shape: f32[1,10], index: 8, kind: input, shape index: {}]
  %s9 = inlined_call_operand.hbm [shape: f32[2,10], index: 9, kind: output, shape index: {}]
  %s10 = sld [smem:[#allocation0]]
  $region46: #{tpu_custom_call.1} parent=0
    _
  %s12 = ssub.s32 1, %s10
  %s13 = scalar_select 0, %s12, %s10
  $region1: #{tpu_custom_call.1} parent=0
    #allocation5 [shape = 'u8[1024]{0}', space=vmem, size = 0x400, scoped, tag = 'output window, operand 0, single buffered']
    #allocation6 [shape = 's32[1]{0}', space=sflag, size = 0x4, scoped, tag = 'scoped memory for tpu_custom_call.1']
    %14 = vsyncpa [#allocation6], 0
    // Predicated region
    $region2: #{tpu_custom_call.1} parent=1 // pred_check
      _
    $region3: #{tpu_custom_call.1} parent=1 // pred_check_branch
      %16 = sbr.rel (0) target = $region5
    $region4: #{tpu_custom_call.1} parent=1 // pred_region
      _
    $region5: #{tpu_custom_call.1} parent=1 // pred_fallthru
      _
    // Predicated region
    $region6: #{tpu_custom_call.1} parent=1 // pred_check
      _
    $region7: #{tpu_custom_call.1} parent=1 // pred_check_branch
      %18 = sbr.rel (0) target = $region9
    $region8: #{tpu_custom_call.1} parent=1 // pred_region
      _
    $region9: #{tpu_custom_call.1} parent=1 // pred_fallthru
      _
    // Predicated region
    $region10: #{tpu_custom_call.1} parent=1 // pred_check
      _
    $region11: #{tpu_custom_call.1} parent=1 // pred_check_branch
      %20 = sbr.rel (0) target = $region13
    $region12: #{tpu_custom_call.1} parent=1 // pred_region
      _
    $region13: #{tpu_custom_call.1} parent=1 // pred_fallthru
      _
    // Predicated region
    $region14: #{tpu_custom_call.1} parent=1 // pred_check
      _
    $region15: #{tpu_custom_call.1} parent=1 // pred_check_branch
      %22 = sbr.rel (0) target = $region17
    $region16: #{tpu_custom_call.1} parent=1 // pred_region
      _
    $region17: #{tpu_custom_call.1} parent=1 // pred_fallthru
      _
    // Predicated region
    $region18: #{tpu_custom_call.1} parent=1 // pred_check
      _
    $region19: #{tpu_custom_call.1} parent=1 // pred_check_branch
      %24 = sbr.rel (0) target = $region21
    $region20: #{tpu_custom_call.1} parent=1 // pred_region
      _
    $region21: #{tpu_custom_call.1} parent=1 // pred_fallthru
      _
    // Predicated region
    $region22: #{tpu_custom_call.1} parent=1 // pred_check
      _
    $region23: #{tpu_custom_call.1} parent=1 // pred_check_branch
      %26 = sbr.rel (0) target = $region25
    $region24: #{tpu_custom_call.1} parent=1 // pred_region
      _
    $region25: #{tpu_custom_call.1} parent=1 // pred_fallthru
      _
    // Predicated region
    $region26: #{tpu_custom_call.1} parent=1 // pred_check
      _
    $region27: #{tpu_custom_call.1} parent=1 // pred_check_branch
      %28 = sbr.rel (0) target = $region29
    $region28: #{tpu_custom_call.1} parent=1 // pred_region
      _
    $region29: #{tpu_custom_call.1} parent=1 // pred_fallthru
      _
    // Predicated region
    $region30: #{tpu_custom_call.1} parent=1 // pred_check
      _
    $region31: #{tpu_custom_call.1} parent=1 // pred_check_branch
      %30 = sbr.rel (0) target = $region33
    $region32: #{tpu_custom_call.1} parent=1 // pred_region
      _
    $region33: #{tpu_custom_call.1} parent=1 // pred_fallthru
      _
    // Predicated region
    $region34: #{tpu_custom_call.1} parent=1 // pred_check
      _
    $region35: #{tpu_custom_call.1} parent=1 // pred_check_branch
      %32 = sbr.rel (0) target = $region37
    $region36: #{tpu_custom_call.1} parent=1 // pred_region
      _
    $region37: #{tpu_custom_call.1} parent=1 // pred_fallthru
      _
    %v33 = vld [vmem:[%s0] sm:$0xff]
    %v34 = vld [vmem:[%s0 + $0x8] sm:$0xff]
    %v35 = vld [vmem:[%s0 + $0x10] sm:$0xff]
    %v36 = vld [vmem:[%s0 + $0x18] sm:$0xff]
    %v37 = vld [vmem:[%s0 + $0x20] sm:$0xff]
    %v38 = vld [vmem:[%s0 + $0x28] sm:$0xff]
    %v39 = vld [vmem:[%s0 + $0x30] sm:$0xff]
    %v40 = vld [vmem:[%s0 + $0x38] sm:$0xff]
    %v41 = vld [vmem:[%s0 + $0x40] sm:$0xff]
    %v42 = vld [vmem:[%s0 + $0x48] sm:$0xff]
    %v43 = vld [vmem:[%s0 + $0x50] sm:$0xff]
    %v44 = vld [vmem:[%s0 + $0x58] sm:$0xff]
    %v45 = vld [vmem:[%s0 + $0x60] sm:$0xff]
    %v46 = vld [vmem:[%s0 + $0x68] sm:$0xff]
    %v47 = vld [vmem:[%s0 + $0x70] sm:$0xff]
    %v48 = vld [vmem:[%s0 + $0x78] sm:$0xff]
    %v49 = vld [vmem:[%s0 + $0x80] sm:$0xff]
    %v50 = vld [vmem:[%s0 + $0x88] sm:$0xff]
    %v51 = vld [vmem:[%s0 + $0x90] sm:$0xff]
    %v52 = vld [vmem:[%s0 + $0x98] sm:$0xff]
    %v53 = vld [vmem:[%s0 + $0xa0] sm:$0xff]
    %v54 = vld [vmem:[%s0 + $0xa8] sm:$0xff]
    %v55 = vld [vmem:[%s0 + $0xb0] sm:$0xff]
    %v56 = vld [vmem:[%s0 + $0xb8] sm:$0xff]
    %v57 = vld [vmem:[%s0 + $0xc0] sm:$0xff]
    %v58 = vld [vmem:[%s0 + $0xc8] sm:$0xff]
    %v59 = vld [vmem:[%s0 + $0xd0] sm:$0xff]
    %v60 = vld [vmem:[%s0 + $0xd8] sm:$0xff]
    %v61 = vld [vmem:[%s0 + $0xe0] sm:$0xff]
    %v62 = vld [vmem:[%s0 + $0xe8] sm:$0xff]
    %v63 = vld [vmem:[%s0 + $0xf0] sm:$0xff]
    %v64 = vld [vmem:[%s0 + $0xf8] sm:$0xff]
    %v65 = vld [vmem:[%s0 + $0x100] sm:$0xff]
    %v66 = vld [vmem:[%s0 + $0x108] sm:$0xff]
    %v67 = vld [vmem:[%s0 + $0x110] sm:$0xff]
    %v68 = vld [vmem:[%s0 + $0x118] sm:$0xff]
    %v69 = vld [vmem:[%s0 + $0x120] sm:$0xff]
    %v70 = vld [vmem:[%s0 + $0x128] sm:$0xff]
    %v71 = vld [vmem:[%s0 + $0x130] sm:$0xff]
    %v72 = vld [vmem:[%s0 + $0x138] sm:$0xff]
    %v73 = vld [vmem:[%s0 + $0x140] sm:$0xff]
    %v74 = vld [vmem:[%s0 + $0x148] sm:$0xff]
    %v75 = vld [vmem:[%s0 + $0x150] sm:$0xff]
    %v76 = vld [vmem:[%s0 + $0x158] sm:$0xff]
    %v77 = vld [vmem:[%s0 + $0x160] sm:$0xff]
    %v78 = vld [vmem:[%s0 + $0x168] sm:$0xff]
    %v79 = vld [vmem:[%s0 + $0x170] sm:$0xff]
    %v80 = vld [vmem:[%s0 + $0x178] sm:$0xff]
    %v81 = vld [vmem:[%s0 + $0x180] sm:$0xff]
    %v82 = vld [vmem:[%s0 + $0x188] sm:$0xff]
    %v83 = vld [vmem:[%s0 + $0x190] sm:$0xff]
    %v84 = vld [vmem:[%s0 + $0x198] sm:$0xff]
    %v85 = vld [vmem:[%s0 + $0x1a0] sm:$0xff]
    %v86 = vld [vmem:[%s0 + $0x1a8] sm:$0xff]
    %v87 = vld [vmem:[%s0 + $0x1b0] sm:$0xff]
    %v88 = vld [vmem:[%s0 + $0x1b8] sm:$0xff]
    %v89 = vld [vmem:[%s0 + $0x1c0] sm:$0xff]
    %v90 = vld [vmem:[%s0 + $0x1c8] sm:$0xff]
    %v91 = vld [vmem:[%s0 + $0x1d0] sm:$0xff]
    %v92 = vld [vmem:[%s0 + $0x1d8] sm:$0xff]
    %v93 = vld [vmem:[%s0 + $0x1e0] sm:$0xff]
    %v94 = vld [vmem:[%s0 + $0x1e8] sm:$0xff]
    %v95 = vld [vmem:[%s0 + $0x1f0] sm:$0xff]
    %v96 = vld [vmem:[%s0 + $0x1f8] sm:$0xff]
    %vm97 = vcmask 31744
    %98 = vst.msk [vmem:[#allocation2] sm:$0xff] %vm97, %v33
    %vm99 = vcmask 29696
    %100 = vst.msk [vmem:[#allocation2 + $0x8] sm:$0x3f] %vm99, %v34
    %101 = vst.msk [vmem:[#allocation2 + $0x10] sm:$0xff] %vm97, %v35
    %102 = vst.msk [vmem:[#allocation2 + $0x18] sm:$0x3f] %vm99, %v36
    %103 = vst.msk [vmem:[#allocation2 + $0x20] sm:$0xff] %vm97, %v37
    %104 = vst.msk [vmem:[#allocation2 + $0x28] sm:$0x3f] %vm99, %v38
    %105 = vst.msk [vmem:[#allocation2 + $0x30] sm:$0xff] %vm97, %v39
    %106 = vst.msk [vmem:[#allocation2 + $0x38] sm:$0x3f] %vm99, %v40
    %107 = vst.msk [vmem:[#allocation2 + $0x40] sm:$0xff] %vm97, %v41
    %108 = vst.msk [vmem:[#allocation2 + $0x48] sm:$0x3f] %vm99, %v42
    %109 = vst.msk [vmem:[#allocation2 + $0x50] sm:$0xff] %vm97, %v43
    %110 = vst.msk [vmem:[#allocation2 + $0x58] sm:$0x3f] %vm99, %v44
    %111 = vst.msk [vmem:[#allocation2 + $0x60] sm:$0xff] %vm97, %v45
    %112 = vst.msk [vmem:[#allocation2 + $0x68] sm:$0x3f] %vm99, %v46
    %113 = vst.msk [vmem:[#allocation2 + $0x70] sm:$0xff] %vm97, %v47
    %114 = vst.msk [vmem:[#allocation2 + $0x78] sm:$0x3f] %vm99, %v48
    %115 = vst.msk [vmem:[#allocation2 + $0x80] sm:$0xff] %vm97, %v49
    %116 = vst.msk [vmem:[#allocation2 + $0x88] sm:$0x3f] %vm99, %v50
    %117 = vst.msk [vmem:[#allocation2 + $0x90] sm:$0xff] %vm97, %v51
    %118 = vst.msk [vmem:[#allocation2 + $0x98] sm:$0x3f] %vm99, %v52
    %119 = vst.msk [vmem:[#allocation2 + $0xa0] sm:$0xff] %vm97, %v53
    %120 = vst.msk [vmem:[#allocation2 + $0xa8] sm:$0x3f] %vm99, %v54
    %121 = vst.msk [vmem:[#allocation2 + $0xb0] sm:$0xff] %vm97, %v55
    %122 = vst.msk [vmem:[#allocation2 + $0xb8] sm:$0x3f] %vm99, %v56
    %123 = vst.msk [vmem:[#allocation2 + $0xc0] sm:$0xff] %vm97, %v57
    %124 = vst.msk [vmem:[#allocation2 + $0xc8] sm:$0x3f] %vm99, %v58
    %125 = vst.msk [vmem:[#allocation2 + $0xd0] sm:$0xff] %vm97, %v59
    %126 = vst.msk [vmem:[#allocation2 + $0xd8] sm:$0x3f] %vm99, %v60
    %127 = vst.msk [vmem:[#allocation2 + $0xe0] sm:$0xff] %vm97, %v65
    %128 = vst.msk [vmem:[#allocation2 + $0xe8] sm:$0x3f] %vm99, %v66
    %129 = vst.msk [vmem:[#allocation2 + $0xf0] sm:$0xff] %vm97, %v67
    %130 = vst.msk [vmem:[#allocation2 + $0xf8] sm:$0x3f] %vm99, %v68
    %131 = vst.msk [vmem:[#allocation2 + $0x100] sm:$0xff] %vm97, %v69
    %132 = vst.msk [vmem:[#allocation2 + $0x108] sm:$0x3f] %vm99, %v70
    %133 = vst.msk [vmem:[#allocation2 + $0x110] sm:$0xff] %vm97, %v71
    %134 = vst.msk [vmem:[#allocation2 + $0x118] sm:$0x3f] %vm99, %v72
    %135 = vst.msk [vmem:[#allocation2 + $0x120] sm:$0xff] %vm97, %v73
    %136 = vst.msk [vmem:[#allocation2 + $0x128] sm:$0x3f] %vm99, %v74
    %137 = vst.msk [vmem:[#allocation2 + $0x130] sm:$0xff] %vm97, %v75
    %138 = vst.msk [vmem:[#allocation2 + $0x138] sm:$0x3f] %vm99, %v76
    %139 = vst.msk [vmem:[#allocation2 + $0x140] sm:$0xff] %vm97, %v77
    %140 = vst.msk [vmem:[#allocation2 + $0x148] sm:$0x3f] %vm99, %v78
    %141 = vst.msk [vmem:[#allocation2 + $0x150] sm:$0xff] %vm97, %v79
    %142 = vst.msk [vmem:[#allocation2 + $0x158] sm:$0x3f] %vm99, %v80
    %143 = vst.msk [vmem:[#allocation2 + $0x160] sm:$0xff] %vm97, %v81
    %144 = vst.msk [vmem:[#allocation2 + $0x168] sm:$0x3f] %vm99, %v82
    %145 = vst.msk [vmem:[#allocation2 + $0x170] sm:$0xff] %vm97, %v83
    %146 = vst.msk [vmem:[#allocation2 + $0x178] sm:$0x3f] %vm99, %v84
    %147 = vst.msk [vmem:[#allocation2 + $0x180] sm:$0xff] %vm97, %v85
    %148 = vst.msk [vmem:[#allocation2 + $0x188] sm:$0x3f] %vm99, %v86
    %149 = vst.msk [vmem:[#allocation2 + $0x190] sm:$0xff] %vm97, %v87
    %150 = vst.msk [vmem:[#allocation2 + $0x198] sm:$0x3f] %vm99, %v88
    %151 = vst.msk [vmem:[#allocation2 + $0x1a0] sm:$0xff] %vm97, %v89
    %152 = vst.msk [vmem:[#allocation2 + $0x1a8] sm:$0x3f] %vm99, %v90
    %153 = vst.msk [vmem:[#allocation2 + $0x1b0] sm:$0xff] %vm97, %v91
    %154 = vst.msk [vmem:[#allocation2 + $0x1b8] sm:$0x3f] %vm99, %v92
    %211 = vrot.lane.b32.xlu0 %v33, 4
    %v212 = vpop.permute.xlu0 %211
    %213 = vrot.lane.b32.xlu0 %v34, 4
    %v214 = vpop.permute.xlu0 %213
    %215 = vrot.lane.b32.xlu0 %v35, 4
    %v216 = vpop.permute.xlu0 %215
    %217 = vrot.lane.b32.xlu0 %v36, 4
    %v218 = vpop.permute.xlu0 %217
    %219 = vrot.lane.b32.xlu0 %v37, 4
    %v220 = vpop.permute.xlu0 %219
    %221 = vrot.lane.b32.xlu0 %v38, 4
    %v222 = vpop.permute.xlu0 %221
    %223 = vrot.lane.b32.xlu0 %v39, 4
    %v224 = vpop.permute.xlu0 %223
    %225 = vrot.lane.b32.xlu0 %v40, 4
    %v226 = vpop.permute.xlu0 %225
    %227 = vrot.lane.b32.xlu0 %v41, 4
    %v228 = vpop.permute.xlu0 %227
    %229 = vrot.lane.b32.xlu0 %v42, 4
    %v230 = vpop.permute.xlu0 %229
    %231 = vrot.lane.b32.xlu0 %v43, 4
    %v232 = vpop.permute.xlu0 %231
    %233 = vrot.lane.b32.xlu0 %v44, 4
    %v234 = vpop.permute.xlu0 %233
    %235 = vrot.lane.b32.xlu0 %v45, 4
    %v236 = vpop.permute.xlu0 %235
    %237 = vrot.lane.b32.xlu0 %v46, 4
    %v238 = vpop.permute.xlu0 %237
    %239 = vrot.lane.b32.xlu0 %v47, 4
    %v240 = vpop.permute.xlu0 %239
    %241 = vrot.lane.b32.xlu0 %v48, 4
    %v242 = vpop.permute.xlu0 %241
    %243 = vrot.lane.b32.xlu0 %v49, 4
    %v244 = vpop.permute.xlu0 %243
    %245 = vrot.lane.b32.xlu0 %v50, 4
    %v246 = vpop.permute.xlu0 %245
    %247 = vrot.lane.b32.xlu0 %v51, 4
    %v248 = vpop.permute.xlu0 %247
    %249 = vrot.lane.b32.xlu0 %v52, 4
    %v250 = vpop.permute.xlu0 %249
    %251 = vrot.lane.b32.xlu0 %v53, 4
    %v252 = vpop.permute.xlu0 %251
    %253 = vrot.lane.b32.xlu0 %v54, 4
    %v254 = vpop.permute.xlu0 %253
    %255 = vrot.lane.b32.xlu0 %v55, 4
    %v256 = vpop.permute.xlu0 %255
    %257 = vrot.lane.b32.xlu0 %v56, 4
    %v258 = vpop.permute.xlu0 %257
    %259 = vrot.lane.b32.xlu0 %v57, 4
    %v260 = vpop.permute.xlu0 %259
    %261 = vrot.lane.b32.xlu0 %v58, 4
    %v262 = vpop.permute.xlu0 %261
    %263 = vrot.lane.b32.xlu0 %v59, 4
    %v264 = vpop.permute.xlu0 %263
    %265 = vrot.lane.b32.xlu0 %v60, 4
    %v266 = vpop.permute.xlu0 %265
    %267 = vrot.lane.b32.xlu0 %v65, 4
    %v268 = vpop.permute.xlu0 %267
    %269 = vrot.lane.b32.xlu0 %v66, 4
    %v270 = vpop.permute.xlu0 %269
    %271 = vrot.lane.b32.xlu0 %v67, 4
    %v272 = vpop.permute.xlu0 %271
    %273 = vrot.lane.b32.xlu0 %v68, 4
    %v274 = vpop.permute.xlu0 %273
    %275 = vrot.lane.b32.xlu0 %v69, 4
    %v276 = vpop.permute.xlu0 %275
    %277 = vrot.lane.b32.xlu0 %v70, 4
    %v278 = vpop.permute.xlu0 %277
    %279 = vrot.lane.b32.xlu0 %v71, 4
    %v280 = vpop.permute.xlu0 %279
    %281 = vrot.lane.b32.xlu0 %v72, 4
    %v282 = vpop.permute.xlu0 %281
    %283 = vrot.lane.b32.xlu0 %v73, 4
    %v284 = vpop.permute.xlu0 %283
    %285 = vrot.lane.b32.xlu0 %v74, 4
    %v286 = vpop.permute.xlu0 %285
    %287 = vrot.lane.b32.xlu0 %v75, 4
    %v288 = vpop.permute.xlu0 %287
    %289 = vrot.lane.b32.xlu0 %v76, 4
    %v290 = vpop.permute.xlu0 %289
    %291 = vrot.lane.b32.xlu0 %v77, 4
    %v292 = vpop.permute.xlu0 %291
    %293 = vrot.lane.b32.xlu0 %v78, 4
    %v294 = vpop.permute.xlu0 %293
    %295 = vrot.lane.b32.xlu0 %v79, 4
    %v296 = vpop.permute.xlu0 %295
    %297 = vrot.lane.b32.xlu0 %v80, 4
    %v298 = vpop.permute.xlu0 %297
    %299 = vrot.lane.b32.xlu0 %v81, 4
    %v300 = vpop.permute.xlu0 %299
    %301 = vrot.lane.b32.xlu0 %v82, 4
    %v302 = vpop.permute.xlu0 %301
    %303 = vrot.lane.b32.xlu0 %v83, 4
    %v304 = vpop.permute.xlu0 %303
    %305 = vrot.lane.b32.xlu0 %v84, 4
    %v306 = vpop.permute.xlu0 %305
    %307 = vrot.lane.b32.xlu0 %v85, 4
    %v308 = vpop.permute.xlu0 %307
    %309 = vrot.lane.b32.xlu0 %v86, 4
    %v310 = vpop.permute.xlu0 %309
    %311 = vrot.lane.b32.xlu0 %v87, 4
    %v312 = vpop.permute.xlu0 %311
    %313 = vrot.lane.b32.xlu0 %v88, 4
    %v314 = vpop.permute.xlu0 %313
    %315 = vrot.lane.b32.xlu0 %v89, 4
    %v316 = vpop.permute.xlu0 %315
    %317 = vrot.lane.b32.xlu0 %v90, 4
    %v318 = vpop.permute.xlu0 %317
    %319 = vrot.lane.b32.xlu0 %v91, 4
    %v320 = vpop.permute.xlu0 %319
    %321 = vrot.lane.b32.xlu0 %v92, 4
    %v322 = vpop.permute.xlu0 %321
    %vm379 = vcmask 64545
    %380 = vst.msk [vmem:[#allocation2 - $0x1] sm:$0xfe] %vm379, %v212
    %vm381 = vcmask 63520
    %382 = vst.msk [vmem:[#allocation2 + $0x7] sm:$0x7f] %vm381, %v214
    %383 = vst.msk [vmem:[#allocation2 + $0xf] sm:$0xfe] %vm379, %v216
    %384 = vst.msk [vmem:[#allocation2 + $0x17] sm:$0x7f] %vm381, %v218
    %385 = vst.msk [vmem:[#allocation2 + $0x1f] sm:$0xfe] %vm379, %v220
    %386 = vst.msk [vmem:[#allocation2 + $0x27] sm:$0x7f] %vm381, %v222
    %387 = vst.msk [vmem:[#allocation2 + $0x2f] sm:$0xfe] %vm379, %v224
    %388 = vst.msk [vmem:[#allocation2 + $0x37] sm:$0x7f] %vm381, %v226
    %389 = vst.msk [vmem:[#allocation2 + $0x3f] sm:$0xfe] %vm379, %v228
    %390 = vst.msk [vmem:[#allocation2 + $0x47] sm:$0x7f] %vm381, %v230
    %391 = vst.msk [vmem:[#allocation2 + $0x4f] sm:$0xfe] %vm379, %v232
    %392 = vst.msk [vmem:[#allocation2 + $0x57] sm:$0x7f] %vm381, %v234
    %393 = vst.msk [vmem:[#allocation2 + $0x5f] sm:$0xfe] %vm379, %v236
    %394 = vst.msk [vmem:[#allocation2 + $0x67] sm:$0x7f] %vm381, %v238
    %395 = vst.msk [vmem:[#allocation2 + $0x6f] sm:$0xfe] %vm379, %v240
    %396 = vst.msk [vmem:[#allocation2 + $0x77] sm:$0x7f] %vm381, %v242
    %397 = vst.msk [vmem:[#allocation2 + $0x7f] sm:$0xfe] %vm379, %v244
    %398 = vst.msk [vmem:[#allocation2 + $0x87] sm:$0x7f] %vm381, %v246
    %399 = vst.msk [vmem:[#allocation2 + $0x8f] sm:$0xfe] %vm379, %v248
    %400 = vst.msk [vmem:[#allocation2 + $0x97] sm:$0x7f] %vm381, %v250
    %401 = vst.msk [vmem:[#allocation2 + $0x9f] sm:$0xfe] %vm379, %v252
    %402 = vst.msk [vmem:[#allocation2 + $0xa7] sm:$0x7f] %vm381, %v254
    %403 = vst.msk [vmem:[#allocation2 + $0xaf] sm:$0xfe] %vm379, %v256
    %404 = vst.msk [vmem:[#allocation2 + $0xb7] sm:$0x7f] %vm381, %v258
    %405 = vst.msk [vmem:[#allocation2 + $0xbf] sm:$0xfe] %vm379, %v260
    %406 = vst.msk [vmem:[#allocation2 + $0xc7] sm:$0x7f] %vm381, %v262
    %407 = vst.msk [vmem:[#allocation2 + $0xcf] sm:$0xfe] %vm379, %v264
    %408 = vst.msk [vmem:[#allocation2 + $0xd7] sm:$0x7f] %vm381, %v266
    %409 = vst.msk [vmem:[#allocation2 + $0xdf] sm:$0xfe] %vm379, %v268
    %410 = vst.msk [vmem:[#allocation2 + $0xe7] sm:$0x7f] %vm381, %v270
    %411 = vst.msk [vmem:[#allocation2 + $0xef] sm:$0xfe] %vm379, %v272
    %412 = vst.msk [vmem:[#allocation2 + $0xf7] sm:$0x7f] %vm381, %v274
    %413 = vst.msk [vmem:[#allocation2 + $0xff] sm:$0xfe] %vm379, %v276
    %414 = vst.msk [vmem:[#allocation2 + $0x107] sm:$0x7f] %vm381, %v278
    %415 = vst.msk [vmem:[#allocation2 + $0x10f] sm:$0xfe] %vm379, %v280
    %416 = vst.msk [vmem:[#allocation2 + $0x117] sm:$0x7f] %vm381, %v282
    %417 = vst.msk [vmem:[#allocation2 + $0x11f] sm:$0xfe] %vm379, %v284
    %418 = vst.msk [vmem:[#allocation2 + $0x127] sm:$0x7f] %vm381, %v286
    %419 = vst.msk [vmem:[#allocation2 + $0x12f] sm:$0xfe] %vm379, %v288
    %420 = vst.msk [vmem:[#allocation2 + $0x137] sm:$0x7f] %vm381, %v290
    %421 = vst.msk [vmem:[#allocation2 + $0x13f] sm:$0xfe] %vm379, %v292
    %422 = vst.msk [vmem:[#allocation2 + $0x147] sm:$0x7f] %vm381, %v294
    %423 = vst.msk [vmem:[#allocation2 + $0x14f] sm:$0xfe] %vm379, %v296
    %424 = vst.msk [vmem:[#allocation2 + $0x157] sm:$0x7f] %vm381, %v298
    %425 = vst.msk [vmem:[#allocation2 + $0x15f] sm:$0xfe] %vm379, %v300
    %426 = vst.msk [vmem:[#allocation2 + $0x167] sm:$0x7f] %vm381, %v302
    %427 = vst.msk [vmem:[#allocation2 + $0x16f] sm:$0xfe] %vm379, %v304
    %428 = vst.msk [vmem:[#allocation2 + $0x177] sm:$0x7f] %vm381, %v306
    %429 = vst.msk [vmem:[#allocation2 + $0x17f] sm:$0xfe] %vm379, %v308
    %430 = vst.msk [vmem:[#allocation2 + $0x187] sm:$0x7f] %vm381, %v310
    %431 = vst.msk [vmem:[#allocation2 + $0x18f] sm:$0xfe] %vm379, %v312
    %432 = vst.msk [vmem:[#allocation2 + $0x197] sm:$0x7f] %vm381, %v314
    %433 = vst.msk [vmem:[#allocation2 + $0x19f] sm:$0xfe] %vm379, %v316
    %434 = vst.msk [vmem:[#allocation2 + $0x1a7] sm:$0x7f] %vm381, %v318
    %435 = vst.msk [vmem:[#allocation2 + $0x1af] sm:$0xfe] %vm379, %v320
    %436 = vst.msk [vmem:[#allocation2 + $0x1b7] sm:$0x7f] %vm381, %v322
    %437 = vrot.lane.b32.xlu0 %v33, 8
    %v438 = vpop.permute.xlu0 %437
    %439 = vrot.lane.b32.xlu0 %v34, 8
    %v440 = vpop.permute.xlu0 %439
    %441 = vrot.lane.b32.xlu0 %v35, 8
    %v442 = vpop.permute.xlu0 %441
    %443 = vrot.lane.b32.xlu0 %v36, 8
    %v444 = vpop.permute.xlu0 %443
    %445 = vrot.lane.b32.xlu0 %v37, 8
    %v446 = vpop.permute.xlu0 %445
    %447 = vrot.lane.b32.xlu0 %v38, 8
    %v448 = vpop.permute.xlu0 %447
    %449 = vrot.lane.b32.xlu0 %v39, 8
    %v450 = vpop.permute.xlu0 %449
    %451 = vrot.lane.b32.xlu0 %v40, 8
    %v452 = vpop.permute.xlu0 %451
    %453 = vrot.lane.b32.xlu0 %v41, 8
    %v454 = vpop.permute.xlu0 %453
    %455 = vrot.lane.b32.xlu0 %v42, 8
    %v456 = vpop.permute.xlu0 %455
    %457 = vrot.lane.b32.xlu0 %v43, 8
    %v458 = vpop.permute.xlu0 %457
    %459 = vrot.lane.b32.xlu0 %v44, 8
    %v460 = vpop.permute.xlu0 %459
    %461 = vrot.lane.b32.xlu0 %v45, 8
    %v462 = vpop.permute.xlu0 %461
    %463 = vrot.lane.b32.xlu0 %v46, 8
    %v464 = vpop.permute.xlu0 %463
    %465 = vrot.lane.b32.xlu0 %v47, 8
    %v466 = vpop.permute.xlu0 %465
    %467 = vrot.lane.b32.xlu0 %v48, 8
    %v468 = vpop.permute.xlu0 %467
    %469 = vrot.lane.b32.xlu0 %v49, 8
    %v470 = vpop.permute.xlu0 %469
    %471 = vrot.lane.b32.xlu0 %v50, 8
    %v472 = vpop.permute.xlu0 %471
    %473 = vrot.lane.b32.xlu0 %v51, 8
    %v474 = vpop.permute.xlu0 %473
    %475 = vrot.lane.b32.xlu0 %v52, 8
    %v476 = vpop.permute.xlu0 %475
    %477 = vrot.lane.b32.xlu0 %v53, 8
    %v478 = vpop.permute.xlu0 %477
    %479 = vrot.lane.b32.xlu0 %v54, 8
    %v480 = vpop.permute.xlu0 %479
    %481 = vrot.lane.b32.xlu0 %v55, 8
    %v482 = vpop.permute.xlu0 %481
    %483 = vrot.lane.b32.xlu0 %v56, 8
    %v484 = vpop.permute.xlu0 %483
    %485 = vrot.lane.b32.xlu0 %v57, 8
    %v486 = vpop.permute.xlu0 %485
    %487 = vrot.lane.b32.xlu0 %v58, 8
    %v488 = vpop.permute.xlu0 %487
    %489 = vrot.lane.b32.xlu0 %v59, 8
    %v490 = vpop.permute.xlu0 %489
    %491 = vrot.lane.b32.xlu0 %v60, 8
    %v492 = vpop.permute.xlu0 %491
    %493 = vrot.lane.b32.xlu0 %v65, 8
    %v494 = vpop.permute.xlu0 %493
    %495 = vrot.lane.b32.xlu0 %v66, 8
    %v496 = vpop.permute.xlu0 %495
    %497 = vrot.lane.b32.xlu0 %v67, 8
    %v498 = vpop.permute.xlu0 %497
    %499 = vrot.lane.b32.xlu0 %v68, 8
    %v500 = vpop.permute.xlu0 %499
    %501 = vrot.lane.b32.xlu0 %v69, 8
    %v502 = vpop.permute.xlu0 %501
    %503 = vrot.lane.b32.xlu0 %v70, 8
    %v504 = vpop.permute.xlu0 %503
    %505 = vrot.lane.b32.xlu0 %v71, 8
    %v506 = vpop.permute.xlu0 %505
    %507 = vrot.lane.b32.xlu0 %v72, 8
    %v508 = vpop.permute.xlu0 %507
    %509 = vrot.lane.b32.xlu0 %v73, 8
    %v510 = vpop.permute.xlu0 %509
    %511 = vrot.lane.b32.xlu0 %v74, 8
    %v512 = vpop.permute.xlu0 %511
    %513 = vrot.lane.b32.xlu0 %v75, 8
    %v514 = vpop.permute.xlu0 %513
    %515 = vrot.lane.b32.xlu0 %v76, 8
    %v516 = vpop.permute.xlu0 %515
    %517 = vrot.lane.b32.xlu0 %v77, 8
    %v518 = vpop.permute.xlu0 %517
    %519 = vrot.lane.b32.xlu0 %v78, 8
    %v520 = vpop.permute.xlu0 %519
    %521 = vrot.lane.b32.xlu0 %v79, 8
    %v522 = vpop.permute.xlu0 %521
    %523 = vrot.lane.b32.xlu0 %v80, 8
    %v524 = vpop.permute.xlu0 %523
    %525 = vrot.lane.b32.xlu0 %v81, 8
    %v526 = vpop.permute.xlu0 %525
    %527 = vrot.lane.b32.xlu0 %v82, 8
    %v528 = vpop.permute.xlu0 %527
    %529 = vrot.lane.b32.xlu0 %v83, 8
    %v530 = vpop.permute.xlu0 %529
    %531 = vrot.lane.b32.xlu0 %v84, 8
    %v532 = vpop.permute.xlu0 %531
    %533 = vrot.lane.b32.xlu0 %v85, 8
    %v534 = vpop.permute.xlu0 %533
    %535 = vrot.lane.b32.xlu0 %v86, 8
    %v536 = vpop.permute.xlu0 %535
    %537 = vrot.lane.b32.xlu0 %v87, 8
    %v538 = vpop.permute.xlu0 %537
    %539 = vrot.lane.b32.xlu0 %v88, 8
    %v540 = vpop.permute.xlu0 %539
    %541 = vrot.lane.b32.xlu0 %v89, 8
    %v542 = vpop.permute.xlu0 %541
    %543 = vrot.lane.b32.xlu0 %v90, 8
    %v544 = vpop.permute.xlu0 %543
    %545 = vrot.lane.b32.xlu0 %v91, 8
    %v546 = vpop.permute.xlu0 %545
    %547 = vrot.lane.b32.xlu0 %v92, 8
    %v548 = vpop.permute.xlu0 %547
    %vm605 = vcmask 97346
    %606 = vst.msk [vmem:[#allocation2 - $0x2] sm:$0xfc] %vm605, %v438
    %vm607 = vcmask 97344
    %608 = vst.msk [vmem:[#allocation2 + $0x6] sm:$0xff] %vm607, %v440
    %609 = vst.msk [vmem:[#allocation2 + $0xe] sm:$0xfc] %vm605, %v442
    %610 = vst.msk [vmem:[#allocation2 + $0x16] sm:$0xff] %vm607, %v444
    %611 = vst.msk [vmem:[#allocation2 + $0x1e] sm:$0xfc] %vm605, %v446
    %612 = vst.msk [vmem:[#allocation2 + $0x26] sm:$0xff] %vm607, %v448
    %613 = vst.msk [vmem:[#allocation2 + $0x2e] sm:$0xfc] %vm605, %v450
    %614 = vst.msk [vmem:[#allocation2 + $0x36] sm:$0xff] %vm607, %v452
    %615 = vst.msk [vmem:[#allocation2 + $0x3e] sm:$0xfc] %vm605, %v454
    %616 = vst.msk [vmem:[#allocation2 + $0x46] sm:$0xff] %vm607, %v456
    %617 = vst.msk [vmem:[#allocation2 + $0x4e] sm:$0xfc] %vm605, %v458
    %618 = vst.msk [vmem:[#allocation2 + $0x56] sm:$0xff] %vm607, %v460
    %619 = vst.msk [vmem:[#allocation2 + $0x5e] sm:$0xfc] %vm605, %v462
    %620 = vst.msk [vmem:[#allocation2 + $0x66] sm:$0xff] %vm607, %v464
    %621 = vst.msk [vmem:[#allocation2 + $0x6e] sm:$0xfc] %vm605, %v466
    %622 = vst.msk [vmem:[#allocation2 + $0x76] sm:$0xff] %vm607, %v468
    %623 = vst.msk [vmem:[#allocation2 + $0x7e] sm:$0xfc] %vm605, %v470
    %624 = vst.msk [vmem:[#allocation2 + $0x86] sm:$0xff] %vm607, %v472
    %625 = vst.msk [vmem:[#allocation2 + $0x8e] sm:$0xfc] %vm605, %v474
    %626 = vst.msk [vmem:[#allocation2 + $0x96] sm:$0xff] %vm607, %v476
    %627 = vst.msk [vmem:[#allocation2 + $0x9e] sm:$0xfc] %vm605, %v478
    %628 = vst.msk [vmem:[#allocation2 + $0xa6] sm:$0xff] %vm607, %v480
    %629 = vst.msk [vmem:[#allocation2 + $0xae] sm:$0xfc] %vm605, %v482
    %630 = vst.msk [vmem:[#allocation2 + $0xb6] sm:$0xff] %vm607, %v484
    %631 = vst.msk [vmem:[#allocation2 + $0xbe] sm:$0xfc] %vm605, %v486
    %632 = vst.msk [vmem:[#allocation2 + $0xc6] sm:$0xff] %vm607, %v488
    %633 = vst.msk [vmem:[#allocation2 + $0xce] sm:$0xfc] %vm605, %v490
    %634 = vst.msk [vmem:[#allocation2 + $0xd6] sm:$0xff] %vm607, %v492
    %635 = vst.msk [vmem:[#allocation2 + $0xde] sm:$0xfc] %vm605, %v494
    %636 = vst.msk [vmem:[#allocation2 + $0xe6] sm:$0xff] %vm607, %v496
    %637 = vst.msk [vmem:[#allocation2 + $0xee] sm:$0xfc] %vm605, %v498
    %638 = vst.msk [vmem:[#allocation2 + $0xf6] sm:$0xff] %vm607, %v500
    %639 = vst.msk [vmem:[#allocation2 + $0xfe] sm:$0xfc] %vm605, %v502
    %640 = vst.msk [vmem:[#allocation2 + $0x106] sm:$0xff] %vm607, %v504
    %641 = vst.msk [vmem:[#allocation2 + $0x10e] sm:$0xfc] %vm605, %v506
    %642 = vst.msk [vmem:[#allocation2 + $0x116] sm:$0xff] %vm607, %v508
    %643 = vst.msk [vmem:[#allocation2 + $0x11e] sm:$0xfc] %vm605, %v510
    %644 = vst.msk [vmem:[#allocation2 + $0x126] sm:$0xff] %vm607, %v512
    %645 = vst.msk [vmem:[#allocation2 + $0x12e] sm:$0xfc] %vm605, %v514
    %646 = vst.msk [vmem:[#allocation2 + $0x136] sm:$0xff] %vm607, %v516
    %647 = vst.msk [vmem:[#allocation2 + $0x13e] sm:$0xfc] %vm605, %v518
    %648 = vst.msk [vmem:[#allocation2 + $0x146] sm:$0xff] %vm607, %v520
    %649 = vst.msk [vmem:[#allocation2 + $0x14e] sm:$0xfc] %vm605, %v522
    %650 = vst.msk [vmem:[#allocation2 + $0x156] sm:$0xff] %vm607, %v524
    %651 = vst.msk [vmem:[#allocation2 + $0x15e] sm:$0xfc] %vm605, %v526
    %652 = vst.msk [vmem:[#allocation2 + $0x166] sm:$0xff] %vm607, %v528
    %653 = vst.msk [vmem:[#allocation2 + $0x16e] sm:$0xfc] %vm605, %v530
    %654 = vst.msk [vmem:[#allocation2 + $0x176] sm:$0xff] %vm607, %v532
    %655 = vst.msk [vmem:[#allocation2 + $0x17e] sm:$0xfc] %vm605, %v534
    %656 = vst.msk [vmem:[#allocation2 + $0x186] sm:$0xff] %vm607, %v536
    %657 = vst.msk [vmem:[#allocation2 + $0x18e] sm:$0xfc] %vm605, %v538
    %658 = vst.msk [vmem:[#allocation2 + $0x196] sm:$0xff] %vm607, %v540
    %659 = vst.msk [vmem:[#allocation2 + $0x19e] sm:$0xfc] %vm605, %v542
    %660 = vst.msk [vmem:[#allocation2 + $0x1a6] sm:$0xff] %vm607, %v544
    %661 = vst.msk [vmem:[#allocation2 + $0x1ae] sm:$0xfc] %vm605, %v546
    %662 = vst.msk [vmem:[#allocation2 + $0x1b6] sm:$0xff] %vm607, %v548
    %667 = vrot.lane.b32.xlu0 %v35, 12
    %v668 = vpop.permute.xlu0 %667
    %669 = vrot.lane.b32.xlu0 %v36, 12
    %v670 = vpop.permute.xlu0 %669
    %671 = vrot.lane.b32.xlu0 %v37, 12
    %v672 = vpop.permute.xlu0 %671
    %673 = vrot.lane.b32.xlu0 %v38, 12
    %v674 = vpop.permute.xlu0 %673
    %675 = vrot.lane.b32.xlu0 %v39, 12
    %v676 = vpop.permute.xlu0 %675
    %677 = vrot.lane.b32.xlu0 %v40, 12
    %v678 = vpop.permute.xlu0 %677
    %679 = vrot.lane.b32.xlu0 %v41, 12
    %v680 = vpop.permute.xlu0 %679
    %681 = vrot.lane.b32.xlu0 %v42, 12
    %v682 = vpop.permute.xlu0 %681
    %683 = vrot.lane.b32.xlu0 %v43, 12
    %v684 = vpop.permute.xlu0 %683
    %685 = vrot.lane.b32.xlu0 %v44, 12
    %v686 = vpop.permute.xlu0 %685
    %687 = vrot.lane.b32.xlu0 %v45, 12
    %v688 = vpop.permute.xlu0 %687
    %689 = vrot.lane.b32.xlu0 %v46, 12
    %v690 = vpop.permute.xlu0 %689
    %691 = vrot.lane.b32.xlu0 %v47, 12
    %v692 = vpop.permute.xlu0 %691
    %693 = vrot.lane.b32.xlu0 %v48, 12
    %v694 = vpop.permute.xlu0 %693
    %695 = vrot.lane.b32.xlu0 %v49, 12
    %v696 = vpop.permute.xlu0 %695
    %697 = vrot.lane.b32.xlu0 %v50, 12
    %v698 = vpop.permute.xlu0 %697
    %699 = vrot.lane.b32.xlu0 %v51, 12
    %v700 = vpop.permute.xlu0 %699
    %701 = vrot.lane.b32.xlu0 %v52, 12
    %v702 = vpop.permute.xlu0 %701
    %703 = vrot.lane.b32.xlu0 %v53, 12
    %v704 = vpop.permute.xlu0 %703
    %705 = vrot.lane.b32.xlu0 %v54, 12
    %v706 = vpop.permute.xlu0 %705
    %707 = vrot.lane.b32.xlu0 %v55, 12
    %v708 = vpop.permute.xlu0 %707
    %709 = vrot.lane.b32.xlu0 %v56, 12
    %v710 = vpop.permute.xlu0 %709
    %711 = vrot.lane.b32.xlu0 %v57, 12
    %v712 = vpop.permute.xlu0 %711
    %713 = vrot.lane.b32.xlu0 %v58, 12
    %v714 = vpop.permute.xlu0 %713
    %715 = vrot.lane.b32.xlu0 %v59, 12
    %v716 = vpop.permute.xlu0 %715
    %717 = vrot.lane.b32.xlu0 %v60, 12
    %v718 = vpop.permute.xlu0 %717
    %719 = vrot.lane.b32.xlu0 %v61, 12
    %v720 = vpop.permute.xlu0 %719
    %721 = vrot.lane.b32.xlu0 %v62, 12
    %v722 = vpop.permute.xlu0 %721
    %723 = vrot.lane.b32.xlu0 %v67, 12
    %v724 = vpop.permute.xlu0 %723
    %725 = vrot.lane.b32.xlu0 %v68, 12
    %v726 = vpop.permute.xlu0 %725
    %727 = vrot.lane.b32.xlu0 %v69, 12
    %v728 = vpop.permute.xlu0 %727
    %729 = vrot.lane.b32.xlu0 %v70, 12
    %v730 = vpop.permute.xlu0 %729
    %731 = vrot.lane.b32.xlu0 %v71, 12
    %v732 = vpop.permute.xlu0 %731
    %733 = vrot.lane.b32.xlu0 %v72, 12
    %v734 = vpop.permute.xlu0 %733
    %735 = vrot.lane.b32.xlu0 %v73, 12
    %v736 = vpop.permute.xlu0 %735
    %737 = vrot.lane.b32.xlu0 %v74, 12
    %v738 = vpop.permute.xlu0 %737
    %739 = vrot.lane.b32.xlu0 %v75, 12
    %v740 = vpop.permute.xlu0 %739
    %741 = vrot.lane.b32.xlu0 %v76, 12
    %v742 = vpop.permute.xlu0 %741
    %743 = vrot.lane.b32.xlu0 %v77, 12
    %v744 = vpop.permute.xlu0 %743
    %745 = vrot.lane.b32.xlu0 %v78, 12
    %v746 = vpop.permute.xlu0 %745
    %747 = vrot.lane.b32.xlu0 %v79, 12
    %v748 = vpop.permute.xlu0 %747
    %749 = vrot.lane.b32.xlu0 %v80, 12
    %v750 = vpop.permute.xlu0 %749
    %751 = vrot.lane.b32.xlu0 %v81, 12
    %v752 = vpop.permute.xlu0 %751
    %753 = vrot.lane.b32.xlu0 %v82, 12
    %v754 = vpop.permute.xlu0 %753
    %755 = vrot.lane.b32.xlu0 %v83, 12
    %v756 = vpop.permute.xlu0 %755
    %757 = vrot.lane.b32.xlu0 %v84, 12
    %v758 = vpop.permute.xlu0 %757
    %759 = vrot.lane.b32.xlu0 %v85, 12
    %v760 = vpop.permute.xlu0 %759
    %761 = vrot.lane.b32.xlu0 %v86, 12
    %v762 = vpop.permute.xlu0 %761
    %763 = vrot.lane.b32.xlu0 %v87, 12
    %v764 = vpop.permute.xlu0 %763
    %765 = vrot.lane.b32.xlu0 %v88, 12
    %v766 = vpop.permute.xlu0 %765
    %767 = vrot.lane.b32.xlu0 %v89, 12
    %v768 = vpop.permute.xlu0 %767
    %769 = vrot.lane.b32.xlu0 %v90, 12
    %v770 = vpop.permute.xlu0 %769
    %771 = vrot.lane.b32.xlu0 %v91, 12
    %v772 = vpop.permute.xlu0 %771
    %773 = vrot.lane.b32.xlu0 %v92, 12
    %v774 = vpop.permute.xlu0 %773
    %775 = vrot.lane.b32.xlu0 %v93, 12
    %v776 = vpop.permute.xlu0 %775
    %777 = vrot.lane.b32.xlu0 %v94, 12
    %v778 = vpop.permute.xlu0 %777
    %vm835 = vcmask 130144
    %836 = vst.msk [vmem:[#allocation2] sm:$0xff] %vm835, %v668
    %vm837 = vcmask 128096
    %838 = vst.msk [vmem:[#allocation2 + $0x8] sm:$0x3f] %vm837, %v670
    %839 = vst.msk [vmem:[#allocation2 + $0x10] sm:$0xff] %vm835, %v672
    %840 = vst.msk [vmem:[#allocation2 + $0x18] sm:$0x3f] %vm837, %v674
    %841 = vst.msk [vmem:[#allocation2 + $0x20] sm:$0xff] %vm835, %v676
    %842 = vst.msk [vmem:[#allocation2 + $0x28] sm:$0x3f] %vm837, %v678
    %843 = vst.msk [vmem:[#allocation2 + $0x30] sm:$0xff] %vm835, %v680
    %844 = vst.msk [vmem:[#allocation2 + $0x38] sm:$0x3f] %vm837, %v682
    %845 = vst.msk [vmem:[#allocation2 + $0x40] sm:$0xff] %vm835, %v684
    %846 = vst.msk [vmem:[#allocation2 + $0x48] sm:$0x3f] %vm837, %v686
    %847 = vst.msk [vmem:[#allocation2 + $0x50] sm:$0xff] %vm835, %v688
    %848 = vst.msk [vmem:[#allocation2 + $0x58] sm:$0x3f] %vm837, %v690
    %849 = vst.msk [vmem:[#allocation2 + $0x60] sm:$0xff] %vm835, %v692
    %850 = vst.msk [vmem:[#allocation2 + $0x68] sm:$0x3f] %vm837, %v694
    %851 = vst.msk [vmem:[#allocation2 + $0x70] sm:$0xff] %vm835, %v696
    %852 = vst.msk [vmem:[#allocation2 + $0x78] sm:$0x3f] %vm837, %v698
    %853 = vst.msk [vmem:[#allocation2 + $0x80] sm:$0xff] %vm835, %v700
    %854 = vst.msk [vmem:[#allocation2 + $0x88] sm:$0x3f] %vm837, %v702
    %855 = vst.msk [vmem:[#allocation2 + $0x90] sm:$0xff] %vm835, %v704
    %856 = vst.msk [vmem:[#allocation2 + $0x98] sm:$0x3f] %vm837, %v706
    %857 = vst.msk [vmem:[#allocation2 + $0xa0] sm:$0xff] %vm835, %v708
    %858 = vst.msk [vmem:[#allocation2 + $0xa8] sm:$0x3f] %vm837, %v710
    %859 = vst.msk [vmem:[#allocation2 + $0xb0] sm:$0xff] %vm835, %v712
    %860 = vst.msk [vmem:[#allocation2 + $0xb8] sm:$0x3f] %vm837, %v714
    %861 = vst.msk [vmem:[#allocation2 + $0xc0] sm:$0xff] %vm835, %v716
    %862 = vst.msk [vmem:[#allocation2 + $0xc8] sm:$0x3f] %vm837, %v718
    %863 = vst.msk [vmem:[#allocation2 + $0xd0] sm:$0xff] %vm835, %v720
    %864 = vst.msk [vmem:[#allocation2 + $0xd8] sm:$0x3f] %vm837, %v722
    %865 = vst.msk [vmem:[#allocation2 + $0xe0] sm:$0xff] %vm835, %v724
    %866 = vst.msk [vmem:[#allocation2 + $0xe8] sm:$0x3f] %vm837, %v726
    %867 = vst.msk [vmem:[#allocation2 + $0xf0] sm:$0xff] %vm835, %v728
    %868 = vst.msk [vmem:[#allocation2 + $0xf8] sm:$0x3f] %vm837, %v730
    %869 = vst.msk [vmem:[#allocation2 + $0x100] sm:$0xff] %vm835, %v732
    %870 = vst.msk [vmem:[#allocation2 + $0x108] sm:$0x3f] %vm837, %v734
    %871 = vst.msk [vmem:[#allocation2 + $0x110] sm:$0xff] %vm835, %v736
    %872 = vst.msk [vmem:[#allocation2 + $0x118] sm:$0x3f] %vm837, %v738
    %873 = vst.msk [vmem:[#allocation2 + $0x120] sm:$0xff] %vm835, %v740
    %874 = vst.msk [vmem:[#allocation2 + $0x128] sm:$0x3f] %vm837, %v742
    %875 = vst.msk [vmem:[#allocation2 + $0x130] sm:$0xff] %vm835, %v744
    %876 = vst.msk [vmem:[#allocation2 + $0x138] sm:$0x3f] %vm837, %v746
    %877 = vst.msk [vmem:[#allocation2 + $0x140] sm:$0xff] %vm835, %v748
    %878 = vst.msk [vmem:[#allocation2 + $0x148] sm:$0x3f] %vm837, %v750
    %879 = vst.msk [vmem:[#allocation2 + $0x150] sm:$0xff] %vm835, %v752
    %880 = vst.msk [vmem:[#allocation2 + $0x158] sm:$0x3f] %vm837, %v754
    %881 = vst.msk [vmem:[#allocation2 + $0x160] sm:$0xff] %vm835, %v756
    %882 = vst.msk [vmem:[#allocation2 + $0x168] sm:$0x3f] %vm837, %v758
    %883 = vst.msk [vmem:[#allocation2 + $0x170] sm:$0xff] %vm835, %v760
    %884 = vst.msk [vmem:[#allocation2 + $0x178] sm:$0x3f] %vm837, %v762
    %885 = vst.msk [vmem:[#allocation2 + $0x180] sm:$0xff] %vm835, %v764
    %886 = vst.msk [vmem:[#allocation2 + $0x188] sm:$0x3f] %vm837, %v766
    %887 = vst.msk [vmem:[#allocation2 + $0x190] sm:$0xff] %vm835, %v768
    %888 = vst.msk [vmem:[#allocation2 + $0x198] sm:$0x3f] %vm837, %v770
    %889 = vst.msk [vmem:[#allocation2 + $0x1a0] sm:$0xff] %vm835, %v772
    %890 = vst.msk [vmem:[#allocation2 + $0x1a8] sm:$0x3f] %vm837, %v774
    %891 = vst.msk [vmem:[#allocation2 + $0x1b0] sm:$0xff] %vm835, %v776
    %892 = vst.msk [vmem:[#allocation2 + $0x1b8] sm:$0x3f] %vm837, %v778
    %893 = vrot.lane.b32.xlu0 %v35, 16
    %v894 = vpop.permute.xlu0 %893
    %895 = vrot.lane.b32.xlu0 %v36, 16
    %v896 = vpop.permute.xlu0 %895
    %897 = vrot.lane.b32.xlu0 %v37, 16
    %v898 = vpop.permute.xlu0 %897
    %899 = vrot.lane.b32.xlu0 %v38, 16
    %v900 = vpop.permute.xlu0 %899
    %901 = vrot.lane.b32.xlu0 %v39, 16
    %v902 = vpop.permute.xlu0 %901
    %903 = vrot.lane.b32.xlu0 %v40, 16
    %v904 = vpop.permute.xlu0 %903
    %905 = vrot.lane.b32.xlu0 %v41, 16
    %v906 = vpop.permute.xlu0 %905
    %907 = vrot.lane.b32.xlu0 %v42, 16
    %v908 = vpop.permute.xlu0 %907
    %909 = vrot.lane.b32.xlu0 %v43, 16
    %v910 = vpop.permute.xlu0 %909
    %911 = vrot.lane.b32.xlu0 %v44, 16
    %v912 = vpop.permute.xlu0 %911
    %913 = vrot.lane.b32.xlu0 %v45, 16
    %v914 = vpop.permute.xlu0 %913
    %915 = vrot.lane.b32.xlu0 %v46, 16
    %v916 = vpop.permute.xlu0 %915
    %917 = vrot.lane.b32.xlu0 %v47, 16
    %v918 = vpop.permute.xlu0 %917
    %919 = vrot.lane.b32.xlu0 %v48, 16
    %v920 = vpop.permute.xlu0 %919
    %921 = vrot.lane.b32.xlu0 %v49, 16
    %v922 = vpop.permute.xlu0 %921
    %923 = vrot.lane.b32.xlu0 %v50, 16
    %v924 = vpop.permute.xlu0 %923
    %925 = vrot.lane.b32.xlu0 %v51, 16
    %v926 = vpop.permute.xlu0 %925
    %927 = vrot.lane.b32.xlu0 %v52, 16
    %v928 = vpop.permute.xlu0 %927
    %929 = vrot.lane.b32.xlu0 %v53, 16
    %v930 = vpop.permute.xlu0 %929
    %931 = vrot.lane.b32.xlu0 %v54, 16
    %v932 = vpop.permute.xlu0 %931
    %933 = vrot.lane.b32.xlu0 %v55, 16
    %v934 = vpop.permute.xlu0 %933
    %935 = vrot.lane.b32.xlu0 %v56, 16
    %v936 = vpop.permute.xlu0 %935
    %937 = vrot.lane.b32.xlu0 %v57, 16
    %v938 = vpop.permute.xlu0 %937
    %939 = vrot.lane.b32.xlu0 %v58, 16
    %v940 = vpop.permute.xlu0 %939
    %941 = vrot.lane.b32.xlu0 %v59, 16
    %v942 = vpop.permute.xlu0 %941
    %943 = vrot.lane.b32.xlu0 %v60, 16
    %v944 = vpop.permute.xlu0 %943
    %945 = vrot.lane.b32.xlu0 %v61, 16
    %v946 = vpop.permute.xlu0 %945
    %947 = vrot.lane.b32.xlu0 %v62, 16
    %v948 = vpop.permute.xlu0 %947
    %949 = vrot.lane.b32.xlu0 %v67, 16
    %v950 = vpop.permute.xlu0 %949
    %951 = vrot.lane.b32.xlu0 %v68, 16
    %v952 = vpop.permute.xlu0 %951
    %953 = vrot.lane.b32.xlu0 %v69, 16
    %v954 = vpop.permute.xlu0 %953
    %955 = vrot.lane.b32.xlu0 %v70, 16
    %v956 = vpop.permute.xlu0 %955
    %957 = vrot.lane.b32.xlu0 %v71, 16
    %v958 = vpop.permute.xlu0 %957
    %959 = vrot.lane.b32.xlu0 %v72, 16
    %v960 = vpop.permute.xlu0 %959
    %961 = vrot.lane.b32.xlu0 %v73, 16
    %v962 = vpop.permute.xlu0 %961
    %963 = vrot.lane.b32.xlu0 %v74, 16
    %v964 = vpop.permute.xlu0 %963
    %965 = vrot.lane.b32.xlu0 %v75, 16
    %v966 = vpop.permute.xlu0 %965
    %967 = vrot.lane.b32.xlu0 %v76, 16
    %v968 = vpop.permute.xlu0 %967
    %969 = vrot.lane.b32.xlu0 %v77, 16
    %v970 = vpop.permute.xlu0 %969
    %971 = vrot.lane.b32.xlu0 %v78, 16
    %v972 = vpop.permute.xlu0 %971
    %973 = vrot.lane.b32.xlu0 %v79, 16
    %v974 = vpop.permute.xlu0 %973
    %975 = vrot.lane.b32.xlu0 %v80, 16
    %v976 = vpop.permute.xlu0 %975
    %977 = vrot.lane.b32.xlu0 %v81, 16
    %v978 = vpop.permute.xlu0 %977
    %979 = vrot.lane.b32.xlu0 %v82, 16
    %v980 = vpop.permute.xlu0 %979
    %981 = vrot.lane.b32.xlu0 %v83, 16
    %v982 = vpop.permute.xlu0 %981
    %983 = vrot.lane.b32.xlu0 %v84, 16
    %v984 = vpop.permute.xlu0 %983
    %985 = vrot.lane.b32.xlu0 %v85, 16
    %v986 = vpop.permute.xlu0 %985
    %987 = vrot.lane.b32.xlu0 %v86, 16
    %v988 = vpop.permute.xlu0 %987
    %989 = vrot.lane.b32.xlu0 %v87, 16
    %v990 = vpop.permute.xlu0 %989
    %991 = vrot.lane.b32.xlu0 %v88, 16
    %v992 = vpop.permute.xlu0 %991
    %993 = vrot.lane.b32.xlu0 %v89, 16
    %v994 = vpop.permute.xlu0 %993
    %995 = vrot.lane.b32.xlu0 %v90, 16
    %v996 = vpop.permute.xlu0 %995
    %997 = vrot.lane.b32.xlu0 %v91, 16
    %v998 = vpop.permute.xlu0 %997
    %999 = vrot.lane.b32.xlu0 %v92, 16
    %v1000 = vpop.permute.xlu0 %999
    %1001 = vrot.lane.b32.xlu0 %v93, 16
    %v1002 = vpop.permute.xlu0 %1001
    %1003 = vrot.lane.b32.xlu0 %v94, 16
    %v1004 = vpop.permute.xlu0 %1003
    %vm1061 = vcmask 162945
    %1062 = vst.msk [vmem:[#allocation2 - $0x1] sm:$0xfe] %vm1061, %v894
    %vm1063 = vcmask 161920
    %1064 = vst.msk [vmem:[#allocation2 + $0x7] sm:$0x7f] %vm1063, %v896
    %1065 = vst.msk [vmem:[#allocation2 + $0xf] sm:$0xfe] %vm1061, %v898
    %1066 = vst.msk [vmem:[#allocation2 + $0x17] sm:$0x7f] %vm1063, %v900
    %1067 = vst.msk [vmem:[#allocation2 + $0x1f] sm:$0xfe] %vm1061, %v902
    %1068 = vst.msk [vmem:[#allocation2 + $0x27] sm:$0x7f] %vm1063, %v904
    %1069 = vst.msk [vmem:[#allocation2 + $0x2f] sm:$0xfe] %vm1061, %v906
    %1070 = vst.msk [vmem:[#allocation2 + $0x37] sm:$0x7f] %vm1063, %v908
    %1071 = vst.msk [vmem:[#allocation2 + $0x3f] sm:$0xfe] %vm1061, %v910
    %1072 = vst.msk [vmem:[#allocation2 + $0x47] sm:$0x7f] %vm1063, %v912
    %1073 = vst.msk [vmem:[#allocation2 + $0x4f] sm:$0xfe] %vm1061, %v914
    %1074 = vst.msk [vmem:[#allocation2 + $0x57] sm:$0x7f] %vm1063, %v916
    %1075 = vst.msk [vmem:[#allocation2 + $0x5f] sm:$0xfe] %vm1061, %v918
    %1076 = vst.msk [vmem:[#allocation2 + $0x67] sm:$0x7f] %vm1063, %v920
    %1077 = vst.msk [vmem:[#allocation2 + $0x6f] sm:$0xfe] %vm1061, %v922
    %1078 = vst.msk [vmem:[#allocation2 + $0x77] sm:$0x7f] %vm1063, %v924
    %1079 = vst.msk [vmem:[#allocation2 + $0x7f] sm:$0xfe] %vm1061, %v926
    %1080 = vst.msk [vmem:[#allocation2 + $0x87] sm:$0x7f] %vm1063, %v928
    %1081 = vst.msk [vmem:[#allocation2 + $0x8f] sm:$0xfe] %vm1061, %v930
    %1082 = vst.msk [vmem:[#allocation2 + $0x97] sm:$0x7f] %vm1063, %v932
    %1083 = vst.msk [vmem:[#allocation2 + $0x9f] sm:$0xfe] %vm1061, %v934
    %1084 = vst.msk [vmem:[#allocation2 + $0xa7] sm:$0x7f] %vm1063, %v936
    %1085 = vst.msk [vmem:[#allocation2 + $0xaf] sm:$0xfe] %vm1061, %v938
    %1086 = vst.msk [vmem:[#allocation2 + $0xb7] sm:$0x7f] %vm1063, %v940
    %1087 = vst.msk [vmem:[#allocation2 + $0xbf] sm:$0xfe] %vm1061, %v942
    %1088 = vst.msk [vmem:[#allocation2 + $0xc7] sm:$0x7f] %vm1063, %v944
    %1089 = vst.msk [vmem:[#allocation2 + $0xcf] sm:$0xfe] %vm1061, %v946
    %1090 = vst.msk [vmem:[#allocation2 + $0xd7] sm:$0x7f] %vm1063, %v948
    %1091 = vst.msk [vmem:[#allocation2 + $0xdf] sm:$0xfe] %vm1061, %v950
    %1092 = vst.msk [vmem:[#allocation2 + $0xe7] sm:$0x7f] %vm1063, %v952
    %1093 = vst.msk [vmem:[#allocation2 + $0xef] sm:$0xfe] %vm1061, %v954
    %1094 = vst.msk [vmem:[#allocation2 + $0xf7] sm:$0x7f] %vm1063, %v956
    %1095 = vst.msk [vmem:[#allocation2 + $0xff] sm:$0xfe] %vm1061, %v958
    %1096 = vst.msk [vmem:[#allocation2 + $0x107] sm:$0x7f] %vm1063, %v960
    %1097 = vst.msk [vmem:[#allocation2 + $0x10f] sm:$0xfe] %vm1061, %v962
    %1098 = vst.msk [vmem:[#allocation2 + $0x117] sm:$0x7f] %vm1063, %v964
    %1099 = vst.msk [vmem:[#allocation2 + $0x11f] sm:$0xfe] %vm1061, %v966
    %1100 = vst.msk [vmem:[#allocation2 + $0x127] sm:$0x7f] %vm1063, %v968
    %1101 = vst.msk [vmem:[#allocation2 + $0x12f] sm:$0xfe] %vm1061, %v970
    %1102 = vst.msk [vmem:[#allocation2 + $0x137] sm:$0x7f] %vm1063, %v972
    %1103 = vst.msk [vmem:[#allocation2 + $0x13f] sm:$0xfe] %vm1061, %v974
    %1104 = vst.msk [vmem:[#allocation2 + $0x147] sm:$0x7f] %vm1063, %v976
    %1105 = vst.msk [vmem:[#allocation2 + $0x14f] sm:$0xfe] %vm1061, %v978
    %1106 = vst.msk [vmem:[#allocation2 + $0x157] sm:$0x7f] %vm1063, %v980
    %1107 = vst.msk [vmem:[#allocation2 + $0x15f] sm:$0xfe] %vm1061, %v982
    %1108 = vst.msk [vmem:[#allocation2 + $0x167] sm:$0x7f] %vm1063, %v984
    %1109 = vst.msk [vmem:[#allocation2 + $0x16f] sm:$0xfe] %vm1061, %v986
    %1110 = vst.msk [vmem:[#allocation2 + $0x177] sm:$0x7f] %vm1063, %v988
    %1111 = vst.msk [vmem:[#allocation2 + $0x17f] sm:$0xfe] %vm1061, %v990
    %1112 = vst.msk [vmem:[#allocation2 + $0x187] sm:$0x7f] %vm1063, %v992
    %1113 = vst.msk [vmem:[#allocation2 + $0x18f] sm:$0xfe] %vm1061, %v994
    %1114 = vst.msk [vmem:[#allocation2 + $0x197] sm:$0x7f] %vm1063, %v996
    %1115 = vst.msk [vmem:[#allocation2 + $0x19f] sm:$0xfe] %vm1061, %v998
    %1116 = vst.msk [vmem:[#allocation2 + $0x1a7] sm:$0x7f] %vm1063, %v1000
    %1117 = vst.msk [vmem:[#allocation2 + $0x1af] sm:$0xfe] %vm1061, %v1002
    %1118 = vst.msk [vmem:[#allocation2 + $0x1b7] sm:$0x7f] %vm1063, %v1004
    %1119 = vrot.lane.b32.xlu0 %v35, 20
    %v1120 = vpop.permute.xlu0 %1119
    %1121 = vrot.lane.b32.xlu0 %v36, 20
    %v1122 = vpop.permute.xlu0 %1121
    %1123 = vrot.lane.b32.xlu0 %v37, 20
    %v1124 = vpop.permute.xlu0 %1123
    %1125 = vrot.lane.b32.xlu0 %v38, 20
    %v1126 = vpop.permute.xlu0 %1125
    %1127 = vrot.lane.b32.xlu0 %v39, 20
    %v1128 = vpop.permute.xlu0 %1127
    %1129 = vrot.lane.b32.xlu0 %v40, 20
    %v1130 = vpop.permute.xlu0 %1129
    %1131 = vrot.lane.b32.xlu0 %v41, 20
    %v1132 = vpop.permute.xlu0 %1131
    %1133 = vrot.lane.b32.xlu0 %v42, 20
    %v1134 = vpop.permute.xlu0 %1133
    %1135 = vrot.lane.b32.xlu0 %v43, 20
    %v1136 = vpop.permute.xlu0 %1135
    %1137 = vrot.lane.b32.xlu0 %v44, 20
    %v1138 = vpop.permute.xlu0 %1137
    %1139 = vrot.lane.b32.xlu0 %v45, 20
    %v1140 = vpop.permute.xlu0 %1139
    %1141 = vrot.lane.b32.xlu0 %v46, 20
    %v1142 = vpop.permute.xlu0 %1141
    %1143 = vrot.lane.b32.xlu0 %v47, 20
    %v1144 = vpop.permute.xlu0 %1143
    %1145 = vrot.lane.b32.xlu0 %v48, 20
    %v1146 = vpop.permute.xlu0 %1145
    %1147 = vrot.lane.b32.xlu0 %v49, 20
    %v1148 = vpop.permute.xlu0 %1147
    %1149 = vrot.lane.b32.xlu0 %v50, 20
    %v1150 = vpop.permute.xlu0 %1149
    %1151 = vrot.lane.b32.xlu0 %v51, 20
    %v1152 = vpop.permute.xlu0 %1151
    %1153 = vrot.lane.b32.xlu0 %v52, 20
    %v1154 = vpop.permute.xlu0 %1153
    %1155 = vrot.lane.b32.xlu0 %v53, 20
    %v1156 = vpop.permute.xlu0 %1155
    %1157 = vrot.lane.b32.xlu0 %v54, 20
    %v1158 = vpop.permute.xlu0 %1157
    %1159 = vrot.lane.b32.xlu0 %v55, 20
    %v1160 = vpop.permute.xlu0 %1159
    %1161 = vrot.lane.b32.xlu0 %v56, 20
    %v1162 = vpop.permute.xlu0 %1161
    %1163 = vrot.lane.b32.xlu0 %v57, 20
    %v1164 = vpop.permute.xlu0 %1163
    %1165 = vrot.lane.b32.xlu0 %v58, 20
    %v1166 = vpop.permute.xlu0 %1165
    %1167 = vrot.lane.b32.xlu0 %v59, 20
    %v1168 = vpop.permute.xlu0 %1167
    %1169 = vrot.lane.b32.xlu0 %v60, 20
    %v1170 = vpop.permute.xlu0 %1169
    %1171 = vrot.lane.b32.xlu0 %v61, 20
    %v1172 = vpop.permute.xlu0 %1171
    %1173 = vrot.lane.b32.xlu0 %v62, 20
    %v1174 = vpop.permute.xlu0 %1173
    %1175 = vrot.lane.b32.xlu0 %v67, 20
    %v1176 = vpop.permute.xlu0 %1175
    %1177 = vrot.lane.b32.xlu0 %v68, 20
    %v1178 = vpop.permute.xlu0 %1177
    %1179 = vrot.lane.b32.xlu0 %v69, 20
    %v1180 = vpop.permute.xlu0 %1179
    %1181 = vrot.lane.b32.xlu0 %v70, 20
    %v1182 = vpop.permute.xlu0 %1181
    %1183 = vrot.lane.b32.xlu0 %v71, 20
    %v1184 = vpop.permute.xlu0 %1183
    %1185 = vrot.lane.b32.xlu0 %v72, 20
    %v1186 = vpop.permute.xlu0 %1185
    %1187 = vrot.lane.b32.xlu0 %v73, 20
    %v1188 = vpop.permute.xlu0 %1187
    %1189 = vrot.lane.b32.xlu0 %v74, 20
    %v1190 = vpop.permute.xlu0 %1189
    %1191 = vrot.lane.b32.xlu0 %v75, 20
    %v1192 = vpop.permute.xlu0 %1191
    %1193 = vrot.lane.b32.xlu0 %v76, 20
    %v1194 = vpop.permute.xlu0 %1193
    %1195 = vrot.lane.b32.xlu0 %v77, 20
    %v1196 = vpop.permute.xlu0 %1195
    %1197 = vrot.lane.b32.xlu0 %v78, 20
    %v1198 = vpop.permute.xlu0 %1197
    %1199 = vrot.lane.b32.xlu0 %v79, 20
    %v1200 = vpop.permute.xlu0 %1199
    %1201 = vrot.lane.b32.xlu0 %v80, 20
    %v1202 = vpop.permute.xlu0 %1201
    %1203 = vrot.lane.b32.xlu0 %v81, 20
    %v1204 = vpop.permute.xlu0 %1203
    %1205 = vrot.lane.b32.xlu0 %v82, 20
    %v1206 = vpop.permute.xlu0 %1205
    %1207 = vrot.lane.b32.xlu0 %v83, 20
    %v1208 = vpop.permute.xlu0 %1207
    %1209 = vrot.lane.b32.xlu0 %v84, 20
    %v1210 = vpop.permute.xlu0 %1209
    %1211 = vrot.lane.b32.xlu0 %v85, 20
    %v1212 = vpop.permute.xlu0 %1211
    %1213 = vrot.lane.b32.xlu0 %v86, 20
    %v1214 = vpop.permute.xlu0 %1213
    %1215 = vrot.lane.b32.xlu0 %v87, 20
    %v1216 = vpop.permute.xlu0 %1215
    %1217 = vrot.lane.b32.xlu0 %v88, 20
    %v1218 = vpop.permute.xlu0 %1217
    %1219 = vrot.lane.b32.xlu0 %v89, 20
    %v1220 = vpop.permute.xlu0 %1219
    %1221 = vrot.lane.b32.xlu0 %v90, 20
    %v1222 = vpop.permute.xlu0 %1221
    %1223 = vrot.lane.b32.xlu0 %v91, 20
    %v1224 = vpop.permute.xlu0 %1223
    %1225 = vrot.lane.b32.xlu0 %v92, 20
    %v1226 = vpop.permute.xlu0 %1225
    %1227 = vrot.lane.b32.xlu0 %v93, 20
    %v1228 = vpop.permute.xlu0 %1227
    %1229 = vrot.lane.b32.xlu0 %v94, 20
    %v1230 = vpop.permute.xlu0 %1229
    %vm1287 = vcmask 195746
    %1288 = vst.msk [vmem:[#allocation2 - $0x2] sm:$0xfc] %vm1287, %v1120
    %vm1289 = vcmask 195744
    %1290 = vst.msk [vmem:[#allocation2 + $0x6] sm:$0xff] %vm1289, %v1122
    %1291 = vst.msk [vmem:[#allocation2 + $0xe] sm:$0xfc] %vm1287, %v1124
    %1292 = vst.msk [vmem:[#allocation2 + $0x16] sm:$0xff] %vm1289, %v1126
    %1293 = vst.msk [vmem:[#allocation2 + $0x1e] sm:$0xfc] %vm1287, %v1128
    %1294 = vst.msk [vmem:[#allocation2 + $0x26] sm:$0xff] %vm1289, %v1130
    %1295 = vst.msk [vmem:[#allocation2 + $0x2e] sm:$0xfc] %vm1287, %v1132
    %1296 = vst.msk [vmem:[#allocation2 + $0x36] sm:$0xff] %vm1289, %v1134
    %1297 = vst.msk [vmem:[#allocation2 + $0x3e] sm:$0xfc] %vm1287, %v1136
    %1298 = vst.msk [vmem:[#allocation2 + $0x46] sm:$0xff] %vm1289, %v1138
    %1299 = vst.msk [vmem:[#allocation2 + $0x4e] sm:$0xfc] %vm1287, %v1140
    %1300 = vst.msk [vmem:[#allocation2 + $0x56] sm:$0xff] %vm1289, %v1142
    %1301 = vst.msk [vmem:[#allocation2 + $0x5e] sm:$0xfc] %vm1287, %v1144
    %1302 = vst.msk [vmem:[#allocation2 + $0x66] sm:$0xff] %vm1289, %v1146
    %1303 = vst.msk [vmem:[#allocation2 + $0x6e] sm:$0xfc] %vm1287, %v1148
    %1304 = vst.msk [vmem:[#allocation2 + $0x76] sm:$0xff] %vm1289, %v1150
    %1305 = vst.msk [vmem:[#allocation2 + $0x7e] sm:$0xfc] %vm1287, %v1152
    %1306 = vst.msk [vmem:[#allocation2 + $0x86] sm:$0xff] %vm1289, %v1154
    %1307 = vst.msk [vmem:[#allocation2 + $0x8e] sm:$0xfc] %vm1287, %v1156
    %1308 = vst.msk [vmem:[#allocation2 + $0x96] sm:$0xff] %vm1289, %v1158
    %1309 = vst.msk [vmem:[#allocation2 + $0x9e] sm:$0xfc] %vm1287, %v1160
    %1310 = vst.msk [vmem:[#allocation2 + $0xa6] sm:$0xff] %vm1289, %v1162
    %1311 = vst.msk [vmem:[#allocation2 + $0xae] sm:$0xfc] %vm1287, %v1164
    %1312 = vst.msk [vmem:[#allocation2 + $0xb6] sm:$0xff] %vm1289, %v1166
    %1313 = vst.msk [vmem:[#allocation2 + $0xbe] sm:$0xfc] %vm1287, %v1168
    %1314 = vst.msk [vmem:[#allocation2 + $0xc6] sm:$0xff] %vm1289, %v1170
    %1315 = vst.msk [vmem:[#allocation2 + $0xce] sm:$0xfc] %vm1287, %v1172
    %1316 = vst.msk [vmem:[#allocation2 + $0xd6] sm:$0xff] %vm1289, %v1174
    %1317 = vst.msk [vmem:[#allocation2 + $0xde] sm:$0xfc] %vm1287, %v1176
    %1318 = vst.msk [vmem:[#allocation2 + $0xe6] sm:$0xff] %vm1289, %v1178
    %1319 = vst.msk [vmem:[#allocation2 + $0xee] sm:$0xfc] %vm1287, %v1180
    %1320 = vst.msk [vmem:[#allocation2 + $0xf6] sm:$0xff] %vm1289, %v1182
    %1321 = vst.msk [vmem:[#allocation2 + $0xfe] sm:$0xfc] %vm1287, %v1184
    %1322 = vst.msk [vmem:[#allocation2 + $0x106] sm:$0xff] %vm1289, %v1186
    %1323 = vst.msk [vmem:[#allocation2 + $0x10e] sm:$0xfc] %vm1287, %v1188
    %1324 = vst.msk [vmem:[#allocation2 + $0x116] sm:$0xff] %vm1289, %v1190
    %1325 = vst.msk [vmem:[#allocation2 + $0x11e] sm:$0xfc] %vm1287, %v1192
    %1326 = vst.msk [vmem:[#allocation2 + $0x126] sm:$0xff] %vm1289, %v1194
    %1327 = vst.msk [vmem:[#allocation2 + $0x12e] sm:$0xfc] %vm1287, %v1196
    %1328 = vst.msk [vmem:[#allocation2 + $0x136] sm:$0xff] %vm1289, %v1198
    %1329 = vst.msk [vmem:[#allocation2 + $0x13e] sm:$0xfc] %vm1287, %v1200
    %1330 = vst.msk [vmem:[#allocation2 + $0x146] sm:$0xff] %vm1289, %v1202
    %1331 = vst.msk [vmem:[#allocation2 + $0x14e] sm:$0xfc] %vm1287, %v1204
    %1332 = vst.msk [vmem:[#allocation2 + $0x156] sm:$0xff] %vm1289, %v1206
    %1333 = vst.msk [vmem:[#allocation2 + $0x15e] sm:$0xfc] %vm1287, %v1208
    %1334 = vst.msk [vmem:[#allocation2 + $0x166] sm:$0xff] %vm1289, %v1210
    %1335 = vst.msk [vmem:[#allocation2 + $0x16e] sm:$0xfc] %vm1287, %v1212
    %1336 = vst.msk [vmem:[#allocation2 + $0x176] sm:$0xff] %vm1289, %v1214
    %1337 = vst.msk [vmem:[#allocation2 + $0x17e] sm:$0xfc] %vm1287, %v1216
    %1338 = vst.msk [vmem:[#allocation2 + $0x186] sm:$0xff] %vm1289, %v1218
    %1339 = vst.msk [vmem:[#allocation2 + $0x18e] sm:$0xfc] %vm1287, %v1220
    %1340 = vst.msk [vmem:[#allocation2 + $0x196] sm:$0xff] %vm1289, %v1222
    %1341 = vst.msk [vmem:[#allocation2 + $0x19e] sm:$0xfc] %vm1287, %v1224
    %1342 = vst.msk [vmem:[#allocation2 + $0x1a6] sm:$0xff] %vm1289, %v1226
    %1343 = vst.msk [vmem:[#allocation2 + $0x1ae] sm:$0xfc] %vm1287, %v1228
    %1344 = vst.msk [vmem:[#allocation2 + $0x1b6] sm:$0xff] %vm1289, %v1230
    %1349 = vrot.lane.b32.xlu0 %v37, 24
    %v1350 = vpop.permute.xlu0 %1349
    %1351 = vrot.lane.b32.xlu0 %v38, 24
    %v1352 = vpop.permute.xlu0 %1351
    %1353 = vrot.lane.b32.xlu0 %v39, 24
    %v1354 = vpop.permute.xlu0 %1353
    %1355 = vrot.lane.b32.xlu0 %v40, 24
    %v1356 = vpop.permute.xlu0 %1355
    %1357 = vrot.lane.b32.xlu0 %v41, 24
    %v1358 = vpop.permute.xlu0 %1357
    %1359 = vrot.lane.b32.xlu0 %v42, 24
    %v1360 = vpop.permute.xlu0 %1359
    %1361 = vrot.lane.b32.xlu0 %v43, 24
    %v1362 = vpop.permute.xlu0 %1361
    %1363 = vrot.lane.b32.xlu0 %v44, 24
    %v1364 = vpop.permute.xlu0 %1363
    %1365 = vrot.lane.b32.xlu0 %v45, 24
    %v1366 = vpop.permute.xlu0 %1365
    %1367 = vrot.lane.b32.xlu0 %v46, 24
    %v1368 = vpop.permute.xlu0 %1367
    %1369 = vrot.lane.b32.xlu0 %v47, 24
    %v1370 = vpop.permute.xlu0 %1369
    %1371 = vrot.lane.b32.xlu0 %v48, 24
    %v1372 = vpop.permute.xlu0 %1371
    %1373 = vrot.lane.b32.xlu0 %v49, 24
    %v1374 = vpop.permute.xlu0 %1373
    %1375 = vrot.lane.b32.xlu0 %v50, 24
    %v1376 = vpop.permute.xlu0 %1375
    %1377 = vrot.lane.b32.xlu0 %v51, 24
    %v1378 = vpop.permute.xlu0 %1377
    %1379 = vrot.lane.b32.xlu0 %v52, 24
    %v1380 = vpop.permute.xlu0 %1379
    %1381 = vrot.lane.b32.xlu0 %v53, 24
    %v1382 = vpop.permute.xlu0 %1381
    %1383 = vrot.lane.b32.xlu0 %v54, 24
    %v1384 = vpop.permute.xlu0 %1383
    %1385 = vrot.lane.b32.xlu0 %v55, 24
    %v1386 = vpop.permute.xlu0 %1385
    %1387 = vrot.lane.b32.xlu0 %v56, 24
    %v1388 = vpop.permute.xlu0 %1387
    %1389 = vrot.lane.b32.xlu0 %v57, 24
    %v1390 = vpop.permute.xlu0 %1389
    %1391 = vrot.lane.b32.xlu0 %v58, 24
    %v1392 = vpop.permute.xlu0 %1391
    %1393 = vrot.lane.b32.xlu0 %v59, 24
    %v1394 = vpop.permute.xlu0 %1393
    %1395 = vrot.lane.b32.xlu0 %v60, 24
    %v1396 = vpop.permute.xlu0 %1395
    %1397 = vrot.lane.b32.xlu0 %v61, 24
    %v1398 = vpop.permute.xlu0 %1397
    %1399 = vrot.lane.b32.xlu0 %v62, 24
    %v1400 = vpop.permute.xlu0 %1399
    %1401 = vrot.lane.b32.xlu0 %v63, 24
    %v1402 = vpop.permute.xlu0 %1401
    %1403 = vrot.lane.b32.xlu0 %v64, 24
    %v1404 = vpop.permute.xlu0 %1403
    %1405 = vrot.lane.b32.xlu0 %v69, 24
    %v1406 = vpop.permute.xlu0 %1405
    %1407 = vrot.lane.b32.xlu0 %v70, 24
    %v1408 = vpop.permute.xlu0 %1407
    %1409 = vrot.lane.b32.xlu0 %v71, 24
    %v1410 = vpop.permute.xlu0 %1409
    %1411 = vrot.lane.b32.xlu0 %v72, 24
    %v1412 = vpop.permute.xlu0 %1411
    %1413 = vrot.lane.b32.xlu0 %v73, 24
    %v1414 = vpop.permute.xlu0 %1413
    %1415 = vrot.lane.b32.xlu0 %v74, 24
    %v1416 = vpop.permute.xlu0 %1415
    %1417 = vrot.lane.b32.xlu0 %v75, 24
    %v1418 = vpop.permute.xlu0 %1417
    %1419 = vrot.lane.b32.xlu0 %v76, 24
    %v1420 = vpop.permute.xlu0 %1419
    %1421 = vrot.lane.b32.xlu0 %v77, 24
    %v1422 = vpop.permute.xlu0 %1421
    %1423 = vrot.lane.b32.xlu0 %v78, 24
    %v1424 = vpop.permute.xlu0 %1423
    %1425 = vrot.lane.b32.xlu0 %v79, 24
    %v1426 = vpop.permute.xlu0 %1425
    %1427 = vrot.lane.b32.xlu0 %v80, 24
    %v1428 = vpop.permute.xlu0 %1427
    %1429 = vrot.lane.b32.xlu0 %v81, 24
    %v1430 = vpop.permute.xlu0 %1429
    %1431 = vrot.lane.b32.xlu0 %v82, 24
    %v1432 = vpop.permute.xlu0 %1431
    %1433 = vrot.lane.b32.xlu0 %v83, 24
    %v1434 = vpop.permute.xlu0 %1433
    %1435 = vrot.lane.b32.xlu0 %v84, 24
    %v1436 = vpop.permute.xlu0 %1435
    %1437 = vrot.lane.b32.xlu0 %v85, 24
    %v1438 = vpop.permute.xlu0 %1437
    %1439 = vrot.lane.b32.xlu0 %v86, 24
    %v1440 = vpop.permute.xlu0 %1439
    %1441 = vrot.lane.b32.xlu0 %v87, 24
    %v1442 = vpop.permute.xlu0 %1441
    %1443 = vrot.lane.b32.xlu0 %v88, 24
    %v1444 = vpop.permute.xlu0 %1443
    %1445 = vrot.lane.b32.xlu0 %v89, 24
    %v1446 = vpop.permute.xlu0 %1445
    %1447 = vrot.lane.b32.xlu0 %v90, 24
    %v1448 = vpop.permute.xlu0 %1447
    %1449 = vrot.lane.b32.xlu0 %v91, 24
    %v1450 = vpop.permute.xlu0 %1449
    %1451 = vrot.lane.b32.xlu0 %v92, 24
    %v1452 = vpop.permute.xlu0 %1451
    %1453 = vrot.lane.b32.xlu0 %v93, 24
    %v1454 = vpop.permute.xlu0 %1453
    %1455 = vrot.lane.b32.xlu0 %v94, 24
    %v1456 = vpop.permute.xlu0 %1455
    %1457 = vrot.lane.b32.xlu0 %v95, 24
    %v1458 = vpop.permute.xlu0 %1457
    %1459 = vrot.lane.b32.xlu0 %v96, 24
    %v1460 = vpop.permute.xlu0 %1459
    %vm1517 = vcmask 228544
    %1518 = vst.msk [vmem:[#allocation2] sm:$0xff] %vm1517, %v1350
    %vm1519 = vcmask 226496
    %1520 = vst.msk [vmem:[#allocation2 + $0x8] sm:$0x3f] %vm1519, %v1352
    %1521 = vst.msk [vmem:[#allocation2 + $0x10] sm:$0xff] %vm1517, %v1354
    %1522 = vst.msk [vmem:[#allocation2 + $0x18] sm:$0x3f] %vm1519, %v1356
    %1523 = vst.msk [vmem:[#allocation2 + $0x20] sm:$0xff] %vm1517, %v1358
    %1524 = vst.msk [vmem:[#allocation2 + $0x28] sm:$0x3f] %vm1519, %v1360
    %1525 = vst.msk [vmem:[#allocation2 + $0x30] sm:$0xff] %vm1517, %v1362
    %1526 = vst.msk [vmem:[#allocation2 + $0x38] sm:$0x3f] %vm1519, %v1364
    %1527 = vst.msk [vmem:[#allocation2 + $0x40] sm:$0xff] %vm1517, %v1366
    %1528 = vst.msk [vmem:[#allocation2 + $0x48] sm:$0x3f] %vm1519, %v1368
    %1529 = vst.msk [vmem:[#allocation2 + $0x50] sm:$0xff] %vm1517, %v1370
    %1530 = vst.msk [vmem:[#allocation2 + $0x58] sm:$0x3f] %vm1519, %v1372
    %1531 = vst.msk [vmem:[#allocation2 + $0x60] sm:$0xff] %vm1517, %v1374
    %1532 = vst.msk [vmem:[#allocation2 + $0x68] sm:$0x3f] %vm1519, %v1376
    %1533 = vst.msk [vmem:[#allocation2 + $0x70] sm:$0xff] %vm1517, %v1378
    %1534 = vst.msk [vmem:[#allocation2 + $0x78] sm:$0x3f] %vm1519, %v1380
    %1535 = vst.msk [vmem:[#allocation2 + $0x80] sm:$0xff] %vm1517, %v1382
    %1536 = vst.msk [vmem:[#allocation2 + $0x88] sm:$0x3f] %vm1519, %v1384
    %1537 = vst.msk [vmem:[#allocation2 + $0x90] sm:$0xff] %vm1517, %v1386
    %1538 = vst.msk [vmem:[#allocation2 + $0x98] sm:$0x3f] %vm1519, %v1388
    %1539 = vst.msk [vmem:[#allocation2 + $0xa0] sm:$0xff] %vm1517, %v1390
    %1540 = vst.msk [vmem:[#allocation2 + $0xa8] sm:$0x3f] %vm1519, %v1392
    %1541 = vst.msk [vmem:[#allocation2 + $0xb0] sm:$0xff] %vm1517, %v1394
    %1542 = vst.msk [vmem:[#allocation2 + $0xb8] sm:$0x3f] %vm1519, %v1396
    %1543 = vst.msk [vmem:[#allocation2 + $0xc0] sm:$0xff] %vm1517, %v1398
    %1544 = vst.msk [vmem:[#allocation2 + $0xc8] sm:$0x3f] %vm1519, %v1400
    %1545 = vst.msk [vmem:[#allocation2 + $0xd0] sm:$0xff] %vm1517, %v1402
    %1546 = vst.msk [vmem:[#allocation2 + $0xd8] sm:$0x3f] %vm1519, %v1404
    %1547 = vst.msk [vmem:[#allocation2 + $0xe0] sm:$0xff] %vm1517, %v1406
    %1548 = vst.msk [vmem:[#allocation2 + $0xe8] sm:$0x3f] %vm1519, %v1408
    %1549 = vst.msk [vmem:[#allocation2 + $0xf0] sm:$0xff] %vm1517, %v1410
    %1550 = vst.msk [vmem:[#allocation2 + $0xf8] sm:$0x3f] %vm1519, %v1412
    %1551 = vst.msk [vmem:[#allocation2 + $0x100] sm:$0xff] %vm1517, %v1414
    %1552 = vst.msk [vmem:[#allocation2 + $0x108] sm:$0x3f] %vm1519, %v1416
    %1553 = vst.msk [vmem:[#allocation2 + $0x110] sm:$0xff] %vm1517, %v1418
    %1554 = vst.msk [vmem:[#allocation2 + $0x118] sm:$0x3f] %vm1519, %v1420
    %1555 = vst.msk [vmem:[#allocation2 + $0x120] sm:$0xff] %vm1517, %v1422
    %1556 = vst.msk [vmem:[#allocation2 + $0x128] sm:$0x3f] %vm1519, %v1424
    %1557 = vst.msk [vmem:[#allocation2 + $0x130] sm:$0xff] %vm1517, %v1426
    %1558 = vst.msk [vmem:[#allocation2 + $0x138] sm:$0x3f] %vm1519, %v1428
    %1559 = vst.msk [vmem:[#allocation2 + $0x140] sm:$0xff] %vm1517, %v1430
    %1560 = vst.msk [vmem:[#allocation2 + $0x148] sm:$0x3f] %vm1519, %v1432
    %1561 = vst.msk [vmem:[#allocation2 + $0x150] sm:$0xff] %vm1517, %v1434
    %1562 = vst.msk [vmem:[#allocation2 + $0x158] sm:$0x3f] %vm1519, %v1436
    %1563 = vst.msk [vmem:[#allocation2 + $0x160] sm:$0xff] %vm1517, %v1438
    %1564 = vst.msk [vmem:[#allocation2 + $0x168] sm:$0x3f] %vm1519, %v1440
    %1565 = vst.msk [vmem:[#allocation2 + $0x170] sm:$0xff] %vm1517, %v1442
    %1566 = vst.msk [vmem:[#allocation2 + $0x178] sm:$0x3f] %vm1519, %v1444
    %1567 = vst.msk [vmem:[#allocation2 + $0x180] sm:$0xff] %vm1517, %v1446
    %1568 = vst.msk [vmem:[#allocation2 + $0x188] sm:$0x3f] %vm1519, %v1448
    %1569 = vst.msk [vmem:[#allocation2 + $0x190] sm:$0xff] %vm1517, %v1450
    %1570 = vst.msk [vmem:[#allocation2 + $0x198] sm:$0x3f] %vm1519, %v1452
    %1571 = vst.msk [vmem:[#allocation2 + $0x1a0] sm:$0xff] %vm1517, %v1454
    %1572 = vst.msk [vmem:[#allocation2 + $0x1a8] sm:$0x3f] %vm1519, %v1456
    %1573 = vst.msk [vmem:[#allocation2 + $0x1b0] sm:$0xff] %vm1517, %v1458
    %1574 = vst.msk [vmem:[#allocation2 + $0x1b8] sm:$0x3f] %vm1519, %v1460
    %1575 = vrot.lane.b32.xlu0 %v37, 28
    %v1576 = vpop.permute.xlu0 %1575
    %1577 = vrot.lane.b32.xlu0 %v38, 28
    %v1578 = vpop.permute.xlu0 %1577
    %1579 = vrot.lane.b32.xlu0 %v39, 28
    %v1580 = vpop.permute.xlu0 %1579
    %1581 = vrot.lane.b32.xlu0 %v40, 28
    %v1582 = vpop.permute.xlu0 %1581
    %1583 = vrot.lane.b32.xlu0 %v41, 28
    %v1584 = vpop.permute.xlu0 %1583
    %1585 = vrot.lane.b32.xlu0 %v42, 28
    %v1586 = vpop.permute.xlu0 %1585
    %1587 = vrot.lane.b32.xlu0 %v43, 28
    %v1588 = vpop.permute.xlu0 %1587
    %1589 = vrot.lane.b32.xlu0 %v44, 28
    %v1590 = vpop.permute.xlu0 %1589
    %1591 = vrot.lane.b32.xlu0 %v45, 28
    %v1592 = vpop.permute.xlu0 %1591
    %1593 = vrot.lane.b32.xlu0 %v46, 28
    %v1594 = vpop.permute.xlu0 %1593
    %1595 = vrot.lane.b32.xlu0 %v47, 28
    %v1596 = vpop.permute.xlu0 %1595
    %1597 = vrot.lane.b32.xlu0 %v48, 28
    %v1598 = vpop.permute.xlu0 %1597
    %1599 = vrot.lane.b32.xlu0 %v49, 28
    %v1600 = vpop.permute.xlu0 %1599
    %1601 = vrot.lane.b32.xlu0 %v50, 28
    %v1602 = vpop.permute.xlu0 %1601
    %1603 = vrot.lane.b32.xlu0 %v51, 28
    %v1604 = vpop.permute.xlu0 %1603
    %1605 = vrot.lane.b32.xlu0 %v52, 28
    %v1606 = vpop.permute.xlu0 %1605
    %1607 = vrot.lane.b32.xlu0 %v53, 28
    %v1608 = vpop.permute.xlu0 %1607
    %1609 = vrot.lane.b32.xlu0 %v54, 28
    %v1610 = vpop.permute.xlu0 %1609
    %1611 = vrot.lane.b32.xlu0 %v55, 28
    %v1612 = vpop.permute.xlu0 %1611
    %1613 = vrot.lane.b32.xlu0 %v56, 28
    %v1614 = vpop.permute.xlu0 %1613
    %1615 = vrot.lane.b32.xlu0 %v57, 28
    %v1616 = vpop.permute.xlu0 %1615
    %1617 = vrot.lane.b32.xlu0 %v58, 28
    %v1618 = vpop.permute.xlu0 %1617
    %1619 = vrot.lane.b32.xlu0 %v59, 28
    %v1620 = vpop.permute.xlu0 %1619
    %1621 = vrot.lane.b32.xlu0 %v60, 28
    %v1622 = vpop.permute.xlu0 %1621
    %1623 = vrot.lane.b32.xlu0 %v61, 28
    %v1624 = vpop.permute.xlu0 %1623
    %1625 = vrot.lane.b32.xlu0 %v62, 28
    %v1626 = vpop.permute.xlu0 %1625
    %1627 = vrot.lane.b32.xlu0 %v63, 28
    %v1628 = vpop.permute.xlu0 %1627
    %1629 = vrot.lane.b32.xlu0 %v64, 28
    %v1630 = vpop.permute.xlu0 %1629
    %1631 = vrot.lane.b32.xlu0 %v69, 28
    %v1632 = vpop.permute.xlu0 %1631
    %1633 = vrot.lane.b32.xlu0 %v70, 28
    %v1634 = vpop.permute.xlu0 %1633
    %1635 = vrot.lane.b32.xlu0 %v71, 28
    %v1636 = vpop.permute.xlu0 %1635
    %1637 = vrot.lane.b32.xlu0 %v72, 28
    %v1638 = vpop.permute.xlu0 %1637
    %1639 = vrot.lane.b32.xlu0 %v73, 28
    %v1640 = vpop.permute.xlu0 %1639
    %1641 = vrot.lane.b32.xlu0 %v74, 28
    %v1642 = vpop.permute.xlu0 %1641
    %1643 = vrot.lane.b32.xlu0 %v75, 28
    %v1644 = vpop.permute.xlu0 %1643
    %1645 = vrot.lane.b32.xlu0 %v76, 28
    %v1646 = vpop.permute.xlu0 %1645
    %1647 = vrot.lane.b32.xlu0 %v77, 28
    %v1648 = vpop.permute.xlu0 %1647
    %1649 = vrot.lane.b32.xlu0 %v78, 28
    %v1650 = vpop.permute.xlu0 %1649
    %1651 = vrot.lane.b32.xlu0 %v79, 28
    %v1652 = vpop.permute.xlu0 %1651
    %1653 = vrot.lane.b32.xlu0 %v80, 28
    %v1654 = vpop.permute.xlu0 %1653
    %1655 = vrot.lane.b32.xlu0 %v81, 28
    %v1656 = vpop.permute.xlu0 %1655
    %1657 = vrot.lane.b32.xlu0 %v82, 28
    %v1658 = vpop.permute.xlu0 %1657
    %1659 = vrot.lane.b32.xlu0 %v83, 28
    %v1660 = vpop.permute.xlu0 %1659
    %1661 = vrot.lane.b32.xlu0 %v84, 28
    %v1662 = vpop.permute.xlu0 %1661
    %1663 = vrot.lane.b32.xlu0 %v85, 28
    %v1664 = vpop.permute.xlu0 %1663
    %1665 = vrot.lane.b32.xlu0 %v86, 28
    %v1666 = vpop.permute.xlu0 %1665
    %1667 = vrot.lane.b32.xlu0 %v87, 28
    %v1668 = vpop.permute.xlu0 %1667
    %1669 = vrot.lane.b32.xlu0 %v88, 28
    %v1670 = vpop.permute.xlu0 %1669
    %1671 = vrot.lane.b32.xlu0 %v89, 28
    %v1672 = vpop.permute.xlu0 %1671
    %1673 = vrot.lane.b32.xlu0 %v90, 28
    %v1674 = vpop.permute.xlu0 %1673
    %1675 = vrot.lane.b32.xlu0 %v91, 28
    %v1676 = vpop.permute.xlu0 %1675
    %1677 = vrot.lane.b32.xlu0 %v92, 28
    %v1678 = vpop.permute.xlu0 %1677
    %1679 = vrot.lane.b32.xlu0 %v93, 28
    %v1680 = vpop.permute.xlu0 %1679
    %1681 = vrot.lane.b32.xlu0 %v94, 28
    %v1682 = vpop.permute.xlu0 %1681
    %1683 = vrot.lane.b32.xlu0 %v95, 28
    %v1684 = vpop.permute.xlu0 %1683
    %1685 = vrot.lane.b32.xlu0 %v96, 28
    %v1686 = vpop.permute.xlu0 %1685
    %vm1743 = vcmask 261345
    %1744 = vst.msk [vmem:[#allocation2 - $0x1] sm:$0xfe] %vm1743, %v1576
    %vm1745 = vcmask 260320
    %1746 = vst.msk [vmem:[#allocation2 + $0x7] sm:$0x7f] %vm1745, %v1578
    %1747 = vst.msk [vmem:[#allocation2 + $0xf] sm:$0xfe] %vm1743, %v1580
    %1748 = vst.msk [vmem:[#allocation2 + $0x17] sm:$0x7f] %vm1745, %v1582
    %1749 = vst.msk [vmem:[#allocation2 + $0x1f] sm:$0xfe] %vm1743, %v1584
    %1750 = vst.msk [vmem:[#allocation2 + $0x27] sm:$0x7f] %vm1745, %v1586
    %1751 = vst.msk [vmem:[#allocation2 + $0x2f] sm:$0xfe] %vm1743, %v1588
    %1752 = vst.msk [vmem:[#allocation2 + $0x37] sm:$0x7f] %vm1745, %v1590
    %1753 = vst.msk [vmem:[#allocation2 + $0x3f] sm:$0xfe] %vm1743, %v1592
    %1754 = vst.msk [vmem:[#allocation2 + $0x47] sm:$0x7f] %vm1745, %v1594
    %1755 = vst.msk [vmem:[#allocation2 + $0x4f] sm:$0xfe] %vm1743, %v1596
    %1756 = vst.msk [vmem:[#allocation2 + $0x57] sm:$0x7f] %vm1745, %v1598
    %1757 = vst.msk [vmem:[#allocation2 + $0x5f] sm:$0xfe] %vm1743, %v1600
    %1758 = vst.msk [vmem:[#allocation2 + $0x67] sm:$0x7f] %vm1745, %v1602
    %1759 = vst.msk [vmem:[#allocation2 + $0x6f] sm:$0xfe] %vm1743, %v1604
    %1760 = vst.msk [vmem:[#allocation2 + $0x77] sm:$0x7f] %vm1745, %v1606
    %1761 = vst.msk [vmem:[#allocation2 + $0x7f] sm:$0xfe] %vm1743, %v1608
    %1762 = vst.msk [vmem:[#allocation2 + $0x87] sm:$0x7f] %vm1745, %v1610
    %1763 = vst.msk [vmem:[#allocation2 + $0x8f] sm:$0xfe] %vm1743, %v1612
    %1764 = vst.msk [vmem:[#allocation2 + $0x97] sm:$0x7f] %vm1745, %v1614
    %1765 = vst.msk [vmem:[#allocation2 + $0x9f] sm:$0xfe] %vm1743, %v1616
    %1766 = vst.msk [vmem:[#allocation2 + $0xa7] sm:$0x7f] %vm1745, %v1618
    %1767 = vst.msk [vmem:[#allocation2 + $0xaf] sm:$0xfe] %vm1743, %v1620
    %1768 = vst.msk [vmem:[#allocation2 + $0xb7] sm:$0x7f] %vm1745, %v1622
    %1769 = vst.msk [vmem:[#allocation2 + $0xbf] sm:$0xfe] %vm1743, %v1624
    %1770 = vst.msk [vmem:[#allocation2 + $0xc7] sm:$0x7f] %vm1745, %v1626
    %1771 = vst.msk [vmem:[#allocation2 + $0xcf] sm:$0xfe] %vm1743, %v1628
    %1772 = vst.msk [vmem:[#allocation2 + $0xd7] sm:$0x7f] %vm1745, %v1630
    %1773 = vst.msk [vmem:[#allocation2 + $0xdf] sm:$0xfe] %vm1743, %v1632
    %1774 = vst.msk [vmem:[#allocation2 + $0xe7] sm:$0x7f] %vm1745, %v1634
    %1775 = vst.msk [vmem:[#allocation2 + $0xef] sm:$0xfe] %vm1743, %v1636
    %1776 = vst.msk [vmem:[#allocation2 + $0xf7] sm:$0x7f] %vm1745, %v1638
    %1777 = vst.msk [vmem:[#allocation2 + $0xff] sm:$0xfe] %vm1743, %v1640
    %1778 = vst.msk [vmem:[#allocation2 + $0x107] sm:$0x7f] %vm1745, %v1642
    %1779 = vst.msk [vmem:[#allocation2 + $0x10f] sm:$0xfe] %vm1743, %v1644
    %1780 = vst.msk [vmem:[#allocation2 + $0x117] sm:$0x7f] %vm1745, %v1646
    %1781 = vst.msk [vmem:[#allocation2 + $0x11f] sm:$0xfe] %vm1743, %v1648
    %1782 = vst.msk [vmem:[#allocation2 + $0x127] sm:$0x7f] %vm1745, %v1650
    %1783 = vst.msk [vmem:[#allocation2 + $0x12f] sm:$0xfe] %vm1743, %v1652
    %1784 = vst.msk [vmem:[#allocation2 + $0x137] sm:$0x7f] %vm1745, %v1654
    %1785 = vst.msk [vmem:[#allocation2 + $0x13f] sm:$0xfe] %vm1743, %v1656
    %1786 = vst.msk [vmem:[#allocation2 + $0x147] sm:$0x7f] %vm1745, %v1658
    %1787 = vst.msk [vmem:[#allocation2 + $0x14f] sm:$0xfe] %vm1743, %v1660
    %1788 = vst.msk [vmem:[#allocation2 + $0x157] sm:$0x7f] %vm1745, %v1662
    %1789 = vst.msk [vmem:[#allocation2 + $0x15f] sm:$0xfe] %vm1743, %v1664
    %1790 = vst.msk [vmem:[#allocation2 + $0x167] sm:$0x7f] %vm1745, %v1666
    %1791 = vst.msk [vmem:[#allocation2 + $0x16f] sm:$0xfe] %vm1743, %v1668
    %1792 = vst.msk [vmem:[#allocation2 + $0x177] sm:$0x7f] %vm1745, %v1670
    %1793 = vst.msk [vmem:[#allocation2 + $0x17f] sm:$0xfe] %vm1743, %v1672
    %1794 = vst.msk [vmem:[#allocation2 + $0x187] sm:$0x7f] %vm1745, %v1674
    %1795 = vst.msk [vmem:[#allocation2 + $0x18f] sm:$0xfe] %vm1743, %v1676
    %1796 = vst.msk [vmem:[#allocation2 + $0x197] sm:$0x7f] %vm1745, %v1678
    %1797 = vst.msk [vmem:[#allocation2 + $0x19f] sm:$0xfe] %vm1743, %v1680
    %1798 = vst.msk [vmem:[#allocation2 + $0x1a7] sm:$0x7f] %vm1745, %v1682
    %1799 = vst.msk [vmem:[#allocation2 + $0x1af] sm:$0xfe] %vm1743, %v1684
    %1800 = vst.msk [vmem:[#allocation2 + $0x1b7] sm:$0x7f] %vm1745, %v1686
    %1801 = vrot.lane.b32.xlu0 %v37, 32
    %v1802 = vpop.permute.xlu0 %1801
    %1803 = vrot.lane.b32.xlu0 %v38, 32
    %v1804 = vpop.permute.xlu0 %1803
    %1805 = vrot.lane.b32.xlu0 %v39, 32
    %v1806 = vpop.permute.xlu0 %1805
    %1807 = vrot.lane.b32.xlu0 %v40, 32
    %v1808 = vpop.permute.xlu0 %1807
    %1809 = vrot.lane.b32.xlu0 %v41, 32
    %v1810 = vpop.permute.xlu0 %1809
    %1811 = vrot.lane.b32.xlu0 %v42, 32
    %v1812 = vpop.permute.xlu0 %1811
    %1813 = vrot.lane.b32.xlu0 %v43, 32
    %v1814 = vpop.permute.xlu0 %1813
    %1815 = vrot.lane.b32.xlu0 %v44, 32
    %v1816 = vpop.permute.xlu0 %1815
    %1817 = vrot.lane.b32.xlu0 %v45, 32
    %v1818 = vpop.permute.xlu0 %1817
    %1819 = vrot.lane.b32.xlu0 %v46, 32
    %v1820 = vpop.permute.xlu0 %1819
    %1821 = vrot.lane.b32.xlu0 %v47, 32
    %v1822 = vpop.permute.xlu0 %1821
    %1823 = vrot.lane.b32.xlu0 %v48, 32
    %v1824 = vpop.permute.xlu0 %1823
    %1825 = vrot.lane.b32.xlu0 %v49, 32
    %v1826 = vpop.permute.xlu0 %1825
    %1827 = vrot.lane.b32.xlu0 %v50, 32
    %v1828 = vpop.permute.xlu0 %1827
    %1829 = vrot.lane.b32.xlu0 %v51, 32
    %v1830 = vpop.permute.xlu0 %1829
    %1831 = vrot.lane.b32.xlu0 %v52, 32
    %v1832 = vpop.permute.xlu0 %1831
    %1833 = vrot.lane.b32.xlu0 %v53, 32
    %v1834 = vpop.permute.xlu0 %1833
    %1835 = vrot.lane.b32.xlu0 %v54, 32
    %v1836 = vpop.permute.xlu0 %1835
    %1837 = vrot.lane.b32.xlu0 %v55, 32
    %v1838 = vpop.permute.xlu0 %1837
    %1839 = vrot.lane.b32.xlu0 %v56, 32
    %v1840 = vpop.permute.xlu0 %1839
    %1841 = vrot.lane.b32.xlu0 %v57, 32
    %v1842 = vpop.permute.xlu0 %1841
    %1843 = vrot.lane.b32.xlu0 %v58, 32
    %v1844 = vpop.permute.xlu0 %1843
    %1845 = vrot.lane.b32.xlu0 %v59, 32
    %v1846 = vpop.permute.xlu0 %1845
    %1847 = vrot.lane.b32.xlu0 %v60, 32
    %v1848 = vpop.permute.xlu0 %1847
    %1849 = vrot.lane.b32.xlu0 %v61, 32
    %v1850 = vpop.permute.xlu0 %1849
    %1851 = vrot.lane.b32.xlu0 %v62, 32
    %v1852 = vpop.permute.xlu0 %1851
    %1853 = vrot.lane.b32.xlu0 %v63, 32
    %v1854 = vpop.permute.xlu0 %1853
    %1855 = vrot.lane.b32.xlu0 %v64, 32
    %v1856 = vpop.permute.xlu0 %1855
    %1857 = vrot.lane.b32.xlu0 %v69, 32
    %v1858 = vpop.permute.xlu0 %1857
    %1859 = vrot.lane.b32.xlu0 %v70, 32
    %v1860 = vpop.permute.xlu0 %1859
    %1861 = vrot.lane.b32.xlu0 %v71, 32
    %v1862 = vpop.permute.xlu0 %1861
    %1863 = vrot.lane.b32.xlu0 %v72, 32
    %v1864 = vpop.permute.xlu0 %1863
    %1865 = vrot.lane.b32.xlu0 %v73, 32
    %v1866 = vpop.permute.xlu0 %1865
    %1867 = vrot.lane.b32.xlu0 %v74, 32
    %v1868 = vpop.permute.xlu0 %1867
    %1869 = vrot.lane.b32.xlu0 %v75, 32
    %v1870 = vpop.permute.xlu0 %1869
    %1871 = vrot.lane.b32.xlu0 %v76, 32
    %v1872 = vpop.permute.xlu0 %1871
    %1873 = vrot.lane.b32.xlu0 %v77, 32
    %v1874 = vpop.permute.xlu0 %1873
    %1875 = vrot.lane.b32.xlu0 %v78, 32
    %v1876 = vpop.permute.xlu0 %1875
    %1877 = vrot.lane.b32.xlu0 %v79, 32
    %v1878 = vpop.permute.xlu0 %1877
    %1879 = vrot.lane.b32.xlu0 %v80, 32
    %v1880 = vpop.permute.xlu0 %1879
    %1881 = vrot.lane.b32.xlu0 %v81, 32
    %v1882 = vpop.permute.xlu0 %1881
    %1883 = vrot.lane.b32.xlu0 %v82, 32
    %v1884 = vpop.permute.xlu0 %1883
    %1885 = vrot.lane.b32.xlu0 %v83, 32
    %v1886 = vpop.permute.xlu0 %1885
    %1887 = vrot.lane.b32.xlu0 %v84, 32
    %v1888 = vpop.permute.xlu0 %1887
    %1889 = vrot.lane.b32.xlu0 %v85, 32
    %v1890 = vpop.permute.xlu0 %1889
    %1891 = vrot.lane.b32.xlu0 %v86, 32
    %v1892 = vpop.permute.xlu0 %1891
    %1893 = vrot.lane.b32.xlu0 %v87, 32
    %v1894 = vpop.permute.xlu0 %1893
    %1895 = vrot.lane.b32.xlu0 %v88, 32
    %v1896 = vpop.permute.xlu0 %1895
    %1897 = vrot.lane.b32.xlu0 %v89, 32
    %v1898 = vpop.permute.xlu0 %1897
    %1899 = vrot.lane.b32.xlu0 %v90, 32
    %v1900 = vpop.permute.xlu0 %1899
    %1901 = vrot.lane.b32.xlu0 %v91, 32
    %v1902 = vpop.permute.xlu0 %1901
    %1903 = vrot.lane.b32.xlu0 %v92, 32
    %v1904 = vpop.permute.xlu0 %1903
    %1905 = vrot.lane.b32.xlu0 %v93, 32
    %v1906 = vpop.permute.xlu0 %1905
    %1907 = vrot.lane.b32.xlu0 %v94, 32
    %v1908 = vpop.permute.xlu0 %1907
    %1909 = vrot.lane.b32.xlu0 %v95, 32
    %v1910 = vpop.permute.xlu0 %1909
    %1911 = vrot.lane.b32.xlu0 %v96, 32
    %v1912 = vpop.permute.xlu0 %1911
    %vm1969 = vcmask 294146
    %1970 = vst.msk [vmem:[#allocation2 - $0x2] sm:$0xfc] %vm1969, %v1802
    %vm1971 = vcmask 294144
    %1972 = vst.msk [vmem:[#allocation2 + $0x6] sm:$0xff] %vm1971, %v1804
    %1973 = vst.msk [vmem:[#allocation2 + $0xe] sm:$0xfc] %vm1969, %v1806
    %1974 = vst.msk [vmem:[#allocation2 + $0x16] sm:$0xff] %vm1971, %v1808
    %1975 = vst.msk [vmem:[#allocation2 + $0x1e] sm:$0xfc] %vm1969, %v1810
    %1976 = vst.msk [vmem:[#allocation2 + $0x26] sm:$0xff] %vm1971, %v1812
    %1977 = vst.msk [vmem:[#allocation2 + $0x2e] sm:$0xfc] %vm1969, %v1814
    %1978 = vst.msk [vmem:[#allocation2 + $0x36] sm:$0xff] %vm1971, %v1816
    %1979 = vst.msk [vmem:[#allocation2 + $0x3e] sm:$0xfc] %vm1969, %v1818
    %1980 = vst.msk [vmem:[#allocation2 + $0x46] sm:$0xff] %vm1971, %v1820
    %1981 = vst.msk [vmem:[#allocation2 + $0x4e] sm:$0xfc] %vm1969, %v1822
    %1982 = vst.msk [vmem:[#allocation2 + $0x56] sm:$0xff] %vm1971, %v1824
    %1983 = vst.msk [vmem:[#allocation2 + $0x5e] sm:$0xfc] %vm1969, %v1826
    %1984 = vst.msk [vmem:[#allocation2 + $0x66] sm:$0xff] %vm1971, %v1828
    %1985 = vst.msk [vmem:[#allocation2 + $0x6e] sm:$0xfc] %vm1969, %v1830
    %1986 = vst.msk [vmem:[#allocation2 + $0x76] sm:$0xff] %vm1971, %v1832
    %1987 = vst.msk [vmem:[#allocation2 + $0x7e] sm:$0xfc] %vm1969, %v1834
    %1988 = vst.msk [vmem:[#allocation2 + $0x86] sm:$0xff] %vm1971, %v1836
    %1989 = vst.msk [vmem:[#allocation2 + $0x8e] sm:$0xfc] %vm1969, %v1838
    %1990 = vst.msk [vmem:[#allocation2 + $0x96] sm:$0xff] %vm1971, %v1840
    %1991 = vst.msk [vmem:[#allocation2 + $0x9e] sm:$0xfc] %vm1969, %v1842
    %1992 = vst.msk [vmem:[#allocation2 + $0xa6] sm:$0xff] %vm1971, %v1844
    %1993 = vst.msk [vmem:[#allocation2 + $0xae] sm:$0xfc] %vm1969, %v1846
    %1994 = vst.msk [vmem:[#allocation2 + $0xb6] sm:$0xff] %vm1971, %v1848
    %1995 = vst.msk [vmem:[#allocation2 + $0xbe] sm:$0xfc] %vm1969, %v1850
    %1996 = vst.msk [vmem:[#allocation2 + $0xc6] sm:$0xff] %vm1971, %v1852
    %1997 = vst.msk [vmem:[#allocation2 + $0xce] sm:$0xfc] %vm1969, %v1854
    %1998 = vst.msk [vmem:[#allocation2 + $0xd6] sm:$0xff] %vm1971, %v1856
    %1999 = vst.msk [vmem:[#allocation2 + $0xde] sm:$0xfc] %vm1969, %v1858
    %2000 = vst.msk [vmem:[#allocation2 + $0xe6] sm:$0xff] %vm1971, %v1860
    %2001 = vst.msk [vmem:[#allocation2 + $0xee] sm:$0xfc] %vm1969, %v1862
    %2002 = vst.msk [vmem:[#allocation2 + $0xf6] sm:$0xff] %vm1971, %v1864
    %2003 = vst.msk [vmem:[#allocation2 + $0xfe] sm:$0xfc] %vm1969, %v1866
    %2004 = vst.msk [vmem:[#allocation2 + $0x106] sm:$0xff] %vm1971, %v1868
    %2005 = vst.msk [vmem:[#allocation2 + $0x10e] sm:$0xfc] %vm1969, %v1870
    %2006 = vst.msk [vmem:[#allocation2 + $0x116] sm:$0xff] %vm1971, %v1872
    %2007 = vst.msk [vmem:[#allocation2 + $0x11e] sm:$0xfc] %vm1969, %v1874
    %2008 = vst.msk [vmem:[#allocation2 + $0x126] sm:$0xff] %vm1971, %v1876
    %2009 = vst.msk [vmem:[#allocation2 + $0x12e] sm:$0xfc] %vm1969, %v1878
    %2010 = vst.msk [vmem:[#allocation2 + $0x136] sm:$0xff] %vm1971, %v1880
    %2011 = vst.msk [vmem:[#allocation2 + $0x13e] sm:$0xfc] %vm1969, %v1882
    %2012 = vst.msk [vmem:[#allocation2 + $0x146] sm:$0xff] %vm1971, %v1884
    %2013 = vst.msk [vmem:[#allocation2 + $0x14e] sm:$0xfc] %vm1969, %v1886
    %2014 = vst.msk [vmem:[#allocation2 + $0x156] sm:$0xff] %vm1971, %v1888
    %2015 = vst.msk [vmem:[#allocation2 + $0x15e] sm:$0xfc] %vm1969, %v1890
    %2016 = vst.msk [vmem:[#allocation2 + $0x166] sm:$0xff] %vm1971, %v1892
    %2017 = vst.msk [vmem:[#allocation2 + $0x16e] sm:$0xfc] %vm1969, %v1894
    %2018 = vst.msk [vmem:[#allocation2 + $0x176] sm:$0xff] %vm1971, %v1896
    %2019 = vst.msk [vmem:[#allocation2 + $0x17e] sm:$0xfc] %vm1969, %v1898
    %2020 = vst.msk [vmem:[#allocation2 + $0x186] sm:$0xff] %vm1971, %v1900
    %2021 = vst.msk [vmem:[#allocation2 + $0x18e] sm:$0xfc] %vm1969, %v1902
    %2022 = vst.msk [vmem:[#allocation2 + $0x196] sm:$0xff] %vm1971, %v1904
    %2023 = vst.msk [vmem:[#allocation2 + $0x19e] sm:$0xfc] %vm1969, %v1906
    %2024 = vst.msk [vmem:[#allocation2 + $0x1a6] sm:$0xff] %vm1971, %v1908
    %2025 = vst.msk [vmem:[#allocation2 + $0x1ae] sm:$0xfc] %vm1969, %v1910
    %2026 = vst.msk [vmem:[#allocation2 + $0x1b6] sm:$0xff] %vm1971, %v1912
    %v2027 = vld [vmem:[#allocation2] sm:$0xff]
    %v2028 = vld [vmem:[#allocation2 + $0x8] sm:$0x3f]
    %v2029 = vld [vmem:[#allocation2 + $0x10] sm:$0xff]
    %v2030 = vld [vmem:[#allocation2 + $0x18] sm:$0x3f]
    %v2031 = vld [vmem:[#allocation2 + $0x20] sm:$0xff]
    %v2032 = vld [vmem:[#allocation2 + $0x28] sm:$0x3f]
    %v2033 = vld [vmem:[#allocation2 + $0x30] sm:$0xff]
    %v2034 = vld [vmem:[#allocation2 + $0x38] sm:$0x3f]
    %v2035 = vld [vmem:[#allocation2 + $0x40] sm:$0xff]
    %v2036 = vld [vmem:[#allocation2 + $0x48] sm:$0x3f]
    %v2037 = vld [vmem:[#allocation2 + $0x50] sm:$0xff]
    %v2038 = vld [vmem:[#allocation2 + $0x58] sm:$0x3f]
    %v2039 = vld [vmem:[#allocation2 + $0x60] sm:$0xff]
    %v2040 = vld [vmem:[#allocation2 + $0x68] sm:$0x3f]
    %v2041 = vld [vmem:[#allocation2 + $0x70] sm:$0xff]
    %v2042 = vld [vmem:[#allocation2 + $0x78] sm:$0x3f]
    %v2043 = vld [vmem:[#allocation2 + $0x80] sm:$0xff]
    %v2044 = vld [vmem:[#allocation2 + $0x88] sm:$0x3f]
    %v2045 = vld [vmem:[#allocation2 + $0x90] sm:$0xff]
    %v2046 = vld [vmem:[#allocation2 + $0x98] sm:$0x3f]
    %v2047 = vld [vmem:[#allocation2 + $0xa0] sm:$0xff]
    %v2048 = vld [vmem:[#allocation2 + $0xa8] sm:$0x3f]
    %v2049 = vld [vmem:[#allocation2 + $0xb0] sm:$0xff]
    %v2050 = vld [vmem:[#allocation2 + $0xb8] sm:$0x3f]
    %v2051 = vld [vmem:[#allocation2 + $0xc0] sm:$0xff]
    %v2052 = vld [vmem:[#allocation2 + $0xc8] sm:$0x3f]
    %v2053 = vld [vmem:[#allocation2 + $0xd0] sm:$0xff]
    %v2054 = vld [vmem:[#allocation2 + $0xd8] sm:$0x3f]
    %v2055 = vld [vmem:[#allocation2 + $0xe0] sm:$0xff]
    %v2056 = vld [vmem:[#allocation2 + $0xe8] sm:$0x3f]
    %v2057 = vld [vmem:[#allocation2 + $0xf0] sm:$0xff]
    %v2058 = vld [vmem:[#allocation2 + $0xf8] sm:$0x3f]
    %v2059 = vld [vmem:[#allocation2 + $0x100] sm:$0xff]
    %v2060 = vld [vmem:[#allocation2 + $0x108] sm:$0x3f]
    %v2061 = vld [vmem:[#allocation2 + $0x110] sm:$0xff]
    %v2062 = vld [vmem:[#allocation2 + $0x118] sm:$0x3f]
    %v2063 = vld [vmem:[#allocation2 + $0x120] sm:$0xff]
    %v2064 = vld [vmem:[#allocation2 + $0x128] sm:$0x3f]
    %v2065 = vld [vmem:[#allocation2 + $0x130] sm:$0xff]
    %v2066 = vld [vmem:[#allocation2 + $0x138] sm:$0x3f]
    %v2067 = vld [vmem:[#allocation2 + $0x140] sm:$0xff]
    %v2068 = vld [vmem:[#allocation2 + $0x148] sm:$0x3f]
    %v2069 = vld [vmem:[#allocation2 + $0x150] sm:$0xff]
    %v2070 = vld [vmem:[#allocation2 + $0x158] sm:$0x3f]
    %v2071 = vld [vmem:[#allocation2 + $0x160] sm:$0xff]
    %v2072 = vld [vmem:[#allocation2 + $0x168] sm:$0x3f]
    %v2073 = vld [vmem:[#allocation2 + $0x170] sm:$0xff]
    %v2074 = vld [vmem:[#allocation2 + $0x178] sm:$0x3f]
    %v2075 = vld [vmem:[#allocation2 + $0x180] sm:$0xff]
    %v2076 = vld [vmem:[#allocation2 + $0x188] sm:$0x3f]
    %v2077 = vld [vmem:[#allocation2 + $0x190] sm:$0xff]
    %v2078 = vld [vmem:[#allocation2 + $0x198] sm:$0x3f]
    %v2079 = vld [vmem:[#allocation2 + $0x1a0] sm:$0xff]
    %v2080 = vld [vmem:[#allocation2 + $0x1a8] sm:$0x3f]
    %v2081 = vld [vmem:[#allocation2 + $0x1b0] sm:$0xff]
    %v2082 = vld [vmem:[#allocation2 + $0x1b8] sm:$0x3f]
    %v2139 = vcombine.high %v2027, %v2027
    %v2141 = vunpack.c.l.s4 1983009808
    %v2142 = vunpack.c.0.s8 %v2141
    %v2143 = vlaneseq
    %v2144 = vshrl.u32 %v2143, 7
    %v2145 = vsub.s32 %v2142, %v2144
    %v2146 = vrot.slane %v2027, %v2145
    %v2148 = vunpack.c.l.s4 1983009808
    %v2149 = vunpack.c.0.s8 %v2148
    %v2150 = vlaneseq
    %v2151 = vshrl.u32 %v2150, 7
    %v2152 = vsub.s32 %v2149, %v2151
    %v2153 = vrot.slane %v2139, %v2152
    %v2154 = vcombine.high %v2146, %v2146
    %v2155 = vcombine.high %v2153, %v2153
    %v2156 = vcombine.high %v2028, %v2028
    %v2158 = vunpack.c.l.s4 1983009808
    %v2159 = vunpack.c.0.s8 %v2158
    %v2160 = vlaneseq
    %v2161 = vshrl.u32 %v2160, 7
    %v2162 = vsub.s32 %v2159, %v2161
    %v2163 = vrot.slane %v2028, %v2162
    %v2165 = vunpack.c.l.s4 1983009808
    %v2166 = vunpack.c.0.s8 %v2165
    %v2167 = vlaneseq
    %v2168 = vshrl.u32 %v2167, 7
    %v2169 = vsub.s32 %v2166, %v2168
    %v2170 = vrot.slane %v2156, %v2169
    %v2171 = vcombine.high %v2163, %v2163
    %v2172 = vcombine.high %v2029, %v2029
    %v2174 = vunpack.c.l.s4 1983009808
    %v2175 = vunpack.c.0.s8 %v2174
    %v2176 = vlaneseq
    %v2177 = vshrl.u32 %v2176, 7
    %v2178 = vsub.s32 %v2175, %v2177
    %v2179 = vrot.slane %v2029, %v2178
    %v2181 = vunpack.c.l.s4 1983009808
    %v2182 = vunpack.c.0.s8 %v2181
    %v2183 = vlaneseq
    %v2184 = vshrl.u32 %v2183, 7
    %v2185 = vsub.s32 %v2182, %v2184
    %v2186 = vrot.slane %v2172, %v2185
    %v2187 = vcombine.high %v2179, %v2179
    %v2188 = vcombine.high %v2186, %v2186
    %v2189 = vcombine.high %v2030, %v2030
    %v2191 = vunpack.c.l.s4 1983009808
    %v2192 = vunpack.c.0.s8 %v2191
    %v2193 = vlaneseq
    %v2194 = vshrl.u32 %v2193, 7
    %v2195 = vsub.s32 %v2192, %v2194
    %v2196 = vrot.slane %v2030, %v2195
    %v2198 = vunpack.c.l.s4 1983009808
    %v2199 = vunpack.c.0.s8 %v2198
    %v2200 = vlaneseq
    %v2201 = vshrl.u32 %v2200, 7
    %v2202 = vsub.s32 %v2199, %v2201
    %v2203 = vrot.slane %v2189, %v2202
    %v2204 = vcombine.high %v2196, %v2196
    %v2205 = vcombine.high %v2031, %v2031
    %v2207 = vunpack.c.l.s4 1983009808
    %v2208 = vunpack.c.0.s8 %v2207
    %v2209 = vlaneseq
    %v2210 = vshrl.u32 %v2209, 7
    %v2211 = vsub.s32 %v2208, %v2210
    %v2212 = vrot.slane %v2031, %v2211
    %v2214 = vunpack.c.l.s4 1983009808
    %v2215 = vunpack.c.0.s8 %v2214
    %v2216 = vlaneseq
    %v2217 = vshrl.u32 %v2216, 7
    %v2218 = vsub.s32 %v2215, %v2217
    %v2219 = vrot.slane %v2205, %v2218
    %v2220 = vcombine.high %v2212, %v2212
    %v2221 = vcombine.high %v2219, %v2219
    %v2222 = vcombine.high %v2032, %v2032
    %v2224 = vunpack.c.l.s4 1983009808
    %v2225 = vunpack.c.0.s8 %v2224
    %v2226 = vlaneseq
    %v2227 = vshrl.u32 %v2226, 7
    %v2228 = vsub.s32 %v2225, %v2227
    %v2229 = vrot.slane %v2032, %v2228
    %v2231 = vunpack.c.l.s4 1983009808
    %v2232 = vunpack.c.0.s8 %v2231
    %v2233 = vlaneseq
    %v2234 = vshrl.u32 %v2233, 7
    %v2235 = vsub.s32 %v2232, %v2234
    %v2236 = vrot.slane %v2222, %v2235
    %v2237 = vcombine.high %v2229, %v2229
    %v2238 = vcombine.high %v2033, %v2033
    %v2240 = vunpack.c.l.s4 1983009808
    %v2241 = vunpack.c.0.s8 %v2240
    %v2242 = vlaneseq
    %v2243 = vshrl.u32 %v2242, 7
    %v2244 = vsub.s32 %v2241, %v2243
    %v2245 = vrot.slane %v2033, %v2244
    %v2247 = vunpack.c.l.s4 1983009808
    %v2248 = vunpack.c.0.s8 %v2247
    %v2249 = vlaneseq
    %v2250 = vshrl.u32 %v2249, 7
    %v2251 = vsub.s32 %v2248, %v2250
    %v2252 = vrot.slane %v2238, %v2251
    %v2253 = vcombine.high %v2245, %v2245
    %v2254 = vcombine.high %v2252, %v2252
    %v2255 = vcombine.high %v2034, %v2034
    %v2257 = vunpack.c.l.s4 1983009808
    %v2258 = vunpack.c.0.s8 %v2257
    %v2259 = vlaneseq
    %v2260 = vshrl.u32 %v2259, 7
    %v2261 = vsub.s32 %v2258, %v2260
    %v2262 = vrot.slane %v2034, %v2261
    %v2264 = vunpack.c.l.s4 1983009808
    %v2265 = vunpack.c.0.s8 %v2264
    %v2266 = vlaneseq
    %v2267 = vshrl.u32 %v2266, 7
    %v2268 = vsub.s32 %v2265, %v2267
    %v2269 = vrot.slane %v2255, %v2268
    %v2270 = vcombine.high %v2262, %v2262
    %v2271 = vcombine.high %v2035, %v2035
    %v2273 = vunpack.c.l.s4 1983009808
    %v2274 = vunpack.c.0.s8 %v2273
    %v2275 = vlaneseq
    %v2276 = vshrl.u32 %v2275, 7
    %v2277 = vsub.s32 %v2274, %v2276
    %v2278 = vrot.slane %v2035, %v2277
    %v2280 = vunpack.c.l.s4 1983009808
    %v2281 = vunpack.c.0.s8 %v2280
    %v2282 = vlaneseq
    %v2283 = vshrl.u32 %v2282, 7
    %v2284 = vsub.s32 %v2281, %v2283
    %v2285 = vrot.slane %v2271, %v2284
    %v2286 = vcombine.high %v2278, %v2278
    %v2287 = vcombine.high %v2285, %v2285
    %v2288 = vcombine.high %v2036, %v2036
    %v2290 = vunpack.c.l.s4 1983009808
    %v2291 = vunpack.c.0.s8 %v2290
    %v2292 = vlaneseq
    %v2293 = vshrl.u32 %v2292, 7
    %v2294 = vsub.s32 %v2291, %v2293
    %v2295 = vrot.slane %v2036, %v2294
    %v2297 = vunpack.c.l.s4 1983009808
    %v2298 = vunpack.c.0.s8 %v2297
    %v2299 = vlaneseq
    %v2300 = vshrl.u32 %v2299, 7
    %v2301 = vsub.s32 %v2298, %v2300
    %v2302 = vrot.slane %v2288, %v2301
    %v2303 = vcombine.high %v2295, %v2295
    %v2304 = vcombine.high %v2037, %v2037
    %v2306 = vunpack.c.l.s4 1983009808
    %v2307 = vunpack.c.0.s8 %v2306
    %v2308 = vlaneseq
    %v2309 = vshrl.u32 %v2308, 7
    %v2310 = vsub.s32 %v2307, %v2309
    %v2311 = vrot.slane %v2037, %v2310
    %v2313 = vunpack.c.l.s4 1983009808
    %v2314 = vunpack.c.0.s8 %v2313
    %v2315 = vlaneseq
    %v2316 = vshrl.u32 %v2315, 7
    %v2317 = vsub.s32 %v2314, %v2316
    %v2318 = vrot.slane %v2304, %v2317
    %v2319 = vcombine.high %v2311, %v2311
    %v2320 = vcombine.high %v2318, %v2318
    %v2321 = vcombine.high %v2038, %v2038
    %v2323 = vunpack.c.l.s4 1983009808
    %v2324 = vunpack.c.0.s8 %v2323
    %v2325 = vlaneseq
    %v2326 = vshrl.u32 %v2325, 7
    %v2327 = vsub.s32 %v2324, %v2326
    %v2328 = vrot.slane %v2038, %v2327
    %v2330 = vunpack.c.l.s4 1983009808
    %v2331 = vunpack.c.0.s8 %v2330
    %v2332 = vlaneseq
    %v2333 = vshrl.u32 %v2332, 7
    %v2334 = vsub.s32 %v2331, %v2333
    %v2335 = vrot.slane %v2321, %v2334
    %v2336 = vcombine.high %v2328, %v2328
    %v2337 = vcombine.high %v2039, %v2039
    %v2339 = vunpack.c.l.s4 1983009808
    %v2340 = vunpack.c.0.s8 %v2339
    %v2341 = vlaneseq
    %v2342 = vshrl.u32 %v2341, 7
    %v2343 = vsub.s32 %v2340, %v2342
    %v2344 = vrot.slane %v2039, %v2343
    %v2346 = vunpack.c.l.s4 1983009808
    %v2347 = vunpack.c.0.s8 %v2346
    %v2348 = vlaneseq
    %v2349 = vshrl.u32 %v2348, 7
    %v2350 = vsub.s32 %v2347, %v2349
    %v2351 = vrot.slane %v2337, %v2350
    %v2352 = vcombine.high %v2344, %v2344
    %v2353 = vcombine.high %v2351, %v2351
    %v2354 = vcombine.high %v2040, %v2040
    %v2356 = vunpack.c.l.s4 1983009808
    %v2357 = vunpack.c.0.s8 %v2356
    %v2358 = vlaneseq
    %v2359 = vshrl.u32 %v2358, 7
    %v2360 = vsub.s32 %v2357, %v2359
    %v2361 = vrot.slane %v2040, %v2360
    %v2363 = vunpack.c.l.s4 1983009808
    %v2364 = vunpack.c.0.s8 %v2363
    %v2365 = vlaneseq
    %v2366 = vshrl.u32 %v2365, 7
    %v2367 = vsub.s32 %v2364, %v2366
    %v2368 = vrot.slane %v2354, %v2367
    %v2369 = vcombine.high %v2361, %v2361
    %v2370 = vcombine.high %v2041, %v2041
    %v2372 = vunpack.c.l.s4 1983009808
    %v2373 = vunpack.c.0.s8 %v2372
    %v2374 = vlaneseq
    %v2375 = vshrl.u32 %v2374, 7
    %v2376 = vsub.s32 %v2373, %v2375
    %v2377 = vrot.slane %v2041, %v2376
    %v2379 = vunpack.c.l.s4 1983009808
    %v2380 = vunpack.c.0.s8 %v2379
    %v2381 = vlaneseq
    %v2382 = vshrl.u32 %v2381, 7
    %v2383 = vsub.s32 %v2380, %v2382
    %v2384 = vrot.slane %v2370, %v2383
    %v2385 = vcombine.high %v2377, %v2377
    %v2386 = vcombine.high %v2384, %v2384
    %v2387 = vcombine.high %v2042, %v2042
    %v2389 = vunpack.c.l.s4 1983009808
    %v2390 = vunpack.c.0.s8 %v2389
    %v2391 = vlaneseq
    %v2392 = vshrl.u32 %v2391, 7
    %v2393 = vsub.s32 %v2390, %v2392
    %v2394 = vrot.slane %v2042, %v2393
    %v2396 = vunpack.c.l.s4 1983009808
    %v2397 = vunpack.c.0.s8 %v2396
    %v2398 = vlaneseq
    %v2399 = vshrl.u32 %v2398, 7
    %v2400 = vsub.s32 %v2397, %v2399
    %v2401 = vrot.slane %v2387, %v2400
    %v2402 = vcombine.high %v2394, %v2394
    %v2403 = vcombine.high %v2043, %v2043
    %v2405 = vunpack.c.l.s4 1983009808
    %v2406 = vunpack.c.0.s8 %v2405
    %v2407 = vlaneseq
    %v2408 = vshrl.u32 %v2407, 7
    %v2409 = vsub.s32 %v2406, %v2408
    %v2410 = vrot.slane %v2043, %v2409
    %v2412 = vunpack.c.l.s4 1983009808
    %v2413 = vunpack.c.0.s8 %v2412
    %v2414 = vlaneseq
    %v2415 = vshrl.u32 %v2414, 7
    %v2416 = vsub.s32 %v2413, %v2415
    %v2417 = vrot.slane %v2403, %v2416
    %v2418 = vcombine.high %v2410, %v2410
    %v2419 = vcombine.high %v2417, %v2417
    %v2420 = vcombine.high %v2044, %v2044
    %v2422 = vunpack.c.l.s4 1983009808
    %v2423 = vunpack.c.0.s8 %v2422
    %v2424 = vlaneseq
    %v2425 = vshrl.u32 %v2424, 7
    %v2426 = vsub.s32 %v2423, %v2425
    %v2427 = vrot.slane %v2044, %v2426
    %v2429 = vunpack.c.l.s4 1983009808
    %v2430 = vunpack.c.0.s8 %v2429
    %v2431 = vlaneseq
    %v2432 = vshrl.u32 %v2431, 7
    %v2433 = vsub.s32 %v2430, %v2432
    %v2434 = vrot.slane %v2420, %v2433
    %v2435 = vcombine.high %v2427, %v2427
    %v2436 = vcombine.high %v2045, %v2045
    %v2438 = vunpack.c.l.s4 1983009808
    %v2439 = vunpack.c.0.s8 %v2438
    %v2440 = vlaneseq
    %v2441 = vshrl.u32 %v2440, 7
    %v2442 = vsub.s32 %v2439, %v2441
    %v2443 = vrot.slane %v2045, %v2442
    %v2445 = vunpack.c.l.s4 1983009808
    %v2446 = vunpack.c.0.s8 %v2445
    %v2447 = vlaneseq
    %v2448 = vshrl.u32 %v2447, 7
    %v2449 = vsub.s32 %v2446, %v2448
    %v2450 = vrot.slane %v2436, %v2449
    %v2451 = vcombine.high %v2443, %v2443
    %v2452 = vcombine.high %v2450, %v2450
    %v2453 = vcombine.high %v2046, %v2046
    %v2455 = vunpack.c.l.s4 1983009808
    %v2456 = vunpack.c.0.s8 %v2455
    %v2457 = vlaneseq
    %v2458 = vshrl.u32 %v2457, 7
    %v2459 = vsub.s32 %v2456, %v2458
    %v2460 = vrot.slane %v2046, %v2459
    %v2462 = vunpack.c.l.s4 1983009808
    %v2463 = vunpack.c.0.s8 %v2462
    %v2464 = vlaneseq
    %v2465 = vshrl.u32 %v2464, 7
    %v2466 = vsub.s32 %v2463, %v2465
    %v2467 = vrot.slane %v2453, %v2466
    %v2468 = vcombine.high %v2460, %v2460
    %v2469 = vcombine.high %v2047, %v2047
    %v2471 = vunpack.c.l.s4 1983009808
    %v2472 = vunpack.c.0.s8 %v2471
    %v2473 = vlaneseq
    %v2474 = vshrl.u32 %v2473, 7
    %v2475 = vsub.s32 %v2472, %v2474
    %v2476 = vrot.slane %v2047, %v2475
    %v2478 = vunpack.c.l.s4 1983009808
    %v2479 = vunpack.c.0.s8 %v2478
    %v2480 = vlaneseq
    %v2481 = vshrl.u32 %v2480, 7
    %v2482 = vsub.s32 %v2479, %v2481
    %v2483 = vrot.slane %v2469, %v2482
    %v2484 = vcombine.high %v2476, %v2476
    %v2485 = vcombine.high %v2483, %v2483
    %v2486 = vcombine.high %v2048, %v2048
    %v2488 = vunpack.c.l.s4 1983009808
    %v2489 = vunpack.c.0.s8 %v2488
    %v2490 = vlaneseq
    %v2491 = vshrl.u32 %v2490, 7
    %v2492 = vsub.s32 %v2489, %v2491
    %v2493 = vrot.slane %v2048, %v2492
    %v2495 = vunpack.c.l.s4 1983009808
    %v2496 = vunpack.c.0.s8 %v2495
    %v2497 = vlaneseq
    %v2498 = vshrl.u32 %v2497, 7
    %v2499 = vsub.s32 %v2496, %v2498
    %v2500 = vrot.slane %v2486, %v2499
    %v2501 = vcombine.high %v2493, %v2493
    %v2502 = vcombine.high %v2049, %v2049
    %v2504 = vunpack.c.l.s4 1983009808
    %v2505 = vunpack.c.0.s8 %v2504
    %v2506 = vlaneseq
    %v2507 = vshrl.u32 %v2506, 7
    %v2508 = vsub.s32 %v2505, %v2507
    %v2509 = vrot.slane %v2049, %v2508
    %v2511 = vunpack.c.l.s4 1983009808
    %v2512 = vunpack.c.0.s8 %v2511
    %v2513 = vlaneseq
    %v2514 = vshrl.u32 %v2513, 7
    %v2515 = vsub.s32 %v2512, %v2514
    %v2516 = vrot.slane %v2502, %v2515
    %v2517 = vcombine.high %v2509, %v2509
    %v2518 = vcombine.high %v2516, %v2516
    %v2519 = vcombine.high %v2050, %v2050
    %v2521 = vunpack.c.l.s4 1983009808
    %v2522 = vunpack.c.0.s8 %v2521
    %v2523 = vlaneseq
    %v2524 = vshrl.u32 %v2523, 7
    %v2525 = vsub.s32 %v2522, %v2524
    %v2526 = vrot.slane %v2050, %v2525
    %v2528 = vunpack.c.l.s4 1983009808
    %v2529 = vunpack.c.0.s8 %v2528
    %v2530 = vlaneseq
    %v2531 = vshrl.u32 %v2530, 7
    %v2532 = vsub.s32 %v2529, %v2531
    %v2533 = vrot.slane %v2519, %v2532
    %v2534 = vcombine.high %v2526, %v2526
    %v2535 = vcombine.high %v2051, %v2051
    %v2537 = vunpack.c.l.s4 1983009808
    %v2538 = vunpack.c.0.s8 %v2537
    %v2539 = vlaneseq
    %v2540 = vshrl.u32 %v2539, 7
    %v2541 = vsub.s32 %v2538, %v2540
    %v2542 = vrot.slane %v2051, %v2541
    %v2544 = vunpack.c.l.s4 1983009808
    %v2545 = vunpack.c.0.s8 %v2544
    %v2546 = vlaneseq
    %v2547 = vshrl.u32 %v2546, 7
    %v2548 = vsub.s32 %v2545, %v2547
    %v2549 = vrot.slane %v2535, %v2548
    %v2550 = vcombine.high %v2542, %v2542
    %v2551 = vcombine.high %v2549, %v2549
    %v2552 = vcombine.high %v2052, %v2052
    %v2554 = vunpack.c.l.s4 1983009808
    %v2555 = vunpack.c.0.s8 %v2554
    %v2556 = vlaneseq
    %v2557 = vshrl.u32 %v2556, 7
    %v2558 = vsub.s32 %v2555, %v2557
    %v2559 = vrot.slane %v2052, %v2558
    %v2561 = vunpack.c.l.s4 1983009808
    %v2562 = vunpack.c.0.s8 %v2561
    %v2563 = vlaneseq
    %v2564 = vshrl.u32 %v2563, 7
    %v2565 = vsub.s32 %v2562, %v2564
    %v2566 = vrot.slane %v2552, %v2565
    %v2567 = vcombine.high %v2559, %v2559
    %v2568 = vcombine.high %v2053, %v2053
    %v2570 = vunpack.c.l.s4 1983009808
    %v2571 = vunpack.c.0.s8 %v2570
    %v2572 = vlaneseq
    %v2573 = vshrl.u32 %v2572, 7
    %v2574 = vsub.s32 %v2571, %v2573
    %v2575 = vrot.slane %v2053, %v2574
    %v2577 = vunpack.c.l.s4 1983009808
    %v2578 = vunpack.c.0.s8 %v2577
    %v2579 = vlaneseq
    %v2580 = vshrl.u32 %v2579, 7
    %v2581 = vsub.s32 %v2578, %v2580
    %v2582 = vrot.slane %v2568, %v2581
    %v2583 = vcombine.high %v2575, %v2575
    %v2584 = vcombine.high %v2582, %v2582
    %v2585 = vcombine.high %v2054, %v2054
    %v2587 = vunpack.c.l.s4 1983009808
    %v2588 = vunpack.c.0.s8 %v2587
    %v2589 = vlaneseq
    %v2590 = vshrl.u32 %v2589, 7
    %v2591 = vsub.s32 %v2588, %v2590
    %v2592 = vrot.slane %v2054, %v2591
    %v2594 = vunpack.c.l.s4 1983009808
    %v2595 = vunpack.c.0.s8 %v2594
    %v2596 = vlaneseq
    %v2597 = vshrl.u32 %v2596, 7
    %v2598 = vsub.s32 %v2595, %v2597
    %v2599 = vrot.slane %v2585, %v2598
    %v2600 = vcombine.high %v2592, %v2592
    %v2601 = vcombine.high %v2055, %v2055
    %v2603 = vunpack.c.l.s4 1983009808
    %v2604 = vunpack.c.0.s8 %v2603
    %v2605 = vlaneseq
    %v2606 = vshrl.u32 %v2605, 7
    %v2607 = vsub.s32 %v2604, %v2606
    %v2608 = vrot.slane %v2055, %v2607
    %v2610 = vunpack.c.l.s4 1983009808
    %v2611 = vunpack.c.0.s8 %v2610
    %v2612 = vlaneseq
    %v2613 = vshrl.u32 %v2612, 7
    %v2614 = vsub.s32 %v2611, %v2613
    %v2615 = vrot.slane %v2601, %v2614
    %v2616 = vcombine.high %v2608, %v2608
    %v2617 = vcombine.high %v2615, %v2615
    %v2618 = vcombine.high %v2056, %v2056
    %v2620 = vunpack.c.l.s4 1983009808
    %v2621 = vunpack.c.0.s8 %v2620
    %v2622 = vlaneseq
    %v2623 = vshrl.u32 %v2622, 7
    %v2624 = vsub.s32 %v2621, %v2623
    %v2625 = vrot.slane %v2056, %v2624
    %v2627 = vunpack.c.l.s4 1983009808
    %v2628 = vunpack.c.0.s8 %v2627
    %v2629 = vlaneseq
    %v2630 = vshrl.u32 %v2629, 7
    %v2631 = vsub.s32 %v2628, %v2630
    %v2632 = vrot.slane %v2618, %v2631
    %v2633 = vcombine.high %v2625, %v2625
    %v2634 = vcombine.high %v2057, %v2057
    %v2636 = vunpack.c.l.s4 1983009808
    %v2637 = vunpack.c.0.s8 %v2636
    %v2638 = vlaneseq
    %v2639 = vshrl.u32 %v2638, 7
    %v2640 = vsub.s32 %v2637, %v2639
    %v2641 = vrot.slane %v2057, %v2640
    %v2643 = vunpack.c.l.s4 1983009808
    %v2644 = vunpack.c.0.s8 %v2643
    %v2645 = vlaneseq
    %v2646 = vshrl.u32 %v2645, 7
    %v2647 = vsub.s32 %v2644, %v2646
    %v2648 = vrot.slane %v2634, %v2647
    %v2649 = vcombine.high %v2641, %v2641
    %v2650 = vcombine.high %v2648, %v2648
    %v2651 = vcombine.high %v2058, %v2058
    %v2653 = vunpack.c.l.s4 1983009808
    %v2654 = vunpack.c.0.s8 %v2653
    %v2655 = vlaneseq
    %v2656 = vshrl.u32 %v2655, 7
    %v2657 = vsub.s32 %v2654, %v2656
    %v2658 = vrot.slane %v2058, %v2657
    %v2660 = vunpack.c.l.s4 1983009808
    %v2661 = vunpack.c.0.s8 %v2660
    %v2662 = vlaneseq
    %v2663 = vshrl.u32 %v2662, 7
    %v2664 = vsub.s32 %v2661, %v2663
    %v2665 = vrot.slane %v2651, %v2664
    %v2666 = vcombine.high %v2658, %v2658
    %v2667 = vcombine.high %v2059, %v2059
    %v2669 = vunpack.c.l.s4 1983009808
    %v2670 = vunpack.c.0.s8 %v2669
    %v2671 = vlaneseq
    %v2672 = vshrl.u32 %v2671, 7
    %v2673 = vsub.s32 %v2670, %v2672
    %v2674 = vrot.slane %v2059, %v2673
    %v2676 = vunpack.c.l.s4 1983009808
    %v2677 = vunpack.c.0.s8 %v2676
    %v2678 = vlaneseq
    %v2679 = vshrl.u32 %v2678, 7
    %v2680 = vsub.s32 %v2677, %v2679
    %v2681 = vrot.slane %v2667, %v2680
    %v2682 = vcombine.high %v2674, %v2674
    %v2683 = vcombine.high %v2681, %v2681
    %v2684 = vcombine.high %v2060, %v2060
    %v2686 = vunpack.c.l.s4 1983009808
    %v2687 = vunpack.c.0.s8 %v2686
    %v2688 = vlaneseq
    %v2689 = vshrl.u32 %v2688, 7
    %v2690 = vsub.s32 %v2687, %v2689
    %v2691 = vrot.slane %v2060, %v2690
    %v2693 = vunpack.c.l.s4 1983009808
    %v2694 = vunpack.c.0.s8 %v2693
    %v2695 = vlaneseq
    %v2696 = vshrl.u32 %v2695, 7
    %v2697 = vsub.s32 %v2694, %v2696
    %v2698 = vrot.slane %v2684, %v2697
    %v2699 = vcombine.high %v2691, %v2691
    %v2700 = vcombine.high %v2061, %v2061
    %v2702 = vunpack.c.l.s4 1983009808
    %v2703 = vunpack.c.0.s8 %v2702
    %v2704 = vlaneseq
    %v2705 = vshrl.u32 %v2704, 7
    %v2706 = vsub.s32 %v2703, %v2705
    %v2707 = vrot.slane %v2061, %v2706
    %v2709 = vunpack.c.l.s4 1983009808
    %v2710 = vunpack.c.0.s8 %v2709
    %v2711 = vlaneseq
    %v2712 = vshrl.u32 %v2711, 7
    %v2713 = vsub.s32 %v2710, %v2712
    %v2714 = vrot.slane %v2700, %v2713
    %v2715 = vcombine.high %v2707, %v2707
    %v2716 = vcombine.high %v2714, %v2714
    %v2717 = vcombine.high %v2062, %v2062
    %v2719 = vunpack.c.l.s4 1983009808
    %v2720 = vunpack.c.0.s8 %v2719
    %v2721 = vlaneseq
    %v2722 = vshrl.u32 %v2721, 7
    %v2723 = vsub.s32 %v2720, %v2722
    %v2724 = vrot.slane %v2062, %v2723
    %v2726 = vunpack.c.l.s4 1983009808
    %v2727 = vunpack.c.0.s8 %v2726
    %v2728 = vlaneseq
    %v2729 = vshrl.u32 %v2728, 7
    %v2730 = vsub.s32 %v2727, %v2729
    %v2731 = vrot.slane %v2717, %v2730
    %v2732 = vcombine.high %v2724, %v2724
    %v2733 = vcombine.high %v2063, %v2063
    %v2735 = vunpack.c.l.s4 1983009808
    %v2736 = vunpack.c.0.s8 %v2735
    %v2737 = vlaneseq
    %v2738 = vshrl.u32 %v2737, 7
    %v2739 = vsub.s32 %v2736, %v2738
    %v2740 = vrot.slane %v2063, %v2739
    %v2742 = vunpack.c.l.s4 1983009808
    %v2743 = vunpack.c.0.s8 %v2742
    %v2744 = vlaneseq
    %v2745 = vshrl.u32 %v2744, 7
    %v2746 = vsub.s32 %v2743, %v2745
    %v2747 = vrot.slane %v2733, %v2746
    %v2748 = vcombine.high %v2740, %v2740
    %v2749 = vcombine.high %v2747, %v2747
    %v2750 = vcombine.high %v2064, %v2064
    %v2752 = vunpack.c.l.s4 1983009808
    %v2753 = vunpack.c.0.s8 %v2752
    %v2754 = vlaneseq
    %v2755 = vshrl.u32 %v2754, 7
    %v2756 = vsub.s32 %v2753, %v2755
    %v2757 = vrot.slane %v2064, %v2756
    %v2759 = vunpack.c.l.s4 1983009808
    %v2760 = vunpack.c.0.s8 %v2759
    %v2761 = vlaneseq
    %v2762 = vshrl.u32 %v2761, 7
    %v2763 = vsub.s32 %v2760, %v2762
    %v2764 = vrot.slane %v2750, %v2763
    %v2765 = vcombine.high %v2757, %v2757
    %v2766 = vcombine.high %v2065, %v2065
    %v2768 = vunpack.c.l.s4 1983009808
    %v2769 = vunpack.c.0.s8 %v2768
    %v2770 = vlaneseq
    %v2771 = vshrl.u32 %v2770, 7
    %v2772 = vsub.s32 %v2769, %v2771
    %v2773 = vrot.slane %v2065, %v2772
    %v2775 = vunpack.c.l.s4 1983009808
    %v2776 = vunpack.c.0.s8 %v2775
    %v2777 = vlaneseq
    %v2778 = vshrl.u32 %v2777, 7
    %v2779 = vsub.s32 %v2776, %v2778
    %v2780 = vrot.slane %v2766, %v2779
    %v2781 = vcombine.high %v2773, %v2773
    %v2782 = vcombine.high %v2780, %v2780
    %v2783 = vcombine.high %v2066, %v2066
    %v2785 = vunpack.c.l.s4 1983009808
    %v2786 = vunpack.c.0.s8 %v2785
    %v2787 = vlaneseq
    %v2788 = vshrl.u32 %v2787, 7
    %v2789 = vsub.s32 %v2786, %v2788
    %v2790 = vrot.slane %v2066, %v2789
    %v2792 = vunpack.c.l.s4 1983009808
    %v2793 = vunpack.c.0.s8 %v2792
    %v2794 = vlaneseq
    %v2795 = vshrl.u32 %v2794, 7
    %v2796 = vsub.s32 %v2793, %v2795
    %v2797 = vrot.slane %v2783, %v2796
    %v2798 = vcombine.high %v2790, %v2790
    %v2799 = vcombine.high %v2067, %v2067
    %v2801 = vunpack.c.l.s4 1983009808
    %v2802 = vunpack.c.0.s8 %v2801
    %v2803 = vlaneseq
    %v2804 = vshrl.u32 %v2803, 7
    %v2805 = vsub.s32 %v2802, %v2804
    %v2806 = vrot.slane %v2067, %v2805
    %v2808 = vunpack.c.l.s4 1983009808
    %v2809 = vunpack.c.0.s8 %v2808
    %v2810 = vlaneseq
    %v2811 = vshrl.u32 %v2810, 7
    %v2812 = vsub.s32 %v2809, %v2811
    %v2813 = vrot.slane %v2799, %v2812
    %v2814 = vcombine.high %v2806, %v2806
    %v2815 = vcombine.high %v2813, %v2813
    %v2816 = vcombine.high %v2068, %v2068
    %v2818 = vunpack.c.l.s4 1983009808
    %v2819 = vunpack.c.0.s8 %v2818
    %v2820 = vlaneseq
    %v2821 = vshrl.u32 %v2820, 7
    %v2822 = vsub.s32 %v2819, %v2821
    %v2823 = vrot.slane %v2068, %v2822
    %v2825 = vunpack.c.l.s4 1983009808
    %v2826 = vunpack.c.0.s8 %v2825
    %v2827 = vlaneseq
    %v2828 = vshrl.u32 %v2827, 7
    %v2829 = vsub.s32 %v2826, %v2828
    %v2830 = vrot.slane %v2816, %v2829
    %v2831 = vcombine.high %v2823, %v2823
    %v2832 = vcombine.high %v2069, %v2069
    %v2834 = vunpack.c.l.s4 1983009808
    %v2835 = vunpack.c.0.s8 %v2834
    %v2836 = vlaneseq
    %v2837 = vshrl.u32 %v2836, 7
    %v2838 = vsub.s32 %v2835, %v2837
    %v2839 = vrot.slane %v2069, %v2838
    %v2841 = vunpack.c.l.s4 1983009808
    %v2842 = vunpack.c.0.s8 %v2841
    %v2843 = vlaneseq
    %v2844 = vshrl.u32 %v2843, 7
    %v2845 = vsub.s32 %v2842, %v2844
    %v2846 = vrot.slane %v2832, %v2845
    %v2847 = vcombine.high %v2839, %v2839
    %v2848 = vcombine.high %v2846, %v2846
    %v2849 = vcombine.high %v2070, %v2070
    %v2851 = vunpack.c.l.s4 1983009808
    %v2852 = vunpack.c.0.s8 %v2851
    %v2853 = vlaneseq
    %v2854 = vshrl.u32 %v2853, 7
    %v2855 = vsub.s32 %v2852, %v2854
    %v2856 = vrot.slane %v2070, %v2855
    %v2858 = vunpack.c.l.s4 1983009808
    %v2859 = vunpack.c.0.s8 %v2858
    %v2860 = vlaneseq
    %v2861 = vshrl.u32 %v2860, 7
    %v2862 = vsub.s32 %v2859, %v2861
    %v2863 = vrot.slane %v2849, %v2862
    %v2864 = vcombine.high %v2856, %v2856
    %v2865 = vcombine.high %v2071, %v2071
    %v2867 = vunpack.c.l.s4 1983009808
    %v2868 = vunpack.c.0.s8 %v2867
    %v2869 = vlaneseq
    %v2870 = vshrl.u32 %v2869, 7
    %v2871 = vsub.s32 %v2868, %v2870
    %v2872 = vrot.slane %v2071, %v2871
    %v2874 = vunpack.c.l.s4 1983009808
    %v2875 = vunpack.c.0.s8 %v2874
    %v2876 = vlaneseq
    %v2877 = vshrl.u32 %v2876, 7
    %v2878 = vsub.s32 %v2875, %v2877
    %v2879 = vrot.slane %v2865, %v2878
    %v2880 = vcombine.high %v2872, %v2872
    %v2881 = vcombine.high %v2879, %v2879
    %v2882 = vcombine.high %v2072, %v2072
    %v2884 = vunpack.c.l.s4 1983009808
    %v2885 = vunpack.c.0.s8 %v2884
    %v2886 = vlaneseq
    %v2887 = vshrl.u32 %v2886, 7
    %v2888 = vsub.s32 %v2885, %v2887
    %v2889 = vrot.slane %v2072, %v2888
    %v2891 = vunpack.c.l.s4 1983009808
    %v2892 = vunpack.c.0.s8 %v2891
    %v2893 = vlaneseq
    %v2894 = vshrl.u32 %v2893, 7
    %v2895 = vsub.s32 %v2892, %v2894
    %v2896 = vrot.slane %v2882, %v2895
    %v2897 = vcombine.high %v2889, %v2889
    %v2898 = vcombine.high %v2073, %v2073
    %v2900 = vunpack.c.l.s4 1983009808
    %v2901 = vunpack.c.0.s8 %v2900
    %v2902 = vlaneseq
    %v2903 = vshrl.u32 %v2902, 7
    %v2904 = vsub.s32 %v2901, %v2903
    %v2905 = vrot.slane %v2073, %v2904
    %v2907 = vunpack.c.l.s4 1983009808
    %v2908 = vunpack.c.0.s8 %v2907
    %v2909 = vlaneseq
    %v2910 = vshrl.u32 %v2909, 7
    %v2911 = vsub.s32 %v2908, %v2910
    %v2912 = vrot.slane %v2898, %v2911
    %v2913 = vcombine.high %v2905, %v2905
    %v2914 = vcombine.high %v2912, %v2912
    %v2915 = vcombine.high %v2074, %v2074
    %v2917 = vunpack.c.l.s4 1983009808
    %v2918 = vunpack.c.0.s8 %v2917
    %v2919 = vlaneseq
    %v2920 = vshrl.u32 %v2919, 7
    %v2921 = vsub.s32 %v2918, %v2920
    %v2922 = vrot.slane %v2074, %v2921
    %v2924 = vunpack.c.l.s4 1983009808
    %v2925 = vunpack.c.0.s8 %v2924
    %v2926 = vlaneseq
    %v2927 = vshrl.u32 %v2926, 7
    %v2928 = vsub.s32 %v2925, %v2927
    %v2929 = vrot.slane %v2915, %v2928
    %v2930 = vcombine.high %v2922, %v2922
    %v2931 = vcombine.high %v2075, %v2075
    %v2933 = vunpack.c.l.s4 1983009808
    %v2934 = vunpack.c.0.s8 %v2933
    %v2935 = vlaneseq
    %v2936 = vshrl.u32 %v2935, 7
    %v2937 = vsub.s32 %v2934, %v2936
    %v2938 = vrot.slane %v2075, %v2937
    %v2940 = vunpack.c.l.s4 1983009808
    %v2941 = vunpack.c.0.s8 %v2940
    %v2942 = vlaneseq
    %v2943 = vshrl.u32 %v2942, 7
    %v2944 = vsub.s32 %v2941, %v2943
    %v2945 = vrot.slane %v2931, %v2944
    %v2946 = vcombine.high %v2938, %v2938
    %v2947 = vcombine.high %v2945, %v2945
    %v2948 = vcombine.high %v2076, %v2076
    %v2950 = vunpack.c.l.s4 1983009808
    %v2951 = vunpack.c.0.s8 %v2950
    %v2952 = vlaneseq
    %v2953 = vshrl.u32 %v2952, 7
    %v2954 = vsub.s32 %v2951, %v2953
    %v2955 = vrot.slane %v2076, %v2954
    %v2957 = vunpack.c.l.s4 1983009808
    %v2958 = vunpack.c.0.s8 %v2957
    %v2959 = vlaneseq
    %v2960 = vshrl.u32 %v2959, 7
    %v2961 = vsub.s32 %v2958, %v2960
    %v2962 = vrot.slane %v2948, %v2961
    %v2963 = vcombine.high %v2955, %v2955
    %v2964 = vcombine.high %v2077, %v2077
    %v2966 = vunpack.c.l.s4 1983009808
    %v2967 = vunpack.c.0.s8 %v2966
    %v2968 = vlaneseq
    %v2969 = vshrl.u32 %v2968, 7
    %v2970 = vsub.s32 %v2967, %v2969
    %v2971 = vrot.slane %v2077, %v2970
    %v2973 = vunpack.c.l.s4 1983009808
    %v2974 = vunpack.c.0.s8 %v2973
    %v2975 = vlaneseq
    %v2976 = vshrl.u32 %v2975, 7
    %v2977 = vsub.s32 %v2974, %v2976
    %v2978 = vrot.slane %v2964, %v2977
    %v2979 = vcombine.high %v2971, %v2971
    %v2980 = vcombine.high %v2978, %v2978
    %v2981 = vcombine.high %v2078, %v2078
    %v2983 = vunpack.c.l.s4 1983009808
    %v2984 = vunpack.c.0.s8 %v2983
    %v2985 = vlaneseq
    %v2986 = vshrl.u32 %v2985, 7
    %v2987 = vsub.s32 %v2984, %v2986
    %v2988 = vrot.slane %v2078, %v2987
    %v2990 = vunpack.c.l.s4 1983009808
    %v2991 = vunpack.c.0.s8 %v2990
    %v2992 = vlaneseq
    %v2993 = vshrl.u32 %v2992, 7
    %v2994 = vsub.s32 %v2991, %v2993
    %v2995 = vrot.slane %v2981, %v2994
    %v2996 = vcombine.high %v2988, %v2988
    %v2997 = vcombine.high %v2079, %v2079
    %v2999 = vunpack.c.l.s4 1983009808
    %v3000 = vunpack.c.0.s8 %v2999
    %v3001 = vlaneseq
    %v3002 = vshrl.u32 %v3001, 7
    %v3003 = vsub.s32 %v3000, %v3002
    %v3004 = vrot.slane %v2079, %v3003
    %v3006 = vunpack.c.l.s4 1983009808
    %v3007 = vunpack.c.0.s8 %v3006
    %v3008 = vlaneseq
    %v3009 = vshrl.u32 %v3008, 7
    %v3010 = vsub.s32 %v3007, %v3009
    %v3011 = vrot.slane %v2997, %v3010
    %v3012 = vcombine.high %v3004, %v3004
    %v3013 = vcombine.high %v3011, %v3011
    %v3014 = vcombine.high %v2080, %v2080
    %v3016 = vunpack.c.l.s4 1983009808
    %v3017 = vunpack.c.0.s8 %v3016
    %v3018 = vlaneseq
    %v3019 = vshrl.u32 %v3018, 7
    %v3020 = vsub.s32 %v3017, %v3019
    %v3021 = vrot.slane %v2080, %v3020
    %v3023 = vunpack.c.l.s4 1983009808
    %v3024 = vunpack.c.0.s8 %v3023
    %v3025 = vlaneseq
    %v3026 = vshrl.u32 %v3025, 7
    %v3027 = vsub.s32 %v3024, %v3026
    %v3028 = vrot.slane %v3014, %v3027
    %v3029 = vcombine.high %v3021, %v3021
    %v3030 = vcombine.high %v2081, %v2081
    %v3032 = vunpack.c.l.s4 1983009808
    %v3033 = vunpack.c.0.s8 %v3032
    %v3034 = vlaneseq
    %v3035 = vshrl.u32 %v3034, 7
    %v3036 = vsub.s32 %v3033, %v3035
    %v3037 = vrot.slane %v2081, %v3036
    %v3039 = vunpack.c.l.s4 1983009808
    %v3040 = vunpack.c.0.s8 %v3039
    %v3041 = vlaneseq
    %v3042 = vshrl.u32 %v3041, 7
    %v3043 = vsub.s32 %v3040, %v3042
    %v3044 = vrot.slane %v3030, %v3043
    %v3045 = vcombine.high %v3037, %v3037
    %v3046 = vcombine.high %v3044, %v3044
    %v3047 = vcombine.high %v2082, %v2082
    %v3049 = vunpack.c.l.s4 1983009808
    %v3050 = vunpack.c.0.s8 %v3049
    %v3051 = vlaneseq
    %v3052 = vshrl.u32 %v3051, 7
    %v3053 = vsub.s32 %v3050, %v3052
    %v3054 = vrot.slane %v2082, %v3053
    %v3056 = vunpack.c.l.s4 1983009808
    %v3057 = vunpack.c.0.s8 %v3056
    %v3058 = vlaneseq
    %v3059 = vshrl.u32 %v3058, 7
    %v3060 = vsub.s32 %v3057, %v3059
    %v3061 = vrot.slane %v3047, %v3060
    %v3062 = vcombine.high %v3054, %v3054
    %v3063 = vld [vmem:[%s1] sm:$0xff]
    %v3064 = vld [vmem:[%s1 + $0x8] sm:$0xff]
    %v3065 = vld [vmem:[%s1 + $0x10] sm:$0xff]
    %v3066 = vld [vmem:[%s1 + $0x18] sm:$0xff]
    %v3067 = vld [vmem:[%s1 + $0x20] sm:$0xf]
    %v3068 = vld [vmem:[%s2] sm:$0x1]
    %v3070 = vlaneseq
    %v3071 = vshrl.u32 %v3070, 7
    %v3072 = vsub.s32 0, %v3071
    %v3073 = vrot.slane %v3068, %v3072
    %v3075 = vcombine.low %v2146, %v2154
    %v3076 = vcombine.low %v2153, %v2155
    %v3078 = vunpack.c.l.s4 1983009808
    %v3079 = vunpack.c.0.s8 %v3078
    %v3080 = vlaneseq
    %v3081 = vshrl.u32 %v3080, 7
    %v3082 = vsub.s32 %v3079, %v3081
    %v3083 = vrot.slane %v3075, %v3082
    %v3085 = vunpack.c.l.s4 1983009808
    %v3086 = vunpack.c.0.s8 %v3085
    %v3087 = vlaneseq
    %v3088 = vshrl.u32 %v3087, 7
    %v3089 = vsub.s32 %v3086, %v3088
    %v3090 = vrot.slane %v3076, %v3089
    %v3091 = vcombine.low %v3083, %v3090
    %v3092 = vcombine.low %v2163, %v2171
    %v3093 = vcombine.low %v2170, %v2179
    %v3095 = vunpack.c.l.s4 1983009808
    %v3096 = vunpack.c.0.s8 %v3095
    %v3097 = vlaneseq
    %v3098 = vshrl.u32 %v3097, 7
    %v3099 = vsub.s32 %v3096, %v3098
    %v3100 = vrot.slane %v3092, %v3099
    %v3102 = vunpack.c.l.s4 1983009808
    %v3103 = vunpack.c.0.s8 %v3102
    %v3104 = vlaneseq
    %v3105 = vshrl.u32 %v3104, 7
    %v3106 = vsub.s32 %v3103, %v3105
    %v3107 = vrot.slane %v3093, %v3106
    %v3108 = vcombine.low %v3100, %v3107
    %v3109 = vcombine.low %v2187, %v2186
    %v3110 = vcombine.low %v2188, %v2196
    %v3112 = vunpack.c.l.s4 1983009808
    %v3113 = vunpack.c.0.s8 %v3112
    %v3114 = vlaneseq
    %v3115 = vshrl.u32 %v3114, 7
    %v3116 = vsub.s32 %v3113, %v3115
    %v3117 = vrot.slane %v3109, %v3116
    %v3119 = vunpack.c.l.s4 1983009808
    %v3120 = vunpack.c.0.s8 %v3119
    %v3121 = vlaneseq
    %v3122 = vshrl.u32 %v3121, 7
    %v3123 = vsub.s32 %v3120, %v3122
    %v3124 = vrot.slane %v3110, %v3123
    %v3125 = vcombine.low %v3117, %v3124
    %v3126 = vcombine.low %v2204, %v2203
    %v3127 = vcombine.low %v2212, %v2220
    %v3129 = vunpack.c.l.s4 1983009808
    %v3130 = vunpack.c.0.s8 %v3129
    %v3131 = vlaneseq
    %v3132 = vshrl.u32 %v3131, 7
    %v3133 = vsub.s32 %v3130, %v3132
    %v3134 = vrot.slane %v3126, %v3133
    %v3136 = vunpack.c.l.s4 1983009808
    %v3137 = vunpack.c.0.s8 %v3136
    %v3138 = vlaneseq
    %v3139 = vshrl.u32 %v3138, 7
    %v3140 = vsub.s32 %v3137, %v3139
    %v3141 = vrot.slane %v3127, %v3140
    %v3142 = vcombine.low %v3134, %v3141
    %v3143 = vcombine.low %v2219, %v2221
    %v3144 = vcombine.low %v2229, %v2237
    %v3146 = vunpack.c.l.s4 1983009808
    %v3147 = vunpack.c.0.s8 %v3146
    %v3148 = vlaneseq
    %v3149 = vshrl.u32 %v3148, 7
    %v3150 = vsub.s32 %v3147, %v3149
    %v3151 = vrot.slane %v3143, %v3150
    %v3153 = vunpack.c.l.s4 1983009808
    %v3154 = vunpack.c.0.s8 %v3153
    %v3155 = vlaneseq
    %v3156 = vshrl.u32 %v3155, 7
    %v3157 = vsub.s32 %v3154, %v3156
    %v3158 = vrot.slane %v3144, %v3157
    %v3159 = vcombine.low %v3151, %v3158
    %v3160 = vcombine.low %v2236, %v2245
    %v3161 = vcombine.low %v2253, %v2252
    %v3163 = vunpack.c.l.s4 1983009808
    %v3164 = vunpack.c.0.s8 %v3163
    %v3165 = vlaneseq
    %v3166 = vshrl.u32 %v3165, 7
    %v3167 = vsub.s32 %v3164, %v3166
    %v3168 = vrot.slane %v3160, %v3167
    %v3170 = vunpack.c.l.s4 1983009808
    %v3171 = vunpack.c.0.s8 %v3170
    %v3172 = vlaneseq
    %v3173 = vshrl.u32 %v3172, 7
    %v3174 = vsub.s32 %v3171, %v3173
    %v3175 = vrot.slane %v3161, %v3174
    %v3176 = vcombine.low %v3168, %v3175
    %v3177 = vcombine.low %v2254, %v2262
    %v3178 = vcombine.low %v2270, %v2269
    %v3180 = vunpack.c.l.s4 1983009808
    %v3181 = vunpack.c.0.s8 %v3180
    %v3182 = vlaneseq
    %v3183 = vshrl.u32 %v3182, 7
    %v3184 = vsub.s32 %v3181, %v3183
    %v3185 = vrot.slane %v3177, %v3184
    %v3187 = vunpack.c.l.s4 1983009808
    %v3188 = vunpack.c.0.s8 %v3187
    %v3189 = vlaneseq
    %v3190 = vshrl.u32 %v3189, 7
    %v3191 = vsub.s32 %v3188, %v3190
    %v3192 = vrot.slane %v3178, %v3191
    %v3193 = vcombine.low %v3185, %v3192
    %v3194 = vcombine.low %v2278, %v2286
    %v3195 = vcombine.low %v2285, %v2287
    %v3197 = vunpack.c.l.s4 1983009808
    %v3198 = vunpack.c.0.s8 %v3197
    %v3199 = vlaneseq
    %v3200 = vshrl.u32 %v3199, 7
    %v3201 = vsub.s32 %v3198, %v3200
    %v3202 = vrot.slane %v3194, %v3201
    %v3204 = vunpack.c.l.s4 1983009808
    %v3205 = vunpack.c.0.s8 %v3204
    %v3206 = vlaneseq
    %v3207 = vshrl.u32 %v3206, 7
    %v3208 = vsub.s32 %v3205, %v3207
    %v3209 = vrot.slane %v3195, %v3208
    %v3210 = vcombine.low %v3202, %v3209
    %v3211 = vcombine.low %v2295, %v2303
    %v3212 = vcombine.low %v2302, %v2311
    %v3214 = vunpack.c.l.s4 1983009808
    %v3215 = vunpack.c.0.s8 %v3214
    %v3216 = vlaneseq
    %v3217 = vshrl.u32 %v3216, 7
    %v3218 = vsub.s32 %v3215, %v3217
    %v3219 = vrot.slane %v3211, %v3218
    %v3221 = vunpack.c.l.s4 1983009808
    %v3222 = vunpack.c.0.s8 %v3221
    %v3223 = vlaneseq
    %v3224 = vshrl.u32 %v3223, 7
    %v3225 = vsub.s32 %v3222, %v3224
    %v3226 = vrot.slane %v3212, %v3225
    %v3227 = vcombine.low %v3219, %v3226
    %v3228 = vcombine.low %v2319, %v2318
    %v3229 = vcombine.low %v2320, %v2328
    %v3231 = vunpack.c.l.s4 1983009808
    %v3232 = vunpack.c.0.s8 %v3231
    %v3233 = vlaneseq
    %v3234 = vshrl.u32 %v3233, 7
    %v3235 = vsub.s32 %v3232, %v3234
    %v3236 = vrot.slane %v3228, %v3235
    %v3238 = vunpack.c.l.s4 1983009808
    %v3239 = vunpack.c.0.s8 %v3238
    %v3240 = vlaneseq
    %v3241 = vshrl.u32 %v3240, 7
    %v3242 = vsub.s32 %v3239, %v3241
    %v3243 = vrot.slane %v3229, %v3242
    %v3244 = vcombine.low %v3236, %v3243
    %v3245 = vcombine.low %v2336, %v2335
    %v3246 = vcombine.low %v2344, %v2352
    %v3248 = vunpack.c.l.s4 1983009808
    %v3249 = vunpack.c.0.s8 %v3248
    %v3250 = vlaneseq
    %v3251 = vshrl.u32 %v3250, 7
    %v3252 = vsub.s32 %v3249, %v3251
    %v3253 = vrot.slane %v3245, %v3252
    %v3255 = vunpack.c.l.s4 1983009808
    %v3256 = vunpack.c.0.s8 %v3255
    %v3257 = vlaneseq
    %v3258 = vshrl.u32 %v3257, 7
    %v3259 = vsub.s32 %v3256, %v3258
    %v3260 = vrot.slane %v3246, %v3259
    %v3261 = vcombine.low %v3253, %v3260
    %v3262 = vcombine.low %v2351, %v2353
    %v3263 = vcombine.low %v2361, %v2369
    %v3265 = vunpack.c.l.s4 1983009808
    %v3266 = vunpack.c.0.s8 %v3265
    %v3267 = vlaneseq
    %v3268 = vshrl.u32 %v3267, 7
    %v3269 = vsub.s32 %v3266, %v3268
    %v3270 = vrot.slane %v3262, %v3269
    %v3272 = vunpack.c.l.s4 1983009808
    %v3273 = vunpack.c.0.s8 %v3272
    %v3274 = vlaneseq
    %v3275 = vshrl.u32 %v3274, 7
    %v3276 = vsub.s32 %v3273, %v3275
    %v3277 = vrot.slane %v3263, %v3276
    %v3278 = vcombine.low %v3270, %v3277
    %v3279 = vcombine.low %v2368, %v2377
    %v3280 = vcombine.low %v2385, %v2384
    %v3282 = vunpack.c.l.s4 1983009808
    %v3283 = vunpack.c.0.s8 %v3282
    %v3284 = vlaneseq
    %v3285 = vshrl.u32 %v3284, 7
    %v3286 = vsub.s32 %v3283, %v3285
    %v3287 = vrot.slane %v3279, %v3286
    %v3289 = vunpack.c.l.s4 1983009808
    %v3290 = vunpack.c.0.s8 %v3289
    %v3291 = vlaneseq
    %v3292 = vshrl.u32 %v3291, 7
    %v3293 = vsub.s32 %v3290, %v3292
    %v3294 = vrot.slane %v3280, %v3293
    %v3295 = vcombine.low %v3287, %v3294
    %v3296 = vcombine.low %v2386, %v2394
    %v3297 = vcombine.low %v2402, %v2401
    %v3299 = vunpack.c.l.s4 1983009808
    %v3300 = vunpack.c.0.s8 %v3299
    %v3301 = vlaneseq
    %v3302 = vshrl.u32 %v3301, 7
    %v3303 = vsub.s32 %v3300, %v3302
    %v3304 = vrot.slane %v3296, %v3303
    %v3306 = vunpack.c.l.s4 1983009808
    %v3307 = vunpack.c.0.s8 %v3306
    %v3308 = vlaneseq
    %v3309 = vshrl.u32 %v3308, 7
    %v3310 = vsub.s32 %v3307, %v3309
    %v3311 = vrot.slane %v3297, %v3310
    %v3312 = vcombine.low %v3304, %v3311
    %v3313 = vcombine.low %v2410, %v2418
    %v3314 = vcombine.low %v2417, %v2419
    %v3316 = vunpack.c.l.s4 1983009808
    %v3317 = vunpack.c.0.s8 %v3316
    %v3318 = vlaneseq
    %v3319 = vshrl.u32 %v3318, 7
    %v3320 = vsub.s32 %v3317, %v3319
    %v3321 = vrot.slane %v3313, %v3320
    %v3323 = vunpack.c.l.s4 1983009808
    %v3324 = vunpack.c.0.s8 %v3323
    %v3325 = vlaneseq
    %v3326 = vshrl.u32 %v3325, 7
    %v3327 = vsub.s32 %v3324, %v3326
    %v3328 = vrot.slane %v3314, %v3327
    %v3329 = vcombine.low %v3321, %v3328
    %v3330 = vcombine.low %v2427, %v2435
    %v3331 = vcombine.low %v2434, %v2443
    %v3333 = vunpack.c.l.s4 1983009808
    %v3334 = vunpack.c.0.s8 %v3333
    %v3335 = vlaneseq
    %v3336 = vshrl.u32 %v3335, 7
    %v3337 = vsub.s32 %v3334, %v3336
    %v3338 = vrot.slane %v3330, %v3337
    %v3340 = vunpack.c.l.s4 1983009808
    %v3341 = vunpack.c.0.s8 %v3340
    %v3342 = vlaneseq
    %v3343 = vshrl.u32 %v3342, 7
    %v3344 = vsub.s32 %v3341, %v3343
    %v3345 = vrot.slane %v3331, %v3344
    %v3346 = vcombine.low %v3338, %v3345
    %v3347 = vcombine.low %v2451, %v2450
    %v3348 = vcombine.low %v2452, %v2460
    %v3350 = vunpack.c.l.s4 1983009808
    %v3351 = vunpack.c.0.s8 %v3350
    %v3352 = vlaneseq
    %v3353 = vshrl.u32 %v3352, 7
    %v3354 = vsub.s32 %v3351, %v3353
    %v3355 = vrot.slane %v3347, %v3354
    %v3357 = vunpack.c.l.s4 1983009808
    %v3358 = vunpack.c.0.s8 %v3357
    %v3359 = vlaneseq
    %v3360 = vshrl.u32 %v3359, 7
    %v3361 = vsub.s32 %v3358, %v3360
    %v3362 = vrot.slane %v3348, %v3361
    %v3363 = vcombine.low %v3355, %v3362
    %v3364 = vcombine.low %v2468, %v2467
    %v3365 = vcombine.low %v2476, %v2484
    %v3367 = vunpack.c.l.s4 1983009808
    %v3368 = vunpack.c.0.s8 %v3367
    %v3369 = vlaneseq
    %v3370 = vshrl.u32 %v3369, 7
    %v3371 = vsub.s32 %v3368, %v3370
    %v3372 = vrot.slane %v3364, %v3371
    %v3374 = vunpack.c.l.s4 1983009808
    %v3375 = vunpack.c.0.s8 %v3374
    %v3376 = vlaneseq
    %v3377 = vshrl.u32 %v3376, 7
    %v3378 = vsub.s32 %v3375, %v3377
    %v3379 = vrot.slane %v3365, %v3378
    %v3380 = vcombine.low %v3372, %v3379
    %v3381 = vcombine.low %v2483, %v2485
    %v3382 = vcombine.low %v2493, %v2501
    %v3384 = vunpack.c.l.s4 1983009808
    %v3385 = vunpack.c.0.s8 %v3384
    %v3386 = vlaneseq
    %v3387 = vshrl.u32 %v3386, 7
    %v3388 = vsub.s32 %v3385, %v3387
    %v3389 = vrot.slane %v3381, %v3388
    %v3391 = vunpack.c.l.s4 1983009808
    %v3392 = vunpack.c.0.s8 %v3391
    %v3393 = vlaneseq
    %v3394 = vshrl.u32 %v3393, 7
    %v3395 = vsub.s32 %v3392, %v3394
    %v3396 = vrot.slane %v3382, %v3395
    %v3397 = vcombine.low %v3389, %v3396
    %v3398 = vcombine.low %v2500, %v2509
    %v3399 = vcombine.low %v2517, %v2516
    %v3401 = vunpack.c.l.s4 1983009808
    %v3402 = vunpack.c.0.s8 %v3401
    %v3403 = vlaneseq
    %v3404 = vshrl.u32 %v3403, 7
    %v3405 = vsub.s32 %v3402, %v3404
    %v3406 = vrot.slane %v3398, %v3405
    %v3408 = vunpack.c.l.s4 1983009808
    %v3409 = vunpack.c.0.s8 %v3408
    %v3410 = vlaneseq
    %v3411 = vshrl.u32 %v3410, 7
    %v3412 = vsub.s32 %v3409, %v3411
    %v3413 = vrot.slane %v3399, %v3412
    %v3414 = vcombine.low %v3406, %v3413
    %v3415 = vcombine.low %v2518, %v2526
    %v3416 = vcombine.low %v2534, %v2533
    %v3418 = vunpack.c.l.s4 1983009808
    %v3419 = vunpack.c.0.s8 %v3418
    %v3420 = vlaneseq
    %v3421 = vshrl.u32 %v3420, 7
    %v3422 = vsub.s32 %v3419, %v3421
    %v3423 = vrot.slane %v3415, %v3422
    %v3425 = vunpack.c.l.s4 1983009808
    %v3426 = vunpack.c.0.s8 %v3425
    %v3427 = vlaneseq
    %v3428 = vshrl.u32 %v3427, 7
    %v3429 = vsub.s32 %v3426, %v3428
    %v3430 = vrot.slane %v3416, %v3429
    %v3431 = vcombine.low %v3423, %v3430
    %v3432 = vcombine.low %v2542, %v2550
    %v3433 = vcombine.low %v2549, %v2551
    %v3435 = vunpack.c.l.s4 1983009808
    %v3436 = vunpack.c.0.s8 %v3435
    %v3437 = vlaneseq
    %v3438 = vshrl.u32 %v3437, 7
    %v3439 = vsub.s32 %v3436, %v3438
    %v3440 = vrot.slane %v3432, %v3439
    %v3442 = vunpack.c.l.s4 1983009808
    %v3443 = vunpack.c.0.s8 %v3442
    %v3444 = vlaneseq
    %v3445 = vshrl.u32 %v3444, 7
    %v3446 = vsub.s32 %v3443, %v3445
    %v3447 = vrot.slane %v3433, %v3446
    %v3448 = vcombine.low %v3440, %v3447
    %v3449 = vcombine.low %v2559, %v2567
    %v3450 = vcombine.low %v2566, %v2575
    %v3452 = vunpack.c.l.s4 1983009808
    %v3453 = vunpack.c.0.s8 %v3452
    %v3454 = vlaneseq
    %v3455 = vshrl.u32 %v3454, 7
    %v3456 = vsub.s32 %v3453, %v3455
    %v3457 = vrot.slane %v3449, %v3456
    %v3459 = vunpack.c.l.s4 1983009808
    %v3460 = vunpack.c.0.s8 %v3459
    %v3461 = vlaneseq
    %v3462 = vshrl.u32 %v3461, 7
    %v3463 = vsub.s32 %v3460, %v3462
    %v3464 = vrot.slane %v3450, %v3463
    %v3465 = vcombine.low %v3457, %v3464
    %v3466 = vcombine.low %v2583, %v2582
    %v3467 = vcombine.low %v2584, %v2592
    %v3469 = vunpack.c.l.s4 1983009808
    %v3470 = vunpack.c.0.s8 %v3469
    %v3471 = vlaneseq
    %v3472 = vshrl.u32 %v3471, 7
    %v3473 = vsub.s32 %v3470, %v3472
    %v3474 = vrot.slane %v3466, %v3473
    %v3476 = vunpack.c.l.s4 1983009808
    %v3477 = vunpack.c.0.s8 %v3476
    %v3478 = vlaneseq
    %v3479 = vshrl.u32 %v3478, 7
    %v3480 = vsub.s32 %v3477, %v3479
    %v3481 = vrot.slane %v3467, %v3480
    %v3482 = vcombine.low %v3474, %v3481
    %v3483 = vcombine.low %v2600, %v2599
    %v3484 = vcombine.low %v2608, %v2616
    %v3486 = vunpack.c.l.s4 1983009808
    %v3487 = vunpack.c.0.s8 %v3486
    %v3488 = vlaneseq
    %v3489 = vshrl.u32 %v3488, 7
    %v3490 = vsub.s32 %v3487, %v3489
    %v3491 = vrot.slane %v3483, %v3490
    %v3493 = vunpack.c.l.s4 1983009808
    %v3494 = vunpack.c.0.s8 %v3493
    %v3495 = vlaneseq
    %v3496 = vshrl.u32 %v3495, 7
    %v3497 = vsub.s32 %v3494, %v3496
    %v3498 = vrot.slane %v3484, %v3497
    %v3499 = vcombine.low %v3491, %v3498
    %v3500 = vcombine.low %v2615, %v2617
    %v3501 = vcombine.low %v2625, %v2633
    %v3503 = vunpack.c.l.s4 1983009808
    %v3504 = vunpack.c.0.s8 %v3503
    %v3505 = vlaneseq
    %v3506 = vshrl.u32 %v3505, 7
    %v3507 = vsub.s32 %v3504, %v3506
    %v3508 = vrot.slane %v3500, %v3507
    %v3510 = vunpack.c.l.s4 1983009808
    %v3511 = vunpack.c.0.s8 %v3510
    %v3512 = vlaneseq
    %v3513 = vshrl.u32 %v3512, 7
    %v3514 = vsub.s32 %v3511, %v3513
    %v3515 = vrot.slane %v3501, %v3514
    %v3516 = vcombine.low %v3508, %v3515
    %v3517 = vcombine.low %v2632, %v2641
    %v3518 = vcombine.low %v2649, %v2648
    %v3520 = vunpack.c.l.s4 1983009808
    %v3521 = vunpack.c.0.s8 %v3520
    %v3522 = vlaneseq
    %v3523 = vshrl.u32 %v3522, 7
    %v3524 = vsub.s32 %v3521, %v3523
    %v3525 = vrot.slane %v3517, %v3524
    %v3527 = vunpack.c.l.s4 1983009808
    %v3528 = vunpack.c.0.s8 %v3527
    %v3529 = vlaneseq
    %v3530 = vshrl.u32 %v3529, 7
    %v3531 = vsub.s32 %v3528, %v3530
    %v3532 = vrot.slane %v3518, %v3531
    %v3533 = vcombine.low %v3525, %v3532
    %v3534 = vcombine.low %v2650, %v2658
    %v3535 = vcombine.low %v2666, %v2665
    %v3537 = vunpack.c.l.s4 1983009808
    %v3538 = vunpack.c.0.s8 %v3537
    %v3539 = vlaneseq
    %v3540 = vshrl.u32 %v3539, 7
    %v3541 = vsub.s32 %v3538, %v3540
    %v3542 = vrot.slane %v3534, %v3541
    %v3544 = vunpack.c.l.s4 1983009808
    %v3545 = vunpack.c.0.s8 %v3544
    %v3546 = vlaneseq
    %v3547 = vshrl.u32 %v3546, 7
    %v3548 = vsub.s32 %v3545, %v3547
    %v3549 = vrot.slane %v3535, %v3548
    %v3550 = vcombine.low %v3542, %v3549
    %v3551 = vcombine.low %v2674, %v2682
    %v3552 = vcombine.low %v2681, %v2683
    %v3554 = vunpack.c.l.s4 1983009808
    %v3555 = vunpack.c.0.s8 %v3554
    %v3556 = vlaneseq
    %v3557 = vshrl.u32 %v3556, 7
    %v3558 = vsub.s32 %v3555, %v3557
    %v3559 = vrot.slane %v3551, %v3558
    %v3561 = vunpack.c.l.s4 1983009808
    %v3562 = vunpack.c.0.s8 %v3561
    %v3563 = vlaneseq
    %v3564 = vshrl.u32 %v3563, 7
    %v3565 = vsub.s32 %v3562, %v3564
    %v3566 = vrot.slane %v3552, %v3565
    %v3567 = vcombine.low %v3559, %v3566
    %v3568 = vcombine.low %v2691, %v2699
    %v3569 = vcombine.low %v2698, %v2707
    %v3571 = vunpack.c.l.s4 1983009808
    %v3572 = vunpack.c.0.s8 %v3571
    %v3573 = vlaneseq
    %v3574 = vshrl.u32 %v3573, 7
    %v3575 = vsub.s32 %v3572, %v3574
    %v3576 = vrot.slane %v3568, %v3575
    %v3578 = vunpack.c.l.s4 1983009808
    %v3579 = vunpack.c.0.s8 %v3578
    %v3580 = vlaneseq
    %v3581 = vshrl.u32 %v3580, 7
    %v3582 = vsub.s32 %v3579, %v3581
    %v3583 = vrot.slane %v3569, %v3582
    %v3584 = vcombine.low %v3576, %v3583
    %v3585 = vcombine.low %v2715, %v2714
    %v3586 = vcombine.low %v2716, %v2724
    %v3588 = vunpack.c.l.s4 1983009808
    %v3589 = vunpack.c.0.s8 %v3588
    %v3590 = vlaneseq
    %v3591 = vshrl.u32 %v3590, 7
    %v3592 = vsub.s32 %v3589, %v3591
    %v3593 = vrot.slane %v3585, %v3592
    %v3595 = vunpack.c.l.s4 1983009808
    %v3596 = vunpack.c.0.s8 %v3595
    %v3597 = vlaneseq
    %v3598 = vshrl.u32 %v3597, 7
    %v3599 = vsub.s32 %v3596, %v3598
    %v3600 = vrot.slane %v3586, %v3599
    %v3601 = vcombine.low %v3593, %v3600
    %v3602 = vcombine.low %v2732, %v2731
    %v3603 = vcombine.low %v2740, %v2748
    %v3605 = vunpack.c.l.s4 1983009808
    %v3606 = vunpack.c.0.s8 %v3605
    %v3607 = vlaneseq
    %v3608 = vshrl.u32 %v3607, 7
    %v3609 = vsub.s32 %v3606, %v3608
    %v3610 = vrot.slane %v3602, %v3609
    %v3612 = vunpack.c.l.s4 1983009808
    %v3613 = vunpack.c.0.s8 %v3612
    %v3614 = vlaneseq
    %v3615 = vshrl.u32 %v3614, 7
    %v3616 = vsub.s32 %v3613, %v3615
    %v3617 = vrot.slane %v3603, %v3616
    %v3618 = vcombine.low %v3610, %v3617
    %v3619 = vcombine.low %v2747, %v2749
    %v3620 = vcombine.low %v2757, %v2765
    %v3622 = vunpack.c.l.s4 1983009808
    %v3623 = vunpack.c.0.s8 %v3622
    %v3624 = vlaneseq
    %v3625 = vshrl.u32 %v3624, 7
    %v3626 = vsub.s32 %v3623, %v3625
    %v3627 = vrot.slane %v3619, %v3626
    %v3629 = vunpack.c.l.s4 1983009808
    %v3630 = vunpack.c.0.s8 %v3629
    %v3631 = vlaneseq
    %v3632 = vshrl.u32 %v3631, 7
    %v3633 = vsub.s32 %v3630, %v3632
    %v3634 = vrot.slane %v3620, %v3633
    %v3635 = vcombine.low %v3627, %v3634
    %v3636 = vcombine.low %v2764, %v2773
    %v3637 = vcombine.low %v2781, %v2780
    %v3639 = vunpack.c.l.s4 1983009808
    %v3640 = vunpack.c.0.s8 %v3639
    %v3641 = vlaneseq
    %v3642 = vshrl.u32 %v3641, 7
    %v3643 = vsub.s32 %v3640, %v3642
    %v3644 = vrot.slane %v3636, %v3643
    %v3646 = vunpack.c.l.s4 1983009808
    %v3647 = vunpack.c.0.s8 %v3646
    %v3648 = vlaneseq
    %v3649 = vshrl.u32 %v3648, 7
    %v3650 = vsub.s32 %v3647, %v3649
    %v3651 = vrot.slane %v3637, %v3650
    %v3652 = vcombine.low %v3644, %v3651
    %v3653 = vcombine.low %v2782, %v2790
    %v3654 = vcombine.low %v2798, %v2797
    %v3656 = vunpack.c.l.s4 1983009808
    %v3657 = vunpack.c.0.s8 %v3656
    %v3658 = vlaneseq
    %v3659 = vshrl.u32 %v3658, 7
    %v3660 = vsub.s32 %v3657, %v3659
    %v3661 = vrot.slane %v3653, %v3660
    %v3663 = vunpack.c.l.s4 1983009808
    %v3664 = vunpack.c.0.s8 %v3663
    %v3665 = vlaneseq
    %v3666 = vshrl.u32 %v3665, 7
    %v3667 = vsub.s32 %v3664, %v3666
    %v3668 = vrot.slane %v3654, %v3667
    %v3669 = vcombine.low %v3661, %v3668
    %v3670 = vcombine.low %v2806, %v2814
    %v3671 = vcombine.low %v2813, %v2815
    %v3673 = vunpack.c.l.s4 1983009808
    %v3674 = vunpack.c.0.s8 %v3673
    %v3675 = vlaneseq
    %v3676 = vshrl.u32 %v3675, 7
    %v3677 = vsub.s32 %v3674, %v3676
    %v3678 = vrot.slane %v3670, %v3677
    %v3680 = vunpack.c.l.s4 1983009808
    %v3681 = vunpack.c.0.s8 %v3680
    %v3682 = vlaneseq
    %v3683 = vshrl.u32 %v3682, 7
    %v3684 = vsub.s32 %v3681, %v3683
    %v3685 = vrot.slane %v3671, %v3684
    %v3686 = vcombine.low %v3678, %v3685
    %v3687 = vcombine.low %v2823, %v2831
    %v3688 = vcombine.low %v2830, %v2839
    %v3690 = vunpack.c.l.s4 1983009808
    %v3691 = vunpack.c.0.s8 %v3690
    %v3692 = vlaneseq
    %v3693 = vshrl.u32 %v3692, 7
    %v3694 = vsub.s32 %v3691, %v3693
    %v3695 = vrot.slane %v3687, %v3694
    %v3697 = vunpack.c.l.s4 1983009808
    %v3698 = vunpack.c.0.s8 %v3697
    %v3699 = vlaneseq
    %v3700 = vshrl.u32 %v3699, 7
    %v3701 = vsub.s32 %v3698, %v3700
    %v3702 = vrot.slane %v3688, %v3701
    %v3703 = vcombine.low %v3695, %v3702
    %v3704 = vcombine.low %v2847, %v2846
    %v3705 = vcombine.low %v2848, %v2856
    %v3707 = vunpack.c.l.s4 1983009808
    %v3708 = vunpack.c.0.s8 %v3707
    %v3709 = vlaneseq
    %v3710 = vshrl.u32 %v3709, 7
    %v3711 = vsub.s32 %v3708, %v3710
    %v3712 = vrot.slane %v3704, %v3711
    %v3714 = vunpack.c.l.s4 1983009808
    %v3715 = vunpack.c.0.s8 %v3714
    %v3716 = vlaneseq
    %v3717 = vshrl.u32 %v3716, 7
    %v3718 = vsub.s32 %v3715, %v3717
    %v3719 = vrot.slane %v3705, %v3718
    %v3720 = vcombine.low %v3712, %v3719
    %v3721 = vcombine.low %v2864, %v2863
    %v3722 = vcombine.low %v2872, %v2880
    %v3724 = vunpack.c.l.s4 1983009808
    %v3725 = vunpack.c.0.s8 %v3724
    %v3726 = vlaneseq
    %v3727 = vshrl.u32 %v3726, 7
    %v3728 = vsub.s32 %v3725, %v3727
    %v3729 = vrot.slane %v3721, %v3728
    %v3731 = vunpack.c.l.s4 1983009808
    %v3732 = vunpack.c.0.s8 %v3731
    %v3733 = vlaneseq
    %v3734 = vshrl.u32 %v3733, 7
    %v3735 = vsub.s32 %v3732, %v3734
    %v3736 = vrot.slane %v3722, %v3735
    %v3737 = vcombine.low %v3729, %v3736
    %v3738 = vcombine.low %v2879, %v2881
    %v3739 = vcombine.low %v2889, %v2897
    %v3741 = vunpack.c.l.s4 1983009808
    %v3742 = vunpack.c.0.s8 %v3741
    %v3743 = vlaneseq
    %v3744 = vshrl.u32 %v3743, 7
    %v3745 = vsub.s32 %v3742, %v3744
    %v3746 = vrot.slane %v3738, %v3745
    %v3748 = vunpack.c.l.s4 1983009808
    %v3749 = vunpack.c.0.s8 %v3748
    %v3750 = vlaneseq
    %v3751 = vshrl.u32 %v3750, 7
    %v3752 = vsub.s32 %v3749, %v3751
    %v3753 = vrot.slane %v3739, %v3752
    %v3754 = vcombine.low %v3746, %v3753
    %v3755 = vcombine.low %v2896, %v2905
    %v3756 = vcombine.low %v2913, %v2912
    %v3758 = vunpack.c.l.s4 1983009808
    %v3759 = vunpack.c.0.s8 %v3758
    %v3760 = vlaneseq
    %v3761 = vshrl.u32 %v3760, 7
    %v3762 = vsub.s32 %v3759, %v3761
    %v3763 = vrot.slane %v3755, %v3762
    %v3765 = vunpack.c.l.s4 1983009808
    %v3766 = vunpack.c.0.s8 %v3765
    %v3767 = vlaneseq
    %v3768 = vshrl.u32 %v3767, 7
    %v3769 = vsub.s32 %v3766, %v3768
    %v3770 = vrot.slane %v3756, %v3769
    %v3771 = vcombine.low %v3763, %v3770
    %v3772 = vcombine.low %v2914, %v2922
    %v3773 = vcombine.low %v2930, %v2929
    %v3775 = vunpack.c.l.s4 1983009808
    %v3776 = vunpack.c.0.s8 %v3775
    %v3777 = vlaneseq
    %v3778 = vshrl.u32 %v3777, 7
    %v3779 = vsub.s32 %v3776, %v3778
    %v3780 = vrot.slane %v3772, %v3779
    %v3782 = vunpack.c.l.s4 1983009808
    %v3783 = vunpack.c.0.s8 %v3782
    %v3784 = vlaneseq
    %v3785 = vshrl.u32 %v3784, 7
    %v3786 = vsub.s32 %v3783, %v3785
    %v3787 = vrot.slane %v3773, %v3786
    %v3788 = vcombine.low %v3780, %v3787
    %v3789 = vcombine.low %v2938, %v2946
    %v3790 = vcombine.low %v2945, %v2947
    %v3792 = vunpack.c.l.s4 1983009808
    %v3793 = vunpack.c.0.s8 %v3792
    %v3794 = vlaneseq
    %v3795 = vshrl.u32 %v3794, 7
    %v3796 = vsub.s32 %v3793, %v3795
    %v3797 = vrot.slane %v3789, %v3796
    %v3799 = vunpack.c.l.s4 1983009808
    %v3800 = vunpack.c.0.s8 %v3799
    %v3801 = vlaneseq
    %v3802 = vshrl.u32 %v3801, 7
    %v3803 = vsub.s32 %v3800, %v3802
    %v3804 = vrot.slane %v3790, %v3803
    %v3805 = vcombine.low %v3797, %v3804
    %v3806 = vcombine.low %v2955, %v2963
    %v3807 = vcombine.low %v2962, %v2971
    %v3809 = vunpack.c.l.s4 1983009808
    %v3810 = vunpack.c.0.s8 %v3809
    %v3811 = vlaneseq
    %v3812 = vshrl.u32 %v3811, 7
    %v3813 = vsub.s32 %v3810, %v3812
    %v3814 = vrot.slane %v3806, %v3813
    %v3816 = vunpack.c.l.s4 1983009808
    %v3817 = vunpack.c.0.s8 %v3816
    %v3818 = vlaneseq
    %v3819 = vshrl.u32 %v3818, 7
    %v3820 = vsub.s32 %v3817, %v3819
    %v3821 = vrot.slane %v3807, %v3820
    %v3822 = vcombine.low %v3814, %v3821
    %v3823 = vcombine.low %v2979, %v2978
    %v3824 = vcombine.low %v2980, %v2988
    %v3826 = vunpack.c.l.s4 1983009808
    %v3827 = vunpack.c.0.s8 %v3826
    %v3828 = vlaneseq
    %v3829 = vshrl.u32 %v3828, 7
    %v3830 = vsub.s32 %v3827, %v3829
    %v3831 = vrot.slane %v3823, %v3830
    %v3833 = vunpack.c.l.s4 1983009808
    %v3834 = vunpack.c.0.s8 %v3833
    %v3835 = vlaneseq
    %v3836 = vshrl.u32 %v3835, 7
    %v3837 = vsub.s32 %v3834, %v3836
    %v3838 = vrot.slane %v3824, %v3837
    %v3839 = vcombine.low %v3831, %v3838
    %v3840 = vcombine.low %v2996, %v2995
    %v3841 = vcombine.low %v3004, %v3012
    %v3843 = vunpack.c.l.s4 1983009808
    %v3844 = vunpack.c.0.s8 %v3843
    %v3845 = vlaneseq
    %v3846 = vshrl.u32 %v3845, 7
    %v3847 = vsub.s32 %v3844, %v3846
    %v3848 = vrot.slane %v3840, %v3847
    %v3850 = vunpack.c.l.s4 1983009808
    %v3851 = vunpack.c.0.s8 %v3850
    %v3852 = vlaneseq
    %v3853 = vshrl.u32 %v3852, 7
    %v3854 = vsub.s32 %v3851, %v3853
    %v3855 = vrot.slane %v3841, %v3854
    %v3856 = vcombine.low %v3848, %v3855
    %v3857 = vcombine.low %v3011, %v3013
    %v3858 = vcombine.low %v3021, %v3029
    %v3860 = vunpack.c.l.s4 1983009808
    %v3861 = vunpack.c.0.s8 %v3860
    %v3862 = vlaneseq
    %v3863 = vshrl.u32 %v3862, 7
    %v3864 = vsub.s32 %v3861, %v3863
    %v3865 = vrot.slane %v3857, %v3864
    %v3867 = vunpack.c.l.s4 1983009808
    %v3868 = vunpack.c.0.s8 %v3867
    %v3869 = vlaneseq
    %v3870 = vshrl.u32 %v3869, 7
    %v3871 = vsub.s32 %v3868, %v3870
    %v3872 = vrot.slane %v3858, %v3871
    %v3873 = vcombine.low %v3865, %v3872
    %v3874 = vcombine.low %v3028, %v3037
    %v3875 = vcombine.low %v3045, %v3044
    %v3877 = vunpack.c.l.s4 1983009808
    %v3878 = vunpack.c.0.s8 %v3877
    %v3879 = vlaneseq
    %v3880 = vshrl.u32 %v3879, 7
    %v3881 = vsub.s32 %v3878, %v3880
    %v3882 = vrot.slane %v3874, %v3881
    %v3884 = vunpack.c.l.s4 1983009808
    %v3885 = vunpack.c.0.s8 %v3884
    %v3886 = vlaneseq
    %v3887 = vshrl.u32 %v3886, 7
    %v3888 = vsub.s32 %v3885, %v3887
    %v3889 = vrot.slane %v3875, %v3888
    %v3890 = vcombine.low %v3882, %v3889
    %v3891 = vcombine.low %v3046, %v3054
    %v3892 = vcombine.low %v3062, %v3061
    %v3894 = vunpack.c.l.s4 1983009808
    %v3895 = vunpack.c.0.s8 %v3894
    %v3896 = vlaneseq
    %v3897 = vshrl.u32 %v3896, 7
    %v3898 = vsub.s32 %v3895, %v3897
    %v3899 = vrot.slane %v3891, %v3898
    %v3901 = vunpack.c.l.s4 1983009808
    %v3902 = vunpack.c.0.s8 %v3901
    %v3903 = vlaneseq
    %v3904 = vshrl.u32 %v3903, 7
    %v3905 = vsub.s32 %v3902, %v3904
    %v3906 = vrot.slane %v3892, %v3905
    %v3907 = vcombine.low %v3899, %v3906
    %vm3908 = vcmask 293888
    %v3909 = vsel %vm3908, %v3091, 0
    %v3911 = vsel %vm3908, %v3108, 0
    %v3913 = vsel %vm3908, %v3125, 0
    %v3915 = vsel %vm3908, %v3142, 0
    %v3917 = vsel %vm3908, %v3159, 0
    %v3919 = vsel %vm3908, %v3176, 0
    %v3921 = vsel %vm3908, %v3193, 0
    %v3923 = vsel %vm3908, %v3210, 0
    %v3925 = vsel %vm3908, %v3227, 0
    %v3927 = vsel %vm3908, %v3244, 0
    %v3929 = vsel %vm3908, %v3261, 0
    %v3931 = vsel %vm3908, %v3278, 0
    %v3933 = vsel %vm3908, %v3295, 0
    %v3935 = vsel %vm3908, %v3312, 0
    %v3937 = vsel %vm3908, %v3329, 0
    %v3939 = vsel %vm3908, %v3346, 0
    %v3941 = vsel %vm3908, %v3363, 0
    %v3943 = vsel %vm3908, %v3380, 0
    %v3945 = vsel %vm3908, %v3397, 0
    %v3947 = vsel %vm3908, %v3414, 0
    %v3949 = vsel %vm3908, %v3431, 0
    %v3951 = vsel %vm3908, %v3448, 0
    %v3953 = vsel %vm3908, %v3465, 0
    %v3955 = vsel %vm3908, %v3482, 0
    %v3957 = vsel %vm3908, %v3499, 0
    %v3959 = vsel %vm3908, %v3516, 0
    %v3961 = vsel %vm3908, %v3533, 0
    %v3963 = vsel %vm3908, %v3550, 0
    %v3965 = vsel %vm3908, %v3567, 0
    %v3967 = vsel %vm3908, %v3584, 0
    %v3969 = vsel %vm3908, %v3601, 0
    %v3971 = vsel %vm3908, %v3618, 0
    %v3973 = vsel %vm3908, %v3635, 0
    %v3975 = vsel %vm3908, %v3652, 0
    %v3977 = vsel %vm3908, %v3669, 0
    %v3979 = vsel %vm3908, %v3686, 0
    %v3981 = vsel %vm3908, %v3703, 0
    %v3983 = vsel %vm3908, %v3720, 0
    %v3985 = vsel %vm3908, %v3737, 0
    %v3987 = vsel %vm3908, %v3754, 0
    %v3989 = vsel %vm3908, %v3771, 0
    %v3991 = vsel %vm3908, %v3788, 0
    %v3993 = vsel %vm3908, %v3805, 0
    %v3995 = vsel %vm3908, %v3822, 0
    %v3997 = vsel %vm3908, %v3839, 0
    %v3999 = vsel %vm3908, %v3856, 0
    %v4001 = vsel %vm3908, %v3873, 0
    %v4003 = vsel %vm3908, %v3890, 0
    %v4005 = vsel %vm3908, %v3907, 0
    %vm4007 = vcmask 1043456
    %v4009 = vsel %vm4007, %v3067, 0
    %4011 = vmatprep.subr.mxu0 0.0
    %4012 = vmatpush1.msra.mxu0 %v3063
    %4013 = vmatprep.subr.mxu0 0.0
    %4014 = vmatpush1.msra.mxu0 %v3064
    %4015 = vmatprep.subr.mxu0 0.0
    %4016 = vmatpush1.msra.mxu0 %v3065
    %4017 = vmatprep.subr.mxu0 0.0
    %4018 = vmatpush1.msra.mxu0 %v3066
    %4019 = vmatprep.subr.mxu0 0.0
    %4020 = vmatpush1.msra.mxu0 %v4009
    %4021 = vmatprep.subr.mxu0 0.0
    %4022 = vmatpush1.msra.mxu0 0.0
    %4023 = vmatprep.subr.mxu0 0.0
    %4024 = vmatpush1.msra.mxu0 0.0
    %4025 = vmatprep.subr.mxu0 0.0
    %4026 = vmatpush1.msra.mxu0 0.0
    %4027 = vmatprep.subr.mxu0 0.0
    %4028 = vmatpush1.msra.mxu0 0.0
    %4029 = vmatprep.subr.mxu0 0.0
    %4030 = vmatpush1.msra.mxu0 0.0
    %4031 = vmatprep.subr.mxu0 0.0
    %4032 = vmatpush1.msra.mxu0 0.0
    %4033 = vmatprep.subr.mxu0 0.0
    %4034 = vmatpush1.msra.mxu0 0.0
    %4035 = vmatprep.subr.mxu0 0.0
    %4036 = vmatpush1.msra.mxu0 0.0
    %4037 = vmatprep.subr.mxu0 0.0
    %4038 = vmatpush1.msra.mxu0 0.0
    %4039 = vmatprep.subr.mxu0 0.0
    %4040 = vmatpush1.msra.mxu0 0.0
    %4041 = vmatprep.subr.mxu0 0.0
    %4042 = vmatpush1.msra.mxu0 0.0
    %4043 = vmatprep.subr.mxu0 0.0
    %4044 = vmatpush1.msra.mxu0 0.0
    %4045 = vmatprep.subr.mxu0 0.0
    %4046 = vmatpush1.msra.mxu0 0.0
    %4047 = vmatprep.subr.mxu0 0.0
    %4048 = vmatpush1.msra.mxu0 0.0
    %4049 = vmatprep.subr.mxu0 0.0
    %4050 = vmatpush1.msra.mxu0 0.0
    %4051 = vmatprep.subr.mxu0 0.0
    %4052 = vmatpush1.msra.mxu0 0.0
    %4053 = vmatprep.subr.mxu0 0.0
    %4054 = vmatpush1.msra.mxu0 0.0
    %4055 = vmatprep.subr.mxu0 0.0
    %4056 = vmatpush1.msra.mxu0 0.0
    %4057 = vmatprep.subr.mxu0 0.0
    %4058 = vmatpush1.msra.mxu0 0.0
    %4059 = vmatprep.subr.mxu0 0.0
    %4060 = vmatpush1.msra.mxu0 0.0
    %4061 = vmatprep.subr.mxu0 0.0
    %4062 = vmatpush1.msra.mxu0 0.0
    %4063 = vmatprep.subr.mxu0 0.0
    %4064 = vmatpush1.msra.mxu0 0.0
    %4065 = vmatprep.subr.mxu0 0.0
    %4066 = vmatpush1.msra.mxu0 0.0
    %4067 = vmatprep.subr.mxu0 0.0
    %4068 = vmatpush1.msra.mxu0 0.0
    %4069 = vmatprep.subr.mxu0 0.0
    %4070 = vmatpush1.msra.mxu0 0.0
    %4071 = vmatprep.subr.mxu0 0.0
    %4072 = vmatpush1.msra.mxu0 0.0
    %4073 = vmatprep.subr.mxu0 0.0
    %4074 = vmatpush1.msra.mxu0 0.0
    %4075 = vmatprep.mubr.f32.mxu0 0.0
    %4076 = vmatmul.mubr.f32.gmra.mrb[0].mxu0 %v3909
    %v4077 = vpop.f32.mrb[0].mxu0
    %v4078 = vadd.f32 %v3073, %v4077
    %v4079 = vpop.f32.mrb[0].mxu0
    %4080 = vmatprep.mubr.f32.mxu0 0.0
    %4081 = vmatmul.mubr.f32.gmra.mrb[0].mxu0 %v3911
    %v4082 = vpop.f32.mrb[0].mxu0
    %v4083 = vadd.f32 %v3073, %v4082
    %v4084 = vpop.f32.mrb[0].mxu0
    %4085 = vmatprep.mubr.f32.mxu0 0.0
    %4086 = vmatmul.mubr.f32.gmra.mrb[0].mxu0 %v3913
    %v4087 = vpop.f32.mrb[0].mxu0
    %v4088 = vadd.f32 %v3073, %v4087
    %v4089 = vpop.f32.mrb[0].mxu0
    %4090 = vmatprep.mubr.f32.mxu0 0.0
    %4091 = vmatmul.mubr.f32.gmra.mrb[0].mxu0 %v3915
    %v4092 = vpop.f32.mrb[0].mxu0
    %v4093 = vadd.f32 %v3073, %v4092
    %v4094 = vpop.f32.mrb[0].mxu0
    %4095 = vmatprep.mubr.f32.mxu0 0.0
    %4096 = vmatmul.mubr.f32.gmra.mrb[0].mxu0 %v3917
    %v4097 = vpop.f32.mrb[0].mxu0
    %v4098 = vadd.f32 %v3073, %v4097
    %v4099 = vpop.f32.mrb[0].mxu0
    %4100 = vmatprep.mubr.f32.mxu0 0.0
    %4101 = vmatmul.mubr.f32.gmra.mrb[0].mxu0 %v3919
    %v4102 = vpop.f32.mrb[0].mxu0
    %v4103 = vadd.f32 %v3073, %v4102
    %v4104 = vpop.f32.mrb[0].mxu0
    %4105 = vmatprep.mubr.f32.mxu0 0.0
    %4106 = vmatmul.mubr.f32.gmra.mrb[0].mxu0 %v3921
    %v4107 = vpop.f32.mrb[0].mxu0
    %v4108 = vadd.f32 %v3073, %v4107
    %v4109 = vpop.f32.mrb[0].mxu0
    %4110 = vmatprep.mubr.f32.mxu0 0.0
    %4111 = vmatmul.mubr.f32.gmra.mrb[0].mxu0 %v3923
    %v4112 = vpop.f32.mrb[0].mxu0
    %v4113 = vadd.f32 %v3073, %v4112
    %v4114 = vpop.f32.mrb[0].mxu0
    %4115 = vmatprep.mubr.f32.mxu0 0.0
    %4116 = vmatmul.mubr.f32.gmra.mrb[0].mxu0 %v3925
    %v4117 = vpop.f32.mrb[0].mxu0
    %v4118 = vadd.f32 %v3073, %v4117
    %v4119 = vpop.f32.mrb[0].mxu0
    %4120 = vmatprep.mubr.f32.mxu0 0.0
    %4121 = vmatmul.mubr.f32.gmra.mrb[0].mxu0 %v3927
    %v4122 = vpop.f32.mrb[0].mxu0
    %v4123 = vadd.f32 %v3073, %v4122
    %v4124 = vpop.f32.mrb[0].mxu0
    %4125 = vmatprep.mubr.f32.mxu0 0.0
    %4126 = vmatmul.mubr.f32.gmra.mrb[0].mxu0 %v3929
    %v4127 = vpop.f32.mrb[0].mxu0
    %v4128 = vadd.f32 %v3073, %v4127
    %v4129 = vpop.f32.mrb[0].mxu0
    %4130 = vmatprep.mubr.f32.mxu0 0.0
    %4131 = vmatmul.mubr.f32.gmra.mrb[0].mxu0 %v3931
    %v4132 = vpop.f32.mrb[0].mxu0
    %v4133 = vadd.f32 %v3073, %v4132
    %v4134 = vpop.f32.mrb[0].mxu0
    %4135 = vmatprep.mubr.f32.mxu0 0.0
    %4136 = vmatmul.mubr.f32.gmra.mrb[0].mxu0 %v3933
    %v4137 = vpop.f32.mrb[0].mxu0
    %v4138 = vadd.f32 %v3073, %v4137
    %v4139 = vpop.f32.mrb[0].mxu0
    %4140 = vmatprep.mubr.f32.mxu0 0.0
    %4141 = vmatmul.mubr.f32.gmra.mrb[0].mxu0 %v3935
    %v4142 = vpop.f32.mrb[0].mxu0
    %v4143 = vadd.f32 %v3073, %v4142
    %v4144 = vpop.f32.mrb[0].mxu0
    %4145 = vmatprep.mubr.f32.mxu0 0.0
    %4146 = vmatmul.mubr.f32.gmra.mrb[0].mxu0 %v3937
    %v4147 = vpop.f32.mrb[0].mxu0
    %v4148 = vadd.f32 %v3073, %v4147
    %v4149 = vpop.f32.mrb[0].mxu0
    %4150 = vmatprep.mubr.f32.mxu0 0.0
    %4151 = vmatmul.mubr.f32.gmra.mrb[0].mxu0 %v3939
    %v4152 = vpop.f32.mrb[0].mxu0
    %v4153 = vadd.f32 %v3073, %v4152
    %v4154 = vpop.f32.mrb[0].mxu0
    %4155 = vmatprep.mubr.f32.mxu0 0.0
    %4156 = vmatmul.mubr.f32.gmra.mrb[0].mxu0 %v3941
    %v4157 = vpop.f32.mrb[0].mxu0
    %v4158 = vadd.f32 %v3073, %v4157
    %v4159 = vpop.f32.mrb[0].mxu0
    %4160 = vmatprep.mubr.f32.mxu0 0.0
    %4161 = vmatmul.mubr.f32.gmra.mrb[0].mxu0 %v3943
    %v4162 = vpop.f32.mrb[0].mxu0
    %v4163 = vadd.f32 %v3073, %v4162
    %v4164 = vpop.f32.mrb[0].mxu0
    %4165 = vmatprep.mubr.f32.mxu0 0.0
    %4166 = vmatmul.mubr.f32.gmra.mrb[0].mxu0 %v3945
    %v4167 = vpop.f32.mrb[0].mxu0
    %v4168 = vadd.f32 %v3073, %v4167
    %v4169 = vpop.f32.mrb[0].mxu0
    %4170 = vmatprep.mubr.f32.mxu0 0.0
    %4171 = vmatmul.mubr.f32.gmra.mrb[0].mxu0 %v3947
    %v4172 = vpop.f32.mrb[0].mxu0
    %v4173 = vadd.f32 %v3073, %v4172
    %v4174 = vpop.f32.mrb[0].mxu0
    %4175 = vmatprep.mubr.f32.mxu0 0.0
    %4176 = vmatmul.mubr.f32.gmra.mrb[0].mxu0 %v3949
    %v4177 = vpop.f32.mrb[0].mxu0
    %v4178 = vadd.f32 %v3073, %v4177
    %v4179 = vpop.f32.mrb[0].mxu0
    %4180 = vmatprep.mubr.f32.mxu0 0.0
    %4181 = vmatmul.mubr.f32.gmra.mrb[0].mxu0 %v3951
    %v4182 = vpop.f32.mrb[0].mxu0
    %v4183 = vadd.f32 %v3073, %v4182
    %v4184 = vpop.f32.mrb[0].mxu0
    %4185 = vmatprep.mubr.f32.mxu0 0.0
    %4186 = vmatmul.mubr.f32.gmra.mrb[0].mxu0 %v3953
    %v4187 = vpop.f32.mrb[0].mxu0
    %v4188 = vadd.f32 %v3073, %v4187
    %v4189 = vpop.f32.mrb[0].mxu0
    %4190 = vmatprep.mubr.f32.mxu0 0.0
    %4191 = vmatmul.mubr.f32.gmra.mrb[0].mxu0 %v3955
    %v4192 = vpop.f32.mrb[0].mxu0
    %v4193 = vadd.f32 %v3073, %v4192
    %v4194 = vpop.f32.mrb[0].mxu0
    %4195 = vmatprep.mubr.f32.mxu0 0.0
    %4196 = vmatmul.mubr.f32.gmra.mrb[0].mxu0 %v3957
    %v4197 = vpop.f32.mrb[0].mxu0
    %v4198 = vadd.f32 %v3073, %v4197
    %v4199 = vpop.f32.mrb[0].mxu0
    %4200 = vmatprep.mubr.f32.mxu0 0.0
    %4201 = vmatmul.mubr.f32.gmra.mrb[0].mxu0 %v3959
    %v4202 = vpop.f32.mrb[0].mxu0
    %v4203 = vadd.f32 %v3073, %v4202
    %v4204 = vpop.f32.mrb[0].mxu0
    %4205 = vmatprep.mubr.f32.mxu0 0.0
    %4206 = vmatmul.mubr.f32.gmra.mrb[0].mxu0 %v3961
    %v4207 = vpop.f32.mrb[0].mxu0
    %v4208 = vadd.f32 %v3073, %v4207
    %v4209 = vpop.f32.mrb[0].mxu0
    %4210 = vmatprep.mubr.f32.mxu0 0.0
    %4211 = vmatmul.mubr.f32.gmra.mrb[0].mxu0 %v3963
    %v4212 = vpop.f32.mrb[0].mxu0
    %v4213 = vadd.f32 %v3073, %v4212
    %v4214 = vpop.f32.mrb[0].mxu0
    %4215 = vmatprep.mubr.f32.mxu0 0.0
    %4216 = vmatmul.mubr.f32.gmra.mrb[0].mxu0 %v3965
    %v4217 = vpop.f32.mrb[0].mxu0
    %v4218 = vadd.f32 %v3073, %v4217
    %v4219 = vpop.f32.mrb[0].mxu0
    %4220 = vmatprep.mubr.f32.mxu0 0.0
    %4221 = vmatmul.mubr.f32.gmra.mrb[0].mxu0 %v3967
    %v4222 = vpop.f32.mrb[0].mxu0
    %v4223 = vadd.f32 %v3073, %v4222
    %v4224 = vpop.f32.mrb[0].mxu0
    %4225 = vmatprep.mubr.f32.mxu0 0.0
    %4226 = vmatmul.mubr.f32.gmra.mrb[0].mxu0 %v3969
    %v4227 = vpop.f32.mrb[0].mxu0
    %v4228 = vadd.f32 %v3073, %v4227
    %v4229 = vpop.f32.mrb[0].mxu0
    %4230 = vmatprep.mubr.f32.mxu0 0.0
    %4231 = vmatmul.mubr.f32.gmra.mrb[0].mxu0 %v3971
    %v4232 = vpop.f32.mrb[0].mxu0
    %v4233 = vadd.f32 %v3073, %v4232
    %v4234 = vpop.f32.mrb[0].mxu0
    %4235 = vmatprep.mubr.f32.mxu0 0.0
    %4236 = vmatmul.mubr.f32.gmra.mrb[0].mxu0 %v3973
    %v4237 = vpop.f32.mrb[0].mxu0
    %v4238 = vadd.f32 %v3073, %v4237
    %v4239 = vpop.f32.mrb[0].mxu0
    %4240 = vmatprep.mubr.f32.mxu0 0.0
    %4241 = vmatmul.mubr.f32.gmra.mrb[0].mxu0 %v3975
    %v4242 = vpop.f32.mrb[0].mxu0
    %v4243 = vadd.f32 %v3073, %v4242
    %v4244 = vpop.f32.mrb[0].mxu0
    %4245 = vmatprep.mubr.f32.mxu0 0.0
    %4246 = vmatmul.mubr.f32.gmra.mrb[0].mxu0 %v3977
    %v4247 = vpop.f32.mrb[0].mxu0
    %v4248 = vadd.f32 %v3073, %v4247
    %v4249 = vpop.f32.mrb[0].mxu0
    %4250 = vmatprep.mubr.f32.mxu0 0.0
    %4251 = vmatmul.mubr.f32.gmra.mrb[0].mxu0 %v3979
    %v4252 = vpop.f32.mrb[0].mxu0
    %v4253 = vadd.f32 %v3073, %v4252
    %v4254 = vpop.f32.mrb[0].mxu0
    %4255 = vmatprep.mubr.f32.mxu0 0.0
    %4256 = vmatmul.mubr.f32.gmra.mrb[0].mxu0 %v3981
    %v4257 = vpop.f32.mrb[0].mxu0
    %v4258 = vadd.f32 %v3073, %v4257
    %v4259 = vpop.f32.mrb[0].mxu0
    %4260 = vmatprep.mubr.f32.mxu0 0.0
    %4261 = vmatmul.mubr.f32.gmra.mrb[0].mxu0 %v3983
    %v4262 = vpop.f32.mrb[0].mxu0
    %v4263 = vadd.f32 %v3073, %v4262
    %v4264 = vpop.f32.mrb[0].mxu0
    %4265 = vmatprep.mubr.f32.mxu0 0.0
    %4266 = vmatmul.mubr.f32.gmra.mrb[0].mxu0 %v3985
    %v4267 = vpop.f32.mrb[0].mxu0
    %v4268 = vadd.f32 %v3073, %v4267
    %v4269 = vpop.f32.mrb[0].mxu0
    %4270 = vmatprep.mubr.f32.mxu0 0.0
    %4271 = vmatmul.mubr.f32.gmra.mrb[0].mxu0 %v3987
    %v4272 = vpop.f32.mrb[0].mxu0
    %v4273 = vadd.f32 %v3073, %v4272
    %v4274 = vpop.f32.mrb[0].mxu0
    %4275 = vmatprep.mubr.f32.mxu0 0.0
    %4276 = vmatmul.mubr.f32.gmra.mrb[0].mxu0 %v3989
    %v4277 = vpop.f32.mrb[0].mxu0
    %v4278 = vadd.f32 %v3073, %v4277
    %v4279 = vpop.f32.mrb[0].mxu0
    %4280 = vmatprep.mubr.f32.mxu0 0.0
    %4281 = vmatmul.mubr.f32.gmra.mrb[0].mxu0 %v3991
    %v4282 = vpop.f32.mrb[0].mxu0
    %v4283 = vadd.f32 %v3073, %v4282
    %v4284 = vpop.f32.mrb[0].mxu0
    %4285 = vmatprep.mubr.f32.mxu0 0.0
    %4286 = vmatmul.mubr.f32.gmra.mrb[0].mxu0 %v3993
    %v4287 = vpop.f32.mrb[0].mxu0
    %v4288 = vadd.f32 %v3073, %v4287
    %v4289 = vpop.f32.mrb[0].mxu0
    %4290 = vmatprep.mubr.f32.mxu0 0.0
    %4291 = vmatmul.mubr.f32.gmra.mrb[0].mxu0 %v3995
    %v4292 = vpop.f32.mrb[0].mxu0
    %v4293 = vadd.f32 %v3073, %v4292
    %v4294 = vpop.f32.mrb[0].mxu0
    %4295 = vmatprep.mubr.f32.mxu0 0.0
    %4296 = vmatmul.mubr.f32.gmra.mrb[0].mxu0 %v3997
    %v4297 = vpop.f32.mrb[0].mxu0
    %v4298 = vadd.f32 %v3073, %v4297
    %v4299 = vpop.f32.mrb[0].mxu0
    %4300 = vmatprep.mubr.f32.mxu0 0.0
    %4301 = vmatmul.mubr.f32.gmra.mrb[0].mxu0 %v3999
    %v4302 = vpop.f32.mrb[0].mxu0
    %v4303 = vadd.f32 %v3073, %v4302
    %v4304 = vpop.f32.mrb[0].mxu0
    %4305 = vmatprep.mubr.f32.mxu0 0.0
    %4306 = vmatmul.mubr.f32.gmra.mrb[0].mxu0 %v4001
    %v4307 = vpop.f32.mrb[0].mxu0
    %v4308 = vadd.f32 %v3073, %v4307
    %v4309 = vpop.f32.mrb[0].mxu0
    %4310 = vmatprep.mubr.f32.mxu0 0.0
    %4311 = vmatmul.mubr.f32.gmra.mrb[0].mxu0 %v4003
    %v4312 = vpop.f32.mrb[0].mxu0
    %v4313 = vadd.f32 %v3073, %v4312
    %v4314 = vpop.f32.mrb[0].mxu0
    %4315 = vmatprep.mubr.f32.mxu0 0.0
    %4316 = vmatmul.mubr.f32.gmra.mrb[0].mxu0 %v4005
    %v4317 = vpop.f32.mrb[0].mxu0
    %v4318 = vadd.f32 %v3073, %v4317
    %v4319 = vpop.f32.mrb[0].mxu0
    %4320 = vdwg.mxu0
    %v4321 = vmax.f32 %v4078, 0.0
    %v4322 = vmax.f32 %v4083, 0.0
    %v4323 = vmax.f32 %v4088, 0.0
    %v4324 = vmax.f32 %v4093, 0.0
    %v4325 = vmax.f32 %v4098, 0.0
    %v4326 = vmax.f32 %v4103, 0.0
    %v4327 = vmax.f32 %v4108, 0.0
    %v4328 = vmax.f32 %v4113, 0.0
    %v4329 = vmax.f32 %v4118, 0.0
    %v4330 = vmax.f32 %v4123, 0.0
    %v4331 = vmax.f32 %v4128, 0.0
    %v4332 = vmax.f32 %v4133, 0.0
    %v4333 = vmax.f32 %v4138, 0.0
    %v4334 = vmax.f32 %v4143, 0.0
    %v4335 = vmax.f32 %v4148, 0.0
    %v4336 = vmax.f32 %v4153, 0.0
    %v4337 = vmax.f32 %v4158, 0.0
    %v4338 = vmax.f32 %v4163, 0.0
    %v4339 = vmax.f32 %v4168, 0.0
    %v4340 = vmax.f32 %v4173, 0.0
    %v4341 = vmax.f32 %v4178, 0.0
    %v4342 = vmax.f32 %v4183, 0.0
    %v4343 = vmax.f32 %v4188, 0.0
    %v4344 = vmax.f32 %v4193, 0.0
    %v4345 = vmax.f32 %v4198, 0.0
    %v4346 = vmax.f32 %v4203, 0.0
    %v4347 = vmax.f32 %v4208, 0.0
    %v4348 = vmax.f32 %v4213, 0.0
    %v4349 = vmax.f32 %v4218, 0.0
    %v4350 = vmax.f32 %v4223, 0.0
    %v4351 = vmax.f32 %v4228, 0.0
    %v4352 = vmax.f32 %v4233, 0.0
    %v4353 = vmax.f32 %v4238, 0.0
    %v4354 = vmax.f32 %v4243, 0.0
    %v4355 = vmax.f32 %v4248, 0.0
    %v4356 = vmax.f32 %v4253, 0.0
    %v4357 = vmax.f32 %v4258, 0.0
    %v4358 = vmax.f32 %v4263, 0.0
    %v4359 = vmax.f32 %v4268, 0.0
    %v4360 = vmax.f32 %v4273, 0.0
    %v4361 = vmax.f32 %v4278, 0.0
    %v4362 = vmax.f32 %v4283, 0.0
    %v4363 = vmax.f32 %v4288, 0.0
    %v4364 = vmax.f32 %v4293, 0.0
    %v4365 = vmax.f32 %v4298, 0.0
    %v4366 = vmax.f32 %v4303, 0.0
    %v4367 = vmax.f32 %v4308, 0.0
    %v4368 = vmax.f32 %v4313, 0.0
    %v4369 = vmax.f32 %v4318, 0.0
    %v4419 = vcombine.high %v4321, %v4321
    %v4421 = vunpack.c.l.s4 1983009808
    %v4422 = vunpack.c.0.s8 %v4421
    %v4423 = vlaneseq
    %v4424 = vshrl.u32 %v4423, 7
    %v4425 = vsub.s32 %v4422, %v4424
    %v4426 = vrot.slane %v4321, %v4425
    %v4428 = vunpack.c.l.s4 1983009808
    %v4429 = vunpack.c.0.s8 %v4428
    %v4430 = vlaneseq
    %v4431 = vshrl.u32 %v4430, 7
    %v4432 = vsub.s32 %v4429, %v4431
    %v4433 = vrot.slane %v4419, %v4432
    %v4434 = vcombine.high %v4426, %v4426
    %v4435 = vcombine.high %v4433, %v4433
    %v4436 = vcombine.high %v4322, %v4322
    %v4438 = vunpack.c.l.s4 1983009808
    %v4439 = vunpack.c.0.s8 %v4438
    %v4440 = vlaneseq
    %v4441 = vshrl.u32 %v4440, 7
    %v4442 = vsub.s32 %v4439, %v4441
    %v4443 = vrot.slane %v4322, %v4442
    %v4445 = vunpack.c.l.s4 1983009808
    %v4446 = vunpack.c.0.s8 %v4445
    %v4447 = vlaneseq
    %v4448 = vshrl.u32 %v4447, 7
    %v4449 = vsub.s32 %v4446, %v4448
    %v4450 = vrot.slane %v4436, %v4449
    %v4451 = vcombine.high %v4443, %v4443
    %v4452 = vcombine.high %v4450, %v4450
    %v4453 = vcombine.high %v4323, %v4323
    %v4455 = vunpack.c.l.s4 1983009808
    %v4456 = vunpack.c.0.s8 %v4455
    %v4457 = vlaneseq
    %v4458 = vshrl.u32 %v4457, 7
    %v4459 = vsub.s32 %v4456, %v4458
    %v4460 = vrot.slane %v4323, %v4459
    %v4462 = vunpack.c.l.s4 1983009808
    %v4463 = vunpack.c.0.s8 %v4462
    %v4464 = vlaneseq
    %v4465 = vshrl.u32 %v4464, 7
    %v4466 = vsub.s32 %v4463, %v4465
    %v4467 = vrot.slane %v4453, %v4466
    %v4468 = vcombine.high %v4460, %v4460
    %v4469 = vcombine.high %v4467, %v4467
    %v4470 = vcombine.high %v4324, %v4324
    %v4472 = vunpack.c.l.s4 1983009808
    %v4473 = vunpack.c.0.s8 %v4472
    %v4474 = vlaneseq
    %v4475 = vshrl.u32 %v4474, 7
    %v4476 = vsub.s32 %v4473, %v4475
    %v4477 = vrot.slane %v4324, %v4476
    %v4479 = vunpack.c.l.s4 1983009808
    %v4480 = vunpack.c.0.s8 %v4479
    %v4481 = vlaneseq
    %v4482 = vshrl.u32 %v4481, 7
    %v4483 = vsub.s32 %v4480, %v4482
    %v4484 = vrot.slane %v4470, %v4483
    %v4485 = vcombine.high %v4477, %v4477
    %v4486 = vcombine.high %v4484, %v4484
    %v4487 = vcombine.high %v4325, %v4325
    %v4489 = vunpack.c.l.s4 1983009808
    %v4490 = vunpack.c.0.s8 %v4489
    %v4491 = vlaneseq
    %v4492 = vshrl.u32 %v4491, 7
    %v4493 = vsub.s32 %v4490, %v4492
    %v4494 = vrot.slane %v4325, %v4493
    %v4496 = vunpack.c.l.s4 1983009808
    %v4497 = vunpack.c.0.s8 %v4496
    %v4498 = vlaneseq
    %v4499 = vshrl.u32 %v4498, 7
    %v4500 = vsub.s32 %v4497, %v4499
    %v4501 = vrot.slane %v4487, %v4500
    %v4502 = vcombine.high %v4494, %v4494
    %v4503 = vcombine.high %v4501, %v4501
    %v4504 = vcombine.high %v4326, %v4326
    %v4506 = vunpack.c.l.s4 1983009808
    %v4507 = vunpack.c.0.s8 %v4506
    %v4508 = vlaneseq
    %v4509 = vshrl.u32 %v4508, 7
    %v4510 = vsub.s32 %v4507, %v4509
    %v4511 = vrot.slane %v4326, %v4510
    %v4513 = vunpack.c.l.s4 1983009808
    %v4514 = vunpack.c.0.s8 %v4513
    %v4515 = vlaneseq
    %v4516 = vshrl.u32 %v4515, 7
    %v4517 = vsub.s32 %v4514, %v4516
    %v4518 = vrot.slane %v4504, %v4517
    %v4519 = vcombine.high %v4511, %v4511
    %v4520 = vcombine.high %v4518, %v4518
    %v4521 = vcombine.high %v4327, %v4327
    %v4523 = vunpack.c.l.s4 1983009808
    %v4524 = vunpack.c.0.s8 %v4523
    %v4525 = vlaneseq
    %v4526 = vshrl.u32 %v4525, 7
    %v4527 = vsub.s32 %v4524, %v4526
    %v4528 = vrot.slane %v4327, %v4527
    %v4530 = vunpack.c.l.s4 1983009808
    %v4531 = vunpack.c.0.s8 %v4530
    %v4532 = vlaneseq
    %v4533 = vshrl.u32 %v4532, 7
    %v4534 = vsub.s32 %v4531, %v4533
    %v4535 = vrot.slane %v4521, %v4534
    %v4536 = vcombine.high %v4528, %v4528
    %v4537 = vcombine.high %v4535, %v4535
    %v4538 = vcombine.high %v4328, %v4328
    %v4540 = vunpack.c.l.s4 1983009808
    %v4541 = vunpack.c.0.s8 %v4540
    %v4542 = vlaneseq
    %v4543 = vshrl.u32 %v4542, 7
    %v4544 = vsub.s32 %v4541, %v4543
    %v4545 = vrot.slane %v4328, %v4544
    %v4547 = vunpack.c.l.s4 1983009808
    %v4548 = vunpack.c.0.s8 %v4547
    %v4549 = vlaneseq
    %v4550 = vshrl.u32 %v4549, 7
    %v4551 = vsub.s32 %v4548, %v4550
    %v4552 = vrot.slane %v4538, %v4551
    %v4553 = vcombine.high %v4545, %v4545
    %v4554 = vcombine.high %v4552, %v4552
    %v4555 = vcombine.high %v4329, %v4329
    %v4557 = vunpack.c.l.s4 1983009808
    %v4558 = vunpack.c.0.s8 %v4557
    %v4559 = vlaneseq
    %v4560 = vshrl.u32 %v4559, 7
    %v4561 = vsub.s32 %v4558, %v4560
    %v4562 = vrot.slane %v4329, %v4561
    %v4564 = vunpack.c.l.s4 1983009808
    %v4565 = vunpack.c.0.s8 %v4564
    %v4566 = vlaneseq
    %v4567 = vshrl.u32 %v4566, 7
    %v4568 = vsub.s32 %v4565, %v4567
    %v4569 = vrot.slane %v4555, %v4568
    %v4570 = vcombine.high %v4562, %v4562
    %v4571 = vcombine.high %v4569, %v4569
    %v4572 = vcombine.high %v4330, %v4330
    %v4574 = vunpack.c.l.s4 1983009808
    %v4575 = vunpack.c.0.s8 %v4574
    %v4576 = vlaneseq
    %v4577 = vshrl.u32 %v4576, 7
    %v4578 = vsub.s32 %v4575, %v4577
    %v4579 = vrot.slane %v4330, %v4578
    %v4581 = vunpack.c.l.s4 1983009808
    %v4582 = vunpack.c.0.s8 %v4581
    %v4583 = vlaneseq
    %v4584 = vshrl.u32 %v4583, 7
    %v4585 = vsub.s32 %v4582, %v4584
    %v4586 = vrot.slane %v4572, %v4585
    %v4587 = vcombine.high %v4579, %v4579
    %v4588 = vcombine.high %v4586, %v4586
    %v4589 = vcombine.high %v4331, %v4331
    %v4591 = vunpack.c.l.s4 1983009808
    %v4592 = vunpack.c.0.s8 %v4591
    %v4593 = vlaneseq
    %v4594 = vshrl.u32 %v4593, 7
    %v4595 = vsub.s32 %v4592, %v4594
    %v4596 = vrot.slane %v4331, %v4595
    %v4598 = vunpack.c.l.s4 1983009808
    %v4599 = vunpack.c.0.s8 %v4598
    %v4600 = vlaneseq
    %v4601 = vshrl.u32 %v4600, 7
    %v4602 = vsub.s32 %v4599, %v4601
    %v4603 = vrot.slane %v4589, %v4602
    %v4604 = vcombine.high %v4596, %v4596
    %v4605 = vcombine.high %v4603, %v4603
    %v4606 = vcombine.high %v4332, %v4332
    %v4608 = vunpack.c.l.s4 1983009808
    %v4609 = vunpack.c.0.s8 %v4608
    %v4610 = vlaneseq
    %v4611 = vshrl.u32 %v4610, 7
    %v4612 = vsub.s32 %v4609, %v4611
    %v4613 = vrot.slane %v4332, %v4612
    %v4615 = vunpack.c.l.s4 1983009808
    %v4616 = vunpack.c.0.s8 %v4615
    %v4617 = vlaneseq
    %v4618 = vshrl.u32 %v4617, 7
    %v4619 = vsub.s32 %v4616, %v4618
    %v4620 = vrot.slane %v4606, %v4619
    %v4621 = vcombine.high %v4613, %v4613
    %v4622 = vcombine.high %v4620, %v4620
    %v4623 = vcombine.high %v4333, %v4333
    %v4625 = vunpack.c.l.s4 1983009808
    %v4626 = vunpack.c.0.s8 %v4625
    %v4627 = vlaneseq
    %v4628 = vshrl.u32 %v4627, 7
    %v4629 = vsub.s32 %v4626, %v4628
    %v4630 = vrot.slane %v4333, %v4629
    %v4632 = vunpack.c.l.s4 1983009808
    %v4633 = vunpack.c.0.s8 %v4632
    %v4634 = vlaneseq
    %v4635 = vshrl.u32 %v4634, 7
    %v4636 = vsub.s32 %v4633, %v4635
    %v4637 = vrot.slane %v4623, %v4636
    %v4638 = vcombine.high %v4630, %v4630
    %v4639 = vcombine.high %v4637, %v4637
    %v4640 = vcombine.high %v4334, %v4334
    %v4642 = vunpack.c.l.s4 1983009808
    %v4643 = vunpack.c.0.s8 %v4642
    %v4644 = vlaneseq
    %v4645 = vshrl.u32 %v4644, 7
    %v4646 = vsub.s32 %v4643, %v4645
    %v4647 = vrot.slane %v4334, %v4646
    %v4649 = vunpack.c.l.s4 1983009808
    %v4650 = vunpack.c.0.s8 %v4649
    %v4651 = vlaneseq
    %v4652 = vshrl.u32 %v4651, 7
    %v4653 = vsub.s32 %v4650, %v4652
    %v4654 = vrot.slane %v4640, %v4653
    %v4655 = vcombine.high %v4647, %v4647
    %v4656 = vcombine.high %v4654, %v4654
    %v4657 = vcombine.high %v4335, %v4335
    %v4659 = vunpack.c.l.s4 1983009808
    %v4660 = vunpack.c.0.s8 %v4659
    %v4661 = vlaneseq
    %v4662 = vshrl.u32 %v4661, 7
    %v4663 = vsub.s32 %v4660, %v4662
    %v4664 = vrot.slane %v4335, %v4663
    %v4666 = vunpack.c.l.s4 1983009808
    %v4667 = vunpack.c.0.s8 %v4666
    %v4668 = vlaneseq
    %v4669 = vshrl.u32 %v4668, 7
    %v4670 = vsub.s32 %v4667, %v4669
    %v4671 = vrot.slane %v4657, %v4670
    %v4672 = vcombine.high %v4664, %v4664
    %v4673 = vcombine.high %v4671, %v4671
    %v4674 = vcombine.high %v4336, %v4336
    %v4676 = vunpack.c.l.s4 1983009808
    %v4677 = vunpack.c.0.s8 %v4676
    %v4678 = vlaneseq
    %v4679 = vshrl.u32 %v4678, 7
    %v4680 = vsub.s32 %v4677, %v4679
    %v4681 = vrot.slane %v4336, %v4680
    %v4683 = vunpack.c.l.s4 1983009808
    %v4684 = vunpack.c.0.s8 %v4683
    %v4685 = vlaneseq
    %v4686 = vshrl.u32 %v4685, 7
    %v4687 = vsub.s32 %v4684, %v4686
    %v4688 = vrot.slane %v4674, %v4687
    %v4689 = vcombine.high %v4681, %v4681
    %v4690 = vcombine.high %v4688, %v4688
    %v4691 = vcombine.high %v4337, %v4337
    %v4693 = vunpack.c.l.s4 1983009808
    %v4694 = vunpack.c.0.s8 %v4693
    %v4695 = vlaneseq
    %v4696 = vshrl.u32 %v4695, 7
    %v4697 = vsub.s32 %v4694, %v4696
    %v4698 = vrot.slane %v4337, %v4697
    %v4700 = vunpack.c.l.s4 1983009808
    %v4701 = vunpack.c.0.s8 %v4700
    %v4702 = vlaneseq
    %v4703 = vshrl.u32 %v4702, 7
    %v4704 = vsub.s32 %v4701, %v4703
    %v4705 = vrot.slane %v4691, %v4704
    %v4706 = vcombine.high %v4698, %v4698
    %v4707 = vcombine.high %v4705, %v4705
    %v4708 = vcombine.high %v4338, %v4338
    %v4710 = vunpack.c.l.s4 1983009808
    %v4711 = vunpack.c.0.s8 %v4710
    %v4712 = vlaneseq
    %v4713 = vshrl.u32 %v4712, 7
    %v4714 = vsub.s32 %v4711, %v4713
    %v4715 = vrot.slane %v4338, %v4714
    %v4717 = vunpack.c.l.s4 1983009808
    %v4718 = vunpack.c.0.s8 %v4717
    %v4719 = vlaneseq
    %v4720 = vshrl.u32 %v4719, 7
    %v4721 = vsub.s32 %v4718, %v4720
    %v4722 = vrot.slane %v4708, %v4721
    %v4723 = vcombine.high %v4715, %v4715
    %v4724 = vcombine.high %v4722, %v4722
    %v4725 = vcombine.high %v4339, %v4339
    %v4727 = vunpack.c.l.s4 1983009808
    %v4728 = vunpack.c.0.s8 %v4727
    %v4729 = vlaneseq
    %v4730 = vshrl.u32 %v4729, 7
    %v4731 = vsub.s32 %v4728, %v4730
    %v4732 = vrot.slane %v4339, %v4731
    %v4734 = vunpack.c.l.s4 1983009808
    %v4735 = vunpack.c.0.s8 %v4734
    %v4736 = vlaneseq
    %v4737 = vshrl.u32 %v4736, 7
    %v4738 = vsub.s32 %v4735, %v4737
    %v4739 = vrot.slane %v4725, %v4738
    %v4740 = vcombine.high %v4732, %v4732
    %v4741 = vcombine.high %v4739, %v4739
    %v4742 = vcombine.high %v4340, %v4340
    %v4744 = vunpack.c.l.s4 1983009808
    %v4745 = vunpack.c.0.s8 %v4744
    %v4746 = vlaneseq
    %v4747 = vshrl.u32 %v4746, 7
    %v4748 = vsub.s32 %v4745, %v4747
    %v4749 = vrot.slane %v4340, %v4748
    %v4751 = vunpack.c.l.s4 1983009808
    %v4752 = vunpack.c.0.s8 %v4751
    %v4753 = vlaneseq
    %v4754 = vshrl.u32 %v4753, 7
    %v4755 = vsub.s32 %v4752, %v4754
    %v4756 = vrot.slane %v4742, %v4755
    %v4757 = vcombine.high %v4749, %v4749
    %v4758 = vcombine.high %v4756, %v4756
    %v4759 = vcombine.high %v4341, %v4341
    %v4761 = vunpack.c.l.s4 1983009808
    %v4762 = vunpack.c.0.s8 %v4761
    %v4763 = vlaneseq
    %v4764 = vshrl.u32 %v4763, 7
    %v4765 = vsub.s32 %v4762, %v4764
    %v4766 = vrot.slane %v4341, %v4765
    %v4768 = vunpack.c.l.s4 1983009808
    %v4769 = vunpack.c.0.s8 %v4768
    %v4770 = vlaneseq
    %v4771 = vshrl.u32 %v4770, 7
    %v4772 = vsub.s32 %v4769, %v4771
    %v4773 = vrot.slane %v4759, %v4772
    %v4774 = vcombine.high %v4766, %v4766
    %v4775 = vcombine.high %v4773, %v4773
    %v4776 = vcombine.high %v4342, %v4342
    %v4778 = vunpack.c.l.s4 1983009808
    %v4779 = vunpack.c.0.s8 %v4778
    %v4780 = vlaneseq
    %v4781 = vshrl.u32 %v4780, 7
    %v4782 = vsub.s32 %v4779, %v4781
    %v4783 = vrot.slane %v4342, %v4782
    %v4785 = vunpack.c.l.s4 1983009808
    %v4786 = vunpack.c.0.s8 %v4785
    %v4787 = vlaneseq
    %v4788 = vshrl.u32 %v4787, 7
    %v4789 = vsub.s32 %v4786, %v4788
    %v4790 = vrot.slane %v4776, %v4789
    %v4791 = vcombine.high %v4783, %v4783
    %v4792 = vcombine.high %v4790, %v4790
    %v4793 = vcombine.high %v4343, %v4343
    %v4795 = vunpack.c.l.s4 1983009808
    %v4796 = vunpack.c.0.s8 %v4795
    %v4797 = vlaneseq
    %v4798 = vshrl.u32 %v4797, 7
    %v4799 = vsub.s32 %v4796, %v4798
    %v4800 = vrot.slane %v4343, %v4799
    %v4802 = vunpack.c.l.s4 1983009808
    %v4803 = vunpack.c.0.s8 %v4802
    %v4804 = vlaneseq
    %v4805 = vshrl.u32 %v4804, 7
    %v4806 = vsub.s32 %v4803, %v4805
    %v4807 = vrot.slane %v4793, %v4806
    %v4808 = vcombine.high %v4800, %v4800
    %v4809 = vcombine.high %v4807, %v4807
    %v4810 = vcombine.high %v4344, %v4344
    %v4812 = vunpack.c.l.s4 1983009808
    %v4813 = vunpack.c.0.s8 %v4812
    %v4814 = vlaneseq
    %v4815 = vshrl.u32 %v4814, 7
    %v4816 = vsub.s32 %v4813, %v4815
    %v4817 = vrot.slane %v4344, %v4816
    %v4819 = vunpack.c.l.s4 1983009808
    %v4820 = vunpack.c.0.s8 %v4819
    %v4821 = vlaneseq
    %v4822 = vshrl.u32 %v4821, 7
    %v4823 = vsub.s32 %v4820, %v4822
    %v4824 = vrot.slane %v4810, %v4823
    %v4825 = vcombine.high %v4817, %v4817
    %v4826 = vcombine.high %v4824, %v4824
    %v4827 = vcombine.high %v4345, %v4345
    %v4829 = vunpack.c.l.s4 1983009808
    %v4830 = vunpack.c.0.s8 %v4829
    %v4831 = vlaneseq
    %v4832 = vshrl.u32 %v4831, 7
    %v4833 = vsub.s32 %v4830, %v4832
    %v4834 = vrot.slane %v4345, %v4833
    %v4836 = vunpack.c.l.s4 1983009808
    %v4837 = vunpack.c.0.s8 %v4836
    %v4838 = vlaneseq
    %v4839 = vshrl.u32 %v4838, 7
    %v4840 = vsub.s32 %v4837, %v4839
    %v4841 = vrot.slane %v4827, %v4840
    %v4842 = vcombine.high %v4834, %v4834
    %v4843 = vcombine.high %v4841, %v4841
    %v4844 = vcombine.high %v4346, %v4346
    %v4846 = vunpack.c.l.s4 1983009808
    %v4847 = vunpack.c.0.s8 %v4846
    %v4848 = vlaneseq
    %v4849 = vshrl.u32 %v4848, 7
    %v4850 = vsub.s32 %v4847, %v4849
    %v4851 = vrot.slane %v4346, %v4850
    %v4853 = vunpack.c.l.s4 1983009808
    %v4854 = vunpack.c.0.s8 %v4853
    %v4855 = vlaneseq
    %v4856 = vshrl.u32 %v4855, 7
    %v4857 = vsub.s32 %v4854, %v4856
    %v4858 = vrot.slane %v4844, %v4857
    %v4859 = vcombine.high %v4851, %v4851
    %v4860 = vcombine.high %v4858, %v4858
    %v4861 = vcombine.high %v4347, %v4347
    %v4863 = vunpack.c.l.s4 1983009808
    %v4864 = vunpack.c.0.s8 %v4863
    %v4865 = vlaneseq
    %v4866 = vshrl.u32 %v4865, 7
    %v4867 = vsub.s32 %v4864, %v4866
    %v4868 = vrot.slane %v4347, %v4867
    %v4870 = vunpack.c.l.s4 1983009808
    %v4871 = vunpack.c.0.s8 %v4870
    %v4872 = vlaneseq
    %v4873 = vshrl.u32 %v4872, 7
    %v4874 = vsub.s32 %v4871, %v4873
    %v4875 = vrot.slane %v4861, %v4874
    %v4876 = vcombine.high %v4868, %v4868
    %v4877 = vcombine.high %v4875, %v4875
    %v4878 = vcombine.high %v4348, %v4348
    %v4880 = vunpack.c.l.s4 1983009808
    %v4881 = vunpack.c.0.s8 %v4880
    %v4882 = vlaneseq
    %v4883 = vshrl.u32 %v4882, 7
    %v4884 = vsub.s32 %v4881, %v4883
    %v4885 = vrot.slane %v4348, %v4884
    %v4887 = vunpack.c.l.s4 1983009808
    %v4888 = vunpack.c.0.s8 %v4887
    %v4889 = vlaneseq
    %v4890 = vshrl.u32 %v4889, 7
    %v4891 = vsub.s32 %v4888, %v4890
    %v4892 = vrot.slane %v4878, %v4891
    %v4893 = vcombine.high %v4885, %v4885
    %v4894 = vcombine.high %v4892, %v4892
    %v4895 = vcombine.high %v4349, %v4349
    %v4897 = vunpack.c.l.s4 1983009808
    %v4898 = vunpack.c.0.s8 %v4897
    %v4899 = vlaneseq
    %v4900 = vshrl.u32 %v4899, 7
    %v4901 = vsub.s32 %v4898, %v4900
    %v4902 = vrot.slane %v4349, %v4901
    %v4904 = vunpack.c.l.s4 1983009808
    %v4905 = vunpack.c.0.s8 %v4904
    %v4906 = vlaneseq
    %v4907 = vshrl.u32 %v4906, 7
    %v4908 = vsub.s32 %v4905, %v4907
    %v4909 = vrot.slane %v4895, %v4908
    %v4910 = vcombine.high %v4902, %v4902
    %v4911 = vcombine.high %v4909, %v4909
    %v4912 = vcombine.high %v4350, %v4350
    %v4914 = vunpack.c.l.s4 1983009808
    %v4915 = vunpack.c.0.s8 %v4914
    %v4916 = vlaneseq
    %v4917 = vshrl.u32 %v4916, 7
    %v4918 = vsub.s32 %v4915, %v4917
    %v4919 = vrot.slane %v4350, %v4918
    %v4921 = vunpack.c.l.s4 1983009808
    %v4922 = vunpack.c.0.s8 %v4921
    %v4923 = vlaneseq
    %v4924 = vshrl.u32 %v4923, 7
    %v4925 = vsub.s32 %v4922, %v4924
    %v4926 = vrot.slane %v4912, %v4925
    %v4927 = vcombine.high %v4919, %v4919
    %v4928 = vcombine.high %v4926, %v4926
    %v4929 = vcombine.high %v4351, %v4351
    %v4931 = vunpack.c.l.s4 1983009808
    %v4932 = vunpack.c.0.s8 %v4931
    %v4933 = vlaneseq
    %v4934 = vshrl.u32 %v4933, 7
    %v4935 = vsub.s32 %v4932, %v4934
    %v4936 = vrot.slane %v4351, %v4935
    %v4938 = vunpack.c.l.s4 1983009808
    %v4939 = vunpack.c.0.s8 %v4938
    %v4940 = vlaneseq
    %v4941 = vshrl.u32 %v4940, 7
    %v4942 = vsub.s32 %v4939, %v4941
    %v4943 = vrot.slane %v4929, %v4942
    %v4944 = vcombine.high %v4936, %v4936
    %v4945 = vcombine.high %v4943, %v4943
    %v4946 = vcombine.high %v4352, %v4352
    %v4948 = vunpack.c.l.s4 1983009808
    %v4949 = vunpack.c.0.s8 %v4948
    %v4950 = vlaneseq
    %v4951 = vshrl.u32 %v4950, 7
    %v4952 = vsub.s32 %v4949, %v4951
    %v4953 = vrot.slane %v4352, %v4952
    %v4955 = vunpack.c.l.s4 1983009808
    %v4956 = vunpack.c.0.s8 %v4955
    %v4957 = vlaneseq
    %v4958 = vshrl.u32 %v4957, 7
    %v4959 = vsub.s32 %v4956, %v4958
    %v4960 = vrot.slane %v4946, %v4959
    %v4961 = vcombine.high %v4953, %v4953
    %v4962 = vcombine.high %v4960, %v4960
    %v4963 = vcombine.high %v4353, %v4353
    %v4965 = vunpack.c.l.s4 1983009808
    %v4966 = vunpack.c.0.s8 %v4965
    %v4967 = vlaneseq
    %v4968 = vshrl.u32 %v4967, 7
    %v4969 = vsub.s32 %v4966, %v4968
    %v4970 = vrot.slane %v4353, %v4969
    %v4972 = vunpack.c.l.s4 1983009808
    %v4973 = vunpack.c.0.s8 %v4972
    %v4974 = vlaneseq
    %v4975 = vshrl.u32 %v4974, 7
    %v4976 = vsub.s32 %v4973, %v4975
    %v4977 = vrot.slane %v4963, %v4976
    %v4978 = vcombine.high %v4970, %v4970
    %v4979 = vcombine.high %v4977, %v4977
    %v4980 = vcombine.high %v4354, %v4354
    %v4982 = vunpack.c.l.s4 1983009808
    %v4983 = vunpack.c.0.s8 %v4982
    %v4984 = vlaneseq
    %v4985 = vshrl.u32 %v4984, 7
    %v4986 = vsub.s32 %v4983, %v4985
    %v4987 = vrot.slane %v4354, %v4986
    %v4989 = vunpack.c.l.s4 1983009808
    %v4990 = vunpack.c.0.s8 %v4989
    %v4991 = vlaneseq
    %v4992 = vshrl.u32 %v4991, 7
    %v4993 = vsub.s32 %v4990, %v4992
    %v4994 = vrot.slane %v4980, %v4993
    %v4995 = vcombine.high %v4987, %v4987
    %v4996 = vcombine.high %v4994, %v4994
    %v4997 = vcombine.high %v4355, %v4355
    %v4999 = vunpack.c.l.s4 1983009808
    %v5000 = vunpack.c.0.s8 %v4999
    %v5001 = vlaneseq
    %v5002 = vshrl.u32 %v5001, 7
    %v5003 = vsub.s32 %v5000, %v5002
    %v5004 = vrot.slane %v4355, %v5003
    %v5006 = vunpack.c.l.s4 1983009808
    %v5007 = vunpack.c.0.s8 %v5006
    %v5008 = vlaneseq
    %v5009 = vshrl.u32 %v5008, 7
    %v5010 = vsub.s32 %v5007, %v5009
    %v5011 = vrot.slane %v4997, %v5010
    %v5012 = vcombine.high %v5004, %v5004
    %v5013 = vcombine.high %v5011, %v5011
    %v5014 = vcombine.high %v4356, %v4356
    %v5016 = vunpack.c.l.s4 1983009808
    %v5017 = vunpack.c.0.s8 %v5016
    %v5018 = vlaneseq
    %v5019 = vshrl.u32 %v5018, 7
    %v5020 = vsub.s32 %v5017, %v5019
    %v5021 = vrot.slane %v4356, %v5020
    %v5023 = vunpack.c.l.s4 1983009808
    %v5024 = vunpack.c.0.s8 %v5023
    %v5025 = vlaneseq
    %v5026 = vshrl.u32 %v5025, 7
    %v5027 = vsub.s32 %v5024, %v5026
    %v5028 = vrot.slane %v5014, %v5027
    %v5029 = vcombine.high %v5021, %v5021
    %v5030 = vcombine.high %v5028, %v5028
    %v5031 = vcombine.high %v4357, %v4357
    %v5033 = vunpack.c.l.s4 1983009808
    %v5034 = vunpack.c.0.s8 %v5033
    %v5035 = vlaneseq
    %v5036 = vshrl.u32 %v5035, 7
    %v5037 = vsub.s32 %v5034, %v5036
    %v5038 = vrot.slane %v4357, %v5037
    %v5040 = vunpack.c.l.s4 1983009808
    %v5041 = vunpack.c.0.s8 %v5040
    %v5042 = vlaneseq
    %v5043 = vshrl.u32 %v5042, 7
    %v5044 = vsub.s32 %v5041, %v5043
    %v5045 = vrot.slane %v5031, %v5044
    %v5046 = vcombine.high %v5038, %v5038
    %v5047 = vcombine.high %v5045, %v5045
    %v5048 = vcombine.high %v4358, %v4358
    %v5050 = vunpack.c.l.s4 1983009808
    %v5051 = vunpack.c.0.s8 %v5050
    %v5052 = vlaneseq
    %v5053 = vshrl.u32 %v5052, 7
    %v5054 = vsub.s32 %v5051, %v5053
    %v5055 = vrot.slane %v4358, %v5054
    %v5057 = vunpack.c.l.s4 1983009808
    %v5058 = vunpack.c.0.s8 %v5057
    %v5059 = vlaneseq
    %v5060 = vshrl.u32 %v5059, 7
    %v5061 = vsub.s32 %v5058, %v5060
    %v5062 = vrot.slane %v5048, %v5061
    %v5063 = vcombine.high %v5055, %v5055
    %v5064 = vcombine.high %v5062, %v5062
    %v5065 = vcombine.high %v4359, %v4359
    %v5067 = vunpack.c.l.s4 1983009808
    %v5068 = vunpack.c.0.s8 %v5067
    %v5069 = vlaneseq
    %v5070 = vshrl.u32 %v5069, 7
    %v5071 = vsub.s32 %v5068, %v5070
    %v5072 = vrot.slane %v4359, %v5071
    %v5074 = vunpack.c.l.s4 1983009808
    %v5075 = vunpack.c.0.s8 %v5074
    %v5076 = vlaneseq
    %v5077 = vshrl.u32 %v5076, 7
    %v5078 = vsub.s32 %v5075, %v5077
    %v5079 = vrot.slane %v5065, %v5078
    %v5080 = vcombine.high %v5072, %v5072
    %v5081 = vcombine.high %v5079, %v5079
    %v5082 = vcombine.high %v4360, %v4360
    %v5084 = vunpack.c.l.s4 1983009808
    %v5085 = vunpack.c.0.s8 %v5084
    %v5086 = vlaneseq
    %v5087 = vshrl.u32 %v5086, 7
    %v5088 = vsub.s32 %v5085, %v5087
    %v5089 = vrot.slane %v4360, %v5088
    %v5091 = vunpack.c.l.s4 1983009808
    %v5092 = vunpack.c.0.s8 %v5091
    %v5093 = vlaneseq
    %v5094 = vshrl.u32 %v5093, 7
    %v5095 = vsub.s32 %v5092, %v5094
    %v5096 = vrot.slane %v5082, %v5095
    %v5097 = vcombine.high %v5089, %v5089
    %v5098 = vcombine.high %v5096, %v5096
    %v5099 = vcombine.high %v4361, %v4361
    %v5101 = vunpack.c.l.s4 1983009808
    %v5102 = vunpack.c.0.s8 %v5101
    %v5103 = vlaneseq
    %v5104 = vshrl.u32 %v5103, 7
    %v5105 = vsub.s32 %v5102, %v5104
    %v5106 = vrot.slane %v4361, %v5105
    %v5108 = vunpack.c.l.s4 1983009808
    %v5109 = vunpack.c.0.s8 %v5108
    %v5110 = vlaneseq
    %v5111 = vshrl.u32 %v5110, 7
    %v5112 = vsub.s32 %v5109, %v5111
    %v5113 = vrot.slane %v5099, %v5112
    %v5114 = vcombine.high %v5106, %v5106
    %v5115 = vcombine.high %v5113, %v5113
    %v5116 = vcombine.high %v4362, %v4362
    %v5118 = vunpack.c.l.s4 1983009808
    %v5119 = vunpack.c.0.s8 %v5118
    %v5120 = vlaneseq
    %v5121 = vshrl.u32 %v5120, 7
    %v5122 = vsub.s32 %v5119, %v5121
    %v5123 = vrot.slane %v4362, %v5122
    %v5125 = vunpack.c.l.s4 1983009808
    %v5126 = vunpack.c.0.s8 %v5125
    %v5127 = vlaneseq
    %v5128 = vshrl.u32 %v5127, 7
    %v5129 = vsub.s32 %v5126, %v5128
    %v5130 = vrot.slane %v5116, %v5129
    %v5131 = vcombine.high %v5123, %v5123
    %v5132 = vcombine.high %v5130, %v5130
    %v5133 = vcombine.high %v4363, %v4363
    %v5135 = vunpack.c.l.s4 1983009808
    %v5136 = vunpack.c.0.s8 %v5135
    %v5137 = vlaneseq
    %v5138 = vshrl.u32 %v5137, 7
    %v5139 = vsub.s32 %v5136, %v5138
    %v5140 = vrot.slane %v4363, %v5139
    %v5142 = vunpack.c.l.s4 1983009808
    %v5143 = vunpack.c.0.s8 %v5142
    %v5144 = vlaneseq
    %v5145 = vshrl.u32 %v5144, 7
    %v5146 = vsub.s32 %v5143, %v5145
    %v5147 = vrot.slane %v5133, %v5146
    %v5148 = vcombine.high %v5140, %v5140
    %v5149 = vcombine.high %v5147, %v5147
    %v5150 = vcombine.high %v4364, %v4364
    %v5152 = vunpack.c.l.s4 1983009808
    %v5153 = vunpack.c.0.s8 %v5152
    %v5154 = vlaneseq
    %v5155 = vshrl.u32 %v5154, 7
    %v5156 = vsub.s32 %v5153, %v5155
    %v5157 = vrot.slane %v4364, %v5156
    %v5159 = vunpack.c.l.s4 1983009808
    %v5160 = vunpack.c.0.s8 %v5159
    %v5161 = vlaneseq
    %v5162 = vshrl.u32 %v5161, 7
    %v5163 = vsub.s32 %v5160, %v5162
    %v5164 = vrot.slane %v5150, %v5163
    %v5165 = vcombine.high %v5157, %v5157
    %v5166 = vcombine.high %v5164, %v5164
    %v5167 = vcombine.high %v4365, %v4365
    %v5169 = vunpack.c.l.s4 1983009808
    %v5170 = vunpack.c.0.s8 %v5169
    %v5171 = vlaneseq
    %v5172 = vshrl.u32 %v5171, 7
    %v5173 = vsub.s32 %v5170, %v5172
    %v5174 = vrot.slane %v4365, %v5173
    %v5176 = vunpack.c.l.s4 1983009808
    %v5177 = vunpack.c.0.s8 %v5176
    %v5178 = vlaneseq
    %v5179 = vshrl.u32 %v5178, 7
    %v5180 = vsub.s32 %v5177, %v5179
    %v5181 = vrot.slane %v5167, %v5180
    %v5182 = vcombine.high %v5174, %v5174
    %v5183 = vcombine.high %v5181, %v5181
    %v5184 = vcombine.high %v4366, %v4366
    %v5186 = vunpack.c.l.s4 1983009808
    %v5187 = vunpack.c.0.s8 %v5186
    %v5188 = vlaneseq
    %v5189 = vshrl.u32 %v5188, 7
    %v5190 = vsub.s32 %v5187, %v5189
    %v5191 = vrot.slane %v4366, %v5190
    %v5193 = vunpack.c.l.s4 1983009808
    %v5194 = vunpack.c.0.s8 %v5193
    %v5195 = vlaneseq
    %v5196 = vshrl.u32 %v5195, 7
    %v5197 = vsub.s32 %v5194, %v5196
    %v5198 = vrot.slane %v5184, %v5197
    %v5199 = vcombine.high %v5191, %v5191
    %v5200 = vcombine.high %v5198, %v5198
    %v5201 = vcombine.high %v4367, %v4367
    %v5203 = vunpack.c.l.s4 1983009808
    %v5204 = vunpack.c.0.s8 %v5203
    %v5205 = vlaneseq
    %v5206 = vshrl.u32 %v5205, 7
    %v5207 = vsub.s32 %v5204, %v5206
    %v5208 = vrot.slane %v4367, %v5207
    %v5210 = vunpack.c.l.s4 1983009808
    %v5211 = vunpack.c.0.s8 %v5210
    %v5212 = vlaneseq
    %v5213 = vshrl.u32 %v5212, 7
    %v5214 = vsub.s32 %v5211, %v5213
    %v5215 = vrot.slane %v5201, %v5214
    %v5216 = vcombine.high %v5208, %v5208
    %v5217 = vcombine.high %v5215, %v5215
    %v5218 = vcombine.high %v4368, %v4368
    %v5220 = vunpack.c.l.s4 1983009808
    %v5221 = vunpack.c.0.s8 %v5220
    %v5222 = vlaneseq
    %v5223 = vshrl.u32 %v5222, 7
    %v5224 = vsub.s32 %v5221, %v5223
    %v5225 = vrot.slane %v4368, %v5224
    %v5227 = vunpack.c.l.s4 1983009808
    %v5228 = vunpack.c.0.s8 %v5227
    %v5229 = vlaneseq
    %v5230 = vshrl.u32 %v5229, 7
    %v5231 = vsub.s32 %v5228, %v5230
    %v5232 = vrot.slane %v5218, %v5231
    %v5233 = vcombine.high %v5225, %v5225
    %v5234 = vcombine.high %v5232, %v5232
    %v5235 = vcombine.high %v4369, %v4369
    %v5237 = vunpack.c.l.s4 1983009808
    %v5238 = vunpack.c.0.s8 %v5237
    %v5239 = vlaneseq
    %v5240 = vshrl.u32 %v5239, 7
    %v5241 = vsub.s32 %v5238, %v5240
    %v5242 = vrot.slane %v4369, %v5241
    %v5244 = vunpack.c.l.s4 1983009808
    %v5245 = vunpack.c.0.s8 %v5244
    %v5246 = vlaneseq
    %v5247 = vshrl.u32 %v5246, 7
    %v5248 = vsub.s32 %v5245, %v5247
    %v5249 = vrot.slane %v5235, %v5248
    %v5250 = vcombine.high %v5242, %v5242
    %v5251 = vcombine.high %v5249, %v5249
    %vm5448 = vcmask 58368
    %v5449 = vsel %vm5448, %v4426, -inf
    %v5450 = vsel %vm5448, %v4452, -inf
    %v5451 = vmax.f32 %v5449, %v5450
    %v5452 = vsel %vm5448, %v4434, -inf
    %v5453 = vsel %vm5448, %v4460, -inf
    %v5454 = vmax.f32 %v5452, %v5453
    %v5455 = vsel %vm5448, %v4433, -inf
    %v5456 = vsel %vm5448, %v4468, -inf
    %v5457 = vmax.f32 %v5455, %v5456
    %v5458 = vsel %vm5448, %v4435, -inf
    %v5459 = vsel %vm5448, %v4467, -inf
    %v5460 = vmax.f32 %v5458, %v5459
    %v5461 = vsel %vm5448, %v4443, -inf
    %v5462 = vsel %vm5448, %v4469, -inf
    %v5463 = vmax.f32 %v5461, %v5462
    %v5464 = vsel %vm5448, %v4451, -inf
    %v5465 = vsel %vm5448, %v4477, -inf
    %v5466 = vmax.f32 %v5464, %v5465
    %v5467 = vsel %vm5448, %v4450, -inf
    %v5468 = vsel %vm5448, %v4485, -inf
    %v5469 = vmax.f32 %v5467, %v5468
    %v5470 = vsel %vm5448, %v4484, -inf
    %v5471 = vsel %vm5448, %v4519, -inf
    %v5472 = vmax.f32 %v5470, %v5471
    %v5473 = vsel %vm5448, %v4486, -inf
    %v5474 = vsel %vm5448, %v4518, -inf
    %v5475 = vmax.f32 %v5473, %v5474
    %v5476 = vsel %vm5448, %v4494, -inf
    %v5477 = vsel %vm5448, %v4520, -inf
    %v5478 = vmax.f32 %v5476, %v5477
    %v5479 = vsel %vm5448, %v4502, -inf
    %v5480 = vsel %vm5448, %v4528, -inf
    %v5481 = vmax.f32 %v5479, %v5480
    %v5482 = vsel %vm5448, %v4501, -inf
    %v5483 = vsel %vm5448, %v4536, -inf
    %v5484 = vmax.f32 %v5482, %v5483
    %v5485 = vsel %vm5448, %v4503, -inf
    %v5486 = vsel %vm5448, %v4535, -inf
    %v5487 = vmax.f32 %v5485, %v5486
    %v5488 = vsel %vm5448, %v4511, -inf
    %v5489 = vsel %vm5448, %v4537, -inf
    %v5490 = vmax.f32 %v5488, %v5489
    %v5491 = vsel %vm5448, %v4545, -inf
    %v5492 = vsel %vm5448, %v4571, -inf
    %v5493 = vmax.f32 %v5491, %v5492
    %v5494 = vsel %vm5448, %v4553, -inf
    %v5495 = vsel %vm5448, %v4579, -inf
    %v5496 = vmax.f32 %v5494, %v5495
    %v5497 = vsel %vm5448, %v4552, -inf
    %v5498 = vsel %vm5448, %v4587, -inf
    %v5499 = vmax.f32 %v5497, %v5498
    %v5500 = vsel %vm5448, %v4554, -inf
    %v5501 = vsel %vm5448, %v4586, -inf
    %v5502 = vmax.f32 %v5500, %v5501
    %v5503 = vsel %vm5448, %v4562, -inf
    %v5504 = vsel %vm5448, %v4588, -inf
    %v5505 = vmax.f32 %v5503, %v5504
    %v5506 = vsel %vm5448, %v4570, -inf
    %v5507 = vsel %vm5448, %v4596, -inf
    %v5508 = vmax.f32 %v5506, %v5507
    %v5509 = vsel %vm5448, %v4569, -inf
    %v5510 = vsel %vm5448, %v4604, -inf
    %v5511 = vmax.f32 %v5509, %v5510
    %v5512 = vsel %vm5448, %v4603, -inf
    %v5513 = vsel %vm5448, %v4638, -inf
    %v5514 = vmax.f32 %v5512, %v5513
    %v5515 = vsel %vm5448, %v4605, -inf
    %v5516 = vsel %vm5448, %v4637, -inf
    %v5517 = vmax.f32 %v5515, %v5516
    %v5518 = vsel %vm5448, %v4613, -inf
    %v5519 = vsel %vm5448, %v4639, -inf
    %v5520 = vmax.f32 %v5518, %v5519
    %v5521 = vsel %vm5448, %v4621, -inf
    %v5522 = vsel %vm5448, %v4647, -inf
    %v5523 = vmax.f32 %v5521, %v5522
    %v5524 = vsel %vm5448, %v4620, -inf
    %v5525 = vsel %vm5448, %v4655, -inf
    %v5526 = vmax.f32 %v5524, %v5525
    %v5527 = vsel %vm5448, %v4622, -inf
    %v5528 = vsel %vm5448, %v4654, -inf
    %v5529 = vmax.f32 %v5527, %v5528
    %v5530 = vsel %vm5448, %v4630, -inf
    %v5531 = vsel %vm5448, %v4656, -inf
    %v5532 = vmax.f32 %v5530, %v5531
    %v5533 = vsel %vm5448, %v4664, -inf
    %v5534 = vsel %vm5448, %v4690, -inf
    %v5535 = vmax.f32 %v5533, %v5534
    %v5536 = vsel %vm5448, %v4672, -inf
    %v5537 = vsel %vm5448, %v4698, -inf
    %v5538 = vmax.f32 %v5536, %v5537
    %v5539 = vsel %vm5448, %v4671, -inf
    %v5540 = vsel %vm5448, %v4706, -inf
    %v5541 = vmax.f32 %v5539, %v5540
    %v5542 = vsel %vm5448, %v4673, -inf
    %v5543 = vsel %vm5448, %v4705, -inf
    %v5544 = vmax.f32 %v5542, %v5543
    %v5545 = vsel %vm5448, %v4681, -inf
    %v5546 = vsel %vm5448, %v4707, -inf
    %v5547 = vmax.f32 %v5545, %v5546
    %v5548 = vsel %vm5448, %v4689, -inf
    %v5549 = vsel %vm5448, %v4715, -inf
    %v5550 = vmax.f32 %v5548, %v5549
    %v5551 = vsel %vm5448, %v4688, -inf
    %v5552 = vsel %vm5448, %v4723, -inf
    %v5553 = vmax.f32 %v5551, %v5552
    %v5554 = vsel %vm5448, %v4722, -inf
    %v5555 = vsel %vm5448, %v4757, -inf
    %v5556 = vmax.f32 %v5554, %v5555
    %v5557 = vsel %vm5448, %v4724, -inf
    %v5558 = vsel %vm5448, %v4756, -inf
    %v5559 = vmax.f32 %v5557, %v5558
    %v5560 = vsel %vm5448, %v4732, -inf
    %v5561 = vsel %vm5448, %v4758, -inf
    %v5562 = vmax.f32 %v5560, %v5561
    %v5563 = vsel %vm5448, %v4740, -inf
    %v5564 = vsel %vm5448, %v4766, -inf
    %v5565 = vmax.f32 %v5563, %v5564
    %v5566 = vsel %vm5448, %v4739, -inf
    %v5567 = vsel %vm5448, %v4774, -inf
    %v5568 = vmax.f32 %v5566, %v5567
    %v5569 = vsel %vm5448, %v4741, -inf
    %v5570 = vsel %vm5448, %v4773, -inf
    %v5571 = vmax.f32 %v5569, %v5570
    %v5572 = vsel %vm5448, %v4749, -inf
    %v5573 = vsel %vm5448, %v4775, -inf
    %v5574 = vmax.f32 %v5572, %v5573
    %v5575 = vsel %vm5448, %v4783, -inf
    %v5576 = vsel %vm5448, %v4809, -inf
    %v5577 = vmax.f32 %v5575, %v5576
    %v5578 = vsel %vm5448, %v4791, -inf
    %v5579 = vsel %vm5448, %v4817, -inf
    %v5580 = vmax.f32 %v5578, %v5579
    %v5581 = vsel %vm5448, %v4790, -inf
    %v5582 = vsel %vm5448, %v4825, -inf
    %v5583 = vmax.f32 %v5581, %v5582
    %v5584 = vsel %vm5448, %v4792, -inf
    %v5585 = vsel %vm5448, %v4824, -inf
    %v5586 = vmax.f32 %v5584, %v5585
    %v5587 = vsel %vm5448, %v4800, -inf
    %v5588 = vsel %vm5448, %v4826, -inf
    %v5589 = vmax.f32 %v5587, %v5588
    %v5590 = vsel %vm5448, %v4808, -inf
    %v5591 = vsel %vm5448, %v4834, -inf
    %v5592 = vmax.f32 %v5590, %v5591
    %v5593 = vsel %vm5448, %v4807, -inf
    %v5594 = vsel %vm5448, %v4842, -inf
    %v5595 = vmax.f32 %v5593, %v5594
    %v5596 = vsel %vm5448, %v4841, -inf
    %v5597 = vsel %vm5448, %v4876, -inf
    %v5598 = vmax.f32 %v5596, %v5597
    %v5599 = vsel %vm5448, %v4843, -inf
    %v5600 = vsel %vm5448, %v4875, -inf
    %v5601 = vmax.f32 %v5599, %v5600
    %v5602 = vsel %vm5448, %v4851, -inf
    %v5603 = vsel %vm5448, %v4877, -inf
    %v5604 = vmax.f32 %v5602, %v5603
    %v5605 = vsel %vm5448, %v4859, -inf
    %v5606 = vsel %vm5448, %v4885, -inf
    %v5607 = vmax.f32 %v5605, %v5606
    %v5608 = vsel %vm5448, %v4858, -inf
    %v5609 = vsel %vm5448, %v4893, -inf
    %v5610 = vmax.f32 %v5608, %v5609
    %v5611 = vsel %vm5448, %v4860, -inf
    %v5612 = vsel %vm5448, %v4892, -inf
    %v5613 = vmax.f32 %v5611, %v5612
    %v5614 = vsel %vm5448, %v4868, -inf
    %v5615 = vsel %vm5448, %v4894, -inf
    %v5616 = vmax.f32 %v5614, %v5615
    %v5617 = vsel %vm5448, %v4902, -inf
    %v5618 = vsel %vm5448, %v4928, -inf
    %v5619 = vmax.f32 %v5617, %v5618
    %v5620 = vsel %vm5448, %v4910, -inf
    %v5621 = vsel %vm5448, %v4936, -inf
    %v5622 = vmax.f32 %v5620, %v5621
    %v5623 = vsel %vm5448, %v4909, -inf
    %v5624 = vsel %vm5448, %v4944, -inf
    %v5625 = vmax.f32 %v5623, %v5624
    %v5626 = vsel %vm5448, %v4911, -inf
    %v5627 = vsel %vm5448, %v4943, -inf
    %v5628 = vmax.f32 %v5626, %v5627
    %v5629 = vsel %vm5448, %v4919, -inf
    %v5630 = vsel %vm5448, %v4945, -inf
    %v5631 = vmax.f32 %v5629, %v5630
    %v5632 = vsel %vm5448, %v4927, -inf
    %v5633 = vsel %vm5448, %v4953, -inf
    %v5634 = vmax.f32 %v5632, %v5633
    %v5635 = vsel %vm5448, %v4926, -inf
    %v5636 = vsel %vm5448, %v4961, -inf
    %v5637 = vmax.f32 %v5635, %v5636
    %v5638 = vsel %vm5448, %v4960, -inf
    %v5639 = vsel %vm5448, %v4995, -inf
    %v5640 = vmax.f32 %v5638, %v5639
    %v5641 = vsel %vm5448, %v4962, -inf
    %v5642 = vsel %vm5448, %v4994, -inf
    %v5643 = vmax.f32 %v5641, %v5642
    %v5644 = vsel %vm5448, %v4970, -inf
    %v5645 = vsel %vm5448, %v4996, -inf
    %v5646 = vmax.f32 %v5644, %v5645
    %v5647 = vsel %vm5448, %v4978, -inf
    %v5648 = vsel %vm5448, %v5004, -inf
    %v5649 = vmax.f32 %v5647, %v5648
    %v5650 = vsel %vm5448, %v4977, -inf
    %v5651 = vsel %vm5448, %v5012, -inf
    %v5652 = vmax.f32 %v5650, %v5651
    %v5653 = vsel %vm5448, %v4979, -inf
    %v5654 = vsel %vm5448, %v5011, -inf
    %v5655 = vmax.f32 %v5653, %v5654
    %v5656 = vsel %vm5448, %v4987, -inf
    %v5657 = vsel %vm5448, %v5013, -inf
    %v5658 = vmax.f32 %v5656, %v5657
    %v5659 = vsel %vm5448, %v5021, -inf
    %v5660 = vsel %vm5448, %v5047, -inf
    %v5661 = vmax.f32 %v5659, %v5660
    %v5662 = vsel %vm5448, %v5029, -inf
    %v5663 = vsel %vm5448, %v5055, -inf
    %v5664 = vmax.f32 %v5662, %v5663
    %v5665 = vsel %vm5448, %v5028, -inf
    %v5666 = vsel %vm5448, %v5063, -inf
    %v5667 = vmax.f32 %v5665, %v5666
    %v5668 = vsel %vm5448, %v5030, -inf
    %v5669 = vsel %vm5448, %v5062, -inf
    %v5670 = vmax.f32 %v5668, %v5669
    %v5671 = vsel %vm5448, %v5038, -inf
    %v5672 = vsel %vm5448, %v5064, -inf
    %v5673 = vmax.f32 %v5671, %v5672
    %v5674 = vsel %vm5448, %v5046, -inf
    %v5675 = vsel %vm5448, %v5072, -inf
    %v5676 = vmax.f32 %v5674, %v5675
    %v5677 = vsel %vm5448, %v5045, -inf
    %v5678 = vsel %vm5448, %v5080, -inf
    %v5679 = vmax.f32 %v5677, %v5678
    %v5680 = vsel %vm5448, %v5079, -inf
    %v5681 = vsel %vm5448, %v5114, -inf
    %v5682 = vmax.f32 %v5680, %v5681
    %v5683 = vsel %vm5448, %v5081, -inf
    %v5684 = vsel %vm5448, %v5113, -inf
    %v5685 = vmax.f32 %v5683, %v5684
    %v5686 = vsel %vm5448, %v5089, -inf
    %v5687 = vsel %vm5448, %v5115, -inf
    %v5688 = vmax.f32 %v5686, %v5687
    %v5689 = vsel %vm5448, %v5097, -inf
    %v5690 = vsel %vm5448, %v5123, -inf
    %v5691 = vmax.f32 %v5689, %v5690
    %v5692 = vsel %vm5448, %v5096, -inf
    %v5693 = vsel %vm5448, %v5131, -inf
    %v5694 = vmax.f32 %v5692, %v5693
    %v5695 = vsel %vm5448, %v5098, -inf
    %v5696 = vsel %vm5448, %v5130, -inf
    %v5697 = vmax.f32 %v5695, %v5696
    %v5698 = vsel %vm5448, %v5106, -inf
    %v5699 = vsel %vm5448, %v5132, -inf
    %v5700 = vmax.f32 %v5698, %v5699
    %v5701 = vsel %vm5448, %v5140, -inf
    %v5702 = vsel %vm5448, %v5166, -inf
    %v5703 = vmax.f32 %v5701, %v5702
    %v5704 = vsel %vm5448, %v5148, -inf
    %v5705 = vsel %vm5448, %v5174, -inf
    %v5706 = vmax.f32 %v5704, %v5705
    %v5707 = vsel %vm5448, %v5147, -inf
    %v5708 = vsel %vm5448, %v5182, -inf
    %v5709 = vmax.f32 %v5707, %v5708
    %v5710 = vsel %vm5448, %v5149, -inf
    %v5711 = vsel %vm5448, %v5181, -inf
    %v5712 = vmax.f32 %v5710, %v5711
    %v5713 = vsel %vm5448, %v5157, -inf
    %v5714 = vsel %vm5448, %v5183, -inf
    %v5715 = vmax.f32 %v5713, %v5714
    %v5716 = vsel %vm5448, %v5165, -inf
    %v5717 = vsel %vm5448, %v5191, -inf
    %v5718 = vmax.f32 %v5716, %v5717
    %v5719 = vsel %vm5448, %v5164, -inf
    %v5720 = vsel %vm5448, %v5199, -inf
    %v5721 = vmax.f32 %v5719, %v5720
    %v5722 = vsel %vm5448, %v5198, -inf
    %v5723 = vsel %vm5448, %v5233, -inf
    %v5724 = vmax.f32 %v5722, %v5723
    %v5725 = vsel %vm5448, %v5200, -inf
    %v5726 = vsel %vm5448, %v5232, -inf
    %v5727 = vmax.f32 %v5725, %v5726
    %v5728 = vsel %vm5448, %v5208, -inf
    %v5729 = vsel %vm5448, %v5234, -inf
    %v5730 = vmax.f32 %v5728, %v5729
    %v5731 = vsel %vm5448, %v5216, -inf
    %v5732 = vsel %vm5448, %v5242, -inf
    %v5733 = vmax.f32 %v5731, %v5732
    %v5734 = vsel %vm5448, %v5215, -inf
    %v5735 = vsel %vm5448, %v5250, -inf
    %v5736 = vmax.f32 %v5734, %v5735
    %v5737 = vsel %vm5448, %v5217, -inf
    %v5738 = vsel %vm5448, %v5249, -inf
    %v5739 = vmax.f32 %v5737, %v5738
    %v5740 = vsel %vm5448, %v5225, -inf
    %v5741 = vsel %vm5448, %v5251, -inf
    %v5742 = vmax.f32 %v5740, %v5741
    %v5743 = vsel %vm5448, %v5451, -inf
    %v5744 = vrot.slane %v5743, 4
    %v5745 = vmax.f32 %v5743, %v5744
    %v5746 = vrot.slane %v5745, 2
    %v5747 = vmax.f32 %v5745, %v5746
    %v5748 = vrot.slane %v5747, 1
    %v5749 = vmax.f32 %v5747, %v5748
    %v5750 = vsel %vm5448, %v5454, -inf
    %v5751 = vrot.slane %v5750, 4
    %v5752 = vmax.f32 %v5750, %v5751
    %v5753 = vrot.slane %v5752, 2
    %v5754 = vmax.f32 %v5752, %v5753
    %v5755 = vrot.slane %v5754, 1
    %v5756 = vmax.f32 %v5754, %v5755
    %v5757 = vsel %vm5448, %v5457, -inf
    %v5758 = vrot.slane %v5757, 4
    %v5759 = vmax.f32 %v5757, %v5758
    %v5760 = vrot.slane %v5759, 2
    %v5761 = vmax.f32 %v5759, %v5760
    %v5762 = vrot.slane %v5761, 1
    %v5763 = vmax.f32 %v5761, %v5762
    %v5764 = vsel %vm5448, %v5460, -inf
    %v5765 = vrot.slane %v5764, 4
    %v5766 = vmax.f32 %v5764, %v5765
    %v5767 = vrot.slane %v5766, 2
    %v5768 = vmax.f32 %v5766, %v5767
    %v5769 = vrot.slane %v5768, 1
    %v5770 = vmax.f32 %v5768, %v5769
    %v5771 = vsel %vm5448, %v5463, -inf
    %v5772 = vrot.slane %v5771, 4
    %v5773 = vmax.f32 %v5771, %v5772
    %v5774 = vrot.slane %v5773, 2
    %v5775 = vmax.f32 %v5773, %v5774
    %v5776 = vrot.slane %v5775, 1
    %v5777 = vmax.f32 %v5775, %v5776
    %v5778 = vsel %vm5448, %v5466, -inf
    %v5779 = vrot.slane %v5778, 4
    %v5780 = vmax.f32 %v5778, %v5779
    %v5781 = vrot.slane %v5780, 2
    %v5782 = vmax.f32 %v5780, %v5781
    %v5783 = vrot.slane %v5782, 1
    %v5784 = vmax.f32 %v5782, %v5783
    %v5785 = vsel %vm5448, %v5469, -inf
    %v5786 = vrot.slane %v5785, 4
    %v5787 = vmax.f32 %v5785, %v5786
    %v5788 = vrot.slane %v5787, 2
    %v5789 = vmax.f32 %v5787, %v5788
    %v5790 = vrot.slane %v5789, 1
    %v5791 = vmax.f32 %v5789, %v5790
    %v5792 = vsel %vm5448, %v5472, -inf
    %v5793 = vrot.slane %v5792, 4
    %v5794 = vmax.f32 %v5792, %v5793
    %v5795 = vrot.slane %v5794, 2
    %v5796 = vmax.f32 %v5794, %v5795
    %v5797 = vrot.slane %v5796, 1
    %v5798 = vmax.f32 %v5796, %v5797
    %v5799 = vsel %vm5448, %v5475, -inf
    %v5800 = vrot.slane %v5799, 4
    %v5801 = vmax.f32 %v5799, %v5800
    %v5802 = vrot.slane %v5801, 2
    %v5803 = vmax.f32 %v5801, %v5802
    %v5804 = vrot.slane %v5803, 1
    %v5805 = vmax.f32 %v5803, %v5804
    %v5806 = vsel %vm5448, %v5478, -inf
    %v5807 = vrot.slane %v5806, 4
    %v5808 = vmax.f32 %v5806, %v5807
    %v5809 = vrot.slane %v5808, 2
    %v5810 = vmax.f32 %v5808, %v5809
    %v5811 = vrot.slane %v5810, 1
    %v5812 = vmax.f32 %v5810, %v5811
    %v5813 = vsel %vm5448, %v5481, -inf
    %v5814 = vrot.slane %v5813, 4
    %v5815 = vmax.f32 %v5813, %v5814
    %v5816 = vrot.slane %v5815, 2
    %v5817 = vmax.f32 %v5815, %v5816
    %v5818 = vrot.slane %v5817, 1
    %v5819 = vmax.f32 %v5817, %v5818
    %v5820 = vsel %vm5448, %v5484, -inf
    %v5821 = vrot.slane %v5820, 4
    %v5822 = vmax.f32 %v5820, %v5821
    %v5823 = vrot.slane %v5822, 2
    %v5824 = vmax.f32 %v5822, %v5823
    %v5825 = vrot.slane %v5824, 1
    %v5826 = vmax.f32 %v5824, %v5825
    %v5827 = vsel %vm5448, %v5487, -inf
    %v5828 = vrot.slane %v5827, 4
    %v5829 = vmax.f32 %v5827, %v5828
    %v5830 = vrot.slane %v5829, 2
    %v5831 = vmax.f32 %v5829, %v5830
    %v5832 = vrot.slane %v5831, 1
    %v5833 = vmax.f32 %v5831, %v5832
    %v5834 = vsel %vm5448, %v5490, -inf
    %v5835 = vrot.slane %v5834, 4
    %v5836 = vmax.f32 %v5834, %v5835
    %v5837 = vrot.slane %v5836, 2
    %v5838 = vmax.f32 %v5836, %v5837
    %v5839 = vrot.slane %v5838, 1
    %v5840 = vmax.f32 %v5838, %v5839
    %v5841 = vsel %vm5448, %v5493, -inf
    %v5842 = vrot.slane %v5841, 4
    %v5843 = vmax.f32 %v5841, %v5842
    %v5844 = vrot.slane %v5843, 2
    %v5845 = vmax.f32 %v5843, %v5844
    %v5846 = vrot.slane %v5845, 1
    %v5847 = vmax.f32 %v5845, %v5846
    %v5848 = vsel %vm5448, %v5496, -inf
    %v5849 = vrot.slane %v5848, 4
    %v5850 = vmax.f32 %v5848, %v5849
    %v5851 = vrot.slane %v5850, 2
    %v5852 = vmax.f32 %v5850, %v5851
    %v5853 = vrot.slane %v5852, 1
    %v5854 = vmax.f32 %v5852, %v5853
    %v5855 = vsel %vm5448, %v5499, -inf
    %v5856 = vrot.slane %v5855, 4
    %v5857 = vmax.f32 %v5855, %v5856
    %v5858 = vrot.slane %v5857, 2
    %v5859 = vmax.f32 %v5857, %v5858
    %v5860 = vrot.slane %v5859, 1
    %v5861 = vmax.f32 %v5859, %v5860
    %v5862 = vsel %vm5448, %v5502, -inf
    %v5863 = vrot.slane %v5862, 4
    %v5864 = vmax.f32 %v5862, %v5863
    %v5865 = vrot.slane %v5864, 2
    %v5866 = vmax.f32 %v5864, %v5865
    %v5867 = vrot.slane %v5866, 1
    %v5868 = vmax.f32 %v5866, %v5867
    %v5869 = vsel %vm5448, %v5505, -inf
    %v5870 = vrot.slane %v5869, 4
    %v5871 = vmax.f32 %v5869, %v5870
    %v5872 = vrot.slane %v5871, 2
    %v5873 = vmax.f32 %v5871, %v5872
    %v5874 = vrot.slane %v5873, 1
    %v5875 = vmax.f32 %v5873, %v5874
    %v5876 = vsel %vm5448, %v5508, -inf
    %v5877 = vrot.slane %v5876, 4
    %v5878 = vmax.f32 %v5876, %v5877
    %v5879 = vrot.slane %v5878, 2
    %v5880 = vmax.f32 %v5878, %v5879
    %v5881 = vrot.slane %v5880, 1
    %v5882 = vmax.f32 %v5880, %v5881
    %v5883 = vsel %vm5448, %v5511, -inf
    %v5884 = vrot.slane %v5883, 4
    %v5885 = vmax.f32 %v5883, %v5884
    %v5886 = vrot.slane %v5885, 2
    %v5887 = vmax.f32 %v5885, %v5886
    %v5888 = vrot.slane %v5887, 1
    %v5889 = vmax.f32 %v5887, %v5888
    %v5890 = vsel %vm5448, %v5514, -inf
    %v5891 = vrot.slane %v5890, 4
    %v5892 = vmax.f32 %v5890, %v5891
    %v5893 = vrot.slane %v5892, 2
    %v5894 = vmax.f32 %v5892, %v5893
    %v5895 = vrot.slane %v5894, 1
    %v5896 = vmax.f32 %v5894, %v5895
    %v5897 = vsel %vm5448, %v5517, -inf
    %v5898 = vrot.slane %v5897, 4
    %v5899 = vmax.f32 %v5897, %v5898
    %v5900 = vrot.slane %v5899, 2
    %v5901 = vmax.f32 %v5899, %v5900
    %v5902 = vrot.slane %v5901, 1
    %v5903 = vmax.f32 %v5901, %v5902
    %v5904 = vsel %vm5448, %v5520, -inf
    %v5905 = vrot.slane %v5904, 4
    %v5906 = vmax.f32 %v5904, %v5905
    %v5907 = vrot.slane %v5906, 2
    %v5908 = vmax.f32 %v5906, %v5907
    %v5909 = vrot.slane %v5908, 1
    %v5910 = vmax.f32 %v5908, %v5909
    %v5911 = vsel %vm5448, %v5523, -inf
    %v5912 = vrot.slane %v5911, 4
    %v5913 = vmax.f32 %v5911, %v5912
    %v5914 = vrot.slane %v5913, 2
    %v5915 = vmax.f32 %v5913, %v5914
    %v5916 = vrot.slane %v5915, 1
    %v5917 = vmax.f32 %v5915, %v5916
    %v5918 = vsel %vm5448, %v5526, -inf
    %v5919 = vrot.slane %v5918, 4
    %v5920 = vmax.f32 %v5918, %v5919
    %v5921 = vrot.slane %v5920, 2
    %v5922 = vmax.f32 %v5920, %v5921
    %v5923 = vrot.slane %v5922, 1
    %v5924 = vmax.f32 %v5922, %v5923
    %v5925 = vsel %vm5448, %v5529, -inf
    %v5926 = vrot.slane %v5925, 4
    %v5927 = vmax.f32 %v5925, %v5926
    %v5928 = vrot.slane %v5927, 2
    %v5929 = vmax.f32 %v5927, %v5928
    %v5930 = vrot.slane %v5929, 1
    %v5931 = vmax.f32 %v5929, %v5930
    %v5932 = vsel %vm5448, %v5532, -inf
    %v5933 = vrot.slane %v5932, 4
    %v5934 = vmax.f32 %v5932, %v5933
    %v5935 = vrot.slane %v5934, 2
    %v5936 = vmax.f32 %v5934, %v5935
    %v5937 = vrot.slane %v5936, 1
    %v5938 = vmax.f32 %v5936, %v5937
    %v5939 = vsel %vm5448, %v5535, -inf
    %v5940 = vrot.slane %v5939, 4
    %v5941 = vmax.f32 %v5939, %v5940
    %v5942 = vrot.slane %v5941, 2
    %v5943 = vmax.f32 %v5941, %v5942
    %v5944 = vrot.slane %v5943, 1
    %v5945 = vmax.f32 %v5943, %v5944
    %v5946 = vsel %vm5448, %v5538, -inf
    %v5947 = vrot.slane %v5946, 4
    %v5948 = vmax.f32 %v5946, %v5947
    %v5949 = vrot.slane %v5948, 2
    %v5950 = vmax.f32 %v5948, %v5949
    %v5951 = vrot.slane %v5950, 1
    %v5952 = vmax.f32 %v5950, %v5951
    %v5953 = vsel %vm5448, %v5541, -inf
    %v5954 = vrot.slane %v5953, 4
    %v5955 = vmax.f32 %v5953, %v5954
    %v5956 = vrot.slane %v5955, 2
    %v5957 = vmax.f32 %v5955, %v5956
    %v5958 = vrot.slane %v5957, 1
    %v5959 = vmax.f32 %v5957, %v5958
    %v5960 = vsel %vm5448, %v5544, -inf
    %v5961 = vrot.slane %v5960, 4
    %v5962 = vmax.f32 %v5960, %v5961
    %v5963 = vrot.slane %v5962, 2
    %v5964 = vmax.f32 %v5962, %v5963
    %v5965 = vrot.slane %v5964, 1
    %v5966 = vmax.f32 %v5964, %v5965
    %v5967 = vsel %vm5448, %v5547, -inf
    %v5968 = vrot.slane %v5967, 4
    %v5969 = vmax.f32 %v5967, %v5968
    %v5970 = vrot.slane %v5969, 2
    %v5971 = vmax.f32 %v5969, %v5970
    %v5972 = vrot.slane %v5971, 1
    %v5973 = vmax.f32 %v5971, %v5972
    %v5974 = vsel %vm5448, %v5550, -inf
    %v5975 = vrot.slane %v5974, 4
    %v5976 = vmax.f32 %v5974, %v5975
    %v5977 = vrot.slane %v5976, 2
    %v5978 = vmax.f32 %v5976, %v5977
    %v5979 = vrot.slane %v5978, 1
    %v5980 = vmax.f32 %v5978, %v5979
    %v5981 = vsel %vm5448, %v5553, -inf
    %v5982 = vrot.slane %v5981, 4
    %v5983 = vmax.f32 %v5981, %v5982
    %v5984 = vrot.slane %v5983, 2
    %v5985 = vmax.f32 %v5983, %v5984
    %v5986 = vrot.slane %v5985, 1
    %v5987 = vmax.f32 %v5985, %v5986
    %v5988 = vsel %vm5448, %v5556, -inf
    %v5989 = vrot.slane %v5988, 4
    %v5990 = vmax.f32 %v5988, %v5989
    %v5991 = vrot.slane %v5990, 2
    %v5992 = vmax.f32 %v5990, %v5991
    %v5993 = vrot.slane %v5992, 1
    %v5994 = vmax.f32 %v5992, %v5993
    %v5995 = vsel %vm5448, %v5559, -inf
    %v5996 = vrot.slane %v5995, 4
    %v5997 = vmax.f32 %v5995, %v5996
    %v5998 = vrot.slane %v5997, 2
    %v5999 = vmax.f32 %v5997, %v5998
    %v6000 = vrot.slane %v5999, 1
    %v6001 = vmax.f32 %v5999, %v6000
    %v6002 = vsel %vm5448, %v5562, -inf
    %v6003 = vrot.slane %v6002, 4
    %v6004 = vmax.f32 %v6002, %v6003
    %v6005 = vrot.slane %v6004, 2
    %v6006 = vmax.f32 %v6004, %v6005
    %v6007 = vrot.slane %v6006, 1
    %v6008 = vmax.f32 %v6006, %v6007
    %v6009 = vsel %vm5448, %v5565, -inf
    %v6010 = vrot.slane %v6009, 4
    %v6011 = vmax.f32 %v6009, %v6010
    %v6012 = vrot.slane %v6011, 2
    %v6013 = vmax.f32 %v6011, %v6012
    %v6014 = vrot.slane %v6013, 1
    %v6015 = vmax.f32 %v6013, %v6014
    %v6016 = vsel %vm5448, %v5568, -inf
    %v6017 = vrot.slane %v6016, 4
    %v6018 = vmax.f32 %v6016, %v6017
    %v6019 = vrot.slane %v6018, 2
    %v6020 = vmax.f32 %v6018, %v6019
    %v6021 = vrot.slane %v6020, 1
    %v6022 = vmax.f32 %v6020, %v6021
    %v6023 = vsel %vm5448, %v5571, -inf
    %v6024 = vrot.slane %v6023, 4
    %v6025 = vmax.f32 %v6023, %v6024
    %v6026 = vrot.slane %v6025, 2
    %v6027 = vmax.f32 %v6025, %v6026
    %v6028 = vrot.slane %v6027, 1
    %v6029 = vmax.f32 %v6027, %v6028
    %v6030 = vsel %vm5448, %v5574, -inf
    %v6031 = vrot.slane %v6030, 4
    %v6032 = vmax.f32 %v6030, %v6031
    %v6033 = vrot.slane %v6032, 2
    %v6034 = vmax.f32 %v6032, %v6033
    %v6035 = vrot.slane %v6034, 1
    %v6036 = vmax.f32 %v6034, %v6035
    %v6037 = vsel %vm5448, %v5577, -inf
    %v6038 = vrot.slane %v6037, 4
    %v6039 = vmax.f32 %v6037, %v6038
    %v6040 = vrot.slane %v6039, 2
    %v6041 = vmax.f32 %v6039, %v6040
    %v6042 = vrot.slane %v6041, 1
    %v6043 = vmax.f32 %v6041, %v6042
    %v6044 = vsel %vm5448, %v5580, -inf
    %v6045 = vrot.slane %v6044, 4
    %v6046 = vmax.f32 %v6044, %v6045
    %v6047 = vrot.slane %v6046, 2
    %v6048 = vmax.f32 %v6046, %v6047
    %v6049 = vrot.slane %v6048, 1
    %v6050 = vmax.f32 %v6048, %v6049
    %v6051 = vsel %vm5448, %v5583, -inf
    %v6052 = vrot.slane %v6051, 4
    %v6053 = vmax.f32 %v6051, %v6052
    %v6054 = vrot.slane %v6053, 2
    %v6055 = vmax.f32 %v6053, %v6054
    %v6056 = vrot.slane %v6055, 1
    %v6057 = vmax.f32 %v6055, %v6056
    %v6058 = vsel %vm5448, %v5586, -inf
    %v6059 = vrot.slane %v6058, 4
    %v6060 = vmax.f32 %v6058, %v6059
    %v6061 = vrot.slane %v6060, 2
    %v6062 = vmax.f32 %v6060, %v6061
    %v6063 = vrot.slane %v6062, 1
    %v6064 = vmax.f32 %v6062, %v6063
    %v6065 = vsel %vm5448, %v5589, -inf
    %v6066 = vrot.slane %v6065, 4
    %v6067 = vmax.f32 %v6065, %v6066
    %v6068 = vrot.slane %v6067, 2
    %v6069 = vmax.f32 %v6067, %v6068
    %v6070 = vrot.slane %v6069, 1
    %v6071 = vmax.f32 %v6069, %v6070
    %v6072 = vsel %vm5448, %v5592, -inf
    %v6073 = vrot.slane %v6072, 4
    %v6074 = vmax.f32 %v6072, %v6073
    %v6075 = vrot.slane %v6074, 2
    %v6076 = vmax.f32 %v6074, %v6075
    %v6077 = vrot.slane %v6076, 1
    %v6078 = vmax.f32 %v6076, %v6077
    %v6079 = vsel %vm5448, %v5595, -inf
    %v6080 = vrot.slane %v6079, 4
    %v6081 = vmax.f32 %v6079, %v6080
    %v6082 = vrot.slane %v6081, 2
    %v6083 = vmax.f32 %v6081, %v6082
    %v6084 = vrot.slane %v6083, 1
    %v6085 = vmax.f32 %v6083, %v6084
    %v6086 = vsel %vm5448, %v5598, -inf
    %v6087 = vrot.slane %v6086, 4
    %v6088 = vmax.f32 %v6086, %v6087
    %v6089 = vrot.slane %v6088, 2
    %v6090 = vmax.f32 %v6088, %v6089
    %v6091 = vrot.slane %v6090, 1
    %v6092 = vmax.f32 %v6090, %v6091
    %v6093 = vsel %vm5448, %v5601, -inf
    %v6094 = vrot.slane %v6093, 4
    %v6095 = vmax.f32 %v6093, %v6094
    %v6096 = vrot.slane %v6095, 2
    %v6097 = vmax.f32 %v6095, %v6096
    %v6098 = vrot.slane %v6097, 1
    %v6099 = vmax.f32 %v6097, %v6098
    %v6100 = vsel %vm5448, %v5604, -inf
    %v6101 = vrot.slane %v6100, 4
    %v6102 = vmax.f32 %v6100, %v6101
    %v6103 = vrot.slane %v6102, 2
    %v6104 = vmax.f32 %v6102, %v6103
    %v6105 = vrot.slane %v6104, 1
    %v6106 = vmax.f32 %v6104, %v6105
    %v6107 = vsel %vm5448, %v5607, -inf
    %v6108 = vrot.slane %v6107, 4
    %v6109 = vmax.f32 %v6107, %v6108
    %v6110 = vrot.slane %v6109, 2
    %v6111 = vmax.f32 %v6109, %v6110
    %v6112 = vrot.slane %v6111, 1
    %v6113 = vmax.f32 %v6111, %v6112
    %v6114 = vsel %vm5448, %v5610, -inf
    %v6115 = vrot.slane %v6114, 4
    %v6116 = vmax.f32 %v6114, %v6115
    %v6117 = vrot.slane %v6116, 2
    %v6118 = vmax.f32 %v6116, %v6117
    %v6119 = vrot.slane %v6118, 1
    %v6120 = vmax.f32 %v6118, %v6119
    %v6121 = vsel %vm5448, %v5613, -inf
    %v6122 = vrot.slane %v6121, 4
    %v6123 = vmax.f32 %v6121, %v6122
    %v6124 = vrot.slane %v6123, 2
    %v6125 = vmax.f32 %v6123, %v6124
    %v6126 = vrot.slane %v6125, 1
    %v6127 = vmax.f32 %v6125, %v6126
    %v6128 = vsel %vm5448, %v5616, -inf
    %v6129 = vrot.slane %v6128, 4
    %v6130 = vmax.f32 %v6128, %v6129
    %v6131 = vrot.slane %v6130, 2
    %v6132 = vmax.f32 %v6130, %v6131
    %v6133 = vrot.slane %v6132, 1
    %v6134 = vmax.f32 %v6132, %v6133
    %v6135 = vsel %vm5448, %v5619, -inf
    %v6136 = vrot.slane %v6135, 4
    %v6137 = vmax.f32 %v6135, %v6136
    %v6138 = vrot.slane %v6137, 2
    %v6139 = vmax.f32 %v6137, %v6138
    %v6140 = vrot.slane %v6139, 1
    %v6141 = vmax.f32 %v6139, %v6140
    %v6142 = vsel %vm5448, %v5622, -inf
    %v6143 = vrot.slane %v6142, 4
    %v6144 = vmax.f32 %v6142, %v6143
    %v6145 = vrot.slane %v6144, 2
    %v6146 = vmax.f32 %v6144, %v6145
    %v6147 = vrot.slane %v6146, 1
    %v6148 = vmax.f32 %v6146, %v6147
    %v6149 = vsel %vm5448, %v5625, -inf
    %v6150 = vrot.slane %v6149, 4
    %v6151 = vmax.f32 %v6149, %v6150
    %v6152 = vrot.slane %v6151, 2
    %v6153 = vmax.f32 %v6151, %v6152
    %v6154 = vrot.slane %v6153, 1
    %v6155 = vmax.f32 %v6153, %v6154
    %v6156 = vsel %vm5448, %v5628, -inf
    %v6157 = vrot.slane %v6156, 4
    %v6158 = vmax.f32 %v6156, %v6157
    %v6159 = vrot.slane %v6158, 2
    %v6160 = vmax.f32 %v6158, %v6159
    %v6161 = vrot.slane %v6160, 1
    %v6162 = vmax.f32 %v6160, %v6161
    %v6163 = vsel %vm5448, %v5631, -inf
    %v6164 = vrot.slane %v6163, 4
    %v6165 = vmax.f32 %v6163, %v6164
    %v6166 = vrot.slane %v6165, 2
    %v6167 = vmax.f32 %v6165, %v6166
    %v6168 = vrot.slane %v6167, 1
    %v6169 = vmax.f32 %v6167, %v6168
    %v6170 = vsel %vm5448, %v5634, -inf
    %v6171 = vrot.slane %v6170, 4
    %v6172 = vmax.f32 %v6170, %v6171
    %v6173 = vrot.slane %v6172, 2
    %v6174 = vmax.f32 %v6172, %v6173
    %v6175 = vrot.slane %v6174, 1
    %v6176 = vmax.f32 %v6174, %v6175
    %v6177 = vsel %vm5448, %v5637, -inf
    %v6178 = vrot.slane %v6177, 4
    %v6179 = vmax.f32 %v6177, %v6178
    %v6180 = vrot.slane %v6179, 2
    %v6181 = vmax.f32 %v6179, %v6180
    %v6182 = vrot.slane %v6181, 1
    %v6183 = vmax.f32 %v6181, %v6182
    %v6184 = vsel %vm5448, %v5640, -inf
    %v6185 = vrot.slane %v6184, 4
    %v6186 = vmax.f32 %v6184, %v6185
    %v6187 = vrot.slane %v6186, 2
    %v6188 = vmax.f32 %v6186, %v6187
    %v6189 = vrot.slane %v6188, 1
    %v6190 = vmax.f32 %v6188, %v6189
    %v6191 = vsel %vm5448, %v5643, -inf
    %v6192 = vrot.slane %v6191, 4
    %v6193 = vmax.f32 %v6191, %v6192
    %v6194 = vrot.slane %v6193, 2
    %v6195 = vmax.f32 %v6193, %v6194
    %v6196 = vrot.slane %v6195, 1
    %v6197 = vmax.f32 %v6195, %v6196
    %v6198 = vsel %vm5448, %v5646, -inf
    %v6199 = vrot.slane %v6198, 4
    %v6200 = vmax.f32 %v6198, %v6199
    %v6201 = vrot.slane %v6200, 2
    %v6202 = vmax.f32 %v6200, %v6201
    %v6203 = vrot.slane %v6202, 1
    %v6204 = vmax.f32 %v6202, %v6203
    %v6205 = vsel %vm5448, %v5649, -inf
    %v6206 = vrot.slane %v6205, 4
    %v6207 = vmax.f32 %v6205, %v6206
    %v6208 = vrot.slane %v6207, 2
    %v6209 = vmax.f32 %v6207, %v6208
    %v6210 = vrot.slane %v6209, 1
    %v6211 = vmax.f32 %v6209, %v6210
    %v6212 = vsel %vm5448, %v5652, -inf
    %v6213 = vrot.slane %v6212, 4
    %v6214 = vmax.f32 %v6212, %v6213
    %v6215 = vrot.slane %v6214, 2
    %v6216 = vmax.f32 %v6214, %v6215
    %v6217 = vrot.slane %v6216, 1
    %v6218 = vmax.f32 %v6216, %v6217
    %v6219 = vsel %vm5448, %v5655, -inf
    %v6220 = vrot.slane %v6219, 4
    %v6221 = vmax.f32 %v6219, %v6220
    %v6222 = vrot.slane %v6221, 2
    %v6223 = vmax.f32 %v6221, %v6222
    %v6224 = vrot.slane %v6223, 1
    %v6225 = vmax.f32 %v6223, %v6224
    %v6226 = vsel %vm5448, %v5658, -inf
    %v6227 = vrot.slane %v6226, 4
    %v6228 = vmax.f32 %v6226, %v6227
    %v6229 = vrot.slane %v6228, 2
    %v6230 = vmax.f32 %v6228, %v6229
    %v6231 = vrot.slane %v6230, 1
    %v6232 = vmax.f32 %v6230, %v6231
    %v6233 = vsel %vm5448, %v5661, -inf
    %v6234 = vrot.slane %v6233, 4
    %v6235 = vmax.f32 %v6233, %v6234
    %v6236 = vrot.slane %v6235, 2
    %v6237 = vmax.f32 %v6235, %v6236
    %v6238 = vrot.slane %v6237, 1
    %v6239 = vmax.f32 %v6237, %v6238
    %v6240 = vsel %vm5448, %v5664, -inf
    %v6241 = vrot.slane %v6240, 4
    %v6242 = vmax.f32 %v6240, %v6241
    %v6243 = vrot.slane %v6242, 2
    %v6244 = vmax.f32 %v6242, %v6243
    %v6245 = vrot.slane %v6244, 1
    %v6246 = vmax.f32 %v6244, %v6245
    %v6247 = vsel %vm5448, %v5667, -inf
    %v6248 = vrot.slane %v6247, 4
    %v6249 = vmax.f32 %v6247, %v6248
    %v6250 = vrot.slane %v6249, 2
    %v6251 = vmax.f32 %v6249, %v6250
    %v6252 = vrot.slane %v6251, 1
    %v6253 = vmax.f32 %v6251, %v6252
    %v6254 = vsel %vm5448, %v5670, -inf
    %v6255 = vrot.slane %v6254, 4
    %v6256 = vmax.f32 %v6254, %v6255
    %v6257 = vrot.slane %v6256, 2
    %v6258 = vmax.f32 %v6256, %v6257
    %v6259 = vrot.slane %v6258, 1
    %v6260 = vmax.f32 %v6258, %v6259
    %v6261 = vsel %vm5448, %v5673, -inf
    %v6262 = vrot.slane %v6261, 4
    %v6263 = vmax.f32 %v6261, %v6262
    %v6264 = vrot.slane %v6263, 2
    %v6265 = vmax.f32 %v6263, %v6264
    %v6266 = vrot.slane %v6265, 1
    %v6267 = vmax.f32 %v6265, %v6266
    %v6268 = vsel %vm5448, %v5676, -inf
    %v6269 = vrot.slane %v6268, 4
    %v6270 = vmax.f32 %v6268, %v6269
    %v6271 = vrot.slane %v6270, 2
    %v6272 = vmax.f32 %v6270, %v6271
    %v6273 = vrot.slane %v6272, 1
    %v6274 = vmax.f32 %v6272, %v6273
    %v6275 = vsel %vm5448, %v5679, -inf
    %v6276 = vrot.slane %v6275, 4
    %v6277 = vmax.f32 %v6275, %v6276
    %v6278 = vrot.slane %v6277, 2
    %v6279 = vmax.f32 %v6277, %v6278
    %v6280 = vrot.slane %v6279, 1
    %v6281 = vmax.f32 %v6279, %v6280
    %v6282 = vsel %vm5448, %v5682, -inf
    %v6283 = vrot.slane %v6282, 4
    %v6284 = vmax.f32 %v6282, %v6283
    %v6285 = vrot.slane %v6284, 2
    %v6286 = vmax.f32 %v6284, %v6285
    %v6287 = vrot.slane %v6286, 1
    %v6288 = vmax.f32 %v6286, %v6287
    %v6289 = vsel %vm5448, %v5685, -inf
    %v6290 = vrot.slane %v6289, 4
    %v6291 = vmax.f32 %v6289, %v6290
    %v6292 = vrot.slane %v6291, 2
    %v6293 = vmax.f32 %v6291, %v6292
    %v6294 = vrot.slane %v6293, 1
    %v6295 = vmax.f32 %v6293, %v6294
    %v6296 = vsel %vm5448, %v5688, -inf
    %v6297 = vrot.slane %v6296, 4
    %v6298 = vmax.f32 %v6296, %v6297
    %v6299 = vrot.slane %v6298, 2
    %v6300 = vmax.f32 %v6298, %v6299
    %v6301 = vrot.slane %v6300, 1
    %v6302 = vmax.f32 %v6300, %v6301
    %v6303 = vsel %vm5448, %v5691, -inf
    %v6304 = vrot.slane %v6303, 4
    %v6305 = vmax.f32 %v6303, %v6304
    %v6306 = vrot.slane %v6305, 2
    %v6307 = vmax.f32 %v6305, %v6306
    %v6308 = vrot.slane %v6307, 1
    %v6309 = vmax.f32 %v6307, %v6308
    %v6310 = vsel %vm5448, %v5694, -inf
    %v6311 = vrot.slane %v6310, 4
    %v6312 = vmax.f32 %v6310, %v6311
    %v6313 = vrot.slane %v6312, 2
    %v6314 = vmax.f32 %v6312, %v6313
    %v6315 = vrot.slane %v6314, 1
    %v6316 = vmax.f32 %v6314, %v6315
    %v6317 = vsel %vm5448, %v5697, -inf
    %v6318 = vrot.slane %v6317, 4
    %v6319 = vmax.f32 %v6317, %v6318
    %v6320 = vrot.slane %v6319, 2
    %v6321 = vmax.f32 %v6319, %v6320
    %v6322 = vrot.slane %v6321, 1
    %v6323 = vmax.f32 %v6321, %v6322
    %v6324 = vsel %vm5448, %v5700, -inf
    %v6325 = vrot.slane %v6324, 4
    %v6326 = vmax.f32 %v6324, %v6325
    %v6327 = vrot.slane %v6326, 2
    %v6328 = vmax.f32 %v6326, %v6327
    %v6329 = vrot.slane %v6328, 1
    %v6330 = vmax.f32 %v6328, %v6329
    %v6331 = vsel %vm5448, %v5703, -inf
    %v6332 = vrot.slane %v6331, 4
    %v6333 = vmax.f32 %v6331, %v6332
    %v6334 = vrot.slane %v6333, 2
    %v6335 = vmax.f32 %v6333, %v6334
    %v6336 = vrot.slane %v6335, 1
    %v6337 = vmax.f32 %v6335, %v6336
    %v6338 = vsel %vm5448, %v5706, -inf
    %v6339 = vrot.slane %v6338, 4
    %v6340 = vmax.f32 %v6338, %v6339
    %v6341 = vrot.slane %v6340, 2
    %v6342 = vmax.f32 %v6340, %v6341
    %v6343 = vrot.slane %v6342, 1
    %v6344 = vmax.f32 %v6342, %v6343
    %v6345 = vsel %vm5448, %v5709, -inf
    %v6346 = vrot.slane %v6345, 4
    %v6347 = vmax.f32 %v6345, %v6346
    %v6348 = vrot.slane %v6347, 2
    %v6349 = vmax.f32 %v6347, %v6348
    %v6350 = vrot.slane %v6349, 1
    %v6351 = vmax.f32 %v6349, %v6350
    %v6352 = vsel %vm5448, %v5712, -inf
    %v6353 = vrot.slane %v6352, 4
    %v6354 = vmax.f32 %v6352, %v6353
    %v6355 = vrot.slane %v6354, 2
    %v6356 = vmax.f32 %v6354, %v6355
    %v6357 = vrot.slane %v6356, 1
    %v6358 = vmax.f32 %v6356, %v6357
    %v6359 = vsel %vm5448, %v5715, -inf
    %v6360 = vrot.slane %v6359, 4
    %v6361 = vmax.f32 %v6359, %v6360
    %v6362 = vrot.slane %v6361, 2
    %v6363 = vmax.f32 %v6361, %v6362
    %v6364 = vrot.slane %v6363, 1
    %v6365 = vmax.f32 %v6363, %v6364
    %v6366 = vsel %vm5448, %v5718, -inf
    %v6367 = vrot.slane %v6366, 4
    %v6368 = vmax.f32 %v6366, %v6367
    %v6369 = vrot.slane %v6368, 2
    %v6370 = vmax.f32 %v6368, %v6369
    %v6371 = vrot.slane %v6370, 1
    %v6372 = vmax.f32 %v6370, %v6371
    %v6373 = vsel %vm5448, %v5721, -inf
    %v6374 = vrot.slane %v6373, 4
    %v6375 = vmax.f32 %v6373, %v6374
    %v6376 = vrot.slane %v6375, 2
    %v6377 = vmax.f32 %v6375, %v6376
    %v6378 = vrot.slane %v6377, 1
    %v6379 = vmax.f32 %v6377, %v6378
    %v6380 = vsel %vm5448, %v5724, -inf
    %v6381 = vrot.slane %v6380, 4
    %v6382 = vmax.f32 %v6380, %v6381
    %v6383 = vrot.slane %v6382, 2
    %v6384 = vmax.f32 %v6382, %v6383
    %v6385 = vrot.slane %v6384, 1
    %v6386 = vmax.f32 %v6384, %v6385
    %v6387 = vsel %vm5448, %v5727, -inf
    %v6388 = vrot.slane %v6387, 4
    %v6389 = vmax.f32 %v6387, %v6388
    %v6390 = vrot.slane %v6389, 2
    %v6391 = vmax.f32 %v6389, %v6390
    %v6392 = vrot.slane %v6391, 1
    %v6393 = vmax.f32 %v6391, %v6392
    %v6394 = vsel %vm5448, %v5730, -inf
    %v6395 = vrot.slane %v6394, 4
    %v6396 = vmax.f32 %v6394, %v6395
    %v6397 = vrot.slane %v6396, 2
    %v6398 = vmax.f32 %v6396, %v6397
    %v6399 = vrot.slane %v6398, 1
    %v6400 = vmax.f32 %v6398, %v6399
    %v6401 = vsel %vm5448, %v5733, -inf
    %v6402 = vrot.slane %v6401, 4
    %v6403 = vmax.f32 %v6401, %v6402
    %v6404 = vrot.slane %v6403, 2
    %v6405 = vmax.f32 %v6403, %v6404
    %v6406 = vrot.slane %v6405, 1
    %v6407 = vmax.f32 %v6405, %v6406
    %v6408 = vsel %vm5448, %v5736, -inf
    %v6409 = vrot.slane %v6408, 4
    %v6410 = vmax.f32 %v6408, %v6409
    %v6411 = vrot.slane %v6410, 2
    %v6412 = vmax.f32 %v6410, %v6411
    %v6413 = vrot.slane %v6412, 1
    %v6414 = vmax.f32 %v6412, %v6413
    %v6415 = vsel %vm5448, %v5739, -inf
    %v6416 = vrot.slane %v6415, 4
    %v6417 = vmax.f32 %v6415, %v6416
    %v6418 = vrot.slane %v6417, 2
    %v6419 = vmax.f32 %v6417, %v6418
    %v6420 = vrot.slane %v6419, 1
    %v6421 = vmax.f32 %v6419, %v6420
    %v6422 = vsel %vm5448, %v5742, -inf
    %v6423 = vrot.slane %v6422, 4
    %v6424 = vmax.f32 %v6422, %v6423
    %v6425 = vrot.slane %v6424, 2
    %v6426 = vmax.f32 %v6424, %v6425
    %v6427 = vrot.slane %v6426, 1
    %v6428 = vmax.f32 %v6426, %v6427
    %vm6479 = vcmask 1041409
    %v6480 = vsel %vm6479, %v5756, %v5749
    %vm6481 = vcmask 1042434
    %v6482 = vsel %vm6481, %v5763, %v6480
    %vm6483 = vcmask 1043459
    %v6484 = vsel %vm6483, %v5770, %v6482
    %vm6485 = vcmask 1044484
    %v6486 = vsel %vm6485, %v5777, %v6484
    %v6487 = vsel %vm6479, %v5805, %v5798
    %v6488 = vsel %vm6481, %v5812, %v6487
    %v6489 = vsel %vm6483, %v5819, %v6488
    %v6490 = vsel %vm6485, %v5826, %v6489
    %v6491 = vsel %vm6479, %v5854, %v5847
    %v6492 = vsel %vm6481, %v5861, %v6491
    %v6493 = vsel %vm6483, %v5868, %v6492
    %v6494 = vsel %vm6485, %v5875, %v6493
    %v6495 = vsel %vm6479, %v5903, %v5896
    %v6496 = vsel %vm6481, %v5910, %v6495
    %v6497 = vsel %vm6483, %v5917, %v6496
    %v6498 = vsel %vm6485, %v5924, %v6497
    %v6499 = vsel %vm6479, %v5952, %v5945
    %v6500 = vsel %vm6481, %v5959, %v6499
    %v6501 = vsel %vm6483, %v5966, %v6500
    %v6502 = vsel %vm6485, %v5973, %v6501
    %v6503 = vsel %vm6479, %v6099, %v6092
    %v6504 = vsel %vm6481, %v6106, %v6503
    %v6505 = vsel %vm6483, %v6113, %v6504
    %v6506 = vsel %vm6485, %v6120, %v6505
    %v6507 = vsel %vm6479, %v6148, %v6141
    %v6508 = vsel %vm6481, %v6155, %v6507
    %v6509 = vsel %vm6483, %v6162, %v6508
    %v6510 = vsel %vm6485, %v6169, %v6509
    %v6511 = vsel %vm6479, %v6197, %v6190
    %v6512 = vsel %vm6481, %v6204, %v6511
    %v6513 = vsel %vm6483, %v6211, %v6512
    %v6514 = vsel %vm6485, %v6218, %v6513
    %v6515 = vsel %vm6479, %v6246, %v6239
    %v6516 = vsel %vm6481, %v6253, %v6515
    %v6517 = vsel %vm6483, %v6260, %v6516
    %v6518 = vsel %vm6485, %v6267, %v6517
    %v6519 = vsel %vm6479, %v6295, %v6288
    %v6520 = vsel %vm6481, %v6302, %v6519
    %v6521 = vsel %vm6483, %v6309, %v6520
    %v6522 = vsel %vm6485, %v6316, %v6521
    %vm6533 = vcmask 61440
    %6534 = vst.msk [vmem:[#allocation3] sm:$0x1f] %vm6533, %v6486
    %6535 = vst.msk [vmem:[#allocation3 + $0x8] sm:$0x1f] %vm6533, %v6490
    %6536 = vst.msk [vmem:[#allocation3 + $0x10] sm:$0x1f] %vm6533, %v6494
    %6537 = vst.msk [vmem:[#allocation3 + $0x18] sm:$0x1f] %vm6533, %v6498
    %6538 = vst.msk [vmem:[#allocation3 + $0x20] sm:$0x1f] %vm6533, %v6502
    %6539 = vst.msk [vmem:[#allocation3 + $0x28] sm:$0x1f] %vm6533, %v6506
    %6540 = vst.msk [vmem:[#allocation3 + $0x30] sm:$0x1f] %vm6533, %v6510
    %6541 = vst.msk [vmem:[#allocation3 + $0x38] sm:$0x1f] %vm6533, %v6514
    %6542 = vst.msk [vmem:[#allocation3 + $0x40] sm:$0x1f] %vm6533, %v6518
    %6543 = vst.msk [vmem:[#allocation3 + $0x48] sm:$0x1f] %vm6533, %v6522
    %v6554 = vsel %vm6479, %v5763, %v5756
    %v6555 = vsel %vm6481, %v5770, %v6554
    %v6556 = vsel %vm6483, %v5777, %v6555
    %v6557 = vsel %vm6485, %v5784, %v6556
    %v6558 = vsel %vm6479, %v5812, %v5805
    %v6559 = vsel %vm6481, %v5819, %v6558
    %v6560 = vsel %vm6483, %v5826, %v6559
    %v6561 = vsel %vm6485, %v5833, %v6560
    %v6562 = vsel %vm6479, %v5861, %v5854
    %v6563 = vsel %vm6481, %v5868, %v6562
    %v6564 = vsel %vm6483, %v5875, %v6563
    %v6565 = vsel %vm6485, %v5882, %v6564
    %v6566 = vsel %vm6479, %v5910, %v5903
    %v6567 = vsel %vm6481, %v5917, %v6566
    %v6568 = vsel %vm6483, %v5924, %v6567
    %v6569 = vsel %vm6485, %v5931, %v6568
    %v6570 = vsel %vm6479, %v5959, %v5952
    %v6571 = vsel %vm6481, %v5966, %v6570
    %v6572 = vsel %vm6483, %v5973, %v6571
    %v6573 = vsel %vm6485, %v5980, %v6572
    %v6574 = vsel %vm6479, %v6106, %v6099
    %v6575 = vsel %vm6481, %v6113, %v6574
    %v6576 = vsel %vm6483, %v6120, %v6575
    %v6577 = vsel %vm6485, %v6127, %v6576
    %v6578 = vsel %vm6479, %v6155, %v6148
    %v6579 = vsel %vm6481, %v6162, %v6578
    %v6580 = vsel %vm6483, %v6169, %v6579
    %v6581 = vsel %vm6485, %v6176, %v6580
    %v6582 = vsel %vm6479, %v6204, %v6197
    %v6583 = vsel %vm6481, %v6211, %v6582
    %v6584 = vsel %vm6483, %v6218, %v6583
    %v6585 = vsel %vm6485, %v6225, %v6584
    %v6586 = vsel %vm6479, %v6253, %v6246
    %v6587 = vsel %vm6481, %v6260, %v6586
    %v6588 = vsel %vm6483, %v6267, %v6587
    %v6589 = vsel %vm6485, %v6274, %v6588
    %v6590 = vsel %vm6479, %v6302, %v6295
    %v6591 = vsel %vm6481, %v6309, %v6590
    %v6592 = vsel %vm6483, %v6316, %v6591
    %v6593 = vsel %vm6485, %v6323, %v6592
    %6594 = vrot.lane.b32.xlu0 %v6557, 8
    %v6595 = vpop.permute.xlu0 %6594
    %6596 = vrot.lane.b32.xlu0 %v6561, 8
    %v6597 = vpop.permute.xlu0 %6596
    %6598 = vrot.lane.b32.xlu0 %v6565, 8
    %v6599 = vpop.permute.xlu0 %6598
    %6600 = vrot.lane.b32.xlu0 %v6569, 8
    %v6601 = vpop.permute.xlu0 %6600
    %6602 = vrot.lane.b32.xlu0 %v6573, 8
    %v6603 = vpop.permute.xlu0 %6602
    %6604 = vrot.lane.b32.xlu0 %v6577, 8
    %v6605 = vpop.permute.xlu0 %6604
    %6606 = vrot.lane.b32.xlu0 %v6581, 8
    %v6607 = vpop.permute.xlu0 %6606
    %6608 = vrot.lane.b32.xlu0 %v6585, 8
    %v6609 = vpop.permute.xlu0 %6608
    %6610 = vrot.lane.b32.xlu0 %v6589, 8
    %v6611 = vpop.permute.xlu0 %6610
    %6612 = vrot.lane.b32.xlu0 %v6593, 8
    %v6613 = vpop.permute.xlu0 %6612
    %vm6624 = vcmask 127040
    %6625 = vst.msk [vmem:[#allocation3] sm:$0x1f] %vm6624, %v6595
    %6626 = vst.msk [vmem:[#allocation3 + $0x8] sm:$0x1f] %vm6624, %v6597
    %6627 = vst.msk [vmem:[#allocation3 + $0x10] sm:$0x1f] %vm6624, %v6599
    %6628 = vst.msk [vmem:[#allocation3 + $0x18] sm:$0x1f] %vm6624, %v6601
    %6629 = vst.msk [vmem:[#allocation3 + $0x20] sm:$0x1f] %vm6624, %v6603
    %6630 = vst.msk [vmem:[#allocation3 + $0x28] sm:$0x1f] %vm6624, %v6605
    %6631 = vst.msk [vmem:[#allocation3 + $0x30] sm:$0x1f] %vm6624, %v6607
    %6632 = vst.msk [vmem:[#allocation3 + $0x38] sm:$0x1f] %vm6624, %v6609
    %6633 = vst.msk [vmem:[#allocation3 + $0x40] sm:$0x1f] %vm6624, %v6611
    %6634 = vst.msk [vmem:[#allocation3 + $0x48] sm:$0x1f] %vm6624, %v6613
    %v6645 = vsel %vm6479, %v5770, %v5763
    %v6646 = vsel %vm6481, %v5777, %v6645
    %v6647 = vsel %vm6483, %v5784, %v6646
    %v6648 = vsel %vm6485, %v5791, %v6647
    %v6649 = vsel %vm6479, %v5819, %v5812
    %v6650 = vsel %vm6481, %v5826, %v6649
    %v6651 = vsel %vm6483, %v5833, %v6650
    %v6652 = vsel %vm6485, %v5840, %v6651
    %v6653 = vsel %vm6479, %v5868, %v5861
    %v6654 = vsel %vm6481, %v5875, %v6653
    %v6655 = vsel %vm6483, %v5882, %v6654
    %v6656 = vsel %vm6485, %v5889, %v6655
    %v6657 = vsel %vm6479, %v5917, %v5910
    %v6658 = vsel %vm6481, %v5924, %v6657
    %v6659 = vsel %vm6483, %v5931, %v6658
    %v6660 = vsel %vm6485, %v5938, %v6659
    %v6661 = vsel %vm6479, %v5966, %v5959
    %v6662 = vsel %vm6481, %v5973, %v6661
    %v6663 = vsel %vm6483, %v5980, %v6662
    %v6664 = vsel %vm6485, %v5987, %v6663
    %v6665 = vsel %vm6479, %v6113, %v6106
    %v6666 = vsel %vm6481, %v6120, %v6665
    %v6667 = vsel %vm6483, %v6127, %v6666
    %v6668 = vsel %vm6485, %v6134, %v6667
    %v6669 = vsel %vm6479, %v6162, %v6155
    %v6670 = vsel %vm6481, %v6169, %v6669
    %v6671 = vsel %vm6483, %v6176, %v6670
    %v6672 = vsel %vm6485, %v6183, %v6671
    %v6673 = vsel %vm6479, %v6211, %v6204
    %v6674 = vsel %vm6481, %v6218, %v6673
    %v6675 = vsel %vm6483, %v6225, %v6674
    %v6676 = vsel %vm6485, %v6232, %v6675
    %v6677 = vsel %vm6479, %v6260, %v6253
    %v6678 = vsel %vm6481, %v6267, %v6677
    %v6679 = vsel %vm6483, %v6274, %v6678
    %v6680 = vsel %vm6485, %v6281, %v6679
    %v6681 = vsel %vm6479, %v6309, %v6302
    %v6682 = vsel %vm6481, %v6316, %v6681
    %v6683 = vsel %vm6483, %v6323, %v6682
    %v6684 = vsel %vm6485, %v6330, %v6683
    %6685 = vrot.lane.b32.xlu0 %v6648, 16
    %v6686 = vpop.permute.xlu0 %6685
    %6687 = vrot.lane.b32.xlu0 %v6652, 16
    %v6688 = vpop.permute.xlu0 %6687
    %6689 = vrot.lane.b32.xlu0 %v6656, 16
    %v6690 = vpop.permute.xlu0 %6689
    %6691 = vrot.lane.b32.xlu0 %v6660, 16
    %v6692 = vpop.permute.xlu0 %6691
    %6693 = vrot.lane.b32.xlu0 %v6664, 16
    %v6694 = vpop.permute.xlu0 %6693
    %6695 = vrot.lane.b32.xlu0 %v6668, 16
    %v6696 = vpop.permute.xlu0 %6695
    %6697 = vrot.lane.b32.xlu0 %v6672, 16
    %v6698 = vpop.permute.xlu0 %6697
    %6699 = vrot.lane.b32.xlu0 %v6676, 16
    %v6700 = vpop.permute.xlu0 %6699
    %6701 = vrot.lane.b32.xlu0 %v6680, 16
    %v6702 = vpop.permute.xlu0 %6701
    %6703 = vrot.lane.b32.xlu0 %v6684, 16
    %v6704 = vpop.permute.xlu0 %6703
    %vm6715 = vcmask 192640
    %6716 = vst.msk [vmem:[#allocation3] sm:$0x1f] %vm6715, %v6686
    %6717 = vst.msk [vmem:[#allocation3 + $0x8] sm:$0x1f] %vm6715, %v6688
    %6718 = vst.msk [vmem:[#allocation3 + $0x10] sm:$0x1f] %vm6715, %v6690
    %6719 = vst.msk [vmem:[#allocation3 + $0x18] sm:$0x1f] %vm6715, %v6692
    %6720 = vst.msk [vmem:[#allocation3 + $0x20] sm:$0x1f] %vm6715, %v6694
    %6721 = vst.msk [vmem:[#allocation3 + $0x28] sm:$0x1f] %vm6715, %v6696
    %6722 = vst.msk [vmem:[#allocation3 + $0x30] sm:$0x1f] %vm6715, %v6698
    %6723 = vst.msk [vmem:[#allocation3 + $0x38] sm:$0x1f] %vm6715, %v6700
    %6724 = vst.msk [vmem:[#allocation3 + $0x40] sm:$0x1f] %vm6715, %v6702
    %6725 = vst.msk [vmem:[#allocation3 + $0x48] sm:$0x1f] %vm6715, %v6704
    %v6736 = vsel %vm6479, %v6001, %v5994
    %v6737 = vsel %vm6481, %v6008, %v6736
    %v6738 = vsel %vm6483, %v6015, %v6737
    %v6739 = vsel %vm6485, %v6022, %v6738
    %v6740 = vsel %vm6479, %v6344, %v6337
    %v6741 = vsel %vm6481, %v6351, %v6740
    %v6742 = vsel %vm6483, %v6358, %v6741
    %v6743 = vsel %vm6485, %v6365, %v6742
    %6744 = vrot.lane.b32.xlu0 %v6490, 24
    %v6745 = vpop.permute.xlu0 %6744
    %6746 = vrot.lane.b32.xlu0 %v6494, 24
    %v6747 = vpop.permute.xlu0 %6746
    %6748 = vrot.lane.b32.xlu0 %v6498, 24
    %v6749 = vpop.permute.xlu0 %6748
    %6750 = vrot.lane.b32.xlu0 %v6502, 24
    %v6751 = vpop.permute.xlu0 %6750
    %6752 = vrot.lane.b32.xlu0 %v6739, 24
    %v6753 = vpop.permute.xlu0 %6752
    %6754 = vrot.lane.b32.xlu0 %v6510, 24
    %v6755 = vpop.permute.xlu0 %6754
    %6756 = vrot.lane.b32.xlu0 %v6514, 24
    %v6757 = vpop.permute.xlu0 %6756
    %6758 = vrot.lane.b32.xlu0 %v6518, 24
    %v6759 = vpop.permute.xlu0 %6758
    %6760 = vrot.lane.b32.xlu0 %v6522, 24
    %v6761 = vpop.permute.xlu0 %6760
    %6762 = vrot.lane.b32.xlu0 %v6743, 24
    %v6763 = vpop.permute.xlu0 %6762
    %vm6774 = vcmask 258240
    %6775 = vst.msk [vmem:[#allocation3] sm:$0x1f] %vm6774, %v6745
    %6776 = vst.msk [vmem:[#allocation3 + $0x8] sm:$0x1f] %vm6774, %v6747
    %6777 = vst.msk [vmem:[#allocation3 + $0x10] sm:$0x1f] %vm6774, %v6749
    %6778 = vst.msk [vmem:[#allocation3 + $0x18] sm:$0x1f] %vm6774, %v6751
    %6779 = vst.msk [vmem:[#allocation3 + $0x20] sm:$0x1f] %vm6774, %v6753
    %6780 = vst.msk [vmem:[#allocation3 + $0x28] sm:$0x1f] %vm6774, %v6755
    %6781 = vst.msk [vmem:[#allocation3 + $0x30] sm:$0x1f] %vm6774, %v6757
    %6782 = vst.msk [vmem:[#allocation3 + $0x38] sm:$0x1f] %vm6774, %v6759
    %6783 = vst.msk [vmem:[#allocation3 + $0x40] sm:$0x1f] %vm6774, %v6761
    %6784 = vst.msk [vmem:[#allocation3 + $0x48] sm:$0x1f] %vm6774, %v6763
    %v6787 = vsel %vm6479, %v6008, %v6001
    %v6788 = vsel %vm6481, %v6015, %v6787
    %v6789 = vsel %vm6483, %v6022, %v6788
    %v6790 = vsel %vm6485, %v6029, %v6789
    %v6791 = vsel %vm6479, %v6351, %v6344
    %v6792 = vsel %vm6481, %v6358, %v6791
    %v6793 = vsel %vm6483, %v6365, %v6792
    %v6794 = vsel %vm6485, %v6372, %v6793
    %6795 = vrot.lane.b32.xlu0 %v6561, 32
    %v6796 = vpop.permute.xlu0 %6795
    %6797 = vrot.lane.b32.xlu0 %v6565, 32
    %v6798 = vpop.permute.xlu0 %6797
    %6799 = vrot.lane.b32.xlu0 %v6569, 32
    %v6800 = vpop.permute.xlu0 %6799
    %6801 = vrot.lane.b32.xlu0 %v6573, 32
    %v6802 = vpop.permute.xlu0 %6801
    %6803 = vrot.lane.b32.xlu0 %v6790, 32
    %v6804 = vpop.permute.xlu0 %6803
    %6805 = vrot.lane.b32.xlu0 %v6581, 32
    %v6806 = vpop.permute.xlu0 %6805
    %6807 = vrot.lane.b32.xlu0 %v6585, 32
    %v6808 = vpop.permute.xlu0 %6807
    %6809 = vrot.lane.b32.xlu0 %v6589, 32
    %v6810 = vpop.permute.xlu0 %6809
    %6811 = vrot.lane.b32.xlu0 %v6593, 32
    %v6812 = vpop.permute.xlu0 %6811
    %6813 = vrot.lane.b32.xlu0 %v6794, 32
    %v6814 = vpop.permute.xlu0 %6813
    %vm6825 = vcmask 323840
    %6826 = vst.msk [vmem:[#allocation3] sm:$0x1f] %vm6825, %v6796
    %6827 = vst.msk [vmem:[#allocation3 + $0x8] sm:$0x1f] %vm6825, %v6798
    %6828 = vst.msk [vmem:[#allocation3 + $0x10] sm:$0x1f] %vm6825, %v6800
    %6829 = vst.msk [vmem:[#allocation3 + $0x18] sm:$0x1f] %vm6825, %v6802
    %6830 = vst.msk [vmem:[#allocation3 + $0x20] sm:$0x1f] %vm6825, %v6804
    %6831 = vst.msk [vmem:[#allocation3 + $0x28] sm:$0x1f] %vm6825, %v6806
    %6832 = vst.msk [vmem:[#allocation3 + $0x30] sm:$0x1f] %vm6825, %v6808
    %6833 = vst.msk [vmem:[#allocation3 + $0x38] sm:$0x1f] %vm6825, %v6810
    %6834 = vst.msk [vmem:[#allocation3 + $0x40] sm:$0x1f] %vm6825, %v6812
    %6835 = vst.msk [vmem:[#allocation3 + $0x48] sm:$0x1f] %vm6825, %v6814
    %v6838 = vsel %vm6479, %v6015, %v6008
    %v6839 = vsel %vm6481, %v6022, %v6838
    %v6840 = vsel %vm6483, %v6029, %v6839
    %v6841 = vsel %vm6485, %v6036, %v6840
    %v6842 = vsel %vm6479, %v6358, %v6351
    %v6843 = vsel %vm6481, %v6365, %v6842
    %v6844 = vsel %vm6483, %v6372, %v6843
    %v6845 = vsel %vm6485, %v6379, %v6844
    %6846 = vrot.lane.b32.xlu0 %v6652, 40
    %v6847 = vpop.permute.xlu0 %6846
    %6848 = vrot.lane.b32.xlu0 %v6656, 40
    %v6849 = vpop.permute.xlu0 %6848
    %6850 = vrot.lane.b32.xlu0 %v6660, 40
    %v6851 = vpop.permute.xlu0 %6850
    %6852 = vrot.lane.b32.xlu0 %v6664, 40
    %v6853 = vpop.permute.xlu0 %6852
    %6854 = vrot.lane.b32.xlu0 %v6841, 40
    %v6855 = vpop.permute.xlu0 %6854
    %6856 = vrot.lane.b32.xlu0 %v6672, 40
    %v6857 = vpop.permute.xlu0 %6856
    %6858 = vrot.lane.b32.xlu0 %v6676, 40
    %v6859 = vpop.permute.xlu0 %6858
    %6860 = vrot.lane.b32.xlu0 %v6680, 40
    %v6861 = vpop.permute.xlu0 %6860
    %6862 = vrot.lane.b32.xlu0 %v6684, 40
    %v6863 = vpop.permute.xlu0 %6862
    %6864 = vrot.lane.b32.xlu0 %v6845, 40
    %v6865 = vpop.permute.xlu0 %6864
    %vm6876 = vcmask 389440
    %6877 = vst.msk [vmem:[#allocation3] sm:$0x1f] %vm6876, %v6847
    %6878 = vst.msk [vmem:[#allocation3 + $0x8] sm:$0x1f] %vm6876, %v6849
    %6879 = vst.msk [vmem:[#allocation3 + $0x10] sm:$0x1f] %vm6876, %v6851
    %6880 = vst.msk [vmem:[#allocation3 + $0x18] sm:$0x1f] %vm6876, %v6853
    %6881 = vst.msk [vmem:[#allocation3 + $0x20] sm:$0x1f] %vm6876, %v6855
    %6882 = vst.msk [vmem:[#allocation3 + $0x28] sm:$0x1f] %vm6876, %v6857
    %6883 = vst.msk [vmem:[#allocation3 + $0x30] sm:$0x1f] %vm6876, %v6859
    %6884 = vst.msk [vmem:[#allocation3 + $0x38] sm:$0x1f] %vm6876, %v6861
    %6885 = vst.msk [vmem:[#allocation3 + $0x40] sm:$0x1f] %vm6876, %v6863
    %6886 = vst.msk [vmem:[#allocation3 + $0x48] sm:$0x1f] %vm6876, %v6865
    %v6897 = vsel %vm6479, %v6050, %v6043
    %v6898 = vsel %vm6481, %v6057, %v6897
    %v6899 = vsel %vm6483, %v6064, %v6898
    %v6900 = vsel %vm6485, %v6071, %v6899
    %v6901 = vsel %vm6479, %v6393, %v6386
    %v6902 = vsel %vm6481, %v6400, %v6901
    %v6903 = vsel %vm6483, %v6407, %v6902
    %v6904 = vsel %vm6485, %v6414, %v6903
    %6905 = vrot.lane.b32.xlu0 %v6494, 48
    %v6906 = vpop.permute.xlu0 %6905
    %6907 = vrot.lane.b32.xlu0 %v6498, 48
    %v6908 = vpop.permute.xlu0 %6907
    %6909 = vrot.lane.b32.xlu0 %v6502, 48
    %v6910 = vpop.permute.xlu0 %6909
    %6911 = vrot.lane.b32.xlu0 %v6739, 48
    %v6912 = vpop.permute.xlu0 %6911
    %6913 = vrot.lane.b32.xlu0 %v6900, 48
    %v6914 = vpop.permute.xlu0 %6913
    %6915 = vrot.lane.b32.xlu0 %v6514, 48
    %v6916 = vpop.permute.xlu0 %6915
    %6917 = vrot.lane.b32.xlu0 %v6518, 48
    %v6918 = vpop.permute.xlu0 %6917
    %6919 = vrot.lane.b32.xlu0 %v6522, 48
    %v6920 = vpop.permute.xlu0 %6919
    %6921 = vrot.lane.b32.xlu0 %v6743, 48
    %v6922 = vpop.permute.xlu0 %6921
    %6923 = vrot.lane.b32.xlu0 %v6904, 48
    %v6924 = vpop.permute.xlu0 %6923
    %vm6935 = vcmask 455040
    %6936 = vst.msk [vmem:[#allocation3] sm:$0x1f] %vm6935, %v6906
    %6937 = vst.msk [vmem:[#allocation3 + $0x8] sm:$0x1f] %vm6935, %v6908
    %6938 = vst.msk [vmem:[#allocation3 + $0x10] sm:$0x1f] %vm6935, %v6910
    %6939 = vst.msk [vmem:[#allocation3 + $0x18] sm:$0x1f] %vm6935, %v6912
    %6940 = vst.msk [vmem:[#allocation3 + $0x20] sm:$0x1f] %vm6935, %v6914
    %6941 = vst.msk [vmem:[#allocation3 + $0x28] sm:$0x1f] %vm6935, %v6916
    %6942 = vst.msk [vmem:[#allocation3 + $0x30] sm:$0x1f] %vm6935, %v6918
    %6943 = vst.msk [vmem:[#allocation3 + $0x38] sm:$0x1f] %vm6935, %v6920
    %6944 = vst.msk [vmem:[#allocation3 + $0x40] sm:$0x1f] %vm6935, %v6922
    %6945 = vst.msk [vmem:[#allocation3 + $0x48] sm:$0x1f] %vm6935, %v6924
    %v6948 = vsel %vm6479, %v6057, %v6050
    %v6949 = vsel %vm6481, %v6064, %v6948
    %v6950 = vsel %vm6483, %v6071, %v6949
    %v6951 = vsel %vm6485, %v6078, %v6950
    %v6952 = vsel %vm6479, %v6400, %v6393
    %v6953 = vsel %vm6481, %v6407, %v6952
    %v6954 = vsel %vm6483, %v6414, %v6953
    %v6955 = vsel %vm6485, %v6421, %v6954
    %6956 = vrot.lane.b32.xlu0 %v6565, 56
    %v6957 = vpop.permute.xlu0 %6956
    %6958 = vrot.lane.b32.xlu0 %v6569, 56
    %v6959 = vpop.permute.xlu0 %6958
    %6960 = vrot.lane.b32.xlu0 %v6573, 56
    %v6961 = vpop.permute.xlu0 %6960
    %6962 = vrot.lane.b32.xlu0 %v6790, 56
    %v6963 = vpop.permute.xlu0 %6962
    %6964 = vrot.lane.b32.xlu0 %v6951, 56
    %v6965 = vpop.permute.xlu0 %6964
    %6966 = vrot.lane.b32.xlu0 %v6585, 56
    %v6967 = vpop.permute.xlu0 %6966
    %6968 = vrot.lane.b32.xlu0 %v6589, 56
    %v6969 = vpop.permute.xlu0 %6968
    %6970 = vrot.lane.b32.xlu0 %v6593, 56
    %v6971 = vpop.permute.xlu0 %6970
    %6972 = vrot.lane.b32.xlu0 %v6794, 56
    %v6973 = vpop.permute.xlu0 %6972
    %6974 = vrot.lane.b32.xlu0 %v6955, 56
    %v6975 = vpop.permute.xlu0 %6974
    %vm6986 = vcmask 520640
    %6987 = vst.msk [vmem:[#allocation3] sm:$0x1f] %vm6986, %v6957
    %6988 = vst.msk [vmem:[#allocation3 + $0x8] sm:$0x1f] %vm6986, %v6959
    %6989 = vst.msk [vmem:[#allocation3 + $0x10] sm:$0x1f] %vm6986, %v6961
    %6990 = vst.msk [vmem:[#allocation3 + $0x18] sm:$0x1f] %vm6986, %v6963
    %6991 = vst.msk [vmem:[#allocation3 + $0x20] sm:$0x1f] %vm6986, %v6965
    %6992 = vst.msk [vmem:[#allocation3 + $0x28] sm:$0x1f] %vm6986, %v6967
    %6993 = vst.msk [vmem:[#allocation3 + $0x30] sm:$0x1f] %vm6986, %v6969
    %6994 = vst.msk [vmem:[#allocation3 + $0x38] sm:$0x1f] %vm6986, %v6971
    %6995 = vst.msk [vmem:[#allocation3 + $0x40] sm:$0x1f] %vm6986, %v6973
    %6996 = vst.msk [vmem:[#allocation3 + $0x48] sm:$0x1f] %vm6986, %v6975
    %v6999 = vsel %vm6479, %v6064, %v6057
    %v7000 = vsel %vm6481, %v6071, %v6999
    %v7001 = vsel %vm6483, %v6078, %v7000
    %v7002 = vsel %vm6485, %v6085, %v7001
    %v7003 = vsel %vm6479, %v6407, %v6400
    %v7004 = vsel %vm6481, %v6414, %v7003
    %v7005 = vsel %vm6483, %v6421, %v7004
    %v7006 = vsel %vm6485, %v6428, %v7005
    %7007 = vrot.lane.b32.xlu0 %v6656, 64
    %v7008 = vpop.permute.xlu0 %7007
    %7009 = vrot.lane.b32.xlu0 %v6660, 64
    %v7010 = vpop.permute.xlu0 %7009
    %7011 = vrot.lane.b32.xlu0 %v6664, 64
    %v7012 = vpop.permute.xlu0 %7011
    %7013 = vrot.lane.b32.xlu0 %v6841, 64
    %v7014 = vpop.permute.xlu0 %7013
    %7015 = vrot.lane.b32.xlu0 %v7002, 64
    %v7016 = vpop.permute.xlu0 %7015
    %7017 = vrot.lane.b32.xlu0 %v6676, 64
    %v7018 = vpop.permute.xlu0 %7017
    %7019 = vrot.lane.b32.xlu0 %v6680, 64
    %v7020 = vpop.permute.xlu0 %7019
    %7021 = vrot.lane.b32.xlu0 %v6684, 64
    %v7022 = vpop.permute.xlu0 %7021
    %7023 = vrot.lane.b32.xlu0 %v6845, 64
    %v7024 = vpop.permute.xlu0 %7023
    %7025 = vrot.lane.b32.xlu0 %v7006, 64
    %v7026 = vpop.permute.xlu0 %7025
    %vm7037 = vcmask 586240
    %7038 = vst.msk [vmem:[#allocation3] sm:$0x1f] %vm7037, %v7008
    %7039 = vst.msk [vmem:[#allocation3 + $0x8] sm:$0x1f] %vm7037, %v7010
    %7040 = vst.msk [vmem:[#allocation3 + $0x10] sm:$0x1f] %vm7037, %v7012
    %7041 = vst.msk [vmem:[#allocation3 + $0x18] sm:$0x1f] %vm7037, %v7014
    %7042 = vst.msk [vmem:[#allocation3 + $0x20] sm:$0x1f] %vm7037, %v7016
    %7043 = vst.msk [vmem:[#allocation3 + $0x28] sm:$0x1f] %vm7037, %v7018
    %7044 = vst.msk [vmem:[#allocation3 + $0x30] sm:$0x1f] %vm7037, %v7020
    %7045 = vst.msk [vmem:[#allocation3 + $0x38] sm:$0x1f] %vm7037, %v7022
    %7046 = vst.msk [vmem:[#allocation3 + $0x40] sm:$0x1f] %vm7037, %v7024
    %7047 = vst.msk [vmem:[#allocation3 + $0x48] sm:$0x1f] %vm7037, %v7026
    %v7048 = vld [vmem:[#allocation3] sm:$0x1f]
    %v7049 = vld [vmem:[#allocation3 + $0x8] sm:$0x1f]
    %v7050 = vld [vmem:[#allocation3 + $0x10] sm:$0x1f]
    %v7051 = vld [vmem:[#allocation3 + $0x18] sm:$0x1f]
    %v7052 = vld [vmem:[#allocation3 + $0x20] sm:$0x1f]
    %v7053 = vld [vmem:[#allocation3 + $0x28] sm:$0x1f]
    %v7054 = vld [vmem:[#allocation3 + $0x30] sm:$0x1f]
    %v7055 = vld [vmem:[#allocation3 + $0x38] sm:$0x1f]
    %v7056 = vld [vmem:[#allocation3 + $0x40] sm:$0x1f]
    %v7057 = vld [vmem:[#allocation3 + $0x48] sm:$0x1f]
    %v7068 = vcombine.high %v7048, %v7048
    %v7070 = vunpack.c.l.s4 1966171168
    %v7071 = vunpack.c.0.s8 %v7070
    %v7072 = vlaneseq
    %v7073 = vshrl.u32 %v7072, 7
    %v7074 = vsub.s32 %v7071, %v7073
    %v7075 = vrot.slane %v7048, %v7074
    %v7077 = vunpack.c.l.s4 1966171168
    %v7078 = vunpack.c.0.s8 %v7077
    %v7079 = vlaneseq
    %v7080 = vshrl.u32 %v7079, 7
    %v7081 = vsub.s32 %v7078, %v7080
    %v7082 = vrot.slane %v7068, %v7081
    %v7083 = vcombine.high %v7075, %v7075
    %v7085 = vunpack.c.l.s4 1966171168
    %v7086 = vunpack.c.0.s8 %v7085
    %v7087 = vlaneseq
    %v7088 = vshrl.u32 %v7087, 7
    %v7089 = vsub.s32 %v7086, %v7088
    %v7090 = vrot.slane %v7075, %v7089
    %v7092 = vunpack.c.l.s4 1966171168
    %v7093 = vunpack.c.0.s8 %v7092
    %v7094 = vlaneseq
    %v7095 = vshrl.u32 %v7094, 7
    %v7096 = vsub.s32 %v7093, %v7095
    %v7097 = vrot.slane %v7082, %v7096
    %v7099 = vunpack.c.l.s4 1966171168
    %v7100 = vunpack.c.0.s8 %v7099
    %v7101 = vlaneseq
    %v7102 = vshrl.u32 %v7101, 7
    %v7103 = vsub.s32 %v7100, %v7102
    %v7104 = vrot.slane %v7083, %v7103
    %v7105 = vcombine.high %v7090, %v7090
    %v7106 = vcombine.high %v7104, %v7104
    %v7107 = vcombine.high %v7049, %v7049
    %v7109 = vunpack.c.l.s4 1966171168
    %v7110 = vunpack.c.0.s8 %v7109
    %v7111 = vlaneseq
    %v7112 = vshrl.u32 %v7111, 7
    %v7113 = vsub.s32 %v7110, %v7112
    %v7114 = vrot.slane %v7049, %v7113
    %v7116 = vunpack.c.l.s4 1966171168
    %v7117 = vunpack.c.0.s8 %v7116
    %v7118 = vlaneseq
    %v7119 = vshrl.u32 %v7118, 7
    %v7120 = vsub.s32 %v7117, %v7119
    %v7121 = vrot.slane %v7107, %v7120
    %v7122 = vcombine.high %v7114, %v7114
    %v7124 = vunpack.c.l.s4 1966171168
    %v7125 = vunpack.c.0.s8 %v7124
    %v7126 = vlaneseq
    %v7127 = vshrl.u32 %v7126, 7
    %v7128 = vsub.s32 %v7125, %v7127
    %v7129 = vrot.slane %v7114, %v7128
    %v7131 = vunpack.c.l.s4 1966171168
    %v7132 = vunpack.c.0.s8 %v7131
    %v7133 = vlaneseq
    %v7134 = vshrl.u32 %v7133, 7
    %v7135 = vsub.s32 %v7132, %v7134
    %v7136 = vrot.slane %v7121, %v7135
    %v7138 = vunpack.c.l.s4 1966171168
    %v7139 = vunpack.c.0.s8 %v7138
    %v7140 = vlaneseq
    %v7141 = vshrl.u32 %v7140, 7
    %v7142 = vsub.s32 %v7139, %v7141
    %v7143 = vrot.slane %v7122, %v7142
    %v7144 = vcombine.high %v7129, %v7129
    %v7145 = vcombine.high %v7143, %v7143
    %v7146 = vcombine.high %v7050, %v7050
    %v7148 = vunpack.c.l.s4 1966171168
    %v7149 = vunpack.c.0.s8 %v7148
    %v7150 = vlaneseq
    %v7151 = vshrl.u32 %v7150, 7
    %v7152 = vsub.s32 %v7149, %v7151
    %v7153 = vrot.slane %v7050, %v7152
    %v7155 = vunpack.c.l.s4 1966171168
    %v7156 = vunpack.c.0.s8 %v7155
    %v7157 = vlaneseq
    %v7158 = vshrl.u32 %v7157, 7
    %v7159 = vsub.s32 %v7156, %v7158
    %v7160 = vrot.slane %v7146, %v7159
    %v7161 = vcombine.high %v7153, %v7153
    %v7163 = vunpack.c.l.s4 1966171168
    %v7164 = vunpack.c.0.s8 %v7163
    %v7165 = vlaneseq
    %v7166 = vshrl.u32 %v7165, 7
    %v7167 = vsub.s32 %v7164, %v7166
    %v7168 = vrot.slane %v7153, %v7167
    %v7170 = vunpack.c.l.s4 1966171168
    %v7171 = vunpack.c.0.s8 %v7170
    %v7172 = vlaneseq
    %v7173 = vshrl.u32 %v7172, 7
    %v7174 = vsub.s32 %v7171, %v7173
    %v7175 = vrot.slane %v7160, %v7174
    %v7177 = vunpack.c.l.s4 1966171168
    %v7178 = vunpack.c.0.s8 %v7177
    %v7179 = vlaneseq
    %v7180 = vshrl.u32 %v7179, 7
    %v7181 = vsub.s32 %v7178, %v7180
    %v7182 = vrot.slane %v7161, %v7181
    %v7183 = vcombine.high %v7168, %v7168
    %v7184 = vcombine.high %v7182, %v7182
    %v7185 = vcombine.high %v7051, %v7051
    %v7187 = vunpack.c.l.s4 1966171168
    %v7188 = vunpack.c.0.s8 %v7187
    %v7189 = vlaneseq
    %v7190 = vshrl.u32 %v7189, 7
    %v7191 = vsub.s32 %v7188, %v7190
    %v7192 = vrot.slane %v7051, %v7191
    %v7194 = vunpack.c.l.s4 1966171168
    %v7195 = vunpack.c.0.s8 %v7194
    %v7196 = vlaneseq
    %v7197 = vshrl.u32 %v7196, 7
    %v7198 = vsub.s32 %v7195, %v7197
    %v7199 = vrot.slane %v7185, %v7198
    %v7200 = vcombine.high %v7192, %v7192
    %v7202 = vunpack.c.l.s4 1966171168
    %v7203 = vunpack.c.0.s8 %v7202
    %v7204 = vlaneseq
    %v7205 = vshrl.u32 %v7204, 7
    %v7206 = vsub.s32 %v7203, %v7205
    %v7207 = vrot.slane %v7192, %v7206
    %v7209 = vunpack.c.l.s4 1966171168
    %v7210 = vunpack.c.0.s8 %v7209
    %v7211 = vlaneseq
    %v7212 = vshrl.u32 %v7211, 7
    %v7213 = vsub.s32 %v7210, %v7212
    %v7214 = vrot.slane %v7199, %v7213
    %v7216 = vunpack.c.l.s4 1966171168
    %v7217 = vunpack.c.0.s8 %v7216
    %v7218 = vlaneseq
    %v7219 = vshrl.u32 %v7218, 7
    %v7220 = vsub.s32 %v7217, %v7219
    %v7221 = vrot.slane %v7200, %v7220
    %v7222 = vcombine.high %v7207, %v7207
    %v7223 = vcombine.high %v7221, %v7221
    %v7224 = vcombine.high %v7052, %v7052
    %v7226 = vunpack.c.l.s4 1966171168
    %v7227 = vunpack.c.0.s8 %v7226
    %v7228 = vlaneseq
    %v7229 = vshrl.u32 %v7228, 7
    %v7230 = vsub.s32 %v7227, %v7229
    %v7231 = vrot.slane %v7052, %v7230
    %v7233 = vunpack.c.l.s4 1966171168
    %v7234 = vunpack.c.0.s8 %v7233
    %v7235 = vlaneseq
    %v7236 = vshrl.u32 %v7235, 7
    %v7237 = vsub.s32 %v7234, %v7236
    %v7238 = vrot.slane %v7224, %v7237
    %v7239 = vcombine.high %v7231, %v7231
    %v7241 = vunpack.c.l.s4 1966171168
    %v7242 = vunpack.c.0.s8 %v7241
    %v7243 = vlaneseq
    %v7244 = vshrl.u32 %v7243, 7
    %v7245 = vsub.s32 %v7242, %v7244
    %v7246 = vrot.slane %v7231, %v7245
    %v7248 = vunpack.c.l.s4 1966171168
    %v7249 = vunpack.c.0.s8 %v7248
    %v7250 = vlaneseq
    %v7251 = vshrl.u32 %v7250, 7
    %v7252 = vsub.s32 %v7249, %v7251
    %v7253 = vrot.slane %v7238, %v7252
    %v7255 = vunpack.c.l.s4 1966171168
    %v7256 = vunpack.c.0.s8 %v7255
    %v7257 = vlaneseq
    %v7258 = vshrl.u32 %v7257, 7
    %v7259 = vsub.s32 %v7256, %v7258
    %v7260 = vrot.slane %v7239, %v7259
    %v7261 = vcombine.high %v7246, %v7246
    %v7262 = vcombine.high %v7260, %v7260
    %v7263 = vcombine.high %v7053, %v7053
    %v7265 = vunpack.c.l.s4 1966171168
    %v7266 = vunpack.c.0.s8 %v7265
    %v7267 = vlaneseq
    %v7268 = vshrl.u32 %v7267, 7
    %v7269 = vsub.s32 %v7266, %v7268
    %v7270 = vrot.slane %v7053, %v7269
    %v7272 = vunpack.c.l.s4 1966171168
    %v7273 = vunpack.c.0.s8 %v7272
    %v7274 = vlaneseq
    %v7275 = vshrl.u32 %v7274, 7
    %v7276 = vsub.s32 %v7273, %v7275
    %v7277 = vrot.slane %v7263, %v7276
    %v7278 = vcombine.high %v7270, %v7270
    %v7280 = vunpack.c.l.s4 1966171168
    %v7281 = vunpack.c.0.s8 %v7280
    %v7282 = vlaneseq
    %v7283 = vshrl.u32 %v7282, 7
    %v7284 = vsub.s32 %v7281, %v7283
    %v7285 = vrot.slane %v7270, %v7284
    %v7287 = vunpack.c.l.s4 1966171168
    %v7288 = vunpack.c.0.s8 %v7287
    %v7289 = vlaneseq
    %v7290 = vshrl.u32 %v7289, 7
    %v7291 = vsub.s32 %v7288, %v7290
    %v7292 = vrot.slane %v7277, %v7291
    %v7294 = vunpack.c.l.s4 1966171168
    %v7295 = vunpack.c.0.s8 %v7294
    %v7296 = vlaneseq
    %v7297 = vshrl.u32 %v7296, 7
    %v7298 = vsub.s32 %v7295, %v7297
    %v7299 = vrot.slane %v7278, %v7298
    %v7300 = vcombine.high %v7285, %v7285
    %v7301 = vcombine.high %v7299, %v7299
    %v7302 = vcombine.high %v7054, %v7054
    %v7304 = vunpack.c.l.s4 1966171168
    %v7305 = vunpack.c.0.s8 %v7304
    %v7306 = vlaneseq
    %v7307 = vshrl.u32 %v7306, 7
    %v7308 = vsub.s32 %v7305, %v7307
    %v7309 = vrot.slane %v7054, %v7308
    %v7311 = vunpack.c.l.s4 1966171168
    %v7312 = vunpack.c.0.s8 %v7311
    %v7313 = vlaneseq
    %v7314 = vshrl.u32 %v7313, 7
    %v7315 = vsub.s32 %v7312, %v7314
    %v7316 = vrot.slane %v7302, %v7315
    %v7317 = vcombine.high %v7309, %v7309
    %v7319 = vunpack.c.l.s4 1966171168
    %v7320 = vunpack.c.0.s8 %v7319
    %v7321 = vlaneseq
    %v7322 = vshrl.u32 %v7321, 7
    %v7323 = vsub.s32 %v7320, %v7322
    %v7324 = vrot.slane %v7309, %v7323
    %v7326 = vunpack.c.l.s4 1966171168
    %v7327 = vunpack.c.0.s8 %v7326
    %v7328 = vlaneseq
    %v7329 = vshrl.u32 %v7328, 7
    %v7330 = vsub.s32 %v7327, %v7329
    %v7331 = vrot.slane %v7316, %v7330
    %v7333 = vunpack.c.l.s4 1966171168
    %v7334 = vunpack.c.0.s8 %v7333
    %v7335 = vlaneseq
    %v7336 = vshrl.u32 %v7335, 7
    %v7337 = vsub.s32 %v7334, %v7336
    %v7338 = vrot.slane %v7317, %v7337
    %v7339 = vcombine.high %v7324, %v7324
    %v7340 = vcombine.high %v7338, %v7338
    %v7341 = vcombine.high %v7055, %v7055
    %v7343 = vunpack.c.l.s4 1966171168
    %v7344 = vunpack.c.0.s8 %v7343
    %v7345 = vlaneseq
    %v7346 = vshrl.u32 %v7345, 7
    %v7347 = vsub.s32 %v7344, %v7346
    %v7348 = vrot.slane %v7055, %v7347
    %v7350 = vunpack.c.l.s4 1966171168
    %v7351 = vunpack.c.0.s8 %v7350
    %v7352 = vlaneseq
    %v7353 = vshrl.u32 %v7352, 7
    %v7354 = vsub.s32 %v7351, %v7353
    %v7355 = vrot.slane %v7341, %v7354
    %v7356 = vcombine.high %v7348, %v7348
    %v7358 = vunpack.c.l.s4 1966171168
    %v7359 = vunpack.c.0.s8 %v7358
    %v7360 = vlaneseq
    %v7361 = vshrl.u32 %v7360, 7
    %v7362 = vsub.s32 %v7359, %v7361
    %v7363 = vrot.slane %v7348, %v7362
    %v7365 = vunpack.c.l.s4 1966171168
    %v7366 = vunpack.c.0.s8 %v7365
    %v7367 = vlaneseq
    %v7368 = vshrl.u32 %v7367, 7
    %v7369 = vsub.s32 %v7366, %v7368
    %v7370 = vrot.slane %v7355, %v7369
    %v7372 = vunpack.c.l.s4 1966171168
    %v7373 = vunpack.c.0.s8 %v7372
    %v7374 = vlaneseq
    %v7375 = vshrl.u32 %v7374, 7
    %v7376 = vsub.s32 %v7373, %v7375
    %v7377 = vrot.slane %v7356, %v7376
    %v7378 = vcombine.high %v7363, %v7363
    %v7379 = vcombine.high %v7377, %v7377
    %v7380 = vcombine.high %v7056, %v7056
    %v7382 = vunpack.c.l.s4 1966171168
    %v7383 = vunpack.c.0.s8 %v7382
    %v7384 = vlaneseq
    %v7385 = vshrl.u32 %v7384, 7
    %v7386 = vsub.s32 %v7383, %v7385
    %v7387 = vrot.slane %v7056, %v7386
    %v7389 = vunpack.c.l.s4 1966171168
    %v7390 = vunpack.c.0.s8 %v7389
    %v7391 = vlaneseq
    %v7392 = vshrl.u32 %v7391, 7
    %v7393 = vsub.s32 %v7390, %v7392
    %v7394 = vrot.slane %v7380, %v7393
    %v7395 = vcombine.high %v7387, %v7387
    %v7397 = vunpack.c.l.s4 1966171168
    %v7398 = vunpack.c.0.s8 %v7397
    %v7399 = vlaneseq
    %v7400 = vshrl.u32 %v7399, 7
    %v7401 = vsub.s32 %v7398, %v7400
    %v7402 = vrot.slane %v7387, %v7401
    %v7404 = vunpack.c.l.s4 1966171168
    %v7405 = vunpack.c.0.s8 %v7404
    %v7406 = vlaneseq
    %v7407 = vshrl.u32 %v7406, 7
    %v7408 = vsub.s32 %v7405, %v7407
    %v7409 = vrot.slane %v7394, %v7408
    %v7411 = vunpack.c.l.s4 1966171168
    %v7412 = vunpack.c.0.s8 %v7411
    %v7413 = vlaneseq
    %v7414 = vshrl.u32 %v7413, 7
    %v7415 = vsub.s32 %v7412, %v7414
    %v7416 = vrot.slane %v7395, %v7415
    %v7417 = vcombine.high %v7402, %v7402
    %v7418 = vcombine.high %v7416, %v7416
    %v7419 = vcombine.high %v7057, %v7057
    %v7421 = vunpack.c.l.s4 1966171168
    %v7422 = vunpack.c.0.s8 %v7421
    %v7423 = vlaneseq
    %v7424 = vshrl.u32 %v7423, 7
    %v7425 = vsub.s32 %v7422, %v7424
    %v7426 = vrot.slane %v7057, %v7425
    %v7428 = vunpack.c.l.s4 1966171168
    %v7429 = vunpack.c.0.s8 %v7428
    %v7430 = vlaneseq
    %v7431 = vshrl.u32 %v7430, 7
    %v7432 = vsub.s32 %v7429, %v7431
    %v7433 = vrot.slane %v7419, %v7432
    %v7434 = vcombine.high %v7426, %v7426
    %v7436 = vunpack.c.l.s4 1966171168
    %v7437 = vunpack.c.0.s8 %v7436
    %v7438 = vlaneseq
    %v7439 = vshrl.u32 %v7438, 7
    %v7440 = vsub.s32 %v7437, %v7439
    %v7441 = vrot.slane %v7426, %v7440
    %v7443 = vunpack.c.l.s4 1966171168
    %v7444 = vunpack.c.0.s8 %v7443
    %v7445 = vlaneseq
    %v7446 = vshrl.u32 %v7445, 7
    %v7447 = vsub.s32 %v7444, %v7446
    %v7448 = vrot.slane %v7433, %v7447
    %v7450 = vunpack.c.l.s4 1966171168
    %v7451 = vunpack.c.0.s8 %v7450
    %v7452 = vlaneseq
    %v7453 = vshrl.u32 %v7452, 7
    %v7454 = vsub.s32 %v7451, %v7453
    %v7455 = vrot.slane %v7434, %v7454
    %v7456 = vcombine.high %v7441, %v7441
    %v7457 = vcombine.high %v7455, %v7455
    %v7458 = vld [vmem:[%s3] sm:$0xff]
    %v7459 = vld [vmem:[%s3 + $0x8] sm:$0xff]
    %v7460 = vld [vmem:[%s3 + $0x10] sm:$0xff]
    %v7461 = vld [vmem:[%s3 + $0x18] sm:$0xff]
    %v7462 = vld [vmem:[%s3 + $0x20] sm:$0xff]
    %v7463 = vld [vmem:[%s3 + $0x28] sm:$0xff]
    %v7464 = vld [vmem:[%s3 + $0x30] sm:$0xff]
    %v7465 = vld [vmem:[%s3 + $0x38] sm:$0xff]
    %v7466 = vld [vmem:[%s3 + $0x40] sm:$0xff]
    %v7467 = vld [vmem:[%s4] sm:$0x1]
    %v7469 = vlaneseq
    %v7470 = vshrl.u32 %v7469, 7
    %v7471 = vsub.s32 0, %v7470
    %v7472 = vrot.slane %v7467, %v7471
    %v7474 = vcombine.low %v7090, %v7104
    %v7475 = vcombine.low %v7105, %v7106
    %v7476 = vcombine.low %v7097, %v7129
    %v7477 = vcombine.low %v7143, %v7144
    %v7479 = vunpack.c.l.s4 1966171168
    %v7480 = vunpack.c.0.s8 %v7479
    %v7481 = vlaneseq
    %v7482 = vshrl.u32 %v7481, 7
    %v7483 = vsub.s32 %v7480, %v7482
    %v7484 = vrot.slane %v7474, %v7483
    %v7486 = vunpack.c.l.s4 1966171168
    %v7487 = vunpack.c.0.s8 %v7486
    %v7488 = vlaneseq
    %v7489 = vshrl.u32 %v7488, 7
    %v7490 = vsub.s32 %v7487, %v7489
    %v7491 = vrot.slane %v7475, %v7490
    %v7493 = vunpack.c.l.s4 1966171168
    %v7494 = vunpack.c.0.s8 %v7493
    %v7495 = vlaneseq
    %v7496 = vshrl.u32 %v7495, 7
    %v7497 = vsub.s32 %v7494, %v7496
    %v7498 = vrot.slane %v7476, %v7497
    %v7500 = vunpack.c.l.s4 1966171168
    %v7501 = vunpack.c.0.s8 %v7500
    %v7502 = vlaneseq
    %v7503 = vshrl.u32 %v7502, 7
    %v7504 = vsub.s32 %v7501, %v7503
    %v7505 = vrot.slane %v7477, %v7504
    %v7506 = vcombine.low %v7484, %v7491
    %v7507 = vcombine.low %v7498, %v7505
    %v7509 = vunpack.c.l.s4 1966171168
    %v7510 = vunpack.c.0.s8 %v7509
    %v7511 = vlaneseq
    %v7512 = vshrl.u32 %v7511, 7
    %v7513 = vsub.s32 %v7510, %v7512
    %v7514 = vrot.slane %v7506, %v7513
    %v7516 = vunpack.c.l.s4 1966171168
    %v7517 = vunpack.c.0.s8 %v7516
    %v7518 = vlaneseq
    %v7519 = vshrl.u32 %v7518, 7
    %v7520 = vsub.s32 %v7517, %v7519
    %v7521 = vrot.slane %v7507, %v7520
    %v7522 = vcombine.low %v7514, %v7521
    %v7523 = vcombine.low %v7145, %v7136
    %v7524 = vcombine.low %v7168, %v7182
    %v7525 = vcombine.low %v7183, %v7184
    %v7526 = vcombine.low %v7175, %v7207
    %v7528 = vunpack.c.l.s4 1966171168
    %v7529 = vunpack.c.0.s8 %v7528
    %v7530 = vlaneseq
    %v7531 = vshrl.u32 %v7530, 7
    %v7532 = vsub.s32 %v7529, %v7531
    %v7533 = vrot.slane %v7523, %v7532
    %v7535 = vunpack.c.l.s4 1966171168
    %v7536 = vunpack.c.0.s8 %v7535
    %v7537 = vlaneseq
    %v7538 = vshrl.u32 %v7537, 7
    %v7539 = vsub.s32 %v7536, %v7538
    %v7540 = vrot.slane %v7524, %v7539
    %v7542 = vunpack.c.l.s4 1966171168
    %v7543 = vunpack.c.0.s8 %v7542
    %v7544 = vlaneseq
    %v7545 = vshrl.u32 %v7544, 7
    %v7546 = vsub.s32 %v7543, %v7545
    %v7547 = vrot.slane %v7525, %v7546
    %v7549 = vunpack.c.l.s4 1966171168
    %v7550 = vunpack.c.0.s8 %v7549
    %v7551 = vlaneseq
    %v7552 = vshrl.u32 %v7551, 7
    %v7553 = vsub.s32 %v7550, %v7552
    %v7554 = vrot.slane %v7526, %v7553
    %v7555 = vcombine.low %v7533, %v7540
    %v7556 = vcombine.low %v7547, %v7554
    %v7558 = vunpack.c.l.s4 1966171168
    %v7559 = vunpack.c.0.s8 %v7558
    %v7560 = vlaneseq
    %v7561 = vshrl.u32 %v7560, 7
    %v7562 = vsub.s32 %v7559, %v7561
    %v7563 = vrot.slane %v7555, %v7562
    %v7565 = vunpack.c.l.s4 1966171168
    %v7566 = vunpack.c.0.s8 %v7565
    %v7567 = vlaneseq
    %v7568 = vshrl.u32 %v7567, 7
    %v7569 = vsub.s32 %v7566, %v7568
    %v7570 = vrot.slane %v7556, %v7569
    %v7571 = vcombine.low %v7563, %v7570
    %v7572 = vcombine.low %v7221, %v7222
    %v7573 = vcombine.low %v7223, %v7214
    %v7574 = vcombine.low %v7246, %v7260
    %v7575 = vcombine.low %v7261, %v7262
    %v7577 = vunpack.c.l.s4 1966171168
    %v7578 = vunpack.c.0.s8 %v7577
    %v7579 = vlaneseq
    %v7580 = vshrl.u32 %v7579, 7
    %v7581 = vsub.s32 %v7578, %v7580
    %v7582 = vrot.slane %v7572, %v7581
    %v7584 = vunpack.c.l.s4 1966171168
    %v7585 = vunpack.c.0.s8 %v7584
    %v7586 = vlaneseq
    %v7587 = vshrl.u32 %v7586, 7
    %v7588 = vsub.s32 %v7585, %v7587
    %v7589 = vrot.slane %v7573, %v7588
    %v7591 = vunpack.c.l.s4 1966171168
    %v7592 = vunpack.c.0.s8 %v7591
    %v7593 = vlaneseq
    %v7594 = vshrl.u32 %v7593, 7
    %v7595 = vsub.s32 %v7592, %v7594
    %v7596 = vrot.slane %v7574, %v7595
    %v7598 = vunpack.c.l.s4 1966171168
    %v7599 = vunpack.c.0.s8 %v7598
    %v7600 = vlaneseq
    %v7601 = vshrl.u32 %v7600, 7
    %v7602 = vsub.s32 %v7599, %v7601
    %v7603 = vrot.slane %v7575, %v7602
    %v7604 = vcombine.low %v7582, %v7589
    %v7605 = vcombine.low %v7596, %v7603
    %v7607 = vunpack.c.l.s4 1966171168
    %v7608 = vunpack.c.0.s8 %v7607
    %v7609 = vlaneseq
    %v7610 = vshrl.u32 %v7609, 7
    %v7611 = vsub.s32 %v7608, %v7610
    %v7612 = vrot.slane %v7604, %v7611
    %v7614 = vunpack.c.l.s4 1966171168
    %v7615 = vunpack.c.0.s8 %v7614
    %v7616 = vlaneseq
    %v7617 = vshrl.u32 %v7616, 7
    %v7618 = vsub.s32 %v7615, %v7617
    %v7619 = vrot.slane %v7605, %v7618
    %v7620 = vcombine.low %v7612, %v7619
    %v7621 = vcombine.low %v7253, %v7285
    %v7622 = vcombine.low %v7299, %v7300
    %v7623 = vcombine.low %v7301, %v7292
    %v7624 = vcombine.low %v7324, %v7338
    %v7626 = vunpack.c.l.s4 1966171168
    %v7627 = vunpack.c.0.s8 %v7626
    %v7628 = vlaneseq
    %v7629 = vshrl.u32 %v7628, 7
    %v7630 = vsub.s32 %v7627, %v7629
    %v7631 = vrot.slane %v7621, %v7630
    %v7633 = vunpack.c.l.s4 1966171168
    %v7634 = vunpack.c.0.s8 %v7633
    %v7635 = vlaneseq
    %v7636 = vshrl.u32 %v7635, 7
    %v7637 = vsub.s32 %v7634, %v7636
    %v7638 = vrot.slane %v7622, %v7637
    %v7640 = vunpack.c.l.s4 1966171168
    %v7641 = vunpack.c.0.s8 %v7640
    %v7642 = vlaneseq
    %v7643 = vshrl.u32 %v7642, 7
    %v7644 = vsub.s32 %v7641, %v7643
    %v7645 = vrot.slane %v7623, %v7644
    %v7647 = vunpack.c.l.s4 1966171168
    %v7648 = vunpack.c.0.s8 %v7647
    %v7649 = vlaneseq
    %v7650 = vshrl.u32 %v7649, 7
    %v7651 = vsub.s32 %v7648, %v7650
    %v7652 = vrot.slane %v7624, %v7651
    %v7653 = vcombine.low %v7631, %v7638
    %v7654 = vcombine.low %v7645, %v7652
    %v7656 = vunpack.c.l.s4 1966171168
    %v7657 = vunpack.c.0.s8 %v7656
    %v7658 = vlaneseq
    %v7659 = vshrl.u32 %v7658, 7
    %v7660 = vsub.s32 %v7657, %v7659
    %v7661 = vrot.slane %v7653, %v7660
    %v7663 = vunpack.c.l.s4 1966171168
    %v7664 = vunpack.c.0.s8 %v7663
    %v7665 = vlaneseq
    %v7666 = vshrl.u32 %v7665, 7
    %v7667 = vsub.s32 %v7664, %v7666
    %v7668 = vrot.slane %v7654, %v7667
    %v7669 = vcombine.low %v7661, %v7668
    %v7670 = vcombine.low %v7339, %v7340
    %v7671 = vcombine.low %v7331, %v7363
    %v7672 = vcombine.low %v7377, %v7378
    %v7673 = vcombine.low %v7379, %v7370
    %v7675 = vunpack.c.l.s4 1966171168
    %v7676 = vunpack.c.0.s8 %v7675
    %v7677 = vlaneseq
    %v7678 = vshrl.u32 %v7677, 7
    %v7679 = vsub.s32 %v7676, %v7678
    %v7680 = vrot.slane %v7670, %v7679
    %v7682 = vunpack.c.l.s4 1966171168
    %v7683 = vunpack.c.0.s8 %v7682
    %v7684 = vlaneseq
    %v7685 = vshrl.u32 %v7684, 7
    %v7686 = vsub.s32 %v7683, %v7685
    %v7687 = vrot.slane %v7671, %v7686
    %v7689 = vunpack.c.l.s4 1966171168
    %v7690 = vunpack.c.0.s8 %v7689
    %v7691 = vlaneseq
    %v7692 = vshrl.u32 %v7691, 7
    %v7693 = vsub.s32 %v7690, %v7692
    %v7694 = vrot.slane %v7672, %v7693
    %v7696 = vunpack.c.l.s4 1966171168
    %v7697 = vunpack.c.0.s8 %v7696
    %v7698 = vlaneseq
    %v7699 = vshrl.u32 %v7698, 7
    %v7700 = vsub.s32 %v7697, %v7699
    %v7701 = vrot.slane %v7673, %v7700
    %v7702 = vcombine.low %v7680, %v7687
    %v7703 = vcombine.low %v7694, %v7701
    %v7705 = vunpack.c.l.s4 1966171168
    %v7706 = vunpack.c.0.s8 %v7705
    %v7707 = vlaneseq
    %v7708 = vshrl.u32 %v7707, 7
    %v7709 = vsub.s32 %v7706, %v7708
    %v7710 = vrot.slane %v7702, %v7709
    %v7712 = vunpack.c.l.s4 1966171168
    %v7713 = vunpack.c.0.s8 %v7712
    %v7714 = vlaneseq
    %v7715 = vshrl.u32 %v7714, 7
    %v7716 = vsub.s32 %v7713, %v7715
    %v7717 = vrot.slane %v7703, %v7716
    %v7718 = vcombine.low %v7710, %v7717
    %v7719 = vcombine.low %v7402, %v7416
    %v7720 = vcombine.low %v7417, %v7418
    %v7721 = vcombine.low %v7409, %v7441
    %v7722 = vcombine.low %v7455, %v7456
    %v7724 = vunpack.c.l.s4 1966171168
    %v7725 = vunpack.c.0.s8 %v7724
    %v7726 = vlaneseq
    %v7727 = vshrl.u32 %v7726, 7
    %v7728 = vsub.s32 %v7725, %v7727
    %v7729 = vrot.slane %v7719, %v7728
    %v7731 = vunpack.c.l.s4 1966171168
    %v7732 = vunpack.c.0.s8 %v7731
    %v7733 = vlaneseq
    %v7734 = vshrl.u32 %v7733, 7
    %v7735 = vsub.s32 %v7732, %v7734
    %v7736 = vrot.slane %v7720, %v7735
    %v7738 = vunpack.c.l.s4 1966171168
    %v7739 = vunpack.c.0.s8 %v7738
    %v7740 = vlaneseq
    %v7741 = vshrl.u32 %v7740, 7
    %v7742 = vsub.s32 %v7739, %v7741
    %v7743 = vrot.slane %v7721, %v7742
    %v7745 = vunpack.c.l.s4 1966171168
    %v7746 = vunpack.c.0.s8 %v7745
    %v7747 = vlaneseq
    %v7748 = vshrl.u32 %v7747, 7
    %v7749 = vsub.s32 %v7746, %v7748
    %v7750 = vrot.slane %v7722, %v7749
    %v7751 = vcombine.low %v7729, %v7736
    %v7752 = vcombine.low %v7743, %v7750
    %v7754 = vunpack.c.l.s4 1966171168
    %v7755 = vunpack.c.0.s8 %v7754
    %v7756 = vlaneseq
    %v7757 = vshrl.u32 %v7756, 7
    %v7758 = vsub.s32 %v7755, %v7757
    %v7759 = vrot.slane %v7751, %v7758
    %v7761 = vunpack.c.l.s4 1966171168
    %v7762 = vunpack.c.0.s8 %v7761
    %v7763 = vlaneseq
    %v7764 = vshrl.u32 %v7763, 7
    %v7765 = vsub.s32 %v7762, %v7764
    %v7766 = vrot.slane %v7752, %v7765
    %v7767 = vcombine.low %v7759, %v7766
    %v7768 = vcombine.low %v7457, %v7448
    %v7770 = vunpack.c.l.s4 1966171168
    %v7771 = vunpack.c.0.s8 %v7770
    %v7772 = vlaneseq
    %v7773 = vshrl.u32 %v7772, 7
    %v7774 = vsub.s32 %v7771, %v7773
    %v7775 = vrot.slane %v7768, %v7774
    %v7777 = vunpack.c.l.s4 1966171168
    %v7778 = vunpack.c.0.s8 %v7777
    %v7779 = vlaneseq
    %v7780 = vshrl.u32 %v7779, 7
    %v7781 = vsub.s32 %v7778, %v7780
    %v7782 = vrot.slane %v7775, %v7781
    %vm7783 = vcmask 588800
    %v7784 = vsel %vm7783, %v7522, 0
    %v7786 = vsel %vm7783, %v7571, 0
    %v7788 = vsel %vm7783, %v7620, 0
    %v7790 = vsel %vm7783, %v7669, 0
    %v7792 = vsel %vm7783, %v7718, 0
    %v7794 = vsel %vm7783, %v7767, 0
    %v7796 = vsel %vm7783, %v7782, 0
    %7798 = vmatprep.subr.mxu0 0.0
    %7799 = vmatpush1.msra.mxu0 %v7458
    %7800 = vmatprep.subr.mxu0 0.0
    %7801 = vmatpush1.msra.mxu0 %v7459
    %7802 = vmatprep.subr.mxu0 0.0
    %7803 = vmatpush1.msra.mxu0 %v7460
    %7804 = vmatprep.subr.mxu0 0.0
    %7805 = vmatpush1.msra.mxu0 %v7461
    %7806 = vmatprep.subr.mxu0 0.0
    %7807 = vmatpush1.msra.mxu0 %v7462
    %7808 = vmatprep.subr.mxu0 0.0
    %7809 = vmatpush1.msra.mxu0 %v7463
    %7810 = vmatprep.subr.mxu0 0.0
    %7811 = vmatpush1.msra.mxu0 %v7464
    %7812 = vmatprep.subr.mxu0 0.0
    %7813 = vmatpush1.msra.mxu0 %v7465
    %7814 = vmatprep.subr.mxu0 0.0
    %7815 = vmatpush1.msra.mxu0 %v7466
    %7816 = vmatprep.subr.mxu0 0.0
    %7817 = vmatpush1.msra.mxu0 0.0
    %7818 = vmatprep.subr.mxu0 0.0
    %7819 = vmatpush1.msra.mxu0 0.0
    %7820 = vmatprep.subr.mxu0 0.0
    %7821 = vmatpush1.msra.mxu0 0.0
    %7822 = vmatprep.subr.mxu0 0.0
    %7823 = vmatpush1.msra.mxu0 0.0
    %7824 = vmatprep.subr.mxu0 0.0
    %7825 = vmatpush1.msra.mxu0 0.0
    %7826 = vmatprep.subr.mxu0 0.0
    %7827 = vmatpush1.msra.mxu0 0.0
    %7828 = vmatprep.subr.mxu0 0.0
    %7829 = vmatpush1.msra.mxu0 0.0
    %7830 = vmatprep.subr.mxu0 0.0
    %7831 = vmatpush1.msra.mxu0 0.0
    %7832 = vmatprep.subr.mxu0 0.0
    %7833 = vmatpush1.msra.mxu0 0.0
    %7834 = vmatprep.subr.mxu0 0.0
    %7835 = vmatpush1.msra.mxu0 0.0
    %7836 = vmatprep.subr.mxu0 0.0
    %7837 = vmatpush1.msra.mxu0 0.0
    %7838 = vmatprep.subr.mxu0 0.0
    %7839 = vmatpush1.msra.mxu0 0.0
    %7840 = vmatprep.subr.mxu0 0.0
    %7841 = vmatpush1.msra.mxu0 0.0
    %7842 = vmatprep.subr.mxu0 0.0
    %7843 = vmatpush1.msra.mxu0 0.0
    %7844 = vmatprep.subr.mxu0 0.0
    %7845 = vmatpush1.msra.mxu0 0.0
    %7846 = vmatprep.subr.mxu0 0.0
    %7847 = vmatpush1.msra.mxu0 0.0
    %7848 = vmatprep.subr.mxu0 0.0
    %7849 = vmatpush1.msra.mxu0 0.0
    %7850 = vmatprep.subr.mxu0 0.0
    %7851 = vmatpush1.msra.mxu0 0.0
    %7852 = vmatprep.subr.mxu0 0.0
    %7853 = vmatpush1.msra.mxu0 0.0
    %7854 = vmatprep.subr.mxu0 0.0
    %7855 = vmatpush1.msra.mxu0 0.0
    %7856 = vmatprep.subr.mxu0 0.0
    %7857 = vmatpush1.msra.mxu0 0.0
    %7858 = vmatprep.subr.mxu0 0.0
    %7859 = vmatpush1.msra.mxu0 0.0
    %7860 = vmatprep.subr.mxu0 0.0
    %7861 = vmatpush1.msra.mxu0 0.0
    %7862 = vmatprep.mubr.f32.mxu0 0.0
    %7863 = vmatmul.mubr.f32.gmra.mrb[0].mxu0 %v7784
    %v7864 = vpop.f32.mrb[0].mxu0
    %v7865 = vadd.f32 %v7472, %v7864
    %v7866 = vpop.f32.mrb[0].mxu0
    %7867 = vmatprep.mubr.f32.mxu0 0.0
    %7868 = vmatmul.mubr.f32.gmra.mrb[0].mxu0 %v7786
    %v7869 = vpop.f32.mrb[0].mxu0
    %v7870 = vadd.f32 %v7472, %v7869
    %v7871 = vpop.f32.mrb[0].mxu0
    %7872 = vmatprep.mubr.f32.mxu0 0.0
    %7873 = vmatmul.mubr.f32.gmra.mrb[0].mxu0 %v7788
    %v7874 = vpop.f32.mrb[0].mxu0
    %v7875 = vadd.f32 %v7472, %v7874
    %v7876 = vpop.f32.mrb[0].mxu0
    %7877 = vmatprep.mubr.f32.mxu0 0.0
    %7878 = vmatmul.mubr.f32.gmra.mrb[0].mxu0 %v7790
    %v7879 = vpop.f32.mrb[0].mxu0
    %v7880 = vadd.f32 %v7472, %v7879
    %v7881 = vpop.f32.mrb[0].mxu0
    %7882 = vmatprep.mubr.f32.mxu0 0.0
    %7883 = vmatmul.mubr.f32.gmra.mrb[0].mxu0 %v7792
    %v7884 = vpop.f32.mrb[0].mxu0
    %v7885 = vadd.f32 %v7472, %v7884
    %v7886 = vpop.f32.mrb[0].mxu0
    %7887 = vmatprep.mubr.f32.mxu0 0.0
    %7888 = vmatmul.mubr.f32.gmra.mrb[0].mxu0 %v7794
    %v7889 = vpop.f32.mrb[0].mxu0
    %v7890 = vadd.f32 %v7472, %v7889
    %v7891 = vpop.f32.mrb[0].mxu0
    %7892 = vmatprep.mubr.f32.mxu0 0.0
    %7893 = vmatmul.mubr.f32.gmra.mrb[0].mxu0 %v7796
    %v7894 = vpop.f32.mrb[0].mxu0
    %v7895 = vpop.f32.mrb[0].mxu0
    %7896 = vdwg.mxu0
    %v7897 = vmax.f32 %v7865, 0.0
    %v7898 = vmax.f32 %v7870, 0.0
    %v7899 = vmax.f32 %v7875, 0.0
    %v7900 = vmax.f32 %v7880, 0.0
    %v7901 = vmax.f32 %v7885, 0.0
    %v7902 = vmax.f32 %v7890, 0.0
    %v7909 = vcombine.high %v7897, %v7897
    %v7911 = vunpack.c.l.s4 1966171168
    %v7912 = vunpack.c.0.s8 %v7911
    %v7913 = vlaneseq
    %v7914 = vshrl.u32 %v7913, 7
    %v7915 = vsub.s32 %v7912, %v7914
    %v7916 = vrot.slane %v7897, %v7915
    %v7918 = vunpack.c.l.s4 1966171168
    %v7919 = vunpack.c.0.s8 %v7918
    %v7920 = vlaneseq
    %v7921 = vshrl.u32 %v7920, 7
    %v7922 = vsub.s32 %v7919, %v7921
    %v7923 = vrot.slane %v7909, %v7922
    %v7924 = vcombine.high %v7916, %v7916
    %v7925 = vcombine.high %v7923, %v7923
    %v7927 = vunpack.c.l.s4 1966171168
    %v7928 = vunpack.c.0.s8 %v7927
    %v7929 = vlaneseq
    %v7930 = vshrl.u32 %v7929, 7
    %v7931 = vsub.s32 %v7928, %v7930
    %v7932 = vrot.slane %v7916, %v7931
    %v7934 = vunpack.c.l.s4 1966171168
    %v7935 = vunpack.c.0.s8 %v7934
    %v7936 = vlaneseq
    %v7937 = vshrl.u32 %v7936, 7
    %v7938 = vsub.s32 %v7935, %v7937
    %v7939 = vrot.slane %v7923, %v7938
    %v7941 = vunpack.c.l.s4 1966171168
    %v7942 = vunpack.c.0.s8 %v7941
    %v7943 = vlaneseq
    %v7944 = vshrl.u32 %v7943, 7
    %v7945 = vsub.s32 %v7942, %v7944
    %v7946 = vrot.slane %v7924, %v7945
    %v7948 = vunpack.c.l.s4 1966171168
    %v7949 = vunpack.c.0.s8 %v7948
    %v7950 = vlaneseq
    %v7951 = vshrl.u32 %v7950, 7
    %v7952 = vsub.s32 %v7949, %v7951
    %v7953 = vrot.slane %v7925, %v7952
    %v7954 = vcombine.high %v7932, %v7932
    %v7955 = vcombine.high %v7939, %v7939
    %v7956 = vcombine.high %v7946, %v7946
    %v7957 = vcombine.high %v7953, %v7953
    %v7958 = vcombine.high %v7898, %v7898
    %v7960 = vunpack.c.l.s4 1966171168
    %v7961 = vunpack.c.0.s8 %v7960
    %v7962 = vlaneseq
    %v7963 = vshrl.u32 %v7962, 7
    %v7964 = vsub.s32 %v7961, %v7963
    %v7965 = vrot.slane %v7898, %v7964
    %v7967 = vunpack.c.l.s4 1966171168
    %v7968 = vunpack.c.0.s8 %v7967
    %v7969 = vlaneseq
    %v7970 = vshrl.u32 %v7969, 7
    %v7971 = vsub.s32 %v7968, %v7970
    %v7972 = vrot.slane %v7958, %v7971
    %v7973 = vcombine.high %v7965, %v7965
    %v7974 = vcombine.high %v7972, %v7972
    %v7976 = vunpack.c.l.s4 1966171168
    %v7977 = vunpack.c.0.s8 %v7976
    %v7978 = vlaneseq
    %v7979 = vshrl.u32 %v7978, 7
    %v7980 = vsub.s32 %v7977, %v7979
    %v7981 = vrot.slane %v7965, %v7980
    %v7983 = vunpack.c.l.s4 1966171168
    %v7984 = vunpack.c.0.s8 %v7983
    %v7985 = vlaneseq
    %v7986 = vshrl.u32 %v7985, 7
    %v7987 = vsub.s32 %v7984, %v7986
    %v7988 = vrot.slane %v7972, %v7987
    %v7990 = vunpack.c.l.s4 1966171168
    %v7991 = vunpack.c.0.s8 %v7990
    %v7992 = vlaneseq
    %v7993 = vshrl.u32 %v7992, 7
    %v7994 = vsub.s32 %v7991, %v7993
    %v7995 = vrot.slane %v7973, %v7994
    %v7997 = vunpack.c.l.s4 1966171168
    %v7998 = vunpack.c.0.s8 %v7997
    %v7999 = vlaneseq
    %v8000 = vshrl.u32 %v7999, 7
    %v8001 = vsub.s32 %v7998, %v8000
    %v8002 = vrot.slane %v7974, %v8001
    %v8003 = vcombine.high %v7981, %v7981
    %v8004 = vcombine.high %v7995, %v7995
    %v8005 = vcombine.high %v8002, %v8002
    %v8007 = vunpack.c.l.s4 1966171168
    %v8008 = vunpack.c.0.s8 %v8007
    %v8009 = vlaneseq
    %v8010 = vshrl.u32 %v8009, 7
    %v8011 = vsub.s32 %v8008, %v8010
    %v8012 = vrot.slane %v7899, %v8011
    %v8013 = vcombine.high %v8012, %v8012
    %v8015 = vunpack.c.l.s4 1966171168
    %v8016 = vunpack.c.0.s8 %v8015
    %v8017 = vlaneseq
    %v8018 = vshrl.u32 %v8017, 7
    %v8019 = vsub.s32 %v8016, %v8018
    %v8020 = vrot.slane %v8012, %v8019
    %v8022 = vunpack.c.l.s4 1966171168
    %v8023 = vunpack.c.0.s8 %v8022
    %v8024 = vlaneseq
    %v8025 = vshrl.u32 %v8024, 7
    %v8026 = vsub.s32 %v8023, %v8025
    %v8027 = vrot.slane %v8013, %v8026
    %v8028 = vcombine.high %v8020, %v8020
    %v8029 = vcombine.high %v7900, %v7900
    %v8031 = vunpack.c.l.s4 1966171168
    %v8032 = vunpack.c.0.s8 %v8031
    %v8033 = vlaneseq
    %v8034 = vshrl.u32 %v8033, 7
    %v8035 = vsub.s32 %v8032, %v8034
    %v8036 = vrot.slane %v7900, %v8035
    %v8038 = vunpack.c.l.s4 1966171168
    %v8039 = vunpack.c.0.s8 %v8038
    %v8040 = vlaneseq
    %v8041 = vshrl.u32 %v8040, 7
    %v8042 = vsub.s32 %v8039, %v8041
    %v8043 = vrot.slane %v8029, %v8042
    %v8044 = vcombine.high %v8036, %v8036
    %v8045 = vcombine.high %v8043, %v8043
    %v8047 = vunpack.c.l.s4 1966171168
    %v8048 = vunpack.c.0.s8 %v8047
    %v8049 = vlaneseq
    %v8050 = vshrl.u32 %v8049, 7
    %v8051 = vsub.s32 %v8048, %v8050
    %v8052 = vrot.slane %v8036, %v8051
    %v8054 = vunpack.c.l.s4 1966171168
    %v8055 = vunpack.c.0.s8 %v8054
    %v8056 = vlaneseq
    %v8057 = vshrl.u32 %v8056, 7
    %v8058 = vsub.s32 %v8055, %v8057
    %v8059 = vrot.slane %v8043, %v8058
    %v8061 = vunpack.c.l.s4 1966171168
    %v8062 = vunpack.c.0.s8 %v8061
    %v8063 = vlaneseq
    %v8064 = vshrl.u32 %v8063, 7
    %v8065 = vsub.s32 %v8062, %v8064
    %v8066 = vrot.slane %v8044, %v8065
    %v8068 = vunpack.c.l.s4 1966171168
    %v8069 = vunpack.c.0.s8 %v8068
    %v8070 = vlaneseq
    %v8071 = vshrl.u32 %v8070, 7
    %v8072 = vsub.s32 %v8069, %v8071
    %v8073 = vrot.slane %v8045, %v8072
    %v8074 = vcombine.high %v8052, %v8052
    %v8075 = vcombine.high %v8059, %v8059
    %v8076 = vcombine.high %v8066, %v8066
    %v8077 = vcombine.high %v8073, %v8073
    %v8078 = vcombine.high %v7901, %v7901
    %v8080 = vunpack.c.l.s4 1966171168
    %v8081 = vunpack.c.0.s8 %v8080
    %v8082 = vlaneseq
    %v8083 = vshrl.u32 %v8082, 7
    %v8084 = vsub.s32 %v8081, %v8083
    %v8085 = vrot.slane %v7901, %v8084
    %v8087 = vunpack.c.l.s4 1966171168
    %v8088 = vunpack.c.0.s8 %v8087
    %v8089 = vlaneseq
    %v8090 = vshrl.u32 %v8089, 7
    %v8091 = vsub.s32 %v8088, %v8090
    %v8092 = vrot.slane %v8078, %v8091
    %v8093 = vcombine.high %v8085, %v8085
    %v8094 = vcombine.high %v8092, %v8092
    %v8096 = vunpack.c.l.s4 1966171168
    %v8097 = vunpack.c.0.s8 %v8096
    %v8098 = vlaneseq
    %v8099 = vshrl.u32 %v8098, 7
    %v8100 = vsub.s32 %v8097, %v8099
    %v8101 = vrot.slane %v8085, %v8100
    %v8103 = vunpack.c.l.s4 1966171168
    %v8104 = vunpack.c.0.s8 %v8103
    %v8105 = vlaneseq
    %v8106 = vshrl.u32 %v8105, 7
    %v8107 = vsub.s32 %v8104, %v8106
    %v8108 = vrot.slane %v8092, %v8107
    %v8110 = vunpack.c.l.s4 1966171168
    %v8111 = vunpack.c.0.s8 %v8110
    %v8112 = vlaneseq
    %v8113 = vshrl.u32 %v8112, 7
    %v8114 = vsub.s32 %v8111, %v8113
    %v8115 = vrot.slane %v8093, %v8114
    %v8117 = vunpack.c.l.s4 1966171168
    %v8118 = vunpack.c.0.s8 %v8117
    %v8119 = vlaneseq
    %v8120 = vshrl.u32 %v8119, 7
    %v8121 = vsub.s32 %v8118, %v8120
    %v8122 = vrot.slane %v8094, %v8121
    %v8123 = vcombine.high %v8108, %v8108
    %v8124 = vcombine.high %v8115, %v8115
    %v8126 = vunpack.c.l.s4 1966171168
    %v8127 = vunpack.c.0.s8 %v8126
    %v8128 = vlaneseq
    %v8129 = vshrl.u32 %v8128, 7
    %v8130 = vsub.s32 %v8127, %v8129
    %v8131 = vrot.slane %v7902, %v8130
    %v8132 = vcombine.high %v8131, %v8131
    %v8134 = vunpack.c.l.s4 1966171168
    %v8135 = vunpack.c.0.s8 %v8134
    %v8136 = vlaneseq
    %v8137 = vshrl.u32 %v8136, 7
    %v8138 = vsub.s32 %v8135, %v8137
    %v8139 = vrot.slane %v8131, %v8138
    %v8141 = vunpack.c.l.s4 1966171168
    %v8142 = vunpack.c.0.s8 %v8141
    %v8143 = vlaneseq
    %v8144 = vshrl.u32 %v8143, 7
    %v8145 = vsub.s32 %v8142, %v8144
    %v8146 = vrot.slane %v8132, %v8145
    %v8147 = vcombine.high %v8139, %v8139
    %v8148 = vcombine.high %v8146, %v8146
    %v8181 = vlaneseq
    %vm8182 = vcmp.ge.s32.totalorder %v8181, 0
    %vm8183 = vcmp.lt.s32.totalorder %v8181, 16
    %vm8184 = vmand %vm8182, %vm8183
    %v8185 = vsel %vm8184, %v7932, -inf
    %v8186 = vsel %vm8184, %v7953, -inf
    %v8187 = vmax.f32 %v8185, %v8186
    %v8188 = vsel %vm8184, %v7946, -inf
    %v8189 = vsel %vm8184, %v7955, -inf
    %v8190 = vmax.f32 %v8188, %v8189
    %v8191 = vsel %vm8184, %v7954, -inf
    %v8192 = vsel %vm8184, %v7957, -inf
    %v8193 = vmax.f32 %v8191, %v8192
    %v8194 = vsel %vm8184, %v7956, -inf
    %v8195 = vsel %vm8184, %v7981, -inf
    %v8196 = vmax.f32 %v8194, %v8195
    %v8197 = vsel %vm8184, %v8003, -inf
    %v8198 = vsel %vm8184, %v8005, -inf
    %v8199 = vmax.f32 %v8197, %v8198
    %v8200 = vsel %vm8184, %v8004, -inf
    %v8201 = vsel %vm8184, %v8020, -inf
    %v8202 = vmax.f32 %v8200, %v8201
    %v8203 = vsel %vm8184, %v7988, -inf
    %v8204 = vsel %vm8184, %v8027, -inf
    %v8205 = vmax.f32 %v8203, %v8204
    %v8206 = vsel %vm8184, %v8002, -inf
    %v8207 = vsel %vm8184, %v8028, -inf
    %v8208 = vmax.f32 %v8206, %v8207
    %v8209 = vsel %vm8184, %v8066, -inf
    %v8210 = vsel %vm8184, %v8075, -inf
    %v8211 = vmax.f32 %v8209, %v8210
    %v8212 = vsel %vm8184, %v8074, -inf
    %v8213 = vsel %vm8184, %v8077, -inf
    %v8214 = vmax.f32 %v8212, %v8213
    %v8215 = vsel %vm8184, %v8076, -inf
    %v8216 = vsel %vm8184, %v8101, -inf
    %v8217 = vmax.f32 %v8215, %v8216
    %v8218 = vsel %vm8184, %v8059, -inf
    %v8219 = vsel %vm8184, %v8115, -inf
    %v8220 = vmax.f32 %v8218, %v8219
    %v8221 = vsel %vm8184, %v8124, -inf
    %v8222 = vsel %vm8184, %v8139, -inf
    %v8223 = vmax.f32 %v8221, %v8222
    %v8224 = vsel %vm8184, %v8108, -inf
    %v8225 = vsel %vm8184, %v8146, -inf
    %v8226 = vmax.f32 %v8224, %v8225
    %v8227 = vsel %vm8184, %v8122, -inf
    %v8228 = vsel %vm8184, %v8147, -inf
    %v8229 = vmax.f32 %v8227, %v8228
    %v8230 = vsel %vm8184, %v8123, -inf
    %v8231 = vsel %vm8184, %v8148, -inf
    %v8232 = vmax.f32 %v8230, %v8231
    %v8249 = vcombine.low %v8187, %v8190
    %v8251 = vunpack.c.l.s4 1966171168
    %v8252 = vunpack.c.0.s8 %v8251
    %v8253 = vlaneseq
    %v8254 = vshrl.u32 %v8253, 7
    %v8255 = vsub.s32 %v8252, %v8254
    %v8256 = vrot.slane %v8249, %v8255
    %v8258 = vunpack.c.l.s4 1966171168
    %v8259 = vunpack.c.0.s8 %v8258
    %v8260 = vlaneseq
    %v8261 = vshrl.u32 %v8260, 7
    %v8262 = vsub.s32 %v8259, %v8261
    %v8263 = vrot.slane %v8256, %v8262
    %v8264 = vcombine.low %v8193, %v8196
    %v8266 = vunpack.c.l.s4 1966171168
    %v8267 = vunpack.c.0.s8 %v8266
    %v8268 = vlaneseq
    %v8269 = vshrl.u32 %v8268, 7
    %v8270 = vsub.s32 %v8267, %v8269
    %v8271 = vrot.slane %v8264, %v8270
    %v8273 = vunpack.c.l.s4 1966171168
    %v8274 = vunpack.c.0.s8 %v8273
    %v8275 = vlaneseq
    %v8276 = vshrl.u32 %v8275, 7
    %v8277 = vsub.s32 %v8274, %v8276
    %v8278 = vrot.slane %v8271, %v8277
    %v8279 = vcombine.low %v8199, %v8202
    %v8281 = vunpack.c.l.s4 1966171168
    %v8282 = vunpack.c.0.s8 %v8281
    %v8283 = vlaneseq
    %v8284 = vshrl.u32 %v8283, 7
    %v8285 = vsub.s32 %v8282, %v8284
    %v8286 = vrot.slane %v8279, %v8285
    %v8288 = vunpack.c.l.s4 1966171168
    %v8289 = vunpack.c.0.s8 %v8288
    %v8290 = vlaneseq
    %v8291 = vshrl.u32 %v8290, 7
    %v8292 = vsub.s32 %v8289, %v8291
    %v8293 = vrot.slane %v8286, %v8292
    %v8294 = vcombine.low %v8205, %v8208
    %v8296 = vunpack.c.l.s4 1966171168
    %v8297 = vunpack.c.0.s8 %v8296
    %v8298 = vlaneseq
    %v8299 = vshrl.u32 %v8298, 7
    %v8300 = vsub.s32 %v8297, %v8299
    %v8301 = vrot.slane %v8294, %v8300
    %v8303 = vunpack.c.l.s4 1966171168
    %v8304 = vunpack.c.0.s8 %v8303
    %v8305 = vlaneseq
    %v8306 = vshrl.u32 %v8305, 7
    %v8307 = vsub.s32 %v8304, %v8306
    %v8308 = vrot.slane %v8301, %v8307
    %v8309 = vcombine.low %v8211, %v8214
    %v8311 = vunpack.c.l.s4 1966171168
    %v8312 = vunpack.c.0.s8 %v8311
    %v8313 = vlaneseq
    %v8314 = vshrl.u32 %v8313, 7
    %v8315 = vsub.s32 %v8312, %v8314
    %v8316 = vrot.slane %v8309, %v8315
    %v8318 = vunpack.c.l.s4 1966171168
    %v8319 = vunpack.c.0.s8 %v8318
    %v8320 = vlaneseq
    %v8321 = vshrl.u32 %v8320, 7
    %v8322 = vsub.s32 %v8319, %v8321
    %v8323 = vrot.slane %v8316, %v8322
    %v8324 = vcombine.low %v8217, %v8220
    %v8326 = vunpack.c.l.s4 1966171168
    %v8327 = vunpack.c.0.s8 %v8326
    %v8328 = vlaneseq
    %v8329 = vshrl.u32 %v8328, 7
    %v8330 = vsub.s32 %v8327, %v8329
    %v8331 = vrot.slane %v8324, %v8330
    %v8333 = vunpack.c.l.s4 1966171168
    %v8334 = vunpack.c.0.s8 %v8333
    %v8335 = vlaneseq
    %v8336 = vshrl.u32 %v8335, 7
    %v8337 = vsub.s32 %v8334, %v8336
    %v8338 = vrot.slane %v8331, %v8337
    %v8339 = vcombine.low %v8223, %v8226
    %v8341 = vunpack.c.l.s4 1966171168
    %v8342 = vunpack.c.0.s8 %v8341
    %v8343 = vlaneseq
    %v8344 = vshrl.u32 %v8343, 7
    %v8345 = vsub.s32 %v8342, %v8344
    %v8346 = vrot.slane %v8339, %v8345
    %v8348 = vunpack.c.l.s4 1966171168
    %v8349 = vunpack.c.0.s8 %v8348
    %v8350 = vlaneseq
    %v8351 = vshrl.u32 %v8350, 7
    %v8352 = vsub.s32 %v8349, %v8351
    %v8353 = vrot.slane %v8346, %v8352
    %v8354 = vcombine.low %v8229, %v8232
    %v8356 = vunpack.c.l.s4 1966171168
    %v8357 = vunpack.c.0.s8 %v8356
    %v8358 = vlaneseq
    %v8359 = vshrl.u32 %v8358, 7
    %v8360 = vsub.s32 %v8357, %v8359
    %v8361 = vrot.slane %v8354, %v8360
    %v8363 = vunpack.c.l.s4 1966171168
    %v8364 = vunpack.c.0.s8 %v8363
    %v8365 = vlaneseq
    %v8366 = vshrl.u32 %v8365, 7
    %v8367 = vsub.s32 %v8364, %v8366
    %v8368 = vrot.slane %v8361, %v8367
    %vm8377 = vcmask 123904
    %v8378 = vsel %vm8377, %v8263, -inf
    %v8379 = vrot.slane %v8378, 4
    %v8380 = vmax.f32 %v8378, %v8379
    %v8381 = vrot.slane %v8380, 2
    %v8382 = vmax.f32 %v8380, %v8381
    %v8383 = vrot.slane %v8382, 1
    %v8384 = vmax.f32 %v8382, %v8383
    %v8385 = vsel %vm8377, %v8278, -inf
    %v8386 = vrot.slane %v8385, 4
    %v8387 = vmax.f32 %v8385, %v8386
    %v8388 = vrot.slane %v8387, 2
    %v8389 = vmax.f32 %v8387, %v8388
    %v8390 = vrot.slane %v8389, 1
    %v8391 = vmax.f32 %v8389, %v8390
    %v8392 = vsel %vm8377, %v8293, -inf
    %v8393 = vrot.slane %v8392, 4
    %v8394 = vmax.f32 %v8392, %v8393
    %v8395 = vrot.slane %v8394, 2
    %v8396 = vmax.f32 %v8394, %v8395
    %v8397 = vrot.slane %v8396, 1
    %v8398 = vmax.f32 %v8396, %v8397
    %v8399 = vsel %vm8377, %v8308, -inf
    %v8400 = vrot.slane %v8399, 4
    %v8401 = vmax.f32 %v8399, %v8400
    %v8402 = vrot.slane %v8401, 2
    %v8403 = vmax.f32 %v8401, %v8402
    %v8404 = vrot.slane %v8403, 1
    %v8405 = vmax.f32 %v8403, %v8404
    %v8406 = vsel %vm8377, %v8323, -inf
    %v8407 = vrot.slane %v8406, 4
    %v8408 = vmax.f32 %v8406, %v8407
    %v8409 = vrot.slane %v8408, 2
    %v8410 = vmax.f32 %v8408, %v8409
    %v8411 = vrot.slane %v8410, 1
    %v8412 = vmax.f32 %v8410, %v8411
    %v8413 = vsel %vm8377, %v8338, -inf
    %v8414 = vrot.slane %v8413, 4
    %v8415 = vmax.f32 %v8413, %v8414
    %v8416 = vrot.slane %v8415, 2
    %v8417 = vmax.f32 %v8415, %v8416
    %v8418 = vrot.slane %v8417, 1
    %v8419 = vmax.f32 %v8417, %v8418
    %v8420 = vsel %vm8377, %v8353, -inf
    %v8421 = vrot.slane %v8420, 4
    %v8422 = vmax.f32 %v8420, %v8421
    %v8423 = vrot.slane %v8422, 2
    %v8424 = vmax.f32 %v8422, %v8423
    %v8425 = vrot.slane %v8424, 1
    %v8426 = vmax.f32 %v8424, %v8425
    %v8427 = vsel %vm8377, %v8368, -inf
    %v8428 = vrot.slane %v8427, 4
    %v8429 = vmax.f32 %v8427, %v8428
    %v8430 = vrot.slane %v8429, 2
    %v8431 = vmax.f32 %v8429, %v8430
    %v8432 = vrot.slane %v8431, 1
    %v8433 = vmax.f32 %v8431, %v8432
    %vm8434 = vcmask 122880
    %8435 = vst.msk [vmem:[#allocation4] sm:$0x1] %vm8434, %v8384
    %8436 = vst.msk [vmem:[#allocation4 + $0x1] sm:$0x1] %vm8434, %v8412
    %8439 = vrot.lane.b32.xlu0 %v8391, 16
    %v8440 = vpop.permute.xlu0 %8439
    %8441 = vrot.lane.b32.xlu0 %v8419, 16
    %v8442 = vpop.permute.xlu0 %8441
    %vm8445 = vcmask 254080
    %8446 = vst.msk [vmem:[#allocation4] sm:$0x1] %vm8445, %v8440
    %8447 = vst.msk [vmem:[#allocation4 + $0x1] sm:$0x1] %vm8445, %v8442
    %8450 = vrot.lane.b32.xlu0 %v8398, 32
    %v8451 = vpop.permute.xlu0 %8450
    %8452 = vrot.lane.b32.xlu0 %v8426, 32
    %v8453 = vpop.permute.xlu0 %8452
    %vm8456 = vcmask 385280
    %8457 = vst.msk [vmem:[#allocation4] sm:$0x1] %vm8456, %v8451
    %8458 = vst.msk [vmem:[#allocation4 + $0x1] sm:$0x1] %vm8456, %v8453
    %8461 = vrot.lane.b32.xlu0 %v8405, 48
    %v8462 = vpop.permute.xlu0 %8461
    %8463 = vrot.lane.b32.xlu0 %v8433, 48
    %v8464 = vpop.permute.xlu0 %8463
    %vm8467 = vcmask 516480
    %8468 = vst.msk [vmem:[#allocation4] sm:$0x1] %vm8467, %v8462
    %8469 = vst.msk [vmem:[#allocation4 + $0x1] sm:$0x1] %vm8467, %v8464
    %v8470 = vld [vmem:[#allocation4] sm:$0x1]
    %v8471 = vld [vmem:[#allocation4 + $0x1] sm:$0x1]
    %v8472 = vld [vmem:[%s5] sm:$0xff]
    %v8473 = vld [vmem:[%s5 + $0x8] sm:$0xff]
    %v8474 = vld [vmem:[%s5 + $0x10] sm:$0xff]
    %v8475 = vld [vmem:[%s5 + $0x18] sm:$0xff]
    %v8476 = vld [vmem:[%s5 + $0x20] sm:$0xff]
    %v8477 = vld [vmem:[%s5 + $0x28] sm:$0xff]
    %v8478 = vld [vmem:[%s5 + $0x30] sm:$0xff]
    %v8479 = vld [vmem:[%s5 + $0x38] sm:$0xff]
    %v8480 = vld [vmem:[%s6] sm:$0x1]
    %v8482 = vlaneseq
    %v8483 = vshrl.u32 %v8482, 7
    %v8484 = vsub.s32 0, %v8483
    %v8485 = vrot.slane %v8480, %v8484
    %v8489 = vcombine.low %v8470, %v8471
    %v8491 = vunpack.c.l.s4 1966171168
    %v8492 = vunpack.c.0.s8 %v8491
    %v8493 = vlaneseq
    %v8494 = vshrl.u32 %v8493, 7
    %v8495 = vsub.s32 %v8492, %v8494
    %v8496 = vrot.slane %v8489, %v8495
    %v8498 = vunpack.c.l.s4 1966171168
    %v8499 = vunpack.c.0.s8 %v8498
    %v8500 = vlaneseq
    %v8501 = vshrl.u32 %v8500, 7
    %v8502 = vsub.s32 %v8499, %v8501
    %v8503 = vrot.slane %v8496, %v8502
    %vm8504 = vcmask 523264
    %v8505 = vsel %vm8504, %v8503, 0
    %8507 = vmatprep.subr.mxu0 0.0
    %8508 = vmatpush1.msra.mxu0 %v8472
    %8509 = vmatprep.subr.mxu0 0.0
    %8510 = vmatpush1.msra.mxu0 %v8473
    %8511 = vmatprep.subr.mxu0 0.0
    %8512 = vmatpush1.msra.mxu0 %v8474
    %8513 = vmatprep.subr.mxu0 0.0
    %8514 = vmatpush1.msra.mxu0 %v8475
    %8515 = vmatprep.subr.mxu0 0.0
    %8516 = vmatpush1.msra.mxu0 %v8476
    %8517 = vmatprep.subr.mxu0 0.0
    %8518 = vmatpush1.msra.mxu0 %v8477
    %8519 = vmatprep.subr.mxu0 0.0
    %8520 = vmatpush1.msra.mxu0 %v8478
    %8521 = vmatprep.subr.mxu0 0.0
    %8522 = vmatpush1.msra.mxu0 %v8479
    %8523 = vmatprep.subr.mxu0 0.0
    %8524 = vmatpush1.msra.mxu0 0.0
    %8525 = vmatprep.subr.mxu0 0.0
    %8526 = vmatpush1.msra.mxu0 0.0
    %8527 = vmatprep.subr.mxu0 0.0
    %8528 = vmatpush1.msra.mxu0 0.0
    %8529 = vmatprep.subr.mxu0 0.0
    %8530 = vmatpush1.msra.mxu0 0.0
    %8531 = vmatprep.subr.mxu0 0.0
    %8532 = vmatpush1.msra.mxu0 0.0
    %8533 = vmatprep.subr.mxu0 0.0
    %8534 = vmatpush1.msra.mxu0 0.0
    %8535 = vmatprep.subr.mxu0 0.0
    %8536 = vmatpush1.msra.mxu0 0.0
    %8537 = vmatprep.subr.mxu0 0.0
    %8538 = vmatpush1.msra.mxu0 0.0
    %8539 = vmatprep.subr.mxu0 0.0
    %8540 = vmatpush1.msra.mxu0 0.0
    %8541 = vmatprep.subr.mxu0 0.0
    %8542 = vmatpush1.msra.mxu0 0.0
    %8543 = vmatprep.subr.mxu0 0.0
    %8544 = vmatpush1.msra.mxu0 0.0
    %8545 = vmatprep.subr.mxu0 0.0
    %8546 = vmatpush1.msra.mxu0 0.0
    %8547 = vmatprep.subr.mxu0 0.0
    %8548 = vmatpush1.msra.mxu0 0.0
    %8549 = vmatprep.subr.mxu0 0.0
    %8550 = vmatpush1.msra.mxu0 0.0
    %8551 = vmatprep.subr.mxu0 0.0
    %8552 = vmatpush1.msra.mxu0 0.0
    %8553 = vmatprep.subr.mxu0 0.0
    %8554 = vmatpush1.msra.mxu0 0.0
    %8555 = vmatprep.subr.mxu0 0.0
    %8556 = vmatpush1.msra.mxu0 0.0
    %8557 = vmatprep.subr.mxu0 0.0
    %8558 = vmatpush1.msra.mxu0 0.0
    %8559 = vmatprep.subr.mxu0 0.0
    %8560 = vmatpush1.msra.mxu0 0.0
    %8561 = vmatprep.subr.mxu0 0.0
    %8562 = vmatpush1.msra.mxu0 0.0
    %8563 = vmatprep.subr.mxu0 0.0
    %8564 = vmatpush1.msra.mxu0 0.0
    %8565 = vmatprep.subr.mxu0 0.0
    %8566 = vmatpush1.msra.mxu0 0.0
    %8567 = vmatprep.subr.mxu0 0.0
    %8568 = vmatpush1.msra.mxu0 0.0
    %8569 = vmatprep.subr.mxu0 0.0
    %8570 = vmatpush1.msra.mxu0 0.0
    %8571 = vmatprep.mubr.f32.mxu0 0.0
    %8572 = vmatmul.mubr.f32.gmra.mrb[0].mxu0 %v8505
    %v8573 = vpop.f32.mrb[0].mxu0
    %v8574 = vadd.f32 %v8485, %v8573
    %v8575 = vpop.f32.mrb[0].mxu0
    %8576 = vdwg.mxu0
    %v8577 = vmax.f32 %v8574, 0.0
    %v8578 = vld [vmem:[%s7] sm:$0xff]
    %v8579 = vld [vmem:[%s7 + $0x8] sm:$0xff]
    %v8580 = vld [vmem:[%s7 + $0x10] sm:$0xff]
    %v8581 = vld [vmem:[%s7 + $0x18] sm:$0xff]
    %v8582 = vld [vmem:[%s8] sm:$0x1]
    %v8584 = vlaneseq
    %v8585 = vshrl.u32 %v8584, 7
    %v8586 = vsub.s32 0, %v8585
    %v8587 = vrot.slane %v8582, %v8586
    %vm8589 = vcmask 261120
    %v8591 = vsel %vm8589, %v8577, 0
    %8593 = vmatprep.subr.mxu0 0.0
    %8594 = vmatpush1.msra.mxu0 %v8578
    %8595 = vmatprep.subr.mxu0 0.0
    %8596 = vmatpush1.msra.mxu0 %v8579
    %8597 = vmatprep.subr.mxu0 0.0
    %8598 = vmatpush1.msra.mxu0 %v8580
    %8599 = vmatprep.subr.mxu0 0.0
    %8600 = vmatpush1.msra.mxu0 %v8581
    %8601 = vmatprep.subr.mxu0 0.0
    %8602 = vmatpush1.msra.mxu0 0.0
    %8603 = vmatprep.subr.mxu0 0.0
    %8604 = vmatpush1.msra.mxu0 0.0
    %8605 = vmatprep.subr.mxu0 0.0
    %8606 = vmatpush1.msra.mxu0 0.0
    %8607 = vmatprep.subr.mxu0 0.0
    %8608 = vmatpush1.msra.mxu0 0.0
    %8609 = vmatprep.subr.mxu0 0.0
    %8610 = vmatpush1.msra.mxu0 0.0
    %8611 = vmatprep.subr.mxu0 0.0
    %8612 = vmatpush1.msra.mxu0 0.0
    %8613 = vmatprep.subr.mxu0 0.0
    %8614 = vmatpush1.msra.mxu0 0.0
    %8615 = vmatprep.subr.mxu0 0.0
    %8616 = vmatpush1.msra.mxu0 0.0
    %8617 = vmatprep.subr.mxu0 0.0
    %8618 = vmatpush1.msra.mxu0 0.0
    %8619 = vmatprep.subr.mxu0 0.0
    %8620 = vmatpush1.msra.mxu0 0.0
    %8621 = vmatprep.subr.mxu0 0.0
    %8622 = vmatpush1.msra.mxu0 0.0
    %8623 = vmatprep.subr.mxu0 0.0
    %8624 = vmatpush1.msra.mxu0 0.0
    %8625 = vmatprep.subr.mxu0 0.0
    %8626 = vmatpush1.msra.mxu0 0.0
    %8627 = vmatprep.subr.mxu0 0.0
    %8628 = vmatpush1.msra.mxu0 0.0
    %8629 = vmatprep.subr.mxu0 0.0
    %8630 = vmatpush1.msra.mxu0 0.0
    %8631 = vmatprep.subr.mxu0 0.0
    %8632 = vmatpush1.msra.mxu0 0.0
    %8633 = vmatprep.subr.mxu0 0.0
    %8634 = vmatpush1.msra.mxu0 0.0
    %8635 = vmatprep.subr.mxu0 0.0
    %8636 = vmatpush1.msra.mxu0 0.0
    %8637 = vmatprep.subr.mxu0 0.0
    %8638 = vmatpush1.msra.mxu0 0.0
    %8639 = vmatprep.subr.mxu0 0.0
    %8640 = vmatpush1.msra.mxu0 0.0
    %8641 = vmatprep.subr.mxu0 0.0
    %8642 = vmatpush1.msra.mxu0 0.0
    %8643 = vmatprep.subr.mxu0 0.0
    %8644 = vmatpush1.msra.mxu0 0.0
    %8645 = vmatprep.subr.mxu0 0.0
    %8646 = vmatpush1.msra.mxu0 0.0
    %8647 = vmatprep.subr.mxu0 0.0
    %8648 = vmatpush1.msra.mxu0 0.0
    %8649 = vmatprep.subr.mxu0 0.0
    %8650 = vmatpush1.msra.mxu0 0.0
    %8651 = vmatprep.subr.mxu0 0.0
    %8652 = vmatpush1.msra.mxu0 0.0
    %8653 = vmatprep.subr.mxu0 0.0
    %8654 = vmatpush1.msra.mxu0 0.0
    %8655 = vmatprep.subr.mxu0 0.0
    %8656 = vmatpush1.msra.mxu0 0.0
    %8657 = vmatprep.mubr.f32.mxu0 0.0
    %8658 = vmatmul.mubr.f32.gmra.mrb[0].mxu0 %v8591
    %v8659 = vpop.f32.mrb[0].mxu0
    %v8660 = vadd.f32 %v8587, %v8659
    %v8661 = vpop.f32.mrb[0].mxu0
    %8662 = vdwg.mxu0
    %vm8663 = vcmask 74752
    %8664 = vst.msk [vmem:[#allocation5] sm:$0x3] %vm8663, %v8660
    // Predicated region
    $region38: #{tpu_custom_call.1} parent=1 // pred_check
      _
    $region39: #{tpu_custom_call.1} parent=1 // pred_check_branch
      %8666 = sbr.rel (0) target = $region41
    $region40: #{tpu_custom_call.1} parent=1 // pred_region
      %s8668 = ssub.s32 32, 32
      %8669 = vsyncadd [#allocation6], %s8668
      %s8671 = sshll.u32 [#allocation5], 4
      %s8672 = int_to_ptr.vmem [resolvable:$true] %s8671
      %8674 = dma.vmem_to_hbm [thread:$0]  %s8672, 32, %s9, [#allocation6]
    $region41: #{tpu_custom_call.1} parent=1 // pred_fallthru
      _
    // Predicated region
    $region42: #{tpu_custom_call.1} parent=1 // pred_check
      _
    $region43: #{tpu_custom_call.1} parent=1 // pred_check_branch
      %8676 = sbr.rel (0) target = $region45
    $region44: #{tpu_custom_call.1} parent=1 // pred_region
      %8677 = dma.done [#allocation6], 32
    $region45: #{tpu_custom_call.1} parent=1 // pred_fallthru
      _
    %8678 = vsyncpa [#allocation6], 1

</llo_original>
